<compile_context>
chip_gen: v5e
topology: v5e:2x2
jax: 0.10.0
libtpu: 0.0.40
codegen_flags: <defaults>
</compile_context>

<pallas_src>
import functools

import jax
import jax.numpy as jnp
from jax import lax
from jax.experimental import pallas as pl
from jax.experimental.pallas import tpu as pltpu


def _round_up(x, m):
    return (x + m - 1) // m * m


def basic_block_kernel(xf_ref, w1_ref, s1_ref, b1_ref, w2_ref, s2_ref, b2_ref,
                       o_ref, mid_ref, *, H, W, base):
    # xf_ref : (1, Lp, CP)  compute-dtype, spatially padded + flattened input
    # w*_ref : (9, CP, CP)  conv weights, tap-major (kh*3+kw)
    # s*/b*  : (1, CP)      folded BN scale / shift (f32)
    # o_ref  : (1, M, CP)   f32 output slab (M = H*(W+2), pad cols included)
    # mid_ref: (Lp, CP)     scratch, same flat layout as xf
    Wp = W + 2
    M = H * Wp
    CP = o_ref.shape[-1]
    Lp = mid_ref.shape[0]

    # Interior-column mask: zeroes the pad-column outputs of conv1 so they act
    # as conv2's zero padding (replaces the old full-scratch memset).
    col = lax.broadcasted_iota(jnp.int32, (M, 1), 0) % Wp
    interior = jnp.logical_and(col >= 1, col <= W)

    # Zero only the thin halo frame of the scratch (~4*Wp rows); the interior
    # is fully overwritten below every grid step.
    mid_ref[0:base, :] = jnp.zeros((base, CP), mid_ref.dtype)
    mid_ref[base + M:Lp, :] = jnp.zeros((Lp - base - M, CP), mid_ref.dtype)

    def conv3x3(src_ref, w_ref, src_is_3d):
        acc = jnp.zeros((M, CP), jnp.float32)
        for kh in range(3):
            for kw in range(3):
                lo = base + (kh - 1) * Wp + (kw - 1)   # static row offset
                if src_is_3d:
                    patch = src_ref[0, lo:lo + M, :]
                else:
                    patch = src_ref[lo:lo + M, :]
                acc = acc + jnp.dot(patch, w_ref[kh * 3 + kw],
                                    preferred_element_type=jnp.float32)
        return acc

    # conv1 -> bn1 -> relu (pad columns forced to zero) -> stage into scratch.
    acc1 = conv3x3(xf_ref, w1_ref, True)
    y1 = acc1 * s1_ref[...] + b1_ref[...]
    out1 = jnp.where(interior, jnp.maximum(y1, 0.0), 0.0)
    mid_ref[base:base + M, :] = out1.astype(mid_ref.dtype)

    # conv2 -> bn2 -> + residual (interior of xf) -> relu.
    acc2 = conv3x3(mid_ref, w2_ref, False)
    y2 = acc2 * s2_ref[...] + b2_ref[...]
    res = xf_ref[0, base:base + M, :].astype(jnp.float32)
    o_ref[0] = jnp.maximum(y2 + res, 0.0)


def basic_block_forward(x_nchw, w1, w2, bn1_params, bn2_params, eps=1e-5,
                        compute_dtype=jnp.bfloat16):
    """BasicBlock forward. stride=1, downsample=None, depthwise_conv=False.

    x_nchw: (N, C, H, W) float32
    w1    : (P, C, 3, 3)  conv1 weight (PyTorch layout)
    w2    : (P, P, 3, 3)  conv2 weight
    bn*_params: (gamma, beta, running_mean, running_var), each (P,)
    """
    N, C, H, W = x_nchw.shape
    P = w1.shape[0]
    assert C == P, "identity residual requires inplanes == planes"

    CP = max(_round_up(C, 128), 128)       # lane-dense channel dim
    Wp = W + 2
    M = H * Wp                             # output slab rows per image
    ALIGN = 16                             # bf16 sublane pack = 16 rows/vreg
    A = (-2 * Wp) % ALIGN                  # front slack so interior is aligned
    base = A + 2 * Wp                      # flat row where the interior starts
    Lp = _round_up(base + M + 2 * Wp, ALIGN)

    # NCHW -> NHWC, pad channels to CP, 1-pixel spatial border, flatten
    # spatial, then pad the flat axis with halo/alignment slack rows.
    x = jnp.transpose(x_nchw, (0, 2, 3, 1)).astype(compute_dtype)
    x = jnp.pad(x, ((0, 0), (0, 0), (0, 0), (0, CP - C)))
    xp = jnp.pad(x, ((0, 0), (1, 1), (1, 1), (0, 0)))            # (N,H+2,Wp,CP)
    xf = xp.reshape(N, (H + 2) * Wp, CP)
    front = base - Wp
    back = Lp - front - (H + 2) * Wp
    xf = jnp.pad(xf, ((0, 0), (front, back), (0, 0)))            # (N, Lp, CP)

    def prep_w(w, cin):
        wk = jnp.transpose(w, (2, 3, 1, 0)).reshape(9, cin, P)   # tap-major
        wk = jnp.pad(wk, ((0, 0), (0, CP - cin), (0, CP - P)))
        return wk.astype(compute_dtype)

    w1_k = prep_w(w1, C)
    w2_k = prep_w(w2, P)

    def fold_bn(params):
        g, b, m, v = params
        scale = g / jnp.sqrt(v + eps)
        shift = b - m * scale
        scale = jnp.pad(scale, (0, CP - P)).reshape(1, CP).astype(jnp.float32)
        shift = jnp.pad(shift, (0, CP - P)).reshape(1, CP).astype(jnp.float32)
        return scale, shift

    s1, b1 = fold_bn(bn1_params)
    s2, b2 = fold_bn(bn2_params)

    kernel = functools.partial(basic_block_kernel, H=H, W=W, base=base)

    out_flat = pl.pallas_call(
        kernel,
        out_shape=jax.ShapeDtypeStruct((N, M, CP), jnp.float32),
        grid=(N,),
        in_specs=[
            pl.BlockSpec((1, Lp, CP), lambda n: (n, 0, 0)),
            pl.BlockSpec((9, CP, CP), lambda n: (0, 0, 0)),
            pl.BlockSpec((1, CP), lambda n: (0, 0)),
            pl.BlockSpec((1, CP), lambda n: (0, 0)),
            pl.BlockSpec((9, CP, CP), lambda n: (0, 0, 0)),
            pl.BlockSpec((1, CP), lambda n: (0, 0)),
            pl.BlockSpec((1, CP), lambda n: (0, 0)),
        ],
        out_specs=pl.BlockSpec((1, M, CP), lambda n: (n, 0, 0)),
        scratch_shapes=[pltpu.VMEM((Lp, CP), compute_dtype)],
        compiler_params=pltpu.CompilerParams(
            dimension_semantics=("parallel",),
            vmem_limit_bytes=32 * 1024 * 1024),
    )(xf, w1_k, s1, b1, w2_k, s2, b2)

    out = out_flat.reshape(N, H, Wp, CP)[:, :, 1:W + 1, :P]      # strip pads
    return jnp.transpose(out, (0, 3, 1, 2))                      # NCHW


def _reference_forward(x_nchw, w1, w2, bn1_params, bn2_params, eps=1e-5):
    """Plain-JAX f32 reference (mirrors the PyTorch eval-mode forward)."""
    x = jnp.transpose(x_nchw, (0, 2, 3, 1))
    dn = ('NHWC', 'HWIO', 'NHWC')

    def conv(z, w):
        w_hwio = jnp.transpose(w, (2, 3, 1, 0))
        return lax.conv_general_dilated(z, w_hwio, (1, 1), 'SAME',
                                        dimension_numbers=dn)

    def bn(z, params):
        g, b, m, v = params
        return (z - m) / jnp.sqrt(v + eps) * g + b

    out = jnp.maximum(bn(conv(x, w1), bn1_params), 0.0)
    out = bn(conv(out, w2), bn2_params)
    out = jnp.maximum(out + x, 0.0)
    return jnp.transpose(out, (0, 3, 1, 2))


if __name__ == "__main__":
    key = jax.random.PRNGKey(0)
    N, C, H, W = 2, 4, 16, 16          # inplanes = planes = 4, stride = 1
    P = C

    ks = jax.random.split(key, 11)
    x = jax.random.normal(ks[0], (N, C, H, W), jnp.float32)
    w1 = jax.random.normal(ks[1], (P, C, 3, 3), jnp.float32) * 0.1
    w2 = jax.random.normal(ks[2], (P, P, 3, 3), jnp.float32) * 0.1

    bn1 = (jax.random.uniform(ks[3], (P,), minval=0.5, maxval=1.5),
           jax.random.normal(ks[4], (P,)) * 0.1,
           jax.random.normal(ks[5], (P,)) * 0.1,
           jax.random.uniform(ks[6], (P,), minval=0.5, maxval=1.5))
    bn2 = (jax.random.uniform(ks[7], (P,), minval=0.5, maxval=1.5),
           jax.random.normal(ks[8], (P,)) * 0.1,
           jax.random.normal(ks[9], (P,)) * 0.1,
           jax.random.uniform(ks[10], (P,), minval=0.5, maxval=1.5))

    ref = _reference_forward(x, w1, w2, bn1, bn2)

    # f32 path: tight check of the flat-shift indexing / layout plumbing.
    out_f32 = jax.block_until_ready(
        basic_block_forward(x, w1, w2, bn1, bn2, compute_dtype=jnp.float32))
    assert out_f32.shape == (N, C, H, W)
    assert jnp.allclose(out_f32, ref, rtol=1e-4, atol=1e-4), \
        f"f32 max err {jnp.max(jnp.abs(out_f32 - ref))}"

    # bf16 path (default perf config): relaxed tolerance for bf16 rounding.
    out = jax.block_until_ready(basic_block_forward(x, w1, w2, bn1, bn2))
    assert out.shape == (N, C, H, W)
    assert jnp.allclose(out, ref, rtol=5e-2, atol=5e-2), \
        f"bf16 max err {jnp.max(jnp.abs(out - ref))}"

    print("KERNEL_OK")
</pallas_src>

<mosaic_0001>
module attributes {stable_mosaic.version = 11 : i64} {
  func.func @basic_block_kernel(%arg0: i32, %arg1: memref<1x384x128xf32, #tpu.memory_space<vmem>>, %arg2: memref<9x128x128xf32, #tpu.memory_space<vmem>>, %arg3: memref<1x128xf32, #tpu.memory_space<vmem>>, %arg4: memref<1x128xf32, #tpu.memory_space<vmem>>, %arg5: memref<9x128x128xf32, #tpu.memory_space<vmem>>, %arg6: memref<1x128xf32, #tpu.memory_space<vmem>>, %arg7: memref<1x128xf32, #tpu.memory_space<vmem>>, %arg8: memref<1x288x128xf32, #tpu.memory_space<vmem>>, %arg9: memref<384x128xf32, #tpu.memory_space<vmem>>) attributes {dimension_semantics = [#tpu.dimension_semantics<parallel>], iteration_bounds = array<i64: 2>, scalar_prefetch = 0 : i64, scratch_operands = 1 : i64, tpu.core_type = #tpu.core_type<tc>, window_params = [{transform_indices = @transform_0, window_bounds = array<i64: 1, 384, 128>}, {pipeline_mode = #tpu.pipeline_mode<synchronous>, transform_indices = @transform_1, window_bounds = array<i64: 9, 128, 128>}, {pipeline_mode = #tpu.pipeline_mode<synchronous>, transform_indices = @transform_2, window_bounds = array<i64: 1, 128>}, {pipeline_mode = #tpu.pipeline_mode<synchronous>, transform_indices = @transform_3, window_bounds = array<i64: 1, 128>}, {pipeline_mode = #tpu.pipeline_mode<synchronous>, transform_indices = @transform_4, window_bounds = array<i64: 9, 128, 128>}, {pipeline_mode = #tpu.pipeline_mode<synchronous>, transform_indices = @transform_5, window_bounds = array<i64: 1, 128>}, {pipeline_mode = #tpu.pipeline_mode<synchronous>, transform_indices = @transform_6, window_bounds = array<i64: 1, 128>}, {transform_indices = @transform_7, window_bounds = array<i64: 1, 288, 128>}]} {
    %0 = tpu.iota {dimensions = array<i32: 0>} : vector<288x1xi32>
    %c18_i32 = arith.constant 18 : i32
    %c0_i32 = arith.constant 0 : i32
    %1 = arith.cmpi eq, %c18_i32, %c0_i32 : i32
    %c1_i32 = arith.constant 1 : i32
    %2 = arith.select %1, %c1_i32, %c18_i32 : i32
    %3 = vector.broadcast %2 : i32 to vector<288x1xi32>
    %4 = arith.remsi %0, %3 : vector<288x1xi32>
    %c0_i32_0 = arith.constant 0 : i32
    %5 = vector.broadcast %c0_i32_0 : i32 to vector<288x1xi32>
    %6 = arith.cmpi ne, %4, %5 : vector<288x1xi32>
    %c0_i32_1 = arith.constant 0 : i32
    %7 = vector.broadcast %c0_i32_1 : i32 to vector<288x1xi32>
    %8 = arith.cmpi slt, %4, %7 : vector<288x1xi32>
    %c0_i32_2 = arith.constant 0 : i32
    %9 = arith.cmpi slt, %2, %c0_i32_2 : i32
    %10 = vector.broadcast %9 : i1 to vector<288x1xi1>
    %11 = vector.broadcast %10 : vector<288x1xi1> to vector<288x1xi1>
    %12 = arith.xori %8, %11 : vector<288x1xi1>
    %13 = arith.andi %12, %6 : vector<288x1xi1>
    %14 = vector.broadcast %2 : i32 to vector<288x1xi32>
    %15 = arith.addi %4, %14 : vector<288x1xi32>
    %16 = arith.select %13, %15, %4 : vector<288x1xi1>, vector<288x1xi32>
    %c1_i32_3 = arith.constant 1 : i32
    %17 = vector.broadcast %c1_i32_3 : i32 to vector<288x1xi32>
    %18 = arith.cmpi sge, %16, %17 : vector<288x1xi32>
    %c16_i32 = arith.constant 16 : i32
    %19 = vector.broadcast %c16_i32 : i32 to vector<288x1xi32>
    %20 = arith.cmpi sle, %16, %19 : vector<288x1xi32>
    %21 = arith.andi %18, %20 : vector<288x1xi1>
    %cst = arith.constant 0.000000e+00 : f32
    %22 = vector.broadcast %cst : f32 to vector<48x128xf32>
    %c0 = arith.constant 0 : index
    %c0_4 = arith.constant 0 : index
    %23 = vector.load %arg9[%c0, %c0_4] : memref<384x128xf32, #tpu.memory_space<vmem>>, vector<48x128xf32>
    tpu.vector_store %arg9[%c0, %c0_4], %22 {strides = array<i32>} : memref<384x128xf32, #tpu.memory_space<vmem>>, vector<48x128xf32>,
    %cst_5 = arith.constant 0.000000e+00 : f32
    %24 = vector.broadcast %cst_5 : f32 to vector<48x128xf32>
    %c336 = arith.constant 336 : index
    %c0_6 = arith.constant 0 : index
    %25 = vector.load %arg9[%c336, %c0_6] : memref<384x128xf32, #tpu.memory_space<vmem>>, vector<48x128xf32>
    tpu.vector_store %arg9[%c336, %c0_6], %24 {strides = array<i32>} : memref<384x128xf32, #tpu.memory_space<vmem>>, vector<48x128xf32>,
    %cst_7 = arith.constant 0.000000e+00 : f32
    %26 = vector.broadcast %cst_7 : f32 to vector<288x128xf32>
    %c0_8 = arith.constant 0 : index
    %c29 = arith.constant 29 : index
    %c0_9 = arith.constant 0 : index
    %27 = vector.load %arg1[%c0_8, %c29, %c0_9] : memref<1x384x128xf32, #tpu.memory_space<vmem>>, vector<1x288x128xf32>
    %28 = vector.shape_cast %27 : vector<1x288x128xf32> to vector<288x128xf32>
    %c0_10 = arith.constant 0 : index
    %c0_11 = arith.constant 0 : index
    %c0_12 = arith.constant 0 : index
    %29 = vector.load %arg2[%c0_10, %c0_11, %c0_12] : memref<9x128x128xf32, #tpu.memory_space<vmem>>, vector<1x128x128xf32>
    %30 = vector.shape_cast %29 : vector<1x128x128xf32> to vector<128x128xf32>
    %cst_13 = arith.constant dense<0.000000e+00> : vector<288x128xf32>
    %31 = tpu.matmul %28, %30, %cst_13 {dimension_numbers = #tpu.dot_dimension_numbers<[1], [0], [0], [1], [0, 0, 1, 1], [], []>} : vector<288x128xf32>, vector<128x128xf32>, vector<288x128xf32> -> vector<288x128xf32>
    %32 = arith.addf %26, %31 : vector<288x128xf32>
    %c0_14 = arith.constant 0 : index
    %c30 = arith.constant 30 : index
    %c0_15 = arith.constant 0 : index
    %33 = vector.load %arg1[%c0_14, %c30, %c0_15] : memref<1x384x128xf32, #tpu.memory_space<vmem>>, vector<1x288x128xf32>
    %34 = vector.shape_cast %33 : vector<1x288x128xf32> to vector<288x128xf32>
    %c1 = arith.constant 1 : index
    %c0_16 = arith.constant 0 : index
    %c0_17 = arith.constant 0 : index
    %35 = vector.load %arg2[%c1, %c0_16, %c0_17] : memref<9x128x128xf32, #tpu.memory_space<vmem>>, vector<1x128x128xf32>
    %36 = vector.shape_cast %35 : vector<1x128x128xf32> to vector<128x128xf32>
    %cst_18 = arith.constant dense<0.000000e+00> : vector<288x128xf32>
    %37 = tpu.matmul %34, %36, %cst_18 {dimension_numbers = #tpu.dot_dimension_numbers<[1], [0], [0], [1], [0, 0, 1, 1], [], []>} : vector<288x128xf32>, vector<128x128xf32>, vector<288x128xf32> -> vector<288x128xf32>
    %38 = arith.addf %32, %37 : vector<288x128xf32>
    %c0_19 = arith.constant 0 : index
    %c31 = arith.constant 31 : index
    %c0_20 = arith.constant 0 : index
    %39 = vector.load %arg1[%c0_19, %c31, %c0_20] : memref<1x384x128xf32, #tpu.memory_space<vmem>>, vector<1x288x128xf32>
    %40 = vector.shape_cast %39 : vector<1x288x128xf32> to vector<288x128xf32>
    %c2 = arith.constant 2 : index
    %c0_21 = arith.constant 0 : index
    %c0_22 = arith.constant 0 : index
    %41 = vector.load %arg2[%c2, %c0_21, %c0_22] : memref<9x128x128xf32, #tpu.memory_space<vmem>>, vector<1x128x128xf32>
    %42 = vector.shape_cast %41 : vector<1x128x128xf32> to vector<128x128xf32>
    %cst_23 = arith.constant dense<0.000000e+00> : vector<288x128xf32>
    %43 = tpu.matmul %40, %42, %cst_23 {dimension_numbers = #tpu.dot_dimension_numbers<[1], [0], [0], [1], [0, 0, 1, 1], [], []>} : vector<288x128xf32>, vector<128x128xf32>, vector<288x128xf32> -> vector<288x128xf32>
    %44 = arith.addf %38, %43 : vector<288x128xf32>
    %c0_24 = arith.constant 0 : index
    %c47 = arith.constant 47 : index
    %c0_25 = arith.constant 0 : index
    %45 = vector.load %arg1[%c0_24, %c47, %c0_25] : memref<1x384x128xf32, #tpu.memory_space<vmem>>, vector<1x288x128xf32>
    %46 = vector.shape_cast %45 : vector<1x288x128xf32> to vector<288x128xf32>
    %c3 = arith.constant 3 : index
    %c0_26 = arith.constant 0 : index
    %c0_27 = arith.constant 0 : index
    %47 = vector.load %arg2[%c3, %c0_26, %c0_27] : memref<9x128x128xf32, #tpu.memory_space<vmem>>, vector<1x128x128xf32>
    %48 = vector.shape_cast %47 : vector<1x128x128xf32> to vector<128x128xf32>
    %cst_28 = arith.constant dense<0.000000e+00> : vector<288x128xf32>
    %49 = tpu.matmul %46, %48, %cst_28 {dimension_numbers = #tpu.dot_dimension_numbers<[1], [0], [0], [1], [0, 0, 1, 1], [], []>} : vector<288x128xf32>, vector<128x128xf32>, vector<288x128xf32> -> vector<288x128xf32>
    %50 = arith.addf %44, %49 : vector<288x128xf32>
    %c0_29 = arith.constant 0 : index
    %c48 = arith.constant 48 : index
    %c0_30 = arith.constant 0 : index
    %51 = vector.load %arg1[%c0_29, %c48, %c0_30] : memref<1x384x128xf32, #tpu.memory_space<vmem>>, vector<1x288x128xf32>
    %52 = vector.shape_cast %51 : vector<1x288x128xf32> to vector<288x128xf32>
    %c4 = arith.constant 4 : index
    %c0_31 = arith.constant 0 : index
    %c0_32 = arith.constant 0 : index
    %53 = vector.load %arg2[%c4, %c0_31, %c0_32] : memref<9x128x128xf32, #tpu.memory_space<vmem>>, vector<1x128x128xf32>
    %54 = vector.shape_cast %53 : vector<1x128x128xf32> to vector<128x128xf32>
    %cst_33 = arith.constant dense<0.000000e+00> : vector<288x128xf32>
    %55 = tpu.matmul %52, %54, %cst_33 {dimension_numbers = #tpu.dot_dimension_numbers<[1], [0], [0], [1], [0, 0, 1, 1], [], []>} : vector<288x128xf32>, vector<128x128xf32>, vector<288x128xf32> -> vector<288x128xf32>
    %56 = arith.addf %50, %55 : vector<288x128xf32>
    %c0_34 = arith.constant 0 : index
    %c49 = arith.constant 49 : index
    %c0_35 = arith.constant 0 : index
    %57 = vector.load %arg1[%c0_34, %c49, %c0_35] : memref<1x384x128xf32, #tpu.memory_space<vmem>>, vector<1x288x128xf32>
    %58 = vector.shape_cast %57 : vector<1x288x128xf32> to vector<288x128xf32>
    %c5 = arith.constant 5 : index
    %c0_36 = arith.constant 0 : index
    %c0_37 = arith.constant 0 : index
    %59 = vector.load %arg2[%c5, %c0_36, %c0_37] : memref<9x128x128xf32, #tpu.memory_space<vmem>>, vector<1x128x128xf32>
    %60 = vector.shape_cast %59 : vector<1x128x128xf32> to vector<128x128xf32>
    %cst_38 = arith.constant dense<0.000000e+00> : vector<288x128xf32>
    %61 = tpu.matmul %58, %60, %cst_38 {dimension_numbers = #tpu.dot_dimension_numbers<[1], [0], [0], [1], [0, 0, 1, 1], [], []>} : vector<288x128xf32>, vector<128x128xf32>, vector<288x128xf32> -> vector<288x128xf32>
    %62 = arith.addf %56, %61 : vector<288x128xf32>
    %c0_39 = arith.constant 0 : index
    %c65 = arith.constant 65 : index
    %c0_40 = arith.constant 0 : index
    %63 = vector.load %arg1[%c0_39, %c65, %c0_40] : memref<1x384x128xf32, #tpu.memory_space<vmem>>, vector<1x288x128xf32>
    %64 = vector.shape_cast %63 : vector<1x288x128xf32> to vector<288x128xf32>
    %c6 = arith.constant 6 : index
    %c0_41 = arith.constant 0 : index
    %c0_42 = arith.constant 0 : index
    %65 = vector.load %arg2[%c6, %c0_41, %c0_42] : memref<9x128x128xf32, #tpu.memory_space<vmem>>, vector<1x128x128xf32>
    %66 = vector.shape_cast %65 : vector<1x128x128xf32> to vector<128x128xf32>
    %cst_43 = arith.constant dense<0.000000e+00> : vector<288x128xf32>
    %67 = tpu.matmul %64, %66, %cst_43 {dimension_numbers = #tpu.dot_dimension_numbers<[1], [0], [0], [1], [0, 0, 1, 1], [], []>} : vector<288x128xf32>, vector<128x128xf32>, vector<288x128xf32> -> vector<288x128xf32>
    %68 = arith.addf %62, %67 : vector<288x128xf32>
    %c0_44 = arith.constant 0 : index
    %c66 = arith.constant 66 : index
    %c0_45 = arith.constant 0 : index
    %69 = vector.load %arg1[%c0_44, %c66, %c0_45] : memref<1x384x128xf32, #tpu.memory_space<vmem>>, vector<1x288x128xf32>
    %70 = vector.shape_cast %69 : vector<1x288x128xf32> to vector<288x128xf32>
    %c7 = arith.constant 7 : index
    %c0_46 = arith.constant 0 : index
    %c0_47 = arith.constant 0 : index
    %71 = vector.load %arg2[%c7, %c0_46, %c0_47] : memref<9x128x128xf32, #tpu.memory_space<vmem>>, vector<1x128x128xf32>
    %72 = vector.shape_cast %71 : vector<1x128x128xf32> to vector<128x128xf32>
    %cst_48 = arith.constant dense<0.000000e+00> : vector<288x128xf32>
    %73 = tpu.matmul %70, %72, %cst_48 {dimension_numbers = #tpu.dot_dimension_numbers<[1], [0], [0], [1], [0, 0, 1, 1], [], []>} : vector<288x128xf32>, vector<128x128xf32>, vector<288x128xf32> -> vector<288x128xf32>
    %74 = arith.addf %68, %73 : vector<288x128xf32>
    %c0_49 = arith.constant 0 : index
    %c67 = arith.constant 67 : index
    %c0_50 = arith.constant 0 : index
    %75 = vector.load %arg1[%c0_49, %c67, %c0_50] : memref<1x384x128xf32, #tpu.memory_space<vmem>>, vector<1x288x128xf32>
    %76 = vector.shape_cast %75 : vector<1x288x128xf32> to vector<288x128xf32>
    %c8 = arith.constant 8 : index
    %c0_51 = arith.constant 0 : index
    %c0_52 = arith.constant 0 : index
    %77 = vector.load %arg2[%c8, %c0_51, %c0_52] : memref<9x128x128xf32, #tpu.memory_space<vmem>>, vector<1x128x128xf32>
    %78 = vector.shape_cast %77 : vector<1x128x128xf32> to vector<128x128xf32>
    %cst_53 = arith.constant dense<0.000000e+00> : vector<288x128xf32>
    %79 = tpu.matmul %76, %78, %cst_53 {dimension_numbers = #tpu.dot_dimension_numbers<[1], [0], [0], [1], [0, 0, 1, 1], [], []>} : vector<288x128xf32>, vector<128x128xf32>, vector<288x128xf32> -> vector<288x128xf32>
    %80 = arith.addf %74, %79 : vector<288x128xf32>
    %c0_54 = arith.constant 0 : index
    %c0_55 = arith.constant 0 : index
    %81 = vector.load %arg3[%c0_54, %c0_55] : memref<1x128xf32, #tpu.memory_space<vmem>>, vector<1x128xf32>
    %82 = vector.broadcast %81 : vector<1x128xf32> to vector<288x128xf32>
    %83 = arith.mulf %80, %82 : vector<288x128xf32>
    %c0_56 = arith.constant 0 : index
    %c0_57 = arith.constant 0 : index
    %84 = vector.load %arg4[%c0_56, %c0_57] : memref<1x128xf32, #tpu.memory_space<vmem>>, vector<1x128xf32>
    %85 = vector.broadcast %84 : vector<1x128xf32> to vector<288x128xf32>
    %86 = arith.addf %83, %85 : vector<288x128xf32>
    %cst_58 = arith.constant 0.000000e+00 : f32
    %87 = vector.broadcast %cst_58 : f32 to vector<288x128xf32>
    %88 = arith.maximumf %86, %87 : vector<288x128xf32>
    %cst_59 = arith.constant 0.000000e+00 : f32
    %89 = vector.shape_cast %21 : vector<288x1xi1> to vector<288x1xi1>
    %90 = vector.broadcast %89 : vector<288x1xi1> to vector<288x128xi1>
    %91 = vector.broadcast %cst_59 : f32 to vector<288x128xf32>
    %92 = arith.select %90, %88, %91 : vector<288x128xi1>, vector<288x128xf32>
    %c48_60 = arith.constant 48 : index
    %c0_61 = arith.constant 0 : index
    %93 = vector.load %arg9[%c48_60, %c0_61] : memref<384x128xf32, #tpu.memory_space<vmem>>, vector<288x128xf32>
    tpu.vector_store %arg9[%c48_60, %c0_61], %92 {strides = array<i32>} : memref<384x128xf32, #tpu.memory_space<vmem>>, vector<288x128xf32>,
    %cst_62 = arith.constant 0.000000e+00 : f32
    %94 = vector.broadcast %cst_62 : f32 to vector<288x128xf32>
    %c29_63 = arith.constant 29 : index
    %c0_64 = arith.constant 0 : index
    %95 = vector.load %arg9[%c29_63, %c0_64] : memref<384x128xf32, #tpu.memory_space<vmem>>, vector<288x128xf32>
    %c0_65 = arith.constant 0 : index
    %c0_66 = arith.constant 0 : index
    %c0_67 = arith.constant 0 : index
    %96 = vector.load %arg5[%c0_65, %c0_66, %c0_67] : memref<9x128x128xf32, #tpu.memory_space<vmem>>, vector<1x128x128xf32>
    %97 = vector.shape_cast %96 : vector<1x128x128xf32> to vector<128x128xf32>
    %cst_68 = arith.constant dense<0.000000e+00> : vector<288x128xf32>
    %98 = tpu.matmul %95, %97, %cst_68 {dimension_numbers = #tpu.dot_dimension_numbers<[1], [0], [0], [1], [0, 0, 1, 1], [], []>} : vector<288x128xf32>, vector<128x128xf32>, vector<288x128xf32> -> vector<288x128xf32>
    %99 = arith.addf %94, %98 : vector<288x128xf32>
    %c30_69 = arith.constant 30 : index
    %c0_70 = arith.constant 0 : index
    %100 = vector.load %arg9[%c30_69, %c0_70] : memref<384x128xf32, #tpu.memory_space<vmem>>, vector<288x128xf32>
    %c1_71 = arith.constant 1 : index
    %c0_72 = arith.constant 0 : index
    %c0_73 = arith.constant 0 : index
    %101 = vector.load %arg5[%c1_71, %c0_72, %c0_73] : memref<9x128x128xf32, #tpu.memory_space<vmem>>, vector<1x128x128xf32>
    %102 = vector.shape_cast %101 : vector<1x128x128xf32> to vector<128x128xf32>
    %cst_74 = arith.constant dense<0.000000e+00> : vector<288x128xf32>
    %103 = tpu.matmul %100, %102, %cst_74 {dimension_numbers = #tpu.dot_dimension_numbers<[1], [0], [0], [1], [0, 0, 1, 1], [], []>} : vector<288x128xf32>, vector<128x128xf32>, vector<288x128xf32> -> vector<288x128xf32>
    %104 = arith.addf %99, %103 : vector<288x128xf32>
    %c31_75 = arith.constant 31 : index
    %c0_76 = arith.constant 0 : index
    %105 = vector.load %arg9[%c31_75, %c0_76] : memref<384x128xf32, #tpu.memory_space<vmem>>, vector<288x128xf32>
    %c2_77 = arith.constant 2 : index
    %c0_78 = arith.constant 0 : index
    %c0_79 = arith.constant 0 : index
    %106 = vector.load %arg5[%c2_77, %c0_78, %c0_79] : memref<9x128x128xf32, #tpu.memory_space<vmem>>, vector<1x128x128xf32>
    %107 = vector.shape_cast %106 : vector<1x128x128xf32> to vector<128x128xf32>
    %cst_80 = arith.constant dense<0.000000e+00> : vector<288x128xf32>
    %108 = tpu.matmul %105, %107, %cst_80 {dimension_numbers = #tpu.dot_dimension_numbers<[1], [0], [0], [1], [0, 0, 1, 1], [], []>} : vector<288x128xf32>, vector<128x128xf32>, vector<288x128xf32> -> vector<288x128xf32>
    %109 = arith.addf %104, %108 : vector<288x128xf32>
    %c47_81 = arith.constant 47 : index
    %c0_82 = arith.constant 0 : index
    %110 = vector.load %arg9[%c47_81, %c0_82] : memref<384x128xf32, #tpu.memory_space<vmem>>, vector<288x128xf32>
    %c3_83 = arith.constant 3 : index
    %c0_84 = arith.constant 0 : index
    %c0_85 = arith.constant 0 : index
    %111 = vector.load %arg5[%c3_83, %c0_84, %c0_85] : memref<9x128x128xf32, #tpu.memory_space<vmem>>, vector<1x128x128xf32>
    %112 = vector.shape_cast %111 : vector<1x128x128xf32> to vector<128x128xf32>
    %cst_86 = arith.constant dense<0.000000e+00> : vector<288x128xf32>
    %113 = tpu.matmul %110, %112, %cst_86 {dimension_numbers = #tpu.dot_dimension_numbers<[1], [0], [0], [1], [0, 0, 1, 1], [], []>} : vector<288x128xf32>, vector<128x128xf32>, vector<288x128xf32> -> vector<288x128xf32>
    %114 = arith.addf %109, %113 : vector<288x128xf32>
    %c48_87 = arith.constant 48 : index
    %c0_88 = arith.constant 0 : index
    %115 = vector.load %arg9[%c48_87, %c0_88] : memref<384x128xf32, #tpu.memory_space<vmem>>, vector<288x128xf32>
    %c4_89 = arith.constant 4 : index
    %c0_90 = arith.constant 0 : index
    %c0_91 = arith.constant 0 : index
    %116 = vector.load %arg5[%c4_89, %c0_90, %c0_91] : memref<9x128x128xf32, #tpu.memory_space<vmem>>, vector<1x128x128xf32>
    %117 = vector.shape_cast %116 : vector<1x128x128xf32> to vector<128x128xf32>
    %cst_92 = arith.constant dense<0.000000e+00> : vector<288x128xf32>
    %118 = tpu.matmul %115, %117, %cst_92 {dimension_numbers = #tpu.dot_dimension_numbers<[1], [0], [0], [1], [0, 0, 1, 1], [], []>} : vector<288x128xf32>, vector<128x128xf32>, vector<288x128xf32> -> vector<288x128xf32>
    %119 = arith.addf %114, %118 : vector<288x128xf32>
    %c49_93 = arith.constant 49 : index
    %c0_94 = arith.constant 0 : index
    %120 = vector.load %arg9[%c49_93, %c0_94] : memref<384x128xf32, #tpu.memory_space<vmem>>, vector<288x128xf32>
    %c5_95 = arith.constant 5 : index
    %c0_96 = arith.constant 0 : index
    %c0_97 = arith.constant 0 : index
    %121 = vector.load %arg5[%c5_95, %c0_96, %c0_97] : memref<9x128x128xf32, #tpu.memory_space<vmem>>, vector<1x128x128xf32>
    %122 = vector.shape_cast %121 : vector<1x128x128xf32> to vector<128x128xf32>
    %cst_98 = arith.constant dense<0.000000e+00> : vector<288x128xf32>
    %123 = tpu.matmul %120, %122, %cst_98 {dimension_numbers = #tpu.dot_dimension_numbers<[1], [0], [0], [1], [0, 0, 1, 1], [], []>} : vector<288x128xf32>, vector<128x128xf32>, vector<288x128xf32> -> vector<288x128xf32>
    %124 = arith.addf %119, %123 : vector<288x128xf32>
    %c65_99 = arith.constant 65 : index
    %c0_100 = arith.constant 0 : index
    %125 = vector.load %arg9[%c65_99, %c0_100] : memref<384x128xf32, #tpu.memory_space<vmem>>, vector<288x128xf32>
    %c6_101 = arith.constant 6 : index
    %c0_102 = arith.constant 0 : index
    %c0_103 = arith.constant 0 : index
    %126 = vector.load %arg5[%c6_101, %c0_102, %c0_103] : memref<9x128x128xf32, #tpu.memory_space<vmem>>, vector<1x128x128xf32>
    %127 = vector.shape_cast %126 : vector<1x128x128xf32> to vector<128x128xf32>
    %cst_104 = arith.constant dense<0.000000e+00> : vector<288x128xf32>
    %128 = tpu.matmul %125, %127, %cst_104 {dimension_numbers = #tpu.dot_dimension_numbers<[1], [0], [0], [1], [0, 0, 1, 1], [], []>} : vector<288x128xf32>, vector<128x128xf32>, vector<288x128xf32> -> vector<288x128xf32>
    %129 = arith.addf %124, %128 : vector<288x128xf32>
    %c66_105 = arith.constant 66 : index
    %c0_106 = arith.constant 0 : index
    %130 = vector.load %arg9[%c66_105, %c0_106] : memref<384x128xf32, #tpu.memory_space<vmem>>, vector<288x128xf32>
    %c7_107 = arith.constant 7 : index
    %c0_108 = arith.constant 0 : index
    %c0_109 = arith.constant 0 : index
    %131 = vector.load %arg5[%c7_107, %c0_108, %c0_109] : memref<9x128x128xf32, #tpu.memory_space<vmem>>, vector<1x128x128xf32>
    %132 = vector.shape_cast %131 : vector<1x128x128xf32> to vector<128x128xf32>
    %cst_110 = arith.constant dense<0.000000e+00> : vector<288x128xf32>
    %133 = tpu.matmul %130, %132, %cst_110 {dimension_numbers = #tpu.dot_dimension_numbers<[1], [0], [0], [1], [0, 0, 1, 1], [], []>} : vector<288x128xf32>, vector<128x128xf32>, vector<288x128xf32> -> vector<288x128xf32>
    %134 = arith.addf %129, %133 : vector<288x128xf32>
    %c67_111 = arith.constant 67 : index
    %c0_112 = arith.constant 0 : index
    %135 = vector.load %arg9[%c67_111, %c0_112] : memref<384x128xf32, #tpu.memory_space<vmem>>, vector<288x128xf32>
    %c8_113 = arith.constant 8 : index
    %c0_114 = arith.constant 0 : index
    %c0_115 = arith.constant 0 : index
    %136 = vector.load %arg5[%c8_113, %c0_114, %c0_115] : memref<9x128x128xf32, #tpu.memory_space<vmem>>, vector<1x128x128xf32>
    %137 = vector.shape_cast %136 : vector<1x128x128xf32> to vector<128x128xf32>
    %cst_116 = arith.constant dense<0.000000e+00> : vector<288x128xf32>
    %138 = tpu.matmul %135, %137, %cst_116 {dimension_numbers = #tpu.dot_dimension_numbers<[1], [0], [0], [1], [0, 0, 1, 1], [], []>} : vector<288x128xf32>, vector<128x128xf32>, vector<288x128xf32> -> vector<288x128xf32>
    %139 = arith.addf %134, %138 : vector<288x128xf32>
    %c0_117 = arith.constant 0 : index
    %c0_118 = arith.constant 0 : index
    %140 = vector.load %arg6[%c0_117, %c0_118] : memref<1x128xf32, #tpu.memory_space<vmem>>, vector<1x128xf32>
    %141 = vector.broadcast %140 : vector<1x128xf32> to vector<288x128xf32>
    %142 = arith.mulf %139, %141 : vector<288x128xf32>
    %c0_119 = arith.constant 0 : index
    %c0_120 = arith.constant 0 : index
    %143 = vector.load %arg7[%c0_119, %c0_120] : memref<1x128xf32, #tpu.memory_space<vmem>>, vector<1x128xf32>
    %144 = vector.broadcast %143 : vector<1x128xf32> to vector<288x128xf32>
    %145 = arith.addf %142, %144 : vector<288x128xf32>
    %c0_121 = arith.constant 0 : index
    %c48_122 = arith.constant 48 : index
    %c0_123 = arith.constant 0 : index
    %146 = vector.load %arg1[%c0_121, %c48_122, %c0_123] : memref<1x384x128xf32, #tpu.memory_space<vmem>>, vector<1x288x128xf32>
    %147 = vector.shape_cast %146 : vector<1x288x128xf32> to vector<288x128xf32>
    %148 = arith.addf %145, %147 : vector<288x128xf32>
    %cst_124 = arith.constant 0.000000e+00 : f32
    %149 = vector.broadcast %cst_124 : f32 to vector<288x128xf32>
    %150 = arith.maximumf %148, %149 : vector<288x128xf32>
    %c0_125 = arith.constant 0 : index
    %c0_126 = arith.constant 0 : index
    %c0_127 = arith.constant 0 : index
    %151 = vector.load %arg8[%c0_125, %c0_126, %c0_127] : memref<1x288x128xf32, #tpu.memory_space<vmem>>, vector<1x288x128xf32>
    %152 = vector.shape_cast %151 : vector<1x288x128xf32> to vector<288x128xf32>
    %153 = vector.shape_cast %150 : vector<288x128xf32> to vector<1x288x128xf32>
    tpu.vector_store %arg8[%c0_125, %c0_126, %c0_127], %153 {strides = array<i32>} : memref<1x288x128xf32, #tpu.memory_space<vmem>>, vector<1x288x128xf32>,
    return
  }
  func.func @transform_0(%arg0: i32) -> (i32, i32, i32) {
    %c0_i32 = arith.constant 0 : i32
    %c0_i32_0 = arith.constant 0 : i32
    %c0_i32_1 = arith.constant 0 : i32
    return %arg0, %c0_i32, %c0_i32_0 : i32, i32, i32
  }
  func.func @transform_1(%arg0: i32) -> (i32, i32, i32) {
    %c0_i32 = arith.constant 0 : i32
    %c0_i32_0 = arith.constant 0 : i32
    %c0_i32_1 = arith.constant 0 : i32
    %c0_i32_2 = arith.constant 0 : i32
    return %c0_i32, %c0_i32_0, %c0_i32_1 : i32, i32, i32
  }
  func.func @transform_2(%arg0: i32) -> (i32, i32) {
    %c0_i32 = arith.constant 0 : i32
    %c0_i32_0 = arith.constant 0 : i32
    %c0_i32_1 = arith.constant 0 : i32
    return %c0_i32, %c0_i32_0 : i32, i32
  }
  func.func @transform_3(%arg0: i32) -> (i32, i32) {
    %c0_i32 = arith.constant 0 : i32
    %c0_i32_0 = arith.constant 0 : i32
    %c0_i32_1 = arith.constant 0 : i32
    return %c0_i32, %c0_i32_0 : i32, i32
  }
  func.func @transform_4(%arg0: i32) -> (i32, i32, i32) {
    %c0_i32 = arith.constant 0 : i32
    %c0_i32_0 = arith.constant 0 : i32
    %c0_i32_1 = arith.constant 0 : i32
    %c0_i32_2 = arith.constant 0 : i32
    return %c0_i32, %c0_i32_0, %c0_i32_1 : i32, i32, i32
  }
  func.func @transform_5(%arg0: i32) -> (i32, i32) {
    %c0_i32 = arith.constant 0 : i32
    %c0_i32_0 = arith.constant 0 : i32
    %c0_i32_1 = arith.constant 0 : i32
    return %c0_i32, %c0_i32_0 : i32, i32
  }
  func.func @transform_6(%arg0: i32) -> (i32, i32) {
    %c0_i32 = arith.constant 0 : i32
    %c0_i32_0 = arith.constant 0 : i32
    %c0_i32_1 = arith.constant 0 : i32
    return %c0_i32, %c0_i32_0 : i32, i32
  }
  func.func @transform_7(%arg0: i32) -> (i32, i32, i32) {
    %c0_i32 = arith.constant 0 : i32
    %c0_i32_0 = arith.constant 0 : i32
    %c0_i32_1 = arith.constant 0 : i32
    return %arg0, %c0_i32, %c0_i32_0 : i32, i32, i32
  }
}

</mosaic_0001>

<llo_original>
// kernel: tpu_custom_call.1
$region0: #{tpu_custom_call.1}
  #allocation0 [shape = 'u32[]', space=smem, size = 0x4, offset = 0x4, fixed_abs, tag = 'smem constant byte address 0x4 - core index']
  #allocation1 [shape = 'u32[72,128]{1,0:T(1,128)}', space=vmem, size = 0x9000, scoped, tag = 'internal scratch']
  #allocation2 [shape = 'f32[384,128]{1,0:T(8,128)}', space=vmem, size = 0x30000, scoped, tag = 'scratch operand']
  %s0 = inlined_call_operand.hbm [shape: f32[2,384,128], index: 0, kind: input, shape index: {}]
  %s1 = inlined_call_operand.hbm [shape: f32[9,128,128], index: 1, kind: input, shape index: {}]
  %s2 = inlined_call_operand.vmem [shape: f32[1,128], index: 2, kind: input, shape index: {}]
  %s3 = inlined_call_operand.vmem [shape: f32[1,128], index: 3, kind: input, shape index: {}]
  %s4 = inlined_call_operand.hbm [shape: f32[9,128,128], index: 4, kind: input, shape index: {}]
  %s5 = inlined_call_operand.vmem [shape: f32[1,128], index: 5, kind: input, shape index: {}]
  %s6 = inlined_call_operand.vmem [shape: f32[1,128], index: 6, kind: input, shape index: {}]
  %s7 = inlined_call_operand.hbm [shape: f32[2,288,128], index: 7, kind: output, shape index: {}]
  %s8 = sld [smem:[#allocation0]]
  $region73: #{tpu_custom_call.1} parent=0
    _
  %s10 = ssub.s32 1, %s8
  %s11 = scalar_select 0, %s10, %s8
  $region1: #{tpu_custom_call.1} parent=0
    #allocation3 [shape = 'u8[393216]{0}', space=vmem, size = 0x60000, scoped, tag = 'input window, operand 0']
    #allocation4 [shape = 's32[2]{0}', space=sflag, size = 0x8, scoped, tag = 'scoped memory for tpu_custom_call.1']
    #allocation5 [shape = 's32[2]{0}', space=sflag, size = 0x8, scoped, tag = 'scoped memory for tpu_custom_call.1']
    #allocation6 [shape = 'u8[589824]{0}', space=vmem, size = 0x90000, scoped, tag = 'input window, operand 1, single buffered']
    #allocation7 [shape = 's32[1]{0}', space=sflag, size = 0x4, scoped, tag = 'scoped memory for tpu_custom_call.1']
    #allocation8 [shape = 'u8[589824]{0}', space=vmem, size = 0x90000, scoped, tag = 'input window, operand 4, single buffered']
    #allocation9 [shape = 'u8[294912]{0}', space=vmem, size = 0x48000, scoped, tag = 'output window, operand 0']
    %12 = vsyncpa [#allocation4], 0
    %s13 = scalar_lea.sflag [#allocation4], 1
    %14 = vsyncpa %s13, 0
    %15 = vsyncpa [#allocation7], 0
    %16 = vsyncpa [#allocation5], 0
    %s17 = scalar_lea.sflag [#allocation5], 1
    %18 = vsyncpa %s17, 0
    loop: start=0, step=1, limit=4
    $region2: #{tpu_custom_call.1} parent=1 // loop_pre_header
      _
    $region3: #{tpu_custom_call.1} parent=1 // loop_header
      %s20 = sphi 0, %s24
      %p21 = scmp.ge.s32.totalorder %s20, 4
      %s30 = sphi 0, %s32
      %s33 = sphi 0, %s30
      %s34 = sphi 0, %s33
      %s50 = sphi 0, %s34
      %s54 = sphi 0, %s54
      %s56 = sphi 0, %s54
      %s57 = sphi 0, %s56
      %s71 = sphi 0, %s57
      %s75 = sphi 0, %s75
      %s77 = sphi 0, %s75
      %s78 = sphi 0, %s77
      %s92 = sphi 0, %s78
      %s96 = sphi 0, %s96
      %s98 = sphi 0, %s96
      %s99 = sphi 0, %s98
      %s113 = sphi 0, %s99
      %s117 = sphi 0, %s117
      %s119 = sphi 0, %s117
      %s120 = sphi 0, %s119
      %s134 = sphi 0, %s120
      %s138 = sphi 0, %s138
      %s140 = sphi 0, %s138
      %s141 = sphi 0, %s140
      %s155 = sphi 0, %s141
      %s159 = sphi 0, %s159
      %s161 = sphi 0, %s159
      %s162 = sphi 0, %s161
      %s176 = sphi 0, %s162
      %s182 = sphi 0, %s184
      %s185 = sphi 0, %s182
      %s186 = sphi 0, %s185
      %s202 = sphi 0, %s186
    $region4: #{tpu_custom_call.1} parent=1 // loop_header_branch
      %23 = sbr.rel (%p21) target = $region8
    $region5: #{tpu_custom_call.1} parent=1 // loop_body
      %s25 = ssub.s32 %s20, 1
      %s26 = ssub.s32 %s20, 2
      %s27 = sadd.s32 %s20, 1
      %s28 = ssub.s32 %s20, %s27
      %p29 = scmp.eq.s32.totalorder %s28, 0
      %s31 = sadd.s32 %s30, 1
      %s32 = scalar_select %p29, %s30, %s31
      %p35 = pneg %p29
      %p36 = scmp.eq.s32.totalorder %s20, 1
      %p37 = por %p35, %p36
      %p38 = scmp.ne.s32.totalorder %s30, %s33
      %p39 = scmp.eq.s32.totalorder %s20, 0
      %p40 = por %p38, %p39
      %p41 = scmp.ne.s32.totalorder %s30, %s33
      %p42 = scmp.eq.s32.totalorder %s25, 1
      %p43 = por %p41, %p42
      %p44 = scmp.ne.s32.totalorder %s33, %s34
      %p45 = scmp.eq.s32.totalorder %s25, 0
      %p46 = por %p44, %p45
      %p47 = scmp.ne.s32.totalorder %s33, %s34
      %p48 = scmp.eq.s32.totalorder %s26, 1
      %p49 = por %p47, %p48
      %p51 = scmp.ne.s32.totalorder %s34, %s50
      %p52 = scmp.eq.s32.totalorder %s26, 0
      %p53 = por %p51, %p52
      %s55 = sadd.s32 %s54, 1
      %p58 = scmp.eq.s32.totalorder %s20, 1
      %p59 = scmp.ne.s32.totalorder %s54, %s56
      %p60 = scmp.eq.s32.totalorder %s20, 0
      %p61 = por %p59, %p60
      %p62 = scmp.ne.s32.totalorder %s54, %s56
      %p63 = scmp.eq.s32.totalorder %s25, 1
      %p64 = por %p62, %p63
      %p65 = scmp.ne.s32.totalorder %s56, %s57
      %p66 = scmp.eq.s32.totalorder %s25, 0
      %p67 = por %p65, %p66
      %p68 = scmp.ne.s32.totalorder %s56, %s57
      %p69 = scmp.eq.s32.totalorder %s26, 1
      %p70 = por %p68, %p69
      %p72 = scmp.ne.s32.totalorder %s57, %s71
      %p73 = scmp.eq.s32.totalorder %s26, 0
      %p74 = por %p72, %p73
      %s76 = sadd.s32 %s75, 1
      %p79 = scmp.eq.s32.totalorder %s20, 1
      %p80 = scmp.ne.s32.totalorder %s75, %s77
      %p81 = scmp.eq.s32.totalorder %s20, 0
      %p82 = por %p80, %p81
      %p83 = scmp.ne.s32.totalorder %s75, %s77
      %p84 = scmp.eq.s32.totalorder %s25, 1
      %p85 = por %p83, %p84
      %p86 = scmp.ne.s32.totalorder %s77, %s78
      %p87 = scmp.eq.s32.totalorder %s25, 0
      %p88 = por %p86, %p87
      %p89 = scmp.ne.s32.totalorder %s77, %s78
      %p90 = scmp.eq.s32.totalorder %s26, 1
      %p91 = por %p89, %p90
      %p93 = scmp.ne.s32.totalorder %s78, %s92
      %p94 = scmp.eq.s32.totalorder %s26, 0
      %p95 = por %p93, %p94
      %s97 = sadd.s32 %s96, 1
      %p100 = scmp.eq.s32.totalorder %s20, 1
      %p101 = scmp.ne.s32.totalorder %s96, %s98
      %p102 = scmp.eq.s32.totalorder %s20, 0
      %p103 = por %p101, %p102
      %p104 = scmp.ne.s32.totalorder %s96, %s98
      %p105 = scmp.eq.s32.totalorder %s25, 1
      %p106 = por %p104, %p105
      %p107 = scmp.ne.s32.totalorder %s98, %s99
      %p108 = scmp.eq.s32.totalorder %s25, 0
      %p109 = por %p107, %p108
      %p110 = scmp.ne.s32.totalorder %s98, %s99
      %p111 = scmp.eq.s32.totalorder %s26, 1
      %p112 = por %p110, %p111
      %p114 = scmp.ne.s32.totalorder %s99, %s113
      %p115 = scmp.eq.s32.totalorder %s26, 0
      %p116 = por %p114, %p115
      %s118 = sadd.s32 %s117, 1
      %p121 = scmp.eq.s32.totalorder %s20, 1
      %p122 = scmp.ne.s32.totalorder %s117, %s119
      %p123 = scmp.eq.s32.totalorder %s20, 0
      %p124 = por %p122, %p123
      %p125 = scmp.ne.s32.totalorder %s117, %s119
      %p126 = scmp.eq.s32.totalorder %s25, 1
      %p127 = por %p125, %p126
      %p128 = scmp.ne.s32.totalorder %s119, %s120
      %p129 = scmp.eq.s32.totalorder %s25, 0
      %p130 = por %p128, %p129
      %p131 = scmp.ne.s32.totalorder %s119, %s120
      %p132 = scmp.eq.s32.totalorder %s26, 1
      %p133 = por %p131, %p132
      %p135 = scmp.ne.s32.totalorder %s120, %s134
      %p136 = scmp.eq.s32.totalorder %s26, 0
      %p137 = por %p135, %p136
      %s139 = sadd.s32 %s138, 1
      %p142 = scmp.eq.s32.totalorder %s20, 1
      %p143 = scmp.ne.s32.totalorder %s138, %s140
      %p144 = scmp.eq.s32.totalorder %s20, 0
      %p145 = por %p143, %p144
      %p146 = scmp.ne.s32.totalorder %s138, %s140
      %p147 = scmp.eq.s32.totalorder %s25, 1
      %p148 = por %p146, %p147
      %p149 = scmp.ne.s32.totalorder %s140, %s141
      %p150 = scmp.eq.s32.totalorder %s25, 0
      %p151 = por %p149, %p150
      %p152 = scmp.ne.s32.totalorder %s140, %s141
      %p153 = scmp.eq.s32.totalorder %s26, 1
      %p154 = por %p152, %p153
      %p156 = scmp.ne.s32.totalorder %s141, %s155
      %p157 = scmp.eq.s32.totalorder %s26, 0
      %p158 = por %p156, %p157
      %s160 = sadd.s32 %s159, 1
      %p163 = scmp.eq.s32.totalorder %s20, 1
      %p164 = scmp.ne.s32.totalorder %s159, %s161
      %p165 = scmp.eq.s32.totalorder %s20, 0
      %p166 = por %p164, %p165
      %p167 = scmp.ne.s32.totalorder %s159, %s161
      %p168 = scmp.eq.s32.totalorder %s25, 1
      %p169 = por %p167, %p168
      %p170 = scmp.ne.s32.totalorder %s161, %s162
      %p171 = scmp.eq.s32.totalorder %s25, 0
      %p172 = por %p170, %p171
      %p173 = scmp.ne.s32.totalorder %s161, %s162
      %p174 = scmp.eq.s32.totalorder %s26, 1
      %p175 = por %p173, %p174
      %p177 = scmp.ne.s32.totalorder %s162, %s176
      %p178 = scmp.eq.s32.totalorder %s26, 0
      %p179 = por %p177, %p178
      %s180 = ssub.s32 %s20, %s27
      %p181 = scmp.eq.s32.totalorder %s180, 0
      %s183 = sadd.s32 %s182, 1
      %s184 = scalar_select %p181, %s182, %s183
      %p187 = pneg %p181
      %p188 = scmp.eq.s32.totalorder %s20, 1
      %p189 = por %p187, %p188
      %p190 = scmp.ne.s32.totalorder %s182, %s185
      %p191 = scmp.eq.s32.totalorder %s20, 0
      %p192 = por %p190, %p191
      %p193 = scmp.ne.s32.totalorder %s182, %s185
      %p194 = scmp.eq.s32.totalorder %s25, 1
      %p195 = por %p193, %p194
      %p196 = scmp.ne.s32.totalorder %s185, %s186
      %p197 = scmp.eq.s32.totalorder %s25, 0
      %p198 = por %p196, %p197
      %p199 = scmp.ne.s32.totalorder %s185, %s186
      %p200 = scmp.eq.s32.totalorder %s26, 1
      %p201 = por %p199, %p200
      %p203 = scmp.ne.s32.totalorder %s186, %s202
      %p204 = scmp.eq.s32.totalorder %s26, 0
      %p205 = por %p203, %p204
      %p206 = scmp.le.s32.totalorder 1, %s20
      %p207 = scmp.lt.s32.totalorder %s20, 3
      %p208 = pnand %p206, %p207
      %p209 = pneg %p208
      // Predicated region
      $region9: #{tpu_custom_call.1} parent=5 // pred_check
        _
      $region10: #{tpu_custom_call.1} parent=5 // pred_check_branch
        %211 = sbr.rel (%p208) target = $region12
      $region11: #{tpu_custom_call.1} parent=5 // pred_region
        %s212 = ssub.s32 %s20, 1
        // Predicated region
        $region13: #{tpu_custom_call.1} parent=11 // pred_check
          %p213 = pneg %p67
        $region14: #{tpu_custom_call.1} parent=11 // pred_check_branch
          %215 = sbr.rel (%p213) target = $region16
        $region15: #{tpu_custom_call.1} parent=11 // pred_region
          %217 = vsyncadd [#allocation7], 0
          %s218 = sshll.u32 %s1, 4
          %s219 = int_to_ptr.hbm [resolvable:$true] %s218
          %s220 = sshll.u32 [#allocation6], 4
          %s221 = int_to_ptr.vmem [resolvable:$true] %s220
          %226 = dma.hbm_to_vmem [thread:$0]  %s219, 18432, %s221, [#allocation7], 128, 128, 8
        $region16: #{tpu_custom_call.1} parent=11 // pred_fallthru
          _
        // Predicated region
        $region17: #{tpu_custom_call.1} parent=11 // pred_check
          %p227 = pneg %p88
        $region18: #{tpu_custom_call.1} parent=11 // pred_check_branch
          %229 = sbr.rel (%p227) target = $region20
        $region19: #{tpu_custom_call.1} parent=11 // pred_region
          _
        $region20: #{tpu_custom_call.1} parent=11 // pred_fallthru
          _
        // Predicated region
        $region21: #{tpu_custom_call.1} parent=11 // pred_check
          %p230 = pneg %p109
        $region22: #{tpu_custom_call.1} parent=11 // pred_check_branch
          %232 = sbr.rel (%p230) target = $region24
        $region23: #{tpu_custom_call.1} parent=11 // pred_region
          _
        $region24: #{tpu_custom_call.1} parent=11 // pred_fallthru
          _
        // Predicated region
        $region25: #{tpu_custom_call.1} parent=11 // pred_check
          %p233 = pneg %p130
        $region26: #{tpu_custom_call.1} parent=11 // pred_check_branch
          %235 = sbr.rel (%p233) target = $region28
        $region27: #{tpu_custom_call.1} parent=11 // pred_region
          %237 = vsyncadd [#allocation7], 0
          %s238 = sshll.u32 %s4, 4
          %s239 = int_to_ptr.hbm [resolvable:$true] %s238
          %s240 = sshll.u32 [#allocation8], 4
          %s241 = int_to_ptr.vmem [resolvable:$true] %s240
          %246 = dma.hbm_to_vmem [thread:$0]  %s239, 18432, %s241, [#allocation7], 128, 128, 8
        $region28: #{tpu_custom_call.1} parent=11 // pred_fallthru
          _
        // Predicated region
        $region29: #{tpu_custom_call.1} parent=11 // pred_check
          %p247 = pneg %p151
        $region30: #{tpu_custom_call.1} parent=11 // pred_check_branch
          %249 = sbr.rel (%p247) target = $region32
        $region31: #{tpu_custom_call.1} parent=11 // pred_region
          _
        $region32: #{tpu_custom_call.1} parent=11 // pred_fallthru
          _
        // Predicated region
        $region33: #{tpu_custom_call.1} parent=11 // pred_check
          %p250 = pneg %p172
        $region34: #{tpu_custom_call.1} parent=11 // pred_check_branch
          %252 = sbr.rel (%p250) target = $region36
        $region35: #{tpu_custom_call.1} parent=11 // pred_region
          _
        $region36: #{tpu_custom_call.1} parent=11 // pred_fallthru
          _
      $region12: #{tpu_custom_call.1} parent=5 // pred_fallthru
        _
      %p253 = scmp.lt.s32.totalorder %s20, 2
      // Predicated region
      $region37: #{tpu_custom_call.1} parent=5 // pred_check
        %p254 = pneg %p253
      $region38: #{tpu_custom_call.1} parent=5 // pred_check_branch
        %256 = sbr.rel (%p254) target = $region40
      $region39: #{tpu_custom_call.1} parent=5 // pred_region
        // Predicated region
        $region41: #{tpu_custom_call.1} parent=39 // pred_check
          %p257 = pneg %p40
        $region42: #{tpu_custom_call.1} parent=39 // pred_check_branch
          %259 = sbr.rel (%p257) target = $region44
        $region43: #{tpu_custom_call.1} parent=39 // pred_region
          %s260 = sand.u32 %s30, 1
          %s261 = scalar_lea.sflag [#allocation4], %s260
          %s262 = sand.u32 %s30, 1
          %s263 = smul.addr %s262, 384
          %s264 = scalar_lea.vmem [#allocation3], %s263
          %266 = vsyncadd %s261, 0
          %s267 = smul.addr %s20, 48
          %s268 = smul.addr %s267, 8
          %s269 = scalar_lea.hbm %s0, %s268
          %s270 = sshll.u32 %s269, 4
          %s271 = int_to_ptr.hbm [resolvable:$true] %s270
          %s272 = sshll.u32 %s264, 4
          %s273 = int_to_ptr.vmem [resolvable:$true] %s272
          %278 = dma.hbm_to_vmem [thread:$0]  %s271, 6144, %s273, %s261, 128, 128, 8
        $region44: #{tpu_custom_call.1} parent=39 // pred_fallthru
          _
      $region40: #{tpu_custom_call.1} parent=5 // pred_fallthru
        _
      %p279 = scmp.le.s32.totalorder 1, %s20
      %p280 = scmp.lt.s32.totalorder %s20, 3
      %p281 = pnand %p279, %p280
      %p282 = pneg %p281
      // Predicated region
      $region45: #{tpu_custom_call.1} parent=5 // pred_check
        _
      $region46: #{tpu_custom_call.1} parent=5 // pred_check_branch
        %284 = sbr.rel (%p281) target = $region48
      $region47: #{tpu_custom_call.1} parent=5 // pred_region
        %s285 = ssub.s32 %s20, 1
        %s286 = sand.u32 %s33, 1
        %s287 = scalar_lea.sflag [#allocation4], %s286
        %s288 = sand.u32 %s33, 1
        %s289 = smul.addr %s288, 384
        %s290 = scalar_lea.vmem [#allocation3], %s289
        // Predicated region
        $region49: #{tpu_custom_call.1} parent=47 // pred_check
          %p291 = pneg %p46
        $region50: #{tpu_custom_call.1} parent=47 // pred_check_branch
          %293 = sbr.rel (%p291) target = $region52
        $region51: #{tpu_custom_call.1} parent=47 // pred_region
          %295 = dma.done %s287, 6144
        $region52: #{tpu_custom_call.1} parent=47 // pred_fallthru
          _
        // Predicated region
        $region53: #{tpu_custom_call.1} parent=47 // pred_check
          %p296 = pneg %p67
        $region54: #{tpu_custom_call.1} parent=47 // pred_check_branch
          %298 = sbr.rel (%p296) target = $region56
        $region55: #{tpu_custom_call.1} parent=47 // pred_region
          %300 = dma.done [#allocation7], 18432
        $region56: #{tpu_custom_call.1} parent=47 // pred_fallthru
          _
        // Predicated region
        $region57: #{tpu_custom_call.1} parent=47 // pred_check
          %p301 = pneg %p130
        $region58: #{tpu_custom_call.1} parent=47 // pred_check_branch
          %303 = sbr.rel (%p301) target = $region60
        $region59: #{tpu_custom_call.1} parent=47 // pred_region
          %305 = dma.done [#allocation7], 18432
        $region60: #{tpu_custom_call.1} parent=47 // pred_fallthru
          _
        %s306 = sand.u32 %s33, 1
        %s307 = scalar_lea.sflag [#allocation4], %s306
        %s308 = sand.u32 %s33, 1
        %s309 = smul.addr %s308, 384
        %s310 = scalar_lea.vmem [#allocation3], %s309
        %p311 = pneg %p46
        %p312 = pneg %p43
        %p313 = pneg %p67
        %p314 = pneg %p64
        %p315 = pneg %p88
        %p316 = pneg %p85
        %p317 = pneg %p109
        %p318 = pneg %p106
        %p319 = pneg %p130
        %p320 = pneg %p127
        %p321 = pneg %p151
        %p322 = pneg %p148
        %p323 = pneg %p172
        %p324 = pneg %p169
        %p325 = pneg %p198
        %p326 = pneg %p195
        %s327 = sand.u32 %s185, 1
        %s328 = scalar_lea.sflag [#allocation5], %s327
        %s329 = sand.u32 %s185, 1
        %s330 = smul.addr %s329, 288
        %s331 = scalar_lea.vmem [#allocation9], %s330
        %v332 = vlaneseq
        %v333 = vshrl.u32 %v332, 7
        %v334 = vadd.s32 %v333, 8
        %v335 = vadd.s32 %v333, 16
        %v336 = vadd.s32 %v333, 24
        %v337 = vadd.s32 %v333, 32
        %v338 = vadd.s32 %v333, 40
        %v339 = vadd.s32 %v333, 48
        %v340 = vadd.s32 %v333, 56
        %v341 = vadd.s32 %v333, 64
        %v342 = vadd.s32 %v333, 72
        %v343 = vadd.s32 %v333, 80
        %v344 = vadd.s32 %v333, 88
        %v345 = vadd.s32 %v333, 96
        %v346 = vadd.s32 %v333, 104
        %v347 = vadd.s32 %v333, 112
        %v348 = vadd.s32 %v333, 120
        %v349 = vadd.s32 %v333, 128
        %v350 = vadd.s32 %v333, 136
        %v351 = vadd.s32 %v333, 144
        %v352 = vadd.s32 %v333, 152
        %v353 = vadd.s32 %v333, 160
        %v354 = vadd.s32 %v333, 168
        %v355 = vadd.s32 %v333, 176
        %v356 = vadd.s32 %v333, 184
        %v357 = vadd.s32 %v333, 192
        %v358 = vadd.s32 %v333, 200
        %v359 = vadd.s32 %v333, 208
        %v360 = vadd.s32 %v333, 216
        %v361 = vadd.s32 %v333, 224
        %v362 = vadd.s32 %v333, 232
        %v363 = vadd.s32 %v333, 240
        %v364 = vadd.s32 %v333, 248
        %v365 = vadd.s32 %v333, 256
        %v366 = vadd.s32 %v333, 264
        %v367 = vadd.s32 %v333, 272
        %v368 = vadd.s32 %v333, 280
        %vm369 = vcmp.lt.s32.totalorder %v333, 0
        %v370 = vsub.s32 0, %v333
        %v371 = vsel %vm369, %v370, %v333
        %v372 = vand.u32 %v371, 65535
        %v373 = vshrl.u32 %v371, 16
        %v375 = vmul.u32 %v372, 14564
        %v376 = vmul.u32 %v372, 58254
        %v377 = vmul.u32 %v373, 14564
        %v378 = vmul.u32 %v373, 58254
        %v379 = vshll.u32 %v376, 16
        %v380 = vshrl.u32 %v376, 16
        %v381 = vshll.u32 %v377, 16
        %v382 = vshrl.u32 %v377, 16
        %vm383 = vc.u32 %v375, %v379
        %v384 = vsel %vm383, 1, 0
        %v385 = vadd.s32 %v375, %v379
        %v386 = vadd.s32 %v378, %v384
        %vm387 = vc.u32 %v385, %v381
        %v388 = vsel %vm387, 1, 0
        %v389 = vadd.s32 %v385, %v381
        %v390 = vadd.s32 %v386, %v388
        %v391 = vadd.s32 %v390, %v380
        %v392 = vadd.s32 %v391, %v382
        %v393 = vshrl.u32 %v392, 4
        %v394 = vmul.u32 %v393, 18
        %v395 = vsub.s32 %v371, %v394
        %v396 = vsub.s32 0, %v395
        %v397 = vsel %vm369, %v396, %v395
        %vm398 = vcmp.lt.s32.totalorder %v334, 0
        %v399 = vsub.s32 0, %v334
        %v400 = vsel %vm398, %v399, %v334
        %v401 = vand.u32 %v400, 65535
        %v402 = vshrl.u32 %v400, 16
        %v404 = vmul.u32 %v401, 14564
        %v405 = vmul.u32 %v401, 58254
        %v406 = vmul.u32 %v402, 14564
        %v407 = vmul.u32 %v402, 58254
        %v408 = vshll.u32 %v405, 16
        %v409 = vshrl.u32 %v405, 16
        %v410 = vshll.u32 %v406, 16
        %v411 = vshrl.u32 %v406, 16
        %vm412 = vc.u32 %v404, %v408
        %v413 = vsel %vm412, 1, 0
        %v414 = vadd.s32 %v404, %v408
        %v415 = vadd.s32 %v407, %v413
        %vm416 = vc.u32 %v414, %v410
        %v417 = vsel %vm416, 1, 0
        %v418 = vadd.s32 %v414, %v410
        %v419 = vadd.s32 %v415, %v417
        %v420 = vadd.s32 %v419, %v409
        %v421 = vadd.s32 %v420, %v411
        %v422 = vshrl.u32 %v421, 4
        %v423 = vmul.u32 %v422, 18
        %v424 = vsub.s32 %v400, %v423
        %v425 = vsub.s32 0, %v424
        %v426 = vsel %vm398, %v425, %v424
        %vm427 = vcmp.lt.s32.totalorder %v335, 0
        %v428 = vsub.s32 0, %v335
        %v429 = vsel %vm427, %v428, %v335
        %v430 = vand.u32 %v429, 65535
        %v431 = vshrl.u32 %v429, 16
        %v433 = vmul.u32 %v430, 14564
        %v434 = vmul.u32 %v430, 58254
        %v435 = vmul.u32 %v431, 14564
        %v436 = vmul.u32 %v431, 58254
        %v437 = vshll.u32 %v434, 16
        %v438 = vshrl.u32 %v434, 16
        %v439 = vshll.u32 %v435, 16
        %v440 = vshrl.u32 %v435, 16
        %vm441 = vc.u32 %v433, %v437
        %v442 = vsel %vm441, 1, 0
        %v443 = vadd.s32 %v433, %v437
        %v444 = vadd.s32 %v436, %v442
        %vm445 = vc.u32 %v443, %v439
        %v446 = vsel %vm445, 1, 0
        %v447 = vadd.s32 %v443, %v439
        %v448 = vadd.s32 %v444, %v446
        %v449 = vadd.s32 %v448, %v438
        %v450 = vadd.s32 %v449, %v440
        %v451 = vshrl.u32 %v450, 4
        %v452 = vmul.u32 %v451, 18
        %v453 = vsub.s32 %v429, %v452
        %v454 = vsub.s32 0, %v453
        %v455 = vsel %vm427, %v454, %v453
        %vm456 = vcmp.lt.s32.totalorder %v336, 0
        %v457 = vsub.s32 0, %v336
        %v458 = vsel %vm456, %v457, %v336
        %v459 = vand.u32 %v458, 65535
        %v460 = vshrl.u32 %v458, 16
        %v462 = vmul.u32 %v459, 14564
        %v463 = vmul.u32 %v459, 58254
        %v464 = vmul.u32 %v460, 14564
        %v465 = vmul.u32 %v460, 58254
        %v466 = vshll.u32 %v463, 16
        %v467 = vshrl.u32 %v463, 16
        %v468 = vshll.u32 %v464, 16
        %v469 = vshrl.u32 %v464, 16
        %vm470 = vc.u32 %v462, %v466
        %v471 = vsel %vm470, 1, 0
        %v472 = vadd.s32 %v462, %v466
        %v473 = vadd.s32 %v465, %v471
        %vm474 = vc.u32 %v472, %v468
        %v475 = vsel %vm474, 1, 0
        %v476 = vadd.s32 %v472, %v468
        %v477 = vadd.s32 %v473, %v475
        %v478 = vadd.s32 %v477, %v467
        %v479 = vadd.s32 %v478, %v469
        %v480 = vshrl.u32 %v479, 4
        %v481 = vmul.u32 %v480, 18
        %v482 = vsub.s32 %v458, %v481
        %v483 = vsub.s32 0, %v482
        %v484 = vsel %vm456, %v483, %v482
        %vm485 = vcmp.lt.s32.totalorder %v337, 0
        %v486 = vsub.s32 0, %v337
        %v487 = vsel %vm485, %v486, %v337
        %v488 = vand.u32 %v487, 65535
        %v489 = vshrl.u32 %v487, 16
        %v491 = vmul.u32 %v488, 14564
        %v492 = vmul.u32 %v488, 58254
        %v493 = vmul.u32 %v489, 14564
        %v494 = vmul.u32 %v489, 58254
        %v495 = vshll.u32 %v492, 16
        %v496 = vshrl.u32 %v492, 16
        %v497 = vshll.u32 %v493, 16
        %v498 = vshrl.u32 %v493, 16
        %vm499 = vc.u32 %v491, %v495
        %v500 = vsel %vm499, 1, 0
        %v501 = vadd.s32 %v491, %v495
        %v502 = vadd.s32 %v494, %v500
        %vm503 = vc.u32 %v501, %v497
        %v504 = vsel %vm503, 1, 0
        %v505 = vadd.s32 %v501, %v497
        %v506 = vadd.s32 %v502, %v504
        %v507 = vadd.s32 %v506, %v496
        %v508 = vadd.s32 %v507, %v498
        %v509 = vshrl.u32 %v508, 4
        %v510 = vmul.u32 %v509, 18
        %v511 = vsub.s32 %v487, %v510
        %v512 = vsub.s32 0, %v511
        %v513 = vsel %vm485, %v512, %v511
        %vm514 = vcmp.lt.s32.totalorder %v338, 0
        %v515 = vsub.s32 0, %v338
        %v516 = vsel %vm514, %v515, %v338
        %v517 = vand.u32 %v516, 65535
        %v518 = vshrl.u32 %v516, 16
        %v520 = vmul.u32 %v517, 14564
        %v521 = vmul.u32 %v517, 58254
        %v522 = vmul.u32 %v518, 14564
        %v523 = vmul.u32 %v518, 58254
        %v524 = vshll.u32 %v521, 16
        %v525 = vshrl.u32 %v521, 16
        %v526 = vshll.u32 %v522, 16
        %v527 = vshrl.u32 %v522, 16
        %vm528 = vc.u32 %v520, %v524
        %v529 = vsel %vm528, 1, 0
        %v530 = vadd.s32 %v520, %v524
        %v531 = vadd.s32 %v523, %v529
        %vm532 = vc.u32 %v530, %v526
        %v533 = vsel %vm532, 1, 0
        %v534 = vadd.s32 %v530, %v526
        %v535 = vadd.s32 %v531, %v533
        %v536 = vadd.s32 %v535, %v525
        %v537 = vadd.s32 %v536, %v527
        %v538 = vshrl.u32 %v537, 4
        %v539 = vmul.u32 %v538, 18
        %v540 = vsub.s32 %v516, %v539
        %v541 = vsub.s32 0, %v540
        %v542 = vsel %vm514, %v541, %v540
        %vm543 = vcmp.lt.s32.totalorder %v339, 0
        %v544 = vsub.s32 0, %v339
        %v545 = vsel %vm543, %v544, %v339
        %v546 = vand.u32 %v545, 65535
        %v547 = vshrl.u32 %v545, 16
        %v549 = vmul.u32 %v546, 14564
        %v550 = vmul.u32 %v546, 58254
        %v551 = vmul.u32 %v547, 14564
        %v552 = vmul.u32 %v547, 58254
        %v553 = vshll.u32 %v550, 16
        %v554 = vshrl.u32 %v550, 16
        %v555 = vshll.u32 %v551, 16
        %v556 = vshrl.u32 %v551, 16
        %vm557 = vc.u32 %v549, %v553
        %v558 = vsel %vm557, 1, 0
        %v559 = vadd.s32 %v549, %v553
        %v560 = vadd.s32 %v552, %v558
        %vm561 = vc.u32 %v559, %v555
        %v562 = vsel %vm561, 1, 0
        %v563 = vadd.s32 %v559, %v555
        %v564 = vadd.s32 %v560, %v562
        %v565 = vadd.s32 %v564, %v554
        %v566 = vadd.s32 %v565, %v556
        %v567 = vshrl.u32 %v566, 4
        %v568 = vmul.u32 %v567, 18
        %v569 = vsub.s32 %v545, %v568
        %v570 = vsub.s32 0, %v569
        %v571 = vsel %vm543, %v570, %v569
        %vm572 = vcmp.lt.s32.totalorder %v340, 0
        %v573 = vsub.s32 0, %v340
        %v574 = vsel %vm572, %v573, %v340
        %v575 = vand.u32 %v574, 65535
        %v576 = vshrl.u32 %v574, 16
        %v578 = vmul.u32 %v575, 14564
        %v579 = vmul.u32 %v575, 58254
        %v580 = vmul.u32 %v576, 14564
        %v581 = vmul.u32 %v576, 58254
        %v582 = vshll.u32 %v579, 16
        %v583 = vshrl.u32 %v579, 16
        %v584 = vshll.u32 %v580, 16
        %v585 = vshrl.u32 %v580, 16
        %vm586 = vc.u32 %v578, %v582
        %v587 = vsel %vm586, 1, 0
        %v588 = vadd.s32 %v578, %v582
        %v589 = vadd.s32 %v581, %v587
        %vm590 = vc.u32 %v588, %v584
        %v591 = vsel %vm590, 1, 0
        %v592 = vadd.s32 %v588, %v584
        %v593 = vadd.s32 %v589, %v591
        %v594 = vadd.s32 %v593, %v583
        %v595 = vadd.s32 %v594, %v585
        %v596 = vshrl.u32 %v595, 4
        %v597 = vmul.u32 %v596, 18
        %v598 = vsub.s32 %v574, %v597
        %v599 = vsub.s32 0, %v598
        %v600 = vsel %vm572, %v599, %v598
        %vm601 = vcmp.lt.s32.totalorder %v341, 0
        %v602 = vsub.s32 0, %v341
        %v603 = vsel %vm601, %v602, %v341
        %v604 = vand.u32 %v603, 65535
        %v605 = vshrl.u32 %v603, 16
        %v607 = vmul.u32 %v604, 14564
        %v608 = vmul.u32 %v604, 58254
        %v609 = vmul.u32 %v605, 14564
        %v610 = vmul.u32 %v605, 58254
        %v611 = vshll.u32 %v608, 16
        %v612 = vshrl.u32 %v608, 16
        %v613 = vshll.u32 %v609, 16
        %v614 = vshrl.u32 %v609, 16
        %vm615 = vc.u32 %v607, %v611
        %v616 = vsel %vm615, 1, 0
        %v617 = vadd.s32 %v607, %v611
        %v618 = vadd.s32 %v610, %v616
        %vm619 = vc.u32 %v617, %v613
        %v620 = vsel %vm619, 1, 0
        %v621 = vadd.s32 %v617, %v613
        %v622 = vadd.s32 %v618, %v620
        %v623 = vadd.s32 %v622, %v612
        %v624 = vadd.s32 %v623, %v614
        %v625 = vshrl.u32 %v624, 4
        %v626 = vmul.u32 %v625, 18
        %v627 = vsub.s32 %v603, %v626
        %v628 = vsub.s32 0, %v627
        %v629 = vsel %vm601, %v628, %v627
        %vm630 = vcmp.lt.s32.totalorder %v342, 0
        %v631 = vsub.s32 0, %v342
        %v632 = vsel %vm630, %v631, %v342
        %v633 = vand.u32 %v632, 65535
        %v634 = vshrl.u32 %v632, 16
        %v636 = vmul.u32 %v633, 14564
        %v637 = vmul.u32 %v633, 58254
        %v638 = vmul.u32 %v634, 14564
        %v639 = vmul.u32 %v634, 58254
        %v640 = vshll.u32 %v637, 16
        %v641 = vshrl.u32 %v637, 16
        %v642 = vshll.u32 %v638, 16
        %v643 = vshrl.u32 %v638, 16
        %vm644 = vc.u32 %v636, %v640
        %v645 = vsel %vm644, 1, 0
        %v646 = vadd.s32 %v636, %v640
        %v647 = vadd.s32 %v639, %v645
        %vm648 = vc.u32 %v646, %v642
        %v649 = vsel %vm648, 1, 0
        %v650 = vadd.s32 %v646, %v642
        %v651 = vadd.s32 %v647, %v649
        %v652 = vadd.s32 %v651, %v641
        %v653 = vadd.s32 %v652, %v643
        %v654 = vshrl.u32 %v653, 4
        %v655 = vmul.u32 %v654, 18
        %v656 = vsub.s32 %v632, %v655
        %v657 = vsub.s32 0, %v656
        %v658 = vsel %vm630, %v657, %v656
        %vm659 = vcmp.lt.s32.totalorder %v343, 0
        %v660 = vsub.s32 0, %v343
        %v661 = vsel %vm659, %v660, %v343
        %v662 = vand.u32 %v661, 65535
        %v663 = vshrl.u32 %v661, 16
        %v665 = vmul.u32 %v662, 14564
        %v666 = vmul.u32 %v662, 58254
        %v667 = vmul.u32 %v663, 14564
        %v668 = vmul.u32 %v663, 58254
        %v669 = vshll.u32 %v666, 16
        %v670 = vshrl.u32 %v666, 16
        %v671 = vshll.u32 %v667, 16
        %v672 = vshrl.u32 %v667, 16
        %vm673 = vc.u32 %v665, %v669
        %v674 = vsel %vm673, 1, 0
        %v675 = vadd.s32 %v665, %v669
        %v676 = vadd.s32 %v668, %v674
        %vm677 = vc.u32 %v675, %v671
        %v678 = vsel %vm677, 1, 0
        %v679 = vadd.s32 %v675, %v671
        %v680 = vadd.s32 %v676, %v678
        %v681 = vadd.s32 %v680, %v670
        %v682 = vadd.s32 %v681, %v672
        %v683 = vshrl.u32 %v682, 4
        %v684 = vmul.u32 %v683, 18
        %v685 = vsub.s32 %v661, %v684
        %v686 = vsub.s32 0, %v685
        %v687 = vsel %vm659, %v686, %v685
        %vm688 = vcmp.lt.s32.totalorder %v344, 0
        %v689 = vsub.s32 0, %v344
        %v690 = vsel %vm688, %v689, %v344
        %v691 = vand.u32 %v690, 65535
        %v692 = vshrl.u32 %v690, 16
        %v694 = vmul.u32 %v691, 14564
        %v695 = vmul.u32 %v691, 58254
        %v696 = vmul.u32 %v692, 14564
        %v697 = vmul.u32 %v692, 58254
        %v698 = vshll.u32 %v695, 16
        %v699 = vshrl.u32 %v695, 16
        %v700 = vshll.u32 %v696, 16
        %v701 = vshrl.u32 %v696, 16
        %vm702 = vc.u32 %v694, %v698
        %v703 = vsel %vm702, 1, 0
        %v704 = vadd.s32 %v694, %v698
        %v705 = vadd.s32 %v697, %v703
        %vm706 = vc.u32 %v704, %v700
        %v707 = vsel %vm706, 1, 0
        %v708 = vadd.s32 %v704, %v700
        %v709 = vadd.s32 %v705, %v707
        %v710 = vadd.s32 %v709, %v699
        %v711 = vadd.s32 %v710, %v701
        %v712 = vshrl.u32 %v711, 4
        %v713 = vmul.u32 %v712, 18
        %v714 = vsub.s32 %v690, %v713
        %v715 = vsub.s32 0, %v714
        %v716 = vsel %vm688, %v715, %v714
        %vm717 = vcmp.lt.s32.totalorder %v345, 0
        %v718 = vsub.s32 0, %v345
        %v719 = vsel %vm717, %v718, %v345
        %v720 = vand.u32 %v719, 65535
        %v721 = vshrl.u32 %v719, 16
        %v723 = vmul.u32 %v720, 14564
        %v724 = vmul.u32 %v720, 58254
        %v725 = vmul.u32 %v721, 14564
        %v726 = vmul.u32 %v721, 58254
        %v727 = vshll.u32 %v724, 16
        %v728 = vshrl.u32 %v724, 16
        %v729 = vshll.u32 %v725, 16
        %v730 = vshrl.u32 %v725, 16
        %vm731 = vc.u32 %v723, %v727
        %v732 = vsel %vm731, 1, 0
        %v733 = vadd.s32 %v723, %v727
        %v734 = vadd.s32 %v726, %v732
        %vm735 = vc.u32 %v733, %v729
        %v736 = vsel %vm735, 1, 0
        %v737 = vadd.s32 %v733, %v729
        %v738 = vadd.s32 %v734, %v736
        %v739 = vadd.s32 %v738, %v728
        %v740 = vadd.s32 %v739, %v730
        %v741 = vshrl.u32 %v740, 4
        %v742 = vmul.u32 %v741, 18
        %v743 = vsub.s32 %v719, %v742
        %v744 = vsub.s32 0, %v743
        %v745 = vsel %vm717, %v744, %v743
        %vm746 = vcmp.lt.s32.totalorder %v346, 0
        %v747 = vsub.s32 0, %v346
        %v748 = vsel %vm746, %v747, %v346
        %v749 = vand.u32 %v748, 65535
        %v750 = vshrl.u32 %v748, 16
        %v752 = vmul.u32 %v749, 14564
        %v753 = vmul.u32 %v749, 58254
        %v754 = vmul.u32 %v750, 14564
        %v755 = vmul.u32 %v750, 58254
        %v756 = vshll.u32 %v753, 16
        %v757 = vshrl.u32 %v753, 16
        %v758 = vshll.u32 %v754, 16
        %v759 = vshrl.u32 %v754, 16
        %vm760 = vc.u32 %v752, %v756
        %v761 = vsel %vm760, 1, 0
        %v762 = vadd.s32 %v752, %v756
        %v763 = vadd.s32 %v755, %v761
        %vm764 = vc.u32 %v762, %v758
        %v765 = vsel %vm764, 1, 0
        %v766 = vadd.s32 %v762, %v758
        %v767 = vadd.s32 %v763, %v765
        %v768 = vadd.s32 %v767, %v757
        %v769 = vadd.s32 %v768, %v759
        %v770 = vshrl.u32 %v769, 4
        %v771 = vmul.u32 %v770, 18
        %v772 = vsub.s32 %v748, %v771
        %v773 = vsub.s32 0, %v772
        %v774 = vsel %vm746, %v773, %v772
        %vm775 = vcmp.lt.s32.totalorder %v347, 0
        %v776 = vsub.s32 0, %v347
        %v777 = vsel %vm775, %v776, %v347
        %v778 = vand.u32 %v777, 65535
        %v779 = vshrl.u32 %v777, 16
        %v781 = vmul.u32 %v778, 14564
        %v782 = vmul.u32 %v778, 58254
        %v783 = vmul.u32 %v779, 14564
        %v784 = vmul.u32 %v779, 58254
        %v785 = vshll.u32 %v782, 16
        %v786 = vshrl.u32 %v782, 16
        %v787 = vshll.u32 %v783, 16
        %v788 = vshrl.u32 %v783, 16
        %vm789 = vc.u32 %v781, %v785
        %v790 = vsel %vm789, 1, 0
        %v791 = vadd.s32 %v781, %v785
        %v792 = vadd.s32 %v784, %v790
        %vm793 = vc.u32 %v791, %v787
        %v794 = vsel %vm793, 1, 0
        %v795 = vadd.s32 %v791, %v787
        %v796 = vadd.s32 %v792, %v794
        %v797 = vadd.s32 %v796, %v786
        %v798 = vadd.s32 %v797, %v788
        %v799 = vshrl.u32 %v798, 4
        %v800 = vmul.u32 %v799, 18
        %v801 = vsub.s32 %v777, %v800
        %v802 = vsub.s32 0, %v801
        %v803 = vsel %vm775, %v802, %v801
        %vm804 = vcmp.lt.s32.totalorder %v348, 0
        %v805 = vsub.s32 0, %v348
        %v806 = vsel %vm804, %v805, %v348
        %v807 = vand.u32 %v806, 65535
        %v808 = vshrl.u32 %v806, 16
        %v810 = vmul.u32 %v807, 14564
        %v811 = vmul.u32 %v807, 58254
        %v812 = vmul.u32 %v808, 14564
        %v813 = vmul.u32 %v808, 58254
        %v814 = vshll.u32 %v811, 16
        %v815 = vshrl.u32 %v811, 16
        %v816 = vshll.u32 %v812, 16
        %v817 = vshrl.u32 %v812, 16
        %vm818 = vc.u32 %v810, %v814
        %v819 = vsel %vm818, 1, 0
        %v820 = vadd.s32 %v810, %v814
        %v821 = vadd.s32 %v813, %v819
        %vm822 = vc.u32 %v820, %v816
        %v823 = vsel %vm822, 1, 0
        %v824 = vadd.s32 %v820, %v816
        %v825 = vadd.s32 %v821, %v823
        %v826 = vadd.s32 %v825, %v815
        %v827 = vadd.s32 %v826, %v817
        %v828 = vshrl.u32 %v827, 4
        %v829 = vmul.u32 %v828, 18
        %v830 = vsub.s32 %v806, %v829
        %v831 = vsub.s32 0, %v830
        %v832 = vsel %vm804, %v831, %v830
        %vm833 = vcmp.lt.s32.totalorder %v349, 0
        %v834 = vsub.s32 0, %v349
        %v835 = vsel %vm833, %v834, %v349
        %v836 = vand.u32 %v835, 65535
        %v837 = vshrl.u32 %v835, 16
        %v839 = vmul.u32 %v836, 14564
        %v840 = vmul.u32 %v836, 58254
        %v841 = vmul.u32 %v837, 14564
        %v842 = vmul.u32 %v837, 58254
        %v843 = vshll.u32 %v840, 16
        %v844 = vshrl.u32 %v840, 16
        %v845 = vshll.u32 %v841, 16
        %v846 = vshrl.u32 %v841, 16
        %vm847 = vc.u32 %v839, %v843
        %v848 = vsel %vm847, 1, 0
        %v849 = vadd.s32 %v839, %v843
        %v850 = vadd.s32 %v842, %v848
        %vm851 = vc.u32 %v849, %v845
        %v852 = vsel %vm851, 1, 0
        %v853 = vadd.s32 %v849, %v845
        %v854 = vadd.s32 %v850, %v852
        %v855 = vadd.s32 %v854, %v844
        %v856 = vadd.s32 %v855, %v846
        %v857 = vshrl.u32 %v856, 4
        %v858 = vmul.u32 %v857, 18
        %v859 = vsub.s32 %v835, %v858
        %v860 = vsub.s32 0, %v859
        %v861 = vsel %vm833, %v860, %v859
        %vm862 = vcmp.lt.s32.totalorder %v350, 0
        %v863 = vsub.s32 0, %v350
        %v864 = vsel %vm862, %v863, %v350
        %v865 = vand.u32 %v864, 65535
        %v866 = vshrl.u32 %v864, 16
        %v868 = vmul.u32 %v865, 14564
        %v869 = vmul.u32 %v865, 58254
        %v870 = vmul.u32 %v866, 14564
        %v871 = vmul.u32 %v866, 58254
        %v872 = vshll.u32 %v869, 16
        %v873 = vshrl.u32 %v869, 16
        %v874 = vshll.u32 %v870, 16
        %v875 = vshrl.u32 %v870, 16
        %vm876 = vc.u32 %v868, %v872
        %v877 = vsel %vm876, 1, 0
        %v878 = vadd.s32 %v868, %v872
        %v879 = vadd.s32 %v871, %v877
        %vm880 = vc.u32 %v878, %v874
        %v881 = vsel %vm880, 1, 0
        %v882 = vadd.s32 %v878, %v874
        %v883 = vadd.s32 %v879, %v881
        %v884 = vadd.s32 %v883, %v873
        %v885 = vadd.s32 %v884, %v875
        %v886 = vshrl.u32 %v885, 4
        %v887 = vmul.u32 %v886, 18
        %v888 = vsub.s32 %v864, %v887
        %v889 = vsub.s32 0, %v888
        %v890 = vsel %vm862, %v889, %v888
        %vm891 = vcmp.lt.s32.totalorder %v351, 0
        %v892 = vsub.s32 0, %v351
        %v893 = vsel %vm891, %v892, %v351
        %v894 = vand.u32 %v893, 65535
        %v895 = vshrl.u32 %v893, 16
        %v897 = vmul.u32 %v894, 14564
        %v898 = vmul.u32 %v894, 58254
        %v899 = vmul.u32 %v895, 14564
        %v900 = vmul.u32 %v895, 58254
        %v901 = vshll.u32 %v898, 16
        %v902 = vshrl.u32 %v898, 16
        %v903 = vshll.u32 %v899, 16
        %v904 = vshrl.u32 %v899, 16
        %vm905 = vc.u32 %v897, %v901
        %v906 = vsel %vm905, 1, 0
        %v907 = vadd.s32 %v897, %v901
        %v908 = vadd.s32 %v900, %v906
        %vm909 = vc.u32 %v907, %v903
        %v910 = vsel %vm909, 1, 0
        %v911 = vadd.s32 %v907, %v903
        %v912 = vadd.s32 %v908, %v910
        %v913 = vadd.s32 %v912, %v902
        %v914 = vadd.s32 %v913, %v904
        %v915 = vshrl.u32 %v914, 4
        %v916 = vmul.u32 %v915, 18
        %v917 = vsub.s32 %v893, %v916
        %v918 = vsub.s32 0, %v917
        %v919 = vsel %vm891, %v918, %v917
        %vm920 = vcmp.lt.s32.totalorder %v352, 0
        %v921 = vsub.s32 0, %v352
        %v922 = vsel %vm920, %v921, %v352
        %v923 = vand.u32 %v922, 65535
        %v924 = vshrl.u32 %v922, 16
        %v926 = vmul.u32 %v923, 14564
        %v927 = vmul.u32 %v923, 58254
        %v928 = vmul.u32 %v924, 14564
        %v929 = vmul.u32 %v924, 58254
        %v930 = vshll.u32 %v927, 16
        %v931 = vshrl.u32 %v927, 16
        %v932 = vshll.u32 %v928, 16
        %v933 = vshrl.u32 %v928, 16
        %vm934 = vc.u32 %v926, %v930
        %v935 = vsel %vm934, 1, 0
        %v936 = vadd.s32 %v926, %v930
        %v937 = vadd.s32 %v929, %v935
        %vm938 = vc.u32 %v936, %v932
        %v939 = vsel %vm938, 1, 0
        %v940 = vadd.s32 %v936, %v932
        %v941 = vadd.s32 %v937, %v939
        %v942 = vadd.s32 %v941, %v931
        %v943 = vadd.s32 %v942, %v933
        %v944 = vshrl.u32 %v943, 4
        %v945 = vmul.u32 %v944, 18
        %v946 = vsub.s32 %v922, %v945
        %v947 = vsub.s32 0, %v946
        %v948 = vsel %vm920, %v947, %v946
        %vm949 = vcmp.lt.s32.totalorder %v353, 0
        %v950 = vsub.s32 0, %v353
        %v951 = vsel %vm949, %v950, %v353
        %v952 = vand.u32 %v951, 65535
        %v953 = vshrl.u32 %v951, 16
        %v955 = vmul.u32 %v952, 14564
        %v956 = vmul.u32 %v952, 58254
        %v957 = vmul.u32 %v953, 14564
        %v958 = vmul.u32 %v953, 58254
        %v959 = vshll.u32 %v956, 16
        %v960 = vshrl.u32 %v956, 16
        %v961 = vshll.u32 %v957, 16
        %v962 = vshrl.u32 %v957, 16
        %vm963 = vc.u32 %v955, %v959
        %v964 = vsel %vm963, 1, 0
        %v965 = vadd.s32 %v955, %v959
        %v966 = vadd.s32 %v958, %v964
        %vm967 = vc.u32 %v965, %v961
        %v968 = vsel %vm967, 1, 0
        %v969 = vadd.s32 %v965, %v961
        %v970 = vadd.s32 %v966, %v968
        %v971 = vadd.s32 %v970, %v960
        %v972 = vadd.s32 %v971, %v962
        %v973 = vshrl.u32 %v972, 4
        %v974 = vmul.u32 %v973, 18
        %v975 = vsub.s32 %v951, %v974
        %v976 = vsub.s32 0, %v975
        %v977 = vsel %vm949, %v976, %v975
        %vm978 = vcmp.lt.s32.totalorder %v354, 0
        %v979 = vsub.s32 0, %v354
        %v980 = vsel %vm978, %v979, %v354
        %v981 = vand.u32 %v980, 65535
        %v982 = vshrl.u32 %v980, 16
        %v984 = vmul.u32 %v981, 14564
        %v985 = vmul.u32 %v981, 58254
        %v986 = vmul.u32 %v982, 14564
        %v987 = vmul.u32 %v982, 58254
        %v988 = vshll.u32 %v985, 16
        %v989 = vshrl.u32 %v985, 16
        %v990 = vshll.u32 %v986, 16
        %v991 = vshrl.u32 %v986, 16
        %vm992 = vc.u32 %v984, %v988
        %v993 = vsel %vm992, 1, 0
        %v994 = vadd.s32 %v984, %v988
        %v995 = vadd.s32 %v987, %v993
        %vm996 = vc.u32 %v994, %v990
        %v997 = vsel %vm996, 1, 0
        %v998 = vadd.s32 %v994, %v990
        %v999 = vadd.s32 %v995, %v997
        %v1000 = vadd.s32 %v999, %v989
        %v1001 = vadd.s32 %v1000, %v991
        %v1002 = vshrl.u32 %v1001, 4
        %v1003 = vmul.u32 %v1002, 18
        %v1004 = vsub.s32 %v980, %v1003
        %v1005 = vsub.s32 0, %v1004
        %v1006 = vsel %vm978, %v1005, %v1004
        %vm1007 = vcmp.lt.s32.totalorder %v355, 0
        %v1008 = vsub.s32 0, %v355
        %v1009 = vsel %vm1007, %v1008, %v355
        %v1010 = vand.u32 %v1009, 65535
        %v1011 = vshrl.u32 %v1009, 16
        %v1013 = vmul.u32 %v1010, 14564
        %v1014 = vmul.u32 %v1010, 58254
        %v1015 = vmul.u32 %v1011, 14564
        %v1016 = vmul.u32 %v1011, 58254
        %v1017 = vshll.u32 %v1014, 16
        %v1018 = vshrl.u32 %v1014, 16
        %v1019 = vshll.u32 %v1015, 16
        %v1020 = vshrl.u32 %v1015, 16
        %vm1021 = vc.u32 %v1013, %v1017
        %v1022 = vsel %vm1021, 1, 0
        %v1023 = vadd.s32 %v1013, %v1017
        %v1024 = vadd.s32 %v1016, %v1022
        %vm1025 = vc.u32 %v1023, %v1019
        %v1026 = vsel %vm1025, 1, 0
        %v1027 = vadd.s32 %v1023, %v1019
        %v1028 = vadd.s32 %v1024, %v1026
        %v1029 = vadd.s32 %v1028, %v1018
        %v1030 = vadd.s32 %v1029, %v1020
        %v1031 = vshrl.u32 %v1030, 4
        %v1032 = vmul.u32 %v1031, 18
        %v1033 = vsub.s32 %v1009, %v1032
        %v1034 = vsub.s32 0, %v1033
        %v1035 = vsel %vm1007, %v1034, %v1033
        %vm1036 = vcmp.lt.s32.totalorder %v356, 0
        %v1037 = vsub.s32 0, %v356
        %v1038 = vsel %vm1036, %v1037, %v356
        %v1039 = vand.u32 %v1038, 65535
        %v1040 = vshrl.u32 %v1038, 16
        %v1042 = vmul.u32 %v1039, 14564
        %v1043 = vmul.u32 %v1039, 58254
        %v1044 = vmul.u32 %v1040, 14564
        %v1045 = vmul.u32 %v1040, 58254
        %v1046 = vshll.u32 %v1043, 16
        %v1047 = vshrl.u32 %v1043, 16
        %v1048 = vshll.u32 %v1044, 16
        %v1049 = vshrl.u32 %v1044, 16
        %vm1050 = vc.u32 %v1042, %v1046
        %v1051 = vsel %vm1050, 1, 0
        %v1052 = vadd.s32 %v1042, %v1046
        %v1053 = vadd.s32 %v1045, %v1051
        %vm1054 = vc.u32 %v1052, %v1048
        %v1055 = vsel %vm1054, 1, 0
        %v1056 = vadd.s32 %v1052, %v1048
        %v1057 = vadd.s32 %v1053, %v1055
        %v1058 = vadd.s32 %v1057, %v1047
        %v1059 = vadd.s32 %v1058, %v1049
        %v1060 = vshrl.u32 %v1059, 4
        %v1061 = vmul.u32 %v1060, 18
        %v1062 = vsub.s32 %v1038, %v1061
        %v1063 = vsub.s32 0, %v1062
        %v1064 = vsel %vm1036, %v1063, %v1062
        %vm1065 = vcmp.lt.s32.totalorder %v357, 0
        %v1066 = vsub.s32 0, %v357
        %v1067 = vsel %vm1065, %v1066, %v357
        %v1068 = vand.u32 %v1067, 65535
        %v1069 = vshrl.u32 %v1067, 16
        %v1071 = vmul.u32 %v1068, 14564
        %v1072 = vmul.u32 %v1068, 58254
        %v1073 = vmul.u32 %v1069, 14564
        %v1074 = vmul.u32 %v1069, 58254
        %v1075 = vshll.u32 %v1072, 16
        %v1076 = vshrl.u32 %v1072, 16
        %v1077 = vshll.u32 %v1073, 16
        %v1078 = vshrl.u32 %v1073, 16
        %vm1079 = vc.u32 %v1071, %v1075
        %v1080 = vsel %vm1079, 1, 0
        %v1081 = vadd.s32 %v1071, %v1075
        %v1082 = vadd.s32 %v1074, %v1080
        %vm1083 = vc.u32 %v1081, %v1077
        %v1084 = vsel %vm1083, 1, 0
        %v1085 = vadd.s32 %v1081, %v1077
        %v1086 = vadd.s32 %v1082, %v1084
        %v1087 = vadd.s32 %v1086, %v1076
        %v1088 = vadd.s32 %v1087, %v1078
        %v1089 = vshrl.u32 %v1088, 4
        %v1090 = vmul.u32 %v1089, 18
        %v1091 = vsub.s32 %v1067, %v1090
        %v1092 = vsub.s32 0, %v1091
        %v1093 = vsel %vm1065, %v1092, %v1091
        %vm1094 = vcmp.lt.s32.totalorder %v358, 0
        %v1095 = vsub.s32 0, %v358
        %v1096 = vsel %vm1094, %v1095, %v358
        %v1097 = vand.u32 %v1096, 65535
        %v1098 = vshrl.u32 %v1096, 16
        %v1100 = vmul.u32 %v1097, 14564
        %v1101 = vmul.u32 %v1097, 58254
        %v1102 = vmul.u32 %v1098, 14564
        %v1103 = vmul.u32 %v1098, 58254
        %v1104 = vshll.u32 %v1101, 16
        %v1105 = vshrl.u32 %v1101, 16
        %v1106 = vshll.u32 %v1102, 16
        %v1107 = vshrl.u32 %v1102, 16
        %vm1108 = vc.u32 %v1100, %v1104
        %v1109 = vsel %vm1108, 1, 0
        %v1110 = vadd.s32 %v1100, %v1104
        %v1111 = vadd.s32 %v1103, %v1109
        %vm1112 = vc.u32 %v1110, %v1106
        %v1113 = vsel %vm1112, 1, 0
        %v1114 = vadd.s32 %v1110, %v1106
        %v1115 = vadd.s32 %v1111, %v1113
        %v1116 = vadd.s32 %v1115, %v1105
        %v1117 = vadd.s32 %v1116, %v1107
        %v1118 = vshrl.u32 %v1117, 4
        %v1119 = vmul.u32 %v1118, 18
        %v1120 = vsub.s32 %v1096, %v1119
        %v1121 = vsub.s32 0, %v1120
        %v1122 = vsel %vm1094, %v1121, %v1120
        %vm1123 = vcmp.lt.s32.totalorder %v359, 0
        %v1124 = vsub.s32 0, %v359
        %v1125 = vsel %vm1123, %v1124, %v359
        %v1126 = vand.u32 %v1125, 65535
        %v1127 = vshrl.u32 %v1125, 16
        %v1129 = vmul.u32 %v1126, 14564
        %v1130 = vmul.u32 %v1126, 58254
        %v1131 = vmul.u32 %v1127, 14564
        %v1132 = vmul.u32 %v1127, 58254
        %v1133 = vshll.u32 %v1130, 16
        %v1134 = vshrl.u32 %v1130, 16
        %v1135 = vshll.u32 %v1131, 16
        %v1136 = vshrl.u32 %v1131, 16
        %vm1137 = vc.u32 %v1129, %v1133
        %v1138 = vsel %vm1137, 1, 0
        %v1139 = vadd.s32 %v1129, %v1133
        %v1140 = vadd.s32 %v1132, %v1138
        %vm1141 = vc.u32 %v1139, %v1135
        %v1142 = vsel %vm1141, 1, 0
        %v1143 = vadd.s32 %v1139, %v1135
        %v1144 = vadd.s32 %v1140, %v1142
        %v1145 = vadd.s32 %v1144, %v1134
        %v1146 = vadd.s32 %v1145, %v1136
        %v1147 = vshrl.u32 %v1146, 4
        %v1148 = vmul.u32 %v1147, 18
        %v1149 = vsub.s32 %v1125, %v1148
        %v1150 = vsub.s32 0, %v1149
        %v1151 = vsel %vm1123, %v1150, %v1149
        %vm1152 = vcmp.lt.s32.totalorder %v360, 0
        %v1153 = vsub.s32 0, %v360
        %v1154 = vsel %vm1152, %v1153, %v360
        %v1155 = vand.u32 %v1154, 65535
        %v1156 = vshrl.u32 %v1154, 16
        %v1158 = vmul.u32 %v1155, 14564
        %v1159 = vmul.u32 %v1155, 58254
        %v1160 = vmul.u32 %v1156, 14564
        %v1161 = vmul.u32 %v1156, 58254
        %v1162 = vshll.u32 %v1159, 16
        %v1163 = vshrl.u32 %v1159, 16
        %v1164 = vshll.u32 %v1160, 16
        %v1165 = vshrl.u32 %v1160, 16
        %vm1166 = vc.u32 %v1158, %v1162
        %v1167 = vsel %vm1166, 1, 0
        %v1168 = vadd.s32 %v1158, %v1162
        %v1169 = vadd.s32 %v1161, %v1167
        %vm1170 = vc.u32 %v1168, %v1164
        %v1171 = vsel %vm1170, 1, 0
        %v1172 = vadd.s32 %v1168, %v1164
        %v1173 = vadd.s32 %v1169, %v1171
        %v1174 = vadd.s32 %v1173, %v1163
        %v1175 = vadd.s32 %v1174, %v1165
        %v1176 = vshrl.u32 %v1175, 4
        %v1177 = vmul.u32 %v1176, 18
        %v1178 = vsub.s32 %v1154, %v1177
        %v1179 = vsub.s32 0, %v1178
        %v1180 = vsel %vm1152, %v1179, %v1178
        %vm1181 = vcmp.lt.s32.totalorder %v361, 0
        %v1182 = vsub.s32 0, %v361
        %v1183 = vsel %vm1181, %v1182, %v361
        %v1184 = vand.u32 %v1183, 65535
        %v1185 = vshrl.u32 %v1183, 16
        %v1187 = vmul.u32 %v1184, 14564
        %v1188 = vmul.u32 %v1184, 58254
        %v1189 = vmul.u32 %v1185, 14564
        %v1190 = vmul.u32 %v1185, 58254
        %v1191 = vshll.u32 %v1188, 16
        %v1192 = vshrl.u32 %v1188, 16
        %v1193 = vshll.u32 %v1189, 16
        %v1194 = vshrl.u32 %v1189, 16
        %vm1195 = vc.u32 %v1187, %v1191
        %v1196 = vsel %vm1195, 1, 0
        %v1197 = vadd.s32 %v1187, %v1191
        %v1198 = vadd.s32 %v1190, %v1196
        %vm1199 = vc.u32 %v1197, %v1193
        %v1200 = vsel %vm1199, 1, 0
        %v1201 = vadd.s32 %v1197, %v1193
        %v1202 = vadd.s32 %v1198, %v1200
        %v1203 = vadd.s32 %v1202, %v1192
        %v1204 = vadd.s32 %v1203, %v1194
        %v1205 = vshrl.u32 %v1204, 4
        %v1206 = vmul.u32 %v1205, 18
        %v1207 = vsub.s32 %v1183, %v1206
        %v1208 = vsub.s32 0, %v1207
        %v1209 = vsel %vm1181, %v1208, %v1207
        %vm1210 = vcmp.lt.s32.totalorder %v362, 0
        %v1211 = vsub.s32 0, %v362
        %v1212 = vsel %vm1210, %v1211, %v362
        %v1213 = vand.u32 %v1212, 65535
        %v1214 = vshrl.u32 %v1212, 16
        %v1216 = vmul.u32 %v1213, 14564
        %v1217 = vmul.u32 %v1213, 58254
        %v1218 = vmul.u32 %v1214, 14564
        %v1219 = vmul.u32 %v1214, 58254
        %v1220 = vshll.u32 %v1217, 16
        %v1221 = vshrl.u32 %v1217, 16
        %v1222 = vshll.u32 %v1218, 16
        %v1223 = vshrl.u32 %v1218, 16
        %vm1224 = vc.u32 %v1216, %v1220
        %v1225 = vsel %vm1224, 1, 0
        %v1226 = vadd.s32 %v1216, %v1220
        %v1227 = vadd.s32 %v1219, %v1225
        %vm1228 = vc.u32 %v1226, %v1222
        %v1229 = vsel %vm1228, 1, 0
        %v1230 = vadd.s32 %v1226, %v1222
        %v1231 = vadd.s32 %v1227, %v1229
        %v1232 = vadd.s32 %v1231, %v1221
        %v1233 = vadd.s32 %v1232, %v1223
        %v1234 = vshrl.u32 %v1233, 4
        %v1235 = vmul.u32 %v1234, 18
        %v1236 = vsub.s32 %v1212, %v1235
        %v1237 = vsub.s32 0, %v1236
        %v1238 = vsel %vm1210, %v1237, %v1236
        %vm1239 = vcmp.lt.s32.totalorder %v363, 0
        %v1240 = vsub.s32 0, %v363
        %v1241 = vsel %vm1239, %v1240, %v363
        %v1242 = vand.u32 %v1241, 65535
        %v1243 = vshrl.u32 %v1241, 16
        %v1245 = vmul.u32 %v1242, 14564
        %v1246 = vmul.u32 %v1242, 58254
        %v1247 = vmul.u32 %v1243, 14564
        %v1248 = vmul.u32 %v1243, 58254
        %v1249 = vshll.u32 %v1246, 16
        %v1250 = vshrl.u32 %v1246, 16
        %v1251 = vshll.u32 %v1247, 16
        %v1252 = vshrl.u32 %v1247, 16
        %vm1253 = vc.u32 %v1245, %v1249
        %v1254 = vsel %vm1253, 1, 0
        %v1255 = vadd.s32 %v1245, %v1249
        %v1256 = vadd.s32 %v1248, %v1254
        %vm1257 = vc.u32 %v1255, %v1251
        %v1258 = vsel %vm1257, 1, 0
        %v1259 = vadd.s32 %v1255, %v1251
        %v1260 = vadd.s32 %v1256, %v1258
        %v1261 = vadd.s32 %v1260, %v1250
        %v1262 = vadd.s32 %v1261, %v1252
        %v1263 = vshrl.u32 %v1262, 4
        %v1264 = vmul.u32 %v1263, 18
        %v1265 = vsub.s32 %v1241, %v1264
        %v1266 = vsub.s32 0, %v1265
        %v1267 = vsel %vm1239, %v1266, %v1265
        %vm1268 = vcmp.lt.s32.totalorder %v364, 0
        %v1269 = vsub.s32 0, %v364
        %v1270 = vsel %vm1268, %v1269, %v364
        %v1271 = vand.u32 %v1270, 65535
        %v1272 = vshrl.u32 %v1270, 16
        %v1274 = vmul.u32 %v1271, 14564
        %v1275 = vmul.u32 %v1271, 58254
        %v1276 = vmul.u32 %v1272, 14564
        %v1277 = vmul.u32 %v1272, 58254
        %v1278 = vshll.u32 %v1275, 16
        %v1279 = vshrl.u32 %v1275, 16
        %v1280 = vshll.u32 %v1276, 16
        %v1281 = vshrl.u32 %v1276, 16
        %vm1282 = vc.u32 %v1274, %v1278
        %v1283 = vsel %vm1282, 1, 0
        %v1284 = vadd.s32 %v1274, %v1278
        %v1285 = vadd.s32 %v1277, %v1283
        %vm1286 = vc.u32 %v1284, %v1280
        %v1287 = vsel %vm1286, 1, 0
        %v1288 = vadd.s32 %v1284, %v1280
        %v1289 = vadd.s32 %v1285, %v1287
        %v1290 = vadd.s32 %v1289, %v1279
        %v1291 = vadd.s32 %v1290, %v1281
        %v1292 = vshrl.u32 %v1291, 4
        %v1293 = vmul.u32 %v1292, 18
        %v1294 = vsub.s32 %v1270, %v1293
        %v1295 = vsub.s32 0, %v1294
        %v1296 = vsel %vm1268, %v1295, %v1294
        %vm1297 = vcmp.lt.s32.totalorder %v365, 0
        %v1298 = vsub.s32 0, %v365
        %v1299 = vsel %vm1297, %v1298, %v365
        %v1300 = vand.u32 %v1299, 65535
        %v1301 = vshrl.u32 %v1299, 16
        %v1303 = vmul.u32 %v1300, 14564
        %v1304 = vmul.u32 %v1300, 58254
        %v1305 = vmul.u32 %v1301, 14564
        %v1306 = vmul.u32 %v1301, 58254
        %v1307 = vshll.u32 %v1304, 16
        %v1308 = vshrl.u32 %v1304, 16
        %v1309 = vshll.u32 %v1305, 16
        %v1310 = vshrl.u32 %v1305, 16
        %vm1311 = vc.u32 %v1303, %v1307
        %v1312 = vsel %vm1311, 1, 0
        %v1313 = vadd.s32 %v1303, %v1307
        %v1314 = vadd.s32 %v1306, %v1312
        %vm1315 = vc.u32 %v1313, %v1309
        %v1316 = vsel %vm1315, 1, 0
        %v1317 = vadd.s32 %v1313, %v1309
        %v1318 = vadd.s32 %v1314, %v1316
        %v1319 = vadd.s32 %v1318, %v1308
        %v1320 = vadd.s32 %v1319, %v1310
        %v1321 = vshrl.u32 %v1320, 4
        %v1322 = vmul.u32 %v1321, 18
        %v1323 = vsub.s32 %v1299, %v1322
        %v1324 = vsub.s32 0, %v1323
        %v1325 = vsel %vm1297, %v1324, %v1323
        %vm1326 = vcmp.lt.s32.totalorder %v366, 0
        %v1327 = vsub.s32 0, %v366
        %v1328 = vsel %vm1326, %v1327, %v366
        %v1329 = vand.u32 %v1328, 65535
        %v1330 = vshrl.u32 %v1328, 16
        %v1332 = vmul.u32 %v1329, 14564
        %v1333 = vmul.u32 %v1329, 58254
        %v1334 = vmul.u32 %v1330, 14564
        %v1335 = vmul.u32 %v1330, 58254
        %v1336 = vshll.u32 %v1333, 16
        %v1337 = vshrl.u32 %v1333, 16
        %v1338 = vshll.u32 %v1334, 16
        %v1339 = vshrl.u32 %v1334, 16
        %vm1340 = vc.u32 %v1332, %v1336
        %v1341 = vsel %vm1340, 1, 0
        %v1342 = vadd.s32 %v1332, %v1336
        %v1343 = vadd.s32 %v1335, %v1341
        %vm1344 = vc.u32 %v1342, %v1338
        %v1345 = vsel %vm1344, 1, 0
        %v1346 = vadd.s32 %v1342, %v1338
        %v1347 = vadd.s32 %v1343, %v1345
        %v1348 = vadd.s32 %v1347, %v1337
        %v1349 = vadd.s32 %v1348, %v1339
        %v1350 = vshrl.u32 %v1349, 4
        %v1351 = vmul.u32 %v1350, 18
        %v1352 = vsub.s32 %v1328, %v1351
        %v1353 = vsub.s32 0, %v1352
        %v1354 = vsel %vm1326, %v1353, %v1352
        %vm1355 = vcmp.lt.s32.totalorder %v367, 0
        %v1356 = vsub.s32 0, %v367
        %v1357 = vsel %vm1355, %v1356, %v367
        %v1358 = vand.u32 %v1357, 65535
        %v1359 = vshrl.u32 %v1357, 16
        %v1361 = vmul.u32 %v1358, 14564
        %v1362 = vmul.u32 %v1358, 58254
        %v1363 = vmul.u32 %v1359, 14564
        %v1364 = vmul.u32 %v1359, 58254
        %v1365 = vshll.u32 %v1362, 16
        %v1366 = vshrl.u32 %v1362, 16
        %v1367 = vshll.u32 %v1363, 16
        %v1368 = vshrl.u32 %v1363, 16
        %vm1369 = vc.u32 %v1361, %v1365
        %v1370 = vsel %vm1369, 1, 0
        %v1371 = vadd.s32 %v1361, %v1365
        %v1372 = vadd.s32 %v1364, %v1370
        %vm1373 = vc.u32 %v1371, %v1367
        %v1374 = vsel %vm1373, 1, 0
        %v1375 = vadd.s32 %v1371, %v1367
        %v1376 = vadd.s32 %v1372, %v1374
        %v1377 = vadd.s32 %v1376, %v1366
        %v1378 = vadd.s32 %v1377, %v1368
        %v1379 = vshrl.u32 %v1378, 4
        %v1380 = vmul.u32 %v1379, 18
        %v1381 = vsub.s32 %v1357, %v1380
        %v1382 = vsub.s32 0, %v1381
        %v1383 = vsel %vm1355, %v1382, %v1381
        %vm1384 = vcmp.lt.s32.totalorder %v368, 0
        %v1385 = vsub.s32 0, %v368
        %v1386 = vsel %vm1384, %v1385, %v368
        %v1387 = vand.u32 %v1386, 65535
        %v1388 = vshrl.u32 %v1386, 16
        %v1390 = vmul.u32 %v1387, 14564
        %v1391 = vmul.u32 %v1387, 58254
        %v1392 = vmul.u32 %v1388, 14564
        %v1393 = vmul.u32 %v1388, 58254
        %v1394 = vshll.u32 %v1391, 16
        %v1395 = vshrl.u32 %v1391, 16
        %v1396 = vshll.u32 %v1392, 16
        %v1397 = vshrl.u32 %v1392, 16
        %vm1398 = vc.u32 %v1390, %v1394
        %v1399 = vsel %vm1398, 1, 0
        %v1400 = vadd.s32 %v1390, %v1394
        %v1401 = vadd.s32 %v1393, %v1399
        %vm1402 = vc.u32 %v1400, %v1396
        %v1403 = vsel %vm1402, 1, 0
        %v1404 = vadd.s32 %v1400, %v1396
        %v1405 = vadd.s32 %v1401, %v1403
        %v1406 = vadd.s32 %v1405, %v1395
        %v1407 = vadd.s32 %v1406, %v1397
        %v1408 = vshrl.u32 %v1407, 4
        %v1409 = vmul.u32 %v1408, 18
        %v1410 = vsub.s32 %v1386, %v1409
        %v1411 = vsub.s32 0, %v1410
        %v1412 = vsel %vm1384, %v1411, %v1410
        %vm1413 = vcmp.ne.s32.totalorder %v397, 0
        %vm1414 = vcmp.ne.s32.totalorder %v426, 0
        %vm1415 = vcmp.ne.s32.totalorder %v455, 0
        %vm1416 = vcmp.ne.s32.totalorder %v484, 0
        %vm1417 = vcmp.ne.s32.totalorder %v513, 0
        %vm1418 = vcmp.ne.s32.totalorder %v542, 0
        %vm1419 = vcmp.ne.s32.totalorder %v571, 0
        %vm1420 = vcmp.ne.s32.totalorder %v600, 0
        %vm1421 = vcmp.ne.s32.totalorder %v629, 0
        %vm1422 = vcmp.ne.s32.totalorder %v658, 0
        %vm1423 = vcmp.ne.s32.totalorder %v687, 0
        %vm1424 = vcmp.ne.s32.totalorder %v716, 0
        %vm1425 = vcmp.ne.s32.totalorder %v745, 0
        %vm1426 = vcmp.ne.s32.totalorder %v774, 0
        %vm1427 = vcmp.ne.s32.totalorder %v803, 0
        %vm1428 = vcmp.ne.s32.totalorder %v832, 0
        %vm1429 = vcmp.ne.s32.totalorder %v861, 0
        %vm1430 = vcmp.ne.s32.totalorder %v890, 0
        %vm1431 = vcmp.ne.s32.totalorder %v919, 0
        %vm1432 = vcmp.ne.s32.totalorder %v948, 0
        %vm1433 = vcmp.ne.s32.totalorder %v977, 0
        %vm1434 = vcmp.ne.s32.totalorder %v1006, 0
        %vm1435 = vcmp.ne.s32.totalorder %v1035, 0
        %vm1436 = vcmp.ne.s32.totalorder %v1064, 0
        %vm1437 = vcmp.ne.s32.totalorder %v1093, 0
        %vm1438 = vcmp.ne.s32.totalorder %v1122, 0
        %vm1439 = vcmp.ne.s32.totalorder %v1151, 0
        %vm1440 = vcmp.ne.s32.totalorder %v1180, 0
        %vm1441 = vcmp.ne.s32.totalorder %v1209, 0
        %vm1442 = vcmp.ne.s32.totalorder %v1238, 0
        %vm1443 = vcmp.ne.s32.totalorder %v1267, 0
        %vm1444 = vcmp.ne.s32.totalorder %v1296, 0
        %vm1445 = vcmp.ne.s32.totalorder %v1325, 0
        %vm1446 = vcmp.ne.s32.totalorder %v1354, 0
        %vm1447 = vcmp.ne.s32.totalorder %v1383, 0
        %vm1448 = vcmp.ne.s32.totalorder %v1412, 0
        %vm1449 = vcmp.lt.s32.totalorder %v397, 0
        %vm1450 = vcmp.lt.s32.totalorder %v426, 0
        %vm1451 = vcmp.lt.s32.totalorder %v455, 0
        %vm1452 = vcmp.lt.s32.totalorder %v484, 0
        %vm1453 = vcmp.lt.s32.totalorder %v513, 0
        %vm1454 = vcmp.lt.s32.totalorder %v542, 0
        %vm1455 = vcmp.lt.s32.totalorder %v571, 0
        %vm1456 = vcmp.lt.s32.totalorder %v600, 0
        %vm1457 = vcmp.lt.s32.totalorder %v629, 0
        %vm1458 = vcmp.lt.s32.totalorder %v658, 0
        %vm1459 = vcmp.lt.s32.totalorder %v687, 0
        %vm1460 = vcmp.lt.s32.totalorder %v716, 0
        %vm1461 = vcmp.lt.s32.totalorder %v745, 0
        %vm1462 = vcmp.lt.s32.totalorder %v774, 0
        %vm1463 = vcmp.lt.s32.totalorder %v803, 0
        %vm1464 = vcmp.lt.s32.totalorder %v832, 0
        %vm1465 = vcmp.lt.s32.totalorder %v861, 0
        %vm1466 = vcmp.lt.s32.totalorder %v890, 0
        %vm1467 = vcmp.lt.s32.totalorder %v919, 0
        %vm1468 = vcmp.lt.s32.totalorder %v948, 0
        %vm1469 = vcmp.lt.s32.totalorder %v977, 0
        %vm1470 = vcmp.lt.s32.totalorder %v1006, 0
        %vm1471 = vcmp.lt.s32.totalorder %v1035, 0
        %vm1472 = vcmp.lt.s32.totalorder %v1064, 0
        %vm1473 = vcmp.lt.s32.totalorder %v1093, 0
        %vm1474 = vcmp.lt.s32.totalorder %v1122, 0
        %vm1475 = vcmp.lt.s32.totalorder %v1151, 0
        %vm1476 = vcmp.lt.s32.totalorder %v1180, 0
        %vm1477 = vcmp.lt.s32.totalorder %v1209, 0
        %vm1478 = vcmp.lt.s32.totalorder %v1238, 0
        %vm1479 = vcmp.lt.s32.totalorder %v1267, 0
        %vm1480 = vcmp.lt.s32.totalorder %v1296, 0
        %vm1481 = vcmp.lt.s32.totalorder %v1325, 0
        %vm1482 = vcmp.lt.s32.totalorder %v1354, 0
        %vm1483 = vcmp.lt.s32.totalorder %v1383, 0
        %vm1484 = vcmp.lt.s32.totalorder %v1412, 0
        %vm1485 = vmand %vm1449, %vm1413
        %vm1486 = vmand %vm1450, %vm1414
        %vm1487 = vmand %vm1451, %vm1415
        %vm1488 = vmand %vm1452, %vm1416
        %vm1489 = vmand %vm1453, %vm1417
        %vm1490 = vmand %vm1454, %vm1418
        %vm1491 = vmand %vm1455, %vm1419
        %vm1492 = vmand %vm1456, %vm1420
        %vm1493 = vmand %vm1457, %vm1421
        %vm1494 = vmand %vm1458, %vm1422
        %vm1495 = vmand %vm1459, %vm1423
        %vm1496 = vmand %vm1460, %vm1424
        %vm1497 = vmand %vm1461, %vm1425
        %vm1498 = vmand %vm1462, %vm1426
        %vm1499 = vmand %vm1463, %vm1427
        %vm1500 = vmand %vm1464, %vm1428
        %vm1501 = vmand %vm1465, %vm1429
        %vm1502 = vmand %vm1466, %vm1430
        %vm1503 = vmand %vm1467, %vm1431
        %vm1504 = vmand %vm1468, %vm1432
        %vm1505 = vmand %vm1469, %vm1433
        %vm1506 = vmand %vm1470, %vm1434
        %vm1507 = vmand %vm1471, %vm1435
        %vm1508 = vmand %vm1472, %vm1436
        %vm1509 = vmand %vm1473, %vm1437
        %vm1510 = vmand %vm1474, %vm1438
        %vm1511 = vmand %vm1475, %vm1439
        %vm1512 = vmand %vm1476, %vm1440
        %vm1513 = vmand %vm1477, %vm1441
        %vm1514 = vmand %vm1478, %vm1442
        %vm1515 = vmand %vm1479, %vm1443
        %vm1516 = vmand %vm1480, %vm1444
        %vm1517 = vmand %vm1481, %vm1445
        %vm1518 = vmand %vm1482, %vm1446
        %vm1519 = vmand %vm1483, %vm1447
        %vm1520 = vmand %vm1484, %vm1448
        %v1521 = vadd.s32 %v397, 18
        %v1522 = vadd.s32 %v426, 18
        %v1523 = vadd.s32 %v455, 18
        %v1524 = vadd.s32 %v484, 18
        %v1525 = vadd.s32 %v513, 18
        %v1526 = vadd.s32 %v542, 18
        %v1527 = vadd.s32 %v571, 18
        %v1528 = vadd.s32 %v600, 18
        %v1529 = vadd.s32 %v629, 18
        %v1530 = vadd.s32 %v658, 18
        %v1531 = vadd.s32 %v687, 18
        %v1532 = vadd.s32 %v716, 18
        %v1533 = vadd.s32 %v745, 18
        %v1534 = vadd.s32 %v774, 18
        %v1535 = vadd.s32 %v803, 18
        %v1536 = vadd.s32 %v832, 18
        %v1537 = vadd.s32 %v861, 18
        %v1538 = vadd.s32 %v890, 18
        %v1539 = vadd.s32 %v919, 18
        %v1540 = vadd.s32 %v948, 18
        %v1541 = vadd.s32 %v977, 18
        %v1542 = vadd.s32 %v1006, 18
        %v1543 = vadd.s32 %v1035, 18
        %v1544 = vadd.s32 %v1064, 18
        %v1545 = vadd.s32 %v1093, 18
        %v1546 = vadd.s32 %v1122, 18
        %v1547 = vadd.s32 %v1151, 18
        %v1548 = vadd.s32 %v1180, 18
        %v1549 = vadd.s32 %v1209, 18
        %v1550 = vadd.s32 %v1238, 18
        %v1551 = vadd.s32 %v1267, 18
        %v1552 = vadd.s32 %v1296, 18
        %v1553 = vadd.s32 %v1325, 18
        %v1554 = vadd.s32 %v1354, 18
        %v1555 = vadd.s32 %v1383, 18
        %v1556 = vadd.s32 %v1412, 18
        %v1557 = vsel %vm1485, %v1521, %v397
        %v1558 = vsel %vm1486, %v1522, %v426
        %v1559 = vsel %vm1487, %v1523, %v455
        %v1560 = vsel %vm1488, %v1524, %v484
        %v1561 = vsel %vm1489, %v1525, %v513
        %v1562 = vsel %vm1490, %v1526, %v542
        %v1563 = vsel %vm1491, %v1527, %v571
        %v1564 = vsel %vm1492, %v1528, %v600
        %v1565 = vsel %vm1493, %v1529, %v629
        %v1566 = vsel %vm1494, %v1530, %v658
        %v1567 = vsel %vm1495, %v1531, %v687
        %v1568 = vsel %vm1496, %v1532, %v716
        %v1569 = vsel %vm1497, %v1533, %v745
        %v1570 = vsel %vm1498, %v1534, %v774
        %v1571 = vsel %vm1499, %v1535, %v803
        %v1572 = vsel %vm1500, %v1536, %v832
        %v1573 = vsel %vm1501, %v1537, %v861
        %v1574 = vsel %vm1502, %v1538, %v890
        %v1575 = vsel %vm1503, %v1539, %v919
        %v1576 = vsel %vm1504, %v1540, %v948
        %v1577 = vsel %vm1505, %v1541, %v977
        %v1578 = vsel %vm1506, %v1542, %v1006
        %v1579 = vsel %vm1507, %v1543, %v1035
        %v1580 = vsel %vm1508, %v1544, %v1064
        %v1581 = vsel %vm1509, %v1545, %v1093
        %v1582 = vsel %vm1510, %v1546, %v1122
        %v1583 = vsel %vm1511, %v1547, %v1151
        %v1584 = vsel %vm1512, %v1548, %v1180
        %v1585 = vsel %vm1513, %v1549, %v1209
        %v1586 = vsel %vm1514, %v1550, %v1238
        %v1587 = vsel %vm1515, %v1551, %v1267
        %v1588 = vsel %vm1516, %v1552, %v1296
        %v1589 = vsel %vm1517, %v1553, %v1325
        %v1590 = vsel %vm1518, %v1554, %v1354
        %v1591 = vsel %vm1519, %v1555, %v1383
        %v1592 = vsel %vm1520, %v1556, %v1412
        %vm1593 = vcmp.ge.s32.totalorder %v1557, 1
        %vm1594 = vcmp.ge.s32.totalorder %v1558, 1
        %vm1595 = vcmp.ge.s32.totalorder %v1559, 1
        %vm1596 = vcmp.ge.s32.totalorder %v1560, 1
        %vm1597 = vcmp.ge.s32.totalorder %v1561, 1
        %vm1598 = vcmp.ge.s32.totalorder %v1562, 1
        %vm1599 = vcmp.ge.s32.totalorder %v1563, 1
        %vm1600 = vcmp.ge.s32.totalorder %v1564, 1
        %vm1601 = vcmp.ge.s32.totalorder %v1565, 1
        %vm1602 = vcmp.ge.s32.totalorder %v1566, 1
        %vm1603 = vcmp.ge.s32.totalorder %v1567, 1
        %vm1604 = vcmp.ge.s32.totalorder %v1568, 1
        %vm1605 = vcmp.ge.s32.totalorder %v1569, 1
        %vm1606 = vcmp.ge.s32.totalorder %v1570, 1
        %vm1607 = vcmp.ge.s32.totalorder %v1571, 1
        %vm1608 = vcmp.ge.s32.totalorder %v1572, 1
        %vm1609 = vcmp.ge.s32.totalorder %v1573, 1
        %vm1610 = vcmp.ge.s32.totalorder %v1574, 1
        %vm1611 = vcmp.ge.s32.totalorder %v1575, 1
        %vm1612 = vcmp.ge.s32.totalorder %v1576, 1
        %vm1613 = vcmp.ge.s32.totalorder %v1577, 1
        %vm1614 = vcmp.ge.s32.totalorder %v1578, 1
        %vm1615 = vcmp.ge.s32.totalorder %v1579, 1
        %vm1616 = vcmp.ge.s32.totalorder %v1580, 1
        %vm1617 = vcmp.ge.s32.totalorder %v1581, 1
        %vm1618 = vcmp.ge.s32.totalorder %v1582, 1
        %vm1619 = vcmp.ge.s32.totalorder %v1583, 1
        %vm1620 = vcmp.ge.s32.totalorder %v1584, 1
        %vm1621 = vcmp.ge.s32.totalorder %v1585, 1
        %vm1622 = vcmp.ge.s32.totalorder %v1586, 1
        %vm1623 = vcmp.ge.s32.totalorder %v1587, 1
        %vm1624 = vcmp.ge.s32.totalorder %v1588, 1
        %vm1625 = vcmp.ge.s32.totalorder %v1589, 1
        %vm1626 = vcmp.ge.s32.totalorder %v1590, 1
        %vm1627 = vcmp.ge.s32.totalorder %v1591, 1
        %vm1628 = vcmp.ge.s32.totalorder %v1592, 1
        %vm1629 = vcmp.le.s32.totalorder %v1557, 16
        %vm1630 = vcmp.le.s32.totalorder %v1558, 16
        %vm1631 = vcmp.le.s32.totalorder %v1559, 16
        %vm1632 = vcmp.le.s32.totalorder %v1560, 16
        %vm1633 = vcmp.le.s32.totalorder %v1561, 16
        %vm1634 = vcmp.le.s32.totalorder %v1562, 16
        %vm1635 = vcmp.le.s32.totalorder %v1563, 16
        %vm1636 = vcmp.le.s32.totalorder %v1564, 16
        %vm1637 = vcmp.le.s32.totalorder %v1565, 16
        %vm1638 = vcmp.le.s32.totalorder %v1566, 16
        %vm1639 = vcmp.le.s32.totalorder %v1567, 16
        %vm1640 = vcmp.le.s32.totalorder %v1568, 16
        %vm1641 = vcmp.le.s32.totalorder %v1569, 16
        %vm1642 = vcmp.le.s32.totalorder %v1570, 16
        %vm1643 = vcmp.le.s32.totalorder %v1571, 16
        %vm1644 = vcmp.le.s32.totalorder %v1572, 16
        %vm1645 = vcmp.le.s32.totalorder %v1573, 16
        %vm1646 = vcmp.le.s32.totalorder %v1574, 16
        %vm1647 = vcmp.le.s32.totalorder %v1575, 16
        %vm1648 = vcmp.le.s32.totalorder %v1576, 16
        %vm1649 = vcmp.le.s32.totalorder %v1577, 16
        %vm1650 = vcmp.le.s32.totalorder %v1578, 16
        %vm1651 = vcmp.le.s32.totalorder %v1579, 16
        %vm1652 = vcmp.le.s32.totalorder %v1580, 16
        %vm1653 = vcmp.le.s32.totalorder %v1581, 16
        %vm1654 = vcmp.le.s32.totalorder %v1582, 16
        %vm1655 = vcmp.le.s32.totalorder %v1583, 16
        %vm1656 = vcmp.le.s32.totalorder %v1584, 16
        %vm1657 = vcmp.le.s32.totalorder %v1585, 16
        %vm1658 = vcmp.le.s32.totalorder %v1586, 16
        %vm1659 = vcmp.le.s32.totalorder %v1587, 16
        %vm1660 = vcmp.le.s32.totalorder %v1588, 16
        %vm1661 = vcmp.le.s32.totalorder %v1589, 16
        %vm1662 = vcmp.le.s32.totalorder %v1590, 16
        %vm1663 = vcmp.le.s32.totalorder %v1591, 16
        %vm1664 = vcmp.le.s32.totalorder %v1592, 16
        %vm1665 = vmand %vm1593, %vm1629
        %vm1666 = vmand %vm1594, %vm1630
        %vm1667 = vmand %vm1595, %vm1631
        %vm1668 = vmand %vm1596, %vm1632
        %vm1669 = vmand %vm1597, %vm1633
        %vm1670 = vmand %vm1598, %vm1634
        %vm1671 = vmand %vm1599, %vm1635
        %vm1672 = vmand %vm1600, %vm1636
        %vm1673 = vmand %vm1601, %vm1637
        %vm1674 = vmand %vm1602, %vm1638
        %vm1675 = vmand %vm1603, %vm1639
        %vm1676 = vmand %vm1604, %vm1640
        %vm1677 = vmand %vm1605, %vm1641
        %vm1678 = vmand %vm1606, %vm1642
        %vm1679 = vmand %vm1607, %vm1643
        %vm1680 = vmand %vm1608, %vm1644
        %vm1681 = vmand %vm1609, %vm1645
        %vm1682 = vmand %vm1610, %vm1646
        %vm1683 = vmand %vm1611, %vm1647
        %vm1684 = vmand %vm1612, %vm1648
        %vm1685 = vmand %vm1613, %vm1649
        %vm1686 = vmand %vm1614, %vm1650
        %vm1687 = vmand %vm1615, %vm1651
        %vm1688 = vmand %vm1616, %vm1652
        %vm1689 = vmand %vm1617, %vm1653
        %vm1690 = vmand %vm1618, %vm1654
        %vm1691 = vmand %vm1619, %vm1655
        %vm1692 = vmand %vm1620, %vm1656
        %vm1693 = vmand %vm1621, %vm1657
        %vm1694 = vmand %vm1622, %vm1658
        %vm1695 = vmand %vm1623, %vm1659
        %vm1696 = vmand %vm1624, %vm1660
        %vm1697 = vmand %vm1625, %vm1661
        %vm1698 = vmand %vm1626, %vm1662
        %vm1699 = vmand %vm1627, %vm1663
        %vm1700 = vmand %vm1628, %vm1664
        %1701 = vst [vmem:[#allocation2] sm:$0xff] 0.0
        %1702 = vst [vmem:[#allocation2 + $0x8] sm:$0xff] 0.0
        %1703 = vst [vmem:[#allocation2 + $0x10] sm:$0xff] 0.0
        %1704 = vst [vmem:[#allocation2 + $0x18] sm:$0xff] 0.0
        %1705 = vst [vmem:[#allocation2 + $0x20] sm:$0xff] 0.0
        %1706 = vst [vmem:[#allocation2 + $0x28] sm:$0xff] 0.0
        %1707 = vst [vmem:[#allocation2 + $0x150] sm:$0xff] 0.0
        %1708 = vst [vmem:[#allocation2 + $0x158] sm:$0xff] 0.0
        %1709 = vst [vmem:[#allocation2 + $0x160] sm:$0xff] 0.0
        %1710 = vst [vmem:[#allocation2 + $0x168] sm:$0xff] 0.0
        %1711 = vst [vmem:[#allocation2 + $0x170] sm:$0xff] 0.0
        %1712 = vst [vmem:[#allocation2 + $0x178] sm:$0xff] 0.0
        %v1713 = vld [vmem:[%s290 + $0x1d] sm:$0xff]
        %v1714 = vld [vmem:[%s290 + $0x25] sm:$0xff]
        %v1715 = vld [vmem:[%s290 + $0x2d] sm:$0xff]
        %v1716 = vld [vmem:[%s290 + $0x35] sm:$0xff]
        %v1717 = vld [vmem:[%s290 + $0x3d] sm:$0xff]
        %v1718 = vld [vmem:[%s290 + $0x45] sm:$0xff]
        %v1719 = vld [vmem:[%s290 + $0x4d] sm:$0xff]
        %v1720 = vld [vmem:[%s290 + $0x55] sm:$0xff]
        %v1721 = vld [vmem:[%s290 + $0x5d] sm:$0xff]
        %v1722 = vld [vmem:[%s290 + $0x65] sm:$0xff]
        %v1723 = vld [vmem:[%s290 + $0x6d] sm:$0xff]
        %v1724 = vld [vmem:[%s290 + $0x75] sm:$0xff]
        %v1725 = vld [vmem:[%s290 + $0x7d] sm:$0xff]
        %v1726 = vld [vmem:[%s290 + $0x85] sm:$0xff]
        %v1727 = vld [vmem:[%s290 + $0x8d] sm:$0xff]
        %v1728 = vld [vmem:[%s290 + $0x95] sm:$0xff]
        %v1729 = vld [vmem:[%s290 + $0x9d] sm:$0xff]
        %v1730 = vld [vmem:[%s290 + $0xa5] sm:$0xff]
        %v1731 = vld [vmem:[%s290 + $0xad] sm:$0xff]
        %v1732 = vld [vmem:[%s290 + $0xb5] sm:$0xff]
        %v1733 = vld [vmem:[%s290 + $0xbd] sm:$0xff]
        %v1734 = vld [vmem:[%s290 + $0xc5] sm:$0xff]
        %v1735 = vld [vmem:[%s290 + $0xcd] sm:$0xff]
        %v1736 = vld [vmem:[%s290 + $0xd5] sm:$0xff]
        %v1737 = vld [vmem:[%s290 + $0xdd] sm:$0xff]
        %v1738 = vld [vmem:[%s290 + $0xe5] sm:$0xff]
        %v1739 = vld [vmem:[%s290 + $0xed] sm:$0xff]
        %v1740 = vld [vmem:[%s290 + $0xf5] sm:$0xff]
        %v1741 = vld [vmem:[%s290 + $0xfd] sm:$0xff]
        %v1742 = vld [vmem:[%s290 + $0x105] sm:$0xff]
        %v1743 = vld [vmem:[%s290 + $0x10d] sm:$0xff]
        %v1744 = vld [vmem:[%s290 + $0x115] sm:$0xff]
        %v1745 = vld [vmem:[%s290 + $0x11d] sm:$0xff]
        %v1746 = vld [vmem:[%s290 + $0x125] sm:$0xff]
        %v1747 = vld [vmem:[%s290 + $0x12d] sm:$0xff]
        %v1748 = vld [vmem:[%s290 + $0x135] sm:$0xff]
        %v1749 = vld [vmem:[#allocation6] sm:$0xff]
        %v1750 = vld [vmem:[#allocation6 + $0x8] sm:$0xff]
        %v1751 = vld [vmem:[#allocation6 + $0x10] sm:$0xff]
        %v1752 = vld [vmem:[#allocation6 + $0x18] sm:$0xff]
        %v1753 = vld [vmem:[#allocation6 + $0x20] sm:$0xff]
        %v1754 = vld [vmem:[#allocation6 + $0x28] sm:$0xff]
        %v1755 = vld [vmem:[#allocation6 + $0x30] sm:$0xff]
        %v1756 = vld [vmem:[#allocation6 + $0x38] sm:$0xff]
        %v1757 = vld [vmem:[#allocation6 + $0x40] sm:$0xff]
        %v1758 = vld [vmem:[#allocation6 + $0x48] sm:$0xff]
        %v1759 = vld [vmem:[#allocation6 + $0x50] sm:$0xff]
        %v1760 = vld [vmem:[#allocation6 + $0x58] sm:$0xff]
        %v1761 = vld [vmem:[#allocation6 + $0x60] sm:$0xff]
        %v1762 = vld [vmem:[#allocation6 + $0x68] sm:$0xff]
        %v1763 = vld [vmem:[#allocation6 + $0x70] sm:$0xff]
        %v1764 = vld [vmem:[#allocation6 + $0x78] sm:$0xff]
        %v1765 = vld [vmem:[%s290 + $0x1e] sm:$0xff]
        %v1766 = vld [vmem:[%s290 + $0x26] sm:$0xff]
        %v1767 = vld [vmem:[%s290 + $0x2e] sm:$0xff]
        %v1768 = vld [vmem:[%s290 + $0x36] sm:$0xff]
        %v1769 = vld [vmem:[%s290 + $0x3e] sm:$0xff]
        %v1770 = vld [vmem:[%s290 + $0x46] sm:$0xff]
        %v1771 = vld [vmem:[%s290 + $0x4e] sm:$0xff]
        %v1772 = vld [vmem:[%s290 + $0x56] sm:$0xff]
        %v1773 = vld [vmem:[%s290 + $0x5e] sm:$0xff]
        %v1774 = vld [vmem:[%s290 + $0x66] sm:$0xff]
        %v1775 = vld [vmem:[%s290 + $0x6e] sm:$0xff]
        %v1776 = vld [vmem:[%s290 + $0x76] sm:$0xff]
        %v1777 = vld [vmem:[%s290 + $0x7e] sm:$0xff]
        %v1778 = vld [vmem:[%s290 + $0x86] sm:$0xff]
        %v1779 = vld [vmem:[%s290 + $0x8e] sm:$0xff]
        %v1780 = vld [vmem:[%s290 + $0x96] sm:$0xff]
        %v1781 = vld [vmem:[%s290 + $0x9e] sm:$0xff]
        %v1782 = vld [vmem:[%s290 + $0xa6] sm:$0xff]
        %v1783 = vld [vmem:[%s290 + $0xae] sm:$0xff]
        %v1784 = vld [vmem:[%s290 + $0xb6] sm:$0xff]
        %v1785 = vld [vmem:[%s290 + $0xbe] sm:$0xff]
        %v1786 = vld [vmem:[%s290 + $0xc6] sm:$0xff]
        %v1787 = vld [vmem:[%s290 + $0xce] sm:$0xff]
        %v1788 = vld [vmem:[%s290 + $0xd6] sm:$0xff]
        %v1789 = vld [vmem:[%s290 + $0xde] sm:$0xff]
        %v1790 = vld [vmem:[%s290 + $0xe6] sm:$0xff]
        %v1791 = vld [vmem:[%s290 + $0xee] sm:$0xff]
        %v1792 = vld [vmem:[%s290 + $0xf6] sm:$0xff]
        %v1793 = vld [vmem:[%s290 + $0xfe] sm:$0xff]
        %v1794 = vld [vmem:[%s290 + $0x106] sm:$0xff]
        %v1795 = vld [vmem:[%s290 + $0x10e] sm:$0xff]
        %v1796 = vld [vmem:[%s290 + $0x116] sm:$0xff]
        %v1797 = vld [vmem:[%s290 + $0x11e] sm:$0xff]
        %v1798 = vld [vmem:[%s290 + $0x126] sm:$0xff]
        %v1799 = vld [vmem:[%s290 + $0x12e] sm:$0xff]
        %v1800 = vld [vmem:[%s290 + $0x136] sm:$0xff]
        %s1801 = scalar_lea.vmem [#allocation6], 128
        %v1802 = vld [vmem:[%s1801] sm:$0xff]
        %v1803 = vld [vmem:[%s1801 + $0x8] sm:$0xff]
        %v1804 = vld [vmem:[%s1801 + $0x10] sm:$0xff]
        %v1805 = vld [vmem:[%s1801 + $0x18] sm:$0xff]
        %v1806 = vld [vmem:[%s1801 + $0x20] sm:$0xff]
        %v1807 = vld [vmem:[%s1801 + $0x28] sm:$0xff]
        %v1808 = vld [vmem:[%s1801 + $0x30] sm:$0xff]
        %v1809 = vld [vmem:[%s1801 + $0x38] sm:$0xff]
        %v1810 = vld [vmem:[%s1801 + $0x40] sm:$0xff]
        %v1811 = vld [vmem:[%s1801 + $0x48] sm:$0xff]
        %v1812 = vld [vmem:[%s1801 + $0x50] sm:$0xff]
        %v1813 = vld [vmem:[%s1801 + $0x58] sm:$0xff]
        %v1814 = vld [vmem:[%s1801 + $0x60] sm:$0xff]
        %v1815 = vld [vmem:[%s1801 + $0x68] sm:$0xff]
        %v1816 = vld [vmem:[%s1801 + $0x70] sm:$0xff]
        %v1817 = vld [vmem:[%s1801 + $0x78] sm:$0xff]
        %1818 = vmatpush.msra.mxu0 %v1817
        %1819 = vmatpush.msra.mxu0 %v1816
        %1820 = vmatpush.msra.mxu0 %v1815
        %1821 = vmatpush.msra.mxu0 %v1814
        %1822 = vmatpush.msra.mxu0 %v1813
        %1823 = vmatpush.msra.mxu0 %v1812
        %1824 = vmatpush.msra.mxu0 %v1811
        %1825 = vmatpush.msra.mxu0 %v1810
        %1826 = vmatpush.msra.mxu0 %v1809
        %1827 = vmatpush.msra.mxu0 %v1808
        %1828 = vmatpush.msra.mxu0 %v1807
        %1829 = vmatpush.msra.mxu0 %v1806
        %1830 = vmatpush.msra.mxu0 %v1805
        %1831 = vmatpush.msra.mxu0 %v1804
        %1832 = vmatpush.msra.mxu0 %v1803
        %1833 = vmatpush.msra.mxu0 %v1802
        %1834 = vmatmul.f32.gmra.mxu0 %v1765
        %v1835 = vpop.f32.mrf.mxu0
        %v1836 = vadd.f32 0.0, %v1835
        %1837 = vmatmul.f32.gmra.mxu0 %v1766
        %v1838 = vpop.f32.mrf.mxu0
        %v1839 = vadd.f32 0.0, %v1838
        %1840 = vmatmul.f32.gmra.mxu0 %v1767
        %v1841 = vpop.f32.mrf.mxu0
        %v1842 = vadd.f32 0.0, %v1841
        %1843 = vmatmul.f32.gmra.mxu0 %v1768
        %v1844 = vpop.f32.mrf.mxu0
        %v1845 = vadd.f32 0.0, %v1844
        %1846 = vmatmul.f32.gmra.mxu0 %v1769
        %v1847 = vpop.f32.mrf.mxu0
        %v1848 = vadd.f32 0.0, %v1847
        %1849 = vmatmul.f32.gmra.mxu0 %v1770
        %v1850 = vpop.f32.mrf.mxu0
        %v1851 = vadd.f32 0.0, %v1850
        %1852 = vmatmul.f32.gmra.mxu0 %v1771
        %v1853 = vpop.f32.mrf.mxu0
        %v1854 = vadd.f32 0.0, %v1853
        %1855 = vmatmul.f32.gmra.mxu0 %v1772
        %v1856 = vpop.f32.mrf.mxu0
        %v1857 = vadd.f32 0.0, %v1856
        %1858 = vmatmul.f32.gmra.mxu0 %v1773
        %v1859 = vpop.f32.mrf.mxu0
        %v1860 = vadd.f32 0.0, %v1859
        %1861 = vmatmul.f32.gmra.mxu0 %v1774
        %v1862 = vpop.f32.mrf.mxu0
        %v1863 = vadd.f32 0.0, %v1862
        %1864 = vmatmul.f32.gmra.mxu0 %v1775
        %v1865 = vpop.f32.mrf.mxu0
        %v1866 = vadd.f32 0.0, %v1865
        %1867 = vmatmul.f32.gmra.mxu0 %v1776
        %v1868 = vpop.f32.mrf.mxu0
        %v1869 = vadd.f32 0.0, %v1868
        %1870 = vmatmul.f32.gmra.mxu0 %v1777
        %v1871 = vpop.f32.mrf.mxu0
        %v1872 = vadd.f32 0.0, %v1871
        %1873 = vmatmul.f32.gmra.mxu0 %v1778
        %v1874 = vpop.f32.mrf.mxu0
        %v1875 = vadd.f32 0.0, %v1874
        %1876 = vmatmul.f32.gmra.mxu0 %v1779
        %v1877 = vpop.f32.mrf.mxu0
        %v1878 = vadd.f32 0.0, %v1877
        %1879 = vmatmul.f32.gmra.mxu0 %v1780
        %v1880 = vpop.f32.mrf.mxu0
        %v1881 = vadd.f32 0.0, %v1880
        %1882 = vmatmul.f32.gmra.mxu0 %v1781
        %v1883 = vpop.f32.mrf.mxu0
        %v1884 = vadd.f32 0.0, %v1883
        %1885 = vmatmul.f32.gmra.mxu0 %v1782
        %v1886 = vpop.f32.mrf.mxu0
        %v1887 = vadd.f32 0.0, %v1886
        %1888 = vmatmul.f32.gmra.mxu0 %v1783
        %v1889 = vpop.f32.mrf.mxu0
        %v1890 = vadd.f32 0.0, %v1889
        %1891 = vmatmul.f32.gmra.mxu0 %v1784
        %v1892 = vpop.f32.mrf.mxu0
        %v1893 = vadd.f32 0.0, %v1892
        %1894 = vmatmul.f32.gmra.mxu0 %v1785
        %v1895 = vpop.f32.mrf.mxu0
        %v1896 = vadd.f32 0.0, %v1895
        %1897 = vmatmul.f32.gmra.mxu0 %v1786
        %v1898 = vpop.f32.mrf.mxu0
        %v1899 = vadd.f32 0.0, %v1898
        %1900 = vmatmul.f32.gmra.mxu0 %v1787
        %v1901 = vpop.f32.mrf.mxu0
        %v1902 = vadd.f32 0.0, %v1901
        %1903 = vmatmul.f32.gmra.mxu0 %v1788
        %v1904 = vpop.f32.mrf.mxu0
        %v1905 = vadd.f32 0.0, %v1904
        %1906 = vmatmul.f32.gmra.mxu0 %v1789
        %v1907 = vpop.f32.mrf.mxu0
        %v1908 = vadd.f32 0.0, %v1907
        %1909 = vmatmul.f32.gmra.mxu0 %v1790
        %v1910 = vpop.f32.mrf.mxu0
        %v1911 = vadd.f32 0.0, %v1910
        %1912 = vmatmul.f32.gmra.mxu0 %v1791
        %v1913 = vpop.f32.mrf.mxu0
        %v1914 = vadd.f32 0.0, %v1913
        %1915 = vmatmul.f32.gmra.mxu0 %v1792
        %v1916 = vpop.f32.mrf.mxu0
        %v1917 = vadd.f32 0.0, %v1916
        %1918 = vmatmul.f32.gmra.mxu0 %v1793
        %v1919 = vpop.f32.mrf.mxu0
        %v1920 = vadd.f32 0.0, %v1919
        %1921 = vmatmul.f32.gmra.mxu0 %v1794
        %v1922 = vpop.f32.mrf.mxu0
        %v1923 = vadd.f32 0.0, %v1922
        %1924 = vmatmul.f32.gmra.mxu0 %v1795
        %v1925 = vpop.f32.mrf.mxu0
        %v1926 = vadd.f32 0.0, %v1925
        %1927 = vmatmul.f32.gmra.mxu0 %v1796
        %v1928 = vpop.f32.mrf.mxu0
        %v1929 = vadd.f32 0.0, %v1928
        %1930 = vmatmul.f32.gmra.mxu0 %v1797
        %v1931 = vpop.f32.mrf.mxu0
        %v1932 = vadd.f32 0.0, %v1931
        %1933 = vmatmul.f32.gmra.mxu0 %v1798
        %v1934 = vpop.f32.mrf.mxu0
        %v1935 = vadd.f32 0.0, %v1934
        %1936 = vmatmul.f32.gmra.mxu0 %v1799
        %v1937 = vpop.f32.mrf.mxu0
        %v1938 = vadd.f32 0.0, %v1937
        %1939 = vmatmul.f32.gmra.mxu0 %v1800
        %v1940 = vpop.f32.mrf.mxu0
        %v1941 = vadd.f32 0.0, %v1940
        %1942 = vdwg.mxu0
        %1943 = vmatpush.msra.mxu0 %v1764
        %1944 = vmatpush.msra.mxu0 %v1763
        %1945 = vmatpush.msra.mxu0 %v1762
        %1946 = vmatpush.msra.mxu0 %v1761
        %1947 = vmatpush.msra.mxu0 %v1760
        %1948 = vmatpush.msra.mxu0 %v1759
        %1949 = vmatpush.msra.mxu0 %v1758
        %1950 = vmatpush.msra.mxu0 %v1757
        %1951 = vmatpush.msra.mxu0 %v1756
        %1952 = vmatpush.msra.mxu0 %v1755
        %1953 = vmatpush.msra.mxu0 %v1754
        %1954 = vmatpush.msra.mxu0 %v1753
        %1955 = vmatpush.msra.mxu0 %v1752
        %1956 = vmatpush.msra.mxu0 %v1751
        %1957 = vmatpush.msra.mxu0 %v1750
        %1958 = vmatpush.msra.mxu0 %v1749
        %1959 = vmatmul.f32.gmra.mxu0 %v1713
        %v1960 = vpop.f32.mrf.mxu0
        %v1961 = vadd.f32 %v1836, %v1960
        %1962 = vmatmul.f32.gmra.mxu0 %v1714
        %v1963 = vpop.f32.mrf.mxu0
        %v1964 = vadd.f32 %v1839, %v1963
        %1965 = vmatmul.f32.gmra.mxu0 %v1715
        %v1966 = vpop.f32.mrf.mxu0
        %v1967 = vadd.f32 %v1842, %v1966
        %1968 = vmatmul.f32.gmra.mxu0 %v1716
        %v1969 = vpop.f32.mrf.mxu0
        %v1970 = vadd.f32 %v1845, %v1969
        %1971 = vmatmul.f32.gmra.mxu0 %v1717
        %v1972 = vpop.f32.mrf.mxu0
        %v1973 = vadd.f32 %v1848, %v1972
        %1974 = vmatmul.f32.gmra.mxu0 %v1718
        %v1975 = vpop.f32.mrf.mxu0
        %v1976 = vadd.f32 %v1851, %v1975
        %1977 = vmatmul.f32.gmra.mxu0 %v1719
        %v1978 = vpop.f32.mrf.mxu0
        %v1979 = vadd.f32 %v1854, %v1978
        %1980 = vmatmul.f32.gmra.mxu0 %v1720
        %v1981 = vpop.f32.mrf.mxu0
        %v1982 = vadd.f32 %v1857, %v1981
        %1983 = vmatmul.f32.gmra.mxu0 %v1721
        %v1984 = vpop.f32.mrf.mxu0
        %v1985 = vadd.f32 %v1860, %v1984
        %1986 = vmatmul.f32.gmra.mxu0 %v1722
        %v1987 = vpop.f32.mrf.mxu0
        %v1988 = vadd.f32 %v1863, %v1987
        %1989 = vmatmul.f32.gmra.mxu0 %v1723
        %v1990 = vpop.f32.mrf.mxu0
        %v1991 = vadd.f32 %v1866, %v1990
        %1992 = vmatmul.f32.gmra.mxu0 %v1724
        %v1993 = vpop.f32.mrf.mxu0
        %v1994 = vadd.f32 %v1869, %v1993
        %1995 = vmatmul.f32.gmra.mxu0 %v1725
        %v1996 = vpop.f32.mrf.mxu0
        %v1997 = vadd.f32 %v1872, %v1996
        %1998 = vmatmul.f32.gmra.mxu0 %v1726
        %v1999 = vpop.f32.mrf.mxu0
        %v2000 = vadd.f32 %v1875, %v1999
        %2001 = vmatmul.f32.gmra.mxu0 %v1727
        %v2002 = vpop.f32.mrf.mxu0
        %v2003 = vadd.f32 %v1878, %v2002
        %2004 = vmatmul.f32.gmra.mxu0 %v1728
        %v2005 = vpop.f32.mrf.mxu0
        %v2006 = vadd.f32 %v1881, %v2005
        %2007 = vmatmul.f32.gmra.mxu0 %v1729
        %v2008 = vpop.f32.mrf.mxu0
        %v2009 = vadd.f32 %v1884, %v2008
        %2010 = vmatmul.f32.gmra.mxu0 %v1730
        %v2011 = vpop.f32.mrf.mxu0
        %v2012 = vadd.f32 %v1887, %v2011
        %2013 = vmatmul.f32.gmra.mxu0 %v1731
        %v2014 = vpop.f32.mrf.mxu0
        %v2015 = vadd.f32 %v1890, %v2014
        %2016 = vmatmul.f32.gmra.mxu0 %v1732
        %v2017 = vpop.f32.mrf.mxu0
        %v2018 = vadd.f32 %v1893, %v2017
        %2019 = vmatmul.f32.gmra.mxu0 %v1733
        %v2020 = vpop.f32.mrf.mxu0
        %v2021 = vadd.f32 %v1896, %v2020
        %2022 = vmatmul.f32.gmra.mxu0 %v1734
        %v2023 = vpop.f32.mrf.mxu0
        %v2024 = vadd.f32 %v1899, %v2023
        %2025 = vmatmul.f32.gmra.mxu0 %v1735
        %v2026 = vpop.f32.mrf.mxu0
        %v2027 = vadd.f32 %v1902, %v2026
        %2028 = vmatmul.f32.gmra.mxu0 %v1736
        %v2029 = vpop.f32.mrf.mxu0
        %v2030 = vadd.f32 %v1905, %v2029
        %2031 = vmatmul.f32.gmra.mxu0 %v1737
        %v2032 = vpop.f32.mrf.mxu0
        %v2033 = vadd.f32 %v1908, %v2032
        %2034 = vmatmul.f32.gmra.mxu0 %v1738
        %v2035 = vpop.f32.mrf.mxu0
        %v2036 = vadd.f32 %v1911, %v2035
        %2037 = vmatmul.f32.gmra.mxu0 %v1739
        %v2038 = vpop.f32.mrf.mxu0
        %v2039 = vadd.f32 %v1914, %v2038
        %2040 = vmatmul.f32.gmra.mxu0 %v1740
        %v2041 = vpop.f32.mrf.mxu0
        %v2042 = vadd.f32 %v1917, %v2041
        %2043 = vmatmul.f32.gmra.mxu0 %v1741
        %v2044 = vpop.f32.mrf.mxu0
        %v2045 = vadd.f32 %v1920, %v2044
        %2046 = vmatmul.f32.gmra.mxu0 %v1742
        %v2047 = vpop.f32.mrf.mxu0
        %v2048 = vadd.f32 %v1923, %v2047
        %2049 = vmatmul.f32.gmra.mxu0 %v1743
        %v2050 = vpop.f32.mrf.mxu0
        %v2051 = vadd.f32 %v1926, %v2050
        %2052 = vmatmul.f32.gmra.mxu0 %v1744
        %v2053 = vpop.f32.mrf.mxu0
        %v2054 = vadd.f32 %v1929, %v2053
        %2055 = vmatmul.f32.gmra.mxu0 %v1745
        %v2056 = vpop.f32.mrf.mxu0
        %v2057 = vadd.f32 %v1932, %v2056
        %2058 = vmatmul.f32.gmra.mxu0 %v1746
        %v2059 = vpop.f32.mrf.mxu0
        %v2060 = vadd.f32 %v1935, %v2059
        %2061 = vmatmul.f32.gmra.mxu0 %v1747
        %v2062 = vpop.f32.mrf.mxu0
        %v2063 = vadd.f32 %v1938, %v2062
        %2064 = vmatmul.f32.gmra.mxu0 %v1748
        %v2065 = vpop.f32.mrf.mxu0
        %v2066 = vadd.f32 %v1941, %v2065
        %2067 = vdwg.mxu0
        %v2068 = vld [vmem:[%s290 + $0x1f] sm:$0xff]
        %v2069 = vld [vmem:[%s290 + $0x27] sm:$0xff]
        %v2070 = vld [vmem:[%s290 + $0x2f] sm:$0xff]
        %v2071 = vld [vmem:[%s290 + $0x37] sm:$0xff]
        %v2072 = vld [vmem:[%s290 + $0x3f] sm:$0xff]
        %v2073 = vld [vmem:[%s290 + $0x47] sm:$0xff]
        %v2074 = vld [vmem:[%s290 + $0x4f] sm:$0xff]
        %v2075 = vld [vmem:[%s290 + $0x57] sm:$0xff]
        %v2076 = vld [vmem:[%s290 + $0x5f] sm:$0xff]
        %v2077 = vld [vmem:[%s290 + $0x67] sm:$0xff]
        %v2078 = vld [vmem:[%s290 + $0x6f] sm:$0xff]
        %v2079 = vld [vmem:[%s290 + $0x77] sm:$0xff]
        %v2080 = vld [vmem:[%s290 + $0x7f] sm:$0xff]
        %v2081 = vld [vmem:[%s290 + $0x87] sm:$0xff]
        %v2082 = vld [vmem:[%s290 + $0x8f] sm:$0xff]
        %v2083 = vld [vmem:[%s290 + $0x97] sm:$0xff]
        %v2084 = vld [vmem:[%s290 + $0x9f] sm:$0xff]
        %v2085 = vld [vmem:[%s290 + $0xa7] sm:$0xff]
        %v2086 = vld [vmem:[%s290 + $0xaf] sm:$0xff]
        %v2087 = vld [vmem:[%s290 + $0xb7] sm:$0xff]
        %v2088 = vld [vmem:[%s290 + $0xbf] sm:$0xff]
        %v2089 = vld [vmem:[%s290 + $0xc7] sm:$0xff]
        %v2090 = vld [vmem:[%s290 + $0xcf] sm:$0xff]
        %v2091 = vld [vmem:[%s290 + $0xd7] sm:$0xff]
        %v2092 = vld [vmem:[%s290 + $0xdf] sm:$0xff]
        %v2093 = vld [vmem:[%s290 + $0xe7] sm:$0xff]
        %v2094 = vld [vmem:[%s290 + $0xef] sm:$0xff]
        %v2095 = vld [vmem:[%s290 + $0xf7] sm:$0xff]
        %v2096 = vld [vmem:[%s290 + $0xff] sm:$0xff]
        %v2097 = vld [vmem:[%s290 + $0x107] sm:$0xff]
        %v2098 = vld [vmem:[%s290 + $0x10f] sm:$0xff]
        %v2099 = vld [vmem:[%s290 + $0x117] sm:$0xff]
        %v2100 = vld [vmem:[%s290 + $0x11f] sm:$0xff]
        %v2101 = vld [vmem:[%s290 + $0x127] sm:$0xff]
        %v2102 = vld [vmem:[%s290 + $0x12f] sm:$0xff]
        %v2103 = vld [vmem:[%s290 + $0x137] sm:$0xff]
        %s2104 = scalar_lea.vmem [#allocation6], 256
        %v2105 = vld [vmem:[%s2104] sm:$0xff]
        %v2106 = vld [vmem:[%s2104 + $0x8] sm:$0xff]
        %v2107 = vld [vmem:[%s2104 + $0x10] sm:$0xff]
        %v2108 = vld [vmem:[%s2104 + $0x18] sm:$0xff]
        %v2109 = vld [vmem:[%s2104 + $0x20] sm:$0xff]
        %v2110 = vld [vmem:[%s2104 + $0x28] sm:$0xff]
        %v2111 = vld [vmem:[%s2104 + $0x30] sm:$0xff]
        %v2112 = vld [vmem:[%s2104 + $0x38] sm:$0xff]
        %v2113 = vld [vmem:[%s2104 + $0x40] sm:$0xff]
        %v2114 = vld [vmem:[%s2104 + $0x48] sm:$0xff]
        %v2115 = vld [vmem:[%s2104 + $0x50] sm:$0xff]
        %v2116 = vld [vmem:[%s2104 + $0x58] sm:$0xff]
        %v2117 = vld [vmem:[%s2104 + $0x60] sm:$0xff]
        %v2118 = vld [vmem:[%s2104 + $0x68] sm:$0xff]
        %v2119 = vld [vmem:[%s2104 + $0x70] sm:$0xff]
        %v2120 = vld [vmem:[%s2104 + $0x78] sm:$0xff]
        %2121 = vmatpush.msra.mxu0 %v2120
        %2122 = vmatpush.msra.mxu0 %v2119
        %2123 = vmatpush.msra.mxu0 %v2118
        %2124 = vmatpush.msra.mxu0 %v2117
        %2125 = vmatpush.msra.mxu0 %v2116
        %2126 = vmatpush.msra.mxu0 %v2115
        %2127 = vmatpush.msra.mxu0 %v2114
        %2128 = vmatpush.msra.mxu0 %v2113
        %2129 = vmatpush.msra.mxu0 %v2112
        %2130 = vmatpush.msra.mxu0 %v2111
        %2131 = vmatpush.msra.mxu0 %v2110
        %2132 = vmatpush.msra.mxu0 %v2109
        %2133 = vmatpush.msra.mxu0 %v2108
        %2134 = vmatpush.msra.mxu0 %v2107
        %2135 = vmatpush.msra.mxu0 %v2106
        %2136 = vmatpush.msra.mxu0 %v2105
        %2137 = vmatmul.f32.gmra.mxu0 %v2068
        %v2138 = vpop.f32.mrf.mxu0
        %v2139 = vadd.f32 0.0, %v2138
        %2140 = vmatmul.f32.gmra.mxu0 %v2069
        %v2141 = vpop.f32.mrf.mxu0
        %v2142 = vadd.f32 0.0, %v2141
        %2143 = vmatmul.f32.gmra.mxu0 %v2070
        %v2144 = vpop.f32.mrf.mxu0
        %v2145 = vadd.f32 0.0, %v2144
        %2146 = vmatmul.f32.gmra.mxu0 %v2071
        %v2147 = vpop.f32.mrf.mxu0
        %v2148 = vadd.f32 0.0, %v2147
        %2149 = vmatmul.f32.gmra.mxu0 %v2072
        %v2150 = vpop.f32.mrf.mxu0
        %v2151 = vadd.f32 0.0, %v2150
        %2152 = vmatmul.f32.gmra.mxu0 %v2073
        %v2153 = vpop.f32.mrf.mxu0
        %v2154 = vadd.f32 0.0, %v2153
        %2155 = vmatmul.f32.gmra.mxu0 %v2074
        %v2156 = vpop.f32.mrf.mxu0
        %v2157 = vadd.f32 0.0, %v2156
        %2158 = vmatmul.f32.gmra.mxu0 %v2075
        %v2159 = vpop.f32.mrf.mxu0
        %v2160 = vadd.f32 0.0, %v2159
        %2161 = vmatmul.f32.gmra.mxu0 %v2076
        %v2162 = vpop.f32.mrf.mxu0
        %v2163 = vadd.f32 0.0, %v2162
        %2164 = vmatmul.f32.gmra.mxu0 %v2077
        %v2165 = vpop.f32.mrf.mxu0
        %v2166 = vadd.f32 0.0, %v2165
        %2167 = vmatmul.f32.gmra.mxu0 %v2078
        %v2168 = vpop.f32.mrf.mxu0
        %v2169 = vadd.f32 0.0, %v2168
        %2170 = vmatmul.f32.gmra.mxu0 %v2079
        %v2171 = vpop.f32.mrf.mxu0
        %v2172 = vadd.f32 0.0, %v2171
        %2173 = vmatmul.f32.gmra.mxu0 %v2080
        %v2174 = vpop.f32.mrf.mxu0
        %v2175 = vadd.f32 0.0, %v2174
        %2176 = vmatmul.f32.gmra.mxu0 %v2081
        %v2177 = vpop.f32.mrf.mxu0
        %v2178 = vadd.f32 0.0, %v2177
        %2179 = vmatmul.f32.gmra.mxu0 %v2082
        %v2180 = vpop.f32.mrf.mxu0
        %v2181 = vadd.f32 0.0, %v2180
        %2182 = vmatmul.f32.gmra.mxu0 %v2083
        %v2183 = vpop.f32.mrf.mxu0
        %v2184 = vadd.f32 0.0, %v2183
        %2185 = vmatmul.f32.gmra.mxu0 %v2084
        %v2186 = vpop.f32.mrf.mxu0
        %v2187 = vadd.f32 0.0, %v2186
        %2188 = vmatmul.f32.gmra.mxu0 %v2085
        %v2189 = vpop.f32.mrf.mxu0
        %v2190 = vadd.f32 0.0, %v2189
        %2191 = vmatmul.f32.gmra.mxu0 %v2086
        %v2192 = vpop.f32.mrf.mxu0
        %v2193 = vadd.f32 0.0, %v2192
        %2194 = vmatmul.f32.gmra.mxu0 %v2087
        %v2195 = vpop.f32.mrf.mxu0
        %v2196 = vadd.f32 0.0, %v2195
        %2197 = vmatmul.f32.gmra.mxu0 %v2088
        %v2198 = vpop.f32.mrf.mxu0
        %v2199 = vadd.f32 0.0, %v2198
        %2200 = vmatmul.f32.gmra.mxu0 %v2089
        %v2201 = vpop.f32.mrf.mxu0
        %v2202 = vadd.f32 0.0, %v2201
        %2203 = vmatmul.f32.gmra.mxu0 %v2090
        %v2204 = vpop.f32.mrf.mxu0
        %v2205 = vadd.f32 0.0, %v2204
        %2206 = vmatmul.f32.gmra.mxu0 %v2091
        %v2207 = vpop.f32.mrf.mxu0
        %v2208 = vadd.f32 0.0, %v2207
        %2209 = vmatmul.f32.gmra.mxu0 %v2092
        %v2210 = vpop.f32.mrf.mxu0
        %v2211 = vadd.f32 0.0, %v2210
        %2212 = vmatmul.f32.gmra.mxu0 %v2093
        %v2213 = vpop.f32.mrf.mxu0
        %v2214 = vadd.f32 0.0, %v2213
        %2215 = vmatmul.f32.gmra.mxu0 %v2094
        %v2216 = vpop.f32.mrf.mxu0
        %v2217 = vadd.f32 0.0, %v2216
        %2218 = vmatmul.f32.gmra.mxu0 %v2095
        %v2219 = vpop.f32.mrf.mxu0
        %v2220 = vadd.f32 0.0, %v2219
        %2221 = vmatmul.f32.gmra.mxu0 %v2096
        %v2222 = vpop.f32.mrf.mxu0
        %v2223 = vadd.f32 0.0, %v2222
        %2224 = vmatmul.f32.gmra.mxu0 %v2097
        %v2225 = vpop.f32.mrf.mxu0
        %v2226 = vadd.f32 0.0, %v2225
        %2227 = vmatmul.f32.gmra.mxu0 %v2098
        %v2228 = vpop.f32.mrf.mxu0
        %v2229 = vadd.f32 0.0, %v2228
        %2230 = vmatmul.f32.gmra.mxu0 %v2099
        %v2231 = vpop.f32.mrf.mxu0
        %v2232 = vadd.f32 0.0, %v2231
        %2233 = vmatmul.f32.gmra.mxu0 %v2100
        %v2234 = vpop.f32.mrf.mxu0
        %v2235 = vadd.f32 0.0, %v2234
        %2236 = vmatmul.f32.gmra.mxu0 %v2101
        %v2237 = vpop.f32.mrf.mxu0
        %v2238 = vadd.f32 0.0, %v2237
        %2239 = vmatmul.f32.gmra.mxu0 %v2102
        %v2240 = vpop.f32.mrf.mxu0
        %v2241 = vadd.f32 0.0, %v2240
        %2242 = vmatmul.f32.gmra.mxu0 %v2103
        %v2243 = vpop.f32.mrf.mxu0
        %v2244 = vadd.f32 0.0, %v2243
        %2245 = vdwg.mxu0
        %v2246 = vadd.f32 %v1961, %v2139
        %v2247 = vadd.f32 %v1964, %v2142
        %v2248 = vadd.f32 %v1967, %v2145
        %v2249 = vadd.f32 %v1970, %v2148
        %v2250 = vadd.f32 %v1973, %v2151
        %v2251 = vadd.f32 %v1976, %v2154
        %v2252 = vadd.f32 %v1979, %v2157
        %v2253 = vadd.f32 %v1982, %v2160
        %v2254 = vadd.f32 %v1985, %v2163
        %v2255 = vadd.f32 %v1988, %v2166
        %v2256 = vadd.f32 %v1991, %v2169
        %v2257 = vadd.f32 %v1994, %v2172
        %v2258 = vadd.f32 %v1997, %v2175
        %v2259 = vadd.f32 %v2000, %v2178
        %v2260 = vadd.f32 %v2003, %v2181
        %v2261 = vadd.f32 %v2006, %v2184
        %v2262 = vadd.f32 %v2009, %v2187
        %v2263 = vadd.f32 %v2012, %v2190
        %v2264 = vadd.f32 %v2015, %v2193
        %v2265 = vadd.f32 %v2018, %v2196
        %v2266 = vadd.f32 %v2021, %v2199
        %v2267 = vadd.f32 %v2024, %v2202
        %v2268 = vadd.f32 %v2027, %v2205
        %v2269 = vadd.f32 %v2030, %v2208
        %v2270 = vadd.f32 %v2033, %v2211
        %v2271 = vadd.f32 %v2036, %v2214
        %v2272 = vadd.f32 %v2039, %v2217
        %v2273 = vadd.f32 %v2042, %v2220
        %v2274 = vadd.f32 %v2045, %v2223
        %v2275 = vadd.f32 %v2048, %v2226
        %v2276 = vadd.f32 %v2051, %v2229
        %v2277 = vadd.f32 %v2054, %v2232
        %v2278 = vadd.f32 %v2057, %v2235
        %v2279 = vadd.f32 %v2060, %v2238
        %v2280 = vadd.f32 %v2063, %v2241
        %v2281 = vadd.f32 %v2066, %v2244
        %v2282 = vld [vmem:[%s290 + $0x2f] sm:$0xff]
        %v2283 = vld [vmem:[%s290 + $0x37] sm:$0xff]
        %v2284 = vld [vmem:[%s290 + $0x3f] sm:$0xff]
        %v2285 = vld [vmem:[%s290 + $0x47] sm:$0xff]
        %v2286 = vld [vmem:[%s290 + $0x4f] sm:$0xff]
        %v2287 = vld [vmem:[%s290 + $0x57] sm:$0xff]
        %v2288 = vld [vmem:[%s290 + $0x5f] sm:$0xff]
        %v2289 = vld [vmem:[%s290 + $0x67] sm:$0xff]
        %v2290 = vld [vmem:[%s290 + $0x6f] sm:$0xff]
        %v2291 = vld [vmem:[%s290 + $0x77] sm:$0xff]
        %v2292 = vld [vmem:[%s290 + $0x7f] sm:$0xff]
        %v2293 = vld [vmem:[%s290 + $0x87] sm:$0xff]
        %v2294 = vld [vmem:[%s290 + $0x8f] sm:$0xff]
        %v2295 = vld [vmem:[%s290 + $0x97] sm:$0xff]
        %v2296 = vld [vmem:[%s290 + $0x9f] sm:$0xff]
        %v2297 = vld [vmem:[%s290 + $0xa7] sm:$0xff]
        %v2298 = vld [vmem:[%s290 + $0xaf] sm:$0xff]
        %v2299 = vld [vmem:[%s290 + $0xb7] sm:$0xff]
        %v2300 = vld [vmem:[%s290 + $0xbf] sm:$0xff]
        %v2301 = vld [vmem:[%s290 + $0xc7] sm:$0xff]
        %v2302 = vld [vmem:[%s290 + $0xcf] sm:$0xff]
        %v2303 = vld [vmem:[%s290 + $0xd7] sm:$0xff]
        %v2304 = vld [vmem:[%s290 + $0xdf] sm:$0xff]
        %v2305 = vld [vmem:[%s290 + $0xe7] sm:$0xff]
        %v2306 = vld [vmem:[%s290 + $0xef] sm:$0xff]
        %v2307 = vld [vmem:[%s290 + $0xf7] sm:$0xff]
        %v2308 = vld [vmem:[%s290 + $0xff] sm:$0xff]
        %v2309 = vld [vmem:[%s290 + $0x107] sm:$0xff]
        %v2310 = vld [vmem:[%s290 + $0x10f] sm:$0xff]
        %v2311 = vld [vmem:[%s290 + $0x117] sm:$0xff]
        %v2312 = vld [vmem:[%s290 + $0x11f] sm:$0xff]
        %v2313 = vld [vmem:[%s290 + $0x127] sm:$0xff]
        %v2314 = vld [vmem:[%s290 + $0x12f] sm:$0xff]
        %v2315 = vld [vmem:[%s290 + $0x137] sm:$0xff]
        %v2316 = vld [vmem:[%s290 + $0x13f] sm:$0xff]
        %v2317 = vld [vmem:[%s290 + $0x147] sm:$0xff]
        %s2318 = scalar_lea.vmem [#allocation6], 384
        %v2319 = vld [vmem:[%s2318] sm:$0xff]
        %v2320 = vld [vmem:[%s2318 + $0x8] sm:$0xff]
        %v2321 = vld [vmem:[%s2318 + $0x10] sm:$0xff]
        %v2322 = vld [vmem:[%s2318 + $0x18] sm:$0xff]
        %v2323 = vld [vmem:[%s2318 + $0x20] sm:$0xff]
        %v2324 = vld [vmem:[%s2318 + $0x28] sm:$0xff]
        %v2325 = vld [vmem:[%s2318 + $0x30] sm:$0xff]
        %v2326 = vld [vmem:[%s2318 + $0x38] sm:$0xff]
        %v2327 = vld [vmem:[%s2318 + $0x40] sm:$0xff]
        %v2328 = vld [vmem:[%s2318 + $0x48] sm:$0xff]
        %v2329 = vld [vmem:[%s2318 + $0x50] sm:$0xff]
        %v2330 = vld [vmem:[%s2318 + $0x58] sm:$0xff]
        %v2331 = vld [vmem:[%s2318 + $0x60] sm:$0xff]
        %v2332 = vld [vmem:[%s2318 + $0x68] sm:$0xff]
        %v2333 = vld [vmem:[%s2318 + $0x70] sm:$0xff]
        %v2334 = vld [vmem:[%s2318 + $0x78] sm:$0xff]
        %2335 = vmatpush.msra.mxu0 %v2334
        %2336 = vmatpush.msra.mxu0 %v2333
        %2337 = vmatpush.msra.mxu0 %v2332
        %2338 = vmatpush.msra.mxu0 %v2331
        %2339 = vmatpush.msra.mxu0 %v2330
        %2340 = vmatpush.msra.mxu0 %v2329
        %2341 = vmatpush.msra.mxu0 %v2328
        %2342 = vmatpush.msra.mxu0 %v2327
        %2343 = vmatpush.msra.mxu0 %v2326
        %2344 = vmatpush.msra.mxu0 %v2325
        %2345 = vmatpush.msra.mxu0 %v2324
        %2346 = vmatpush.msra.mxu0 %v2323
        %2347 = vmatpush.msra.mxu0 %v2322
        %2348 = vmatpush.msra.mxu0 %v2321
        %2349 = vmatpush.msra.mxu0 %v2320
        %2350 = vmatpush.msra.mxu0 %v2319
        %2351 = vmatmul.f32.gmra.mxu0 %v2282
        %v2352 = vpop.f32.mrf.mxu0
        %v2353 = vadd.f32 0.0, %v2352
        %2354 = vmatmul.f32.gmra.mxu0 %v2283
        %v2355 = vpop.f32.mrf.mxu0
        %v2356 = vadd.f32 0.0, %v2355
        %2357 = vmatmul.f32.gmra.mxu0 %v2284
        %v2358 = vpop.f32.mrf.mxu0
        %v2359 = vadd.f32 0.0, %v2358
        %2360 = vmatmul.f32.gmra.mxu0 %v2285
        %v2361 = vpop.f32.mrf.mxu0
        %v2362 = vadd.f32 0.0, %v2361
        %2363 = vmatmul.f32.gmra.mxu0 %v2286
        %v2364 = vpop.f32.mrf.mxu0
        %v2365 = vadd.f32 0.0, %v2364
        %2366 = vmatmul.f32.gmra.mxu0 %v2287
        %v2367 = vpop.f32.mrf.mxu0
        %v2368 = vadd.f32 0.0, %v2367
        %2369 = vmatmul.f32.gmra.mxu0 %v2288
        %v2370 = vpop.f32.mrf.mxu0
        %v2371 = vadd.f32 0.0, %v2370
        %2372 = vmatmul.f32.gmra.mxu0 %v2289
        %v2373 = vpop.f32.mrf.mxu0
        %v2374 = vadd.f32 0.0, %v2373
        %2375 = vmatmul.f32.gmra.mxu0 %v2290
        %v2376 = vpop.f32.mrf.mxu0
        %v2377 = vadd.f32 0.0, %v2376
        %2378 = vmatmul.f32.gmra.mxu0 %v2291
        %v2379 = vpop.f32.mrf.mxu0
        %v2380 = vadd.f32 0.0, %v2379
        %2381 = vmatmul.f32.gmra.mxu0 %v2292
        %v2382 = vpop.f32.mrf.mxu0
        %v2383 = vadd.f32 0.0, %v2382
        %2384 = vmatmul.f32.gmra.mxu0 %v2293
        %v2385 = vpop.f32.mrf.mxu0
        %v2386 = vadd.f32 0.0, %v2385
        %2387 = vmatmul.f32.gmra.mxu0 %v2294
        %v2388 = vpop.f32.mrf.mxu0
        %v2389 = vadd.f32 0.0, %v2388
        %2390 = vmatmul.f32.gmra.mxu0 %v2295
        %v2391 = vpop.f32.mrf.mxu0
        %v2392 = vadd.f32 0.0, %v2391
        %2393 = vmatmul.f32.gmra.mxu0 %v2296
        %v2394 = vpop.f32.mrf.mxu0
        %v2395 = vadd.f32 0.0, %v2394
        %2396 = vmatmul.f32.gmra.mxu0 %v2297
        %v2397 = vpop.f32.mrf.mxu0
        %v2398 = vadd.f32 0.0, %v2397
        %2399 = vmatmul.f32.gmra.mxu0 %v2298
        %v2400 = vpop.f32.mrf.mxu0
        %v2401 = vadd.f32 0.0, %v2400
        %2402 = vmatmul.f32.gmra.mxu0 %v2299
        %v2403 = vpop.f32.mrf.mxu0
        %v2404 = vadd.f32 0.0, %v2403
        %2405 = vmatmul.f32.gmra.mxu0 %v2300
        %v2406 = vpop.f32.mrf.mxu0
        %v2407 = vadd.f32 0.0, %v2406
        %2408 = vmatmul.f32.gmra.mxu0 %v2301
        %v2409 = vpop.f32.mrf.mxu0
        %v2410 = vadd.f32 0.0, %v2409
        %2411 = vmatmul.f32.gmra.mxu0 %v2302
        %v2412 = vpop.f32.mrf.mxu0
        %v2413 = vadd.f32 0.0, %v2412
        %2414 = vmatmul.f32.gmra.mxu0 %v2303
        %v2415 = vpop.f32.mrf.mxu0
        %v2416 = vadd.f32 0.0, %v2415
        %2417 = vmatmul.f32.gmra.mxu0 %v2304
        %v2418 = vpop.f32.mrf.mxu0
        %v2419 = vadd.f32 0.0, %v2418
        %2420 = vmatmul.f32.gmra.mxu0 %v2305
        %v2421 = vpop.f32.mrf.mxu0
        %v2422 = vadd.f32 0.0, %v2421
        %2423 = vmatmul.f32.gmra.mxu0 %v2306
        %v2424 = vpop.f32.mrf.mxu0
        %v2425 = vadd.f32 0.0, %v2424
        %2426 = vmatmul.f32.gmra.mxu0 %v2307
        %v2427 = vpop.f32.mrf.mxu0
        %v2428 = vadd.f32 0.0, %v2427
        %2429 = vmatmul.f32.gmra.mxu0 %v2308
        %v2430 = vpop.f32.mrf.mxu0
        %v2431 = vadd.f32 0.0, %v2430
        %2432 = vmatmul.f32.gmra.mxu0 %v2309
        %v2433 = vpop.f32.mrf.mxu0
        %v2434 = vadd.f32 0.0, %v2433
        %2435 = vmatmul.f32.gmra.mxu0 %v2310
        %v2436 = vpop.f32.mrf.mxu0
        %v2437 = vadd.f32 0.0, %v2436
        %2438 = vmatmul.f32.gmra.mxu0 %v2311
        %v2439 = vpop.f32.mrf.mxu0
        %v2440 = vadd.f32 0.0, %v2439
        %2441 = vmatmul.f32.gmra.mxu0 %v2312
        %v2442 = vpop.f32.mrf.mxu0
        %v2443 = vadd.f32 0.0, %v2442
        %2444 = vmatmul.f32.gmra.mxu0 %v2313
        %v2445 = vpop.f32.mrf.mxu0
        %v2446 = vadd.f32 0.0, %v2445
        %2447 = vmatmul.f32.gmra.mxu0 %v2314
        %v2448 = vpop.f32.mrf.mxu0
        %v2449 = vadd.f32 0.0, %v2448
        %2450 = vmatmul.f32.gmra.mxu0 %v2315
        %v2451 = vpop.f32.mrf.mxu0
        %v2452 = vadd.f32 0.0, %v2451
        %2453 = vmatmul.f32.gmra.mxu0 %v2316
        %v2454 = vpop.f32.mrf.mxu0
        %v2455 = vadd.f32 0.0, %v2454
        %2456 = vmatmul.f32.gmra.mxu0 %v2317
        %v2457 = vpop.f32.mrf.mxu0
        %v2458 = vadd.f32 0.0, %v2457
        %2459 = vdwg.mxu0
        %v2460 = vadd.f32 %v2246, %v2353
        %v2461 = vadd.f32 %v2247, %v2356
        %v2462 = vadd.f32 %v2248, %v2359
        %v2463 = vadd.f32 %v2249, %v2362
        %v2464 = vadd.f32 %v2250, %v2365
        %v2465 = vadd.f32 %v2251, %v2368
        %v2466 = vadd.f32 %v2252, %v2371
        %v2467 = vadd.f32 %v2253, %v2374
        %v2468 = vadd.f32 %v2254, %v2377
        %v2469 = vadd.f32 %v2255, %v2380
        %v2470 = vadd.f32 %v2256, %v2383
        %v2471 = vadd.f32 %v2257, %v2386
        %v2472 = vadd.f32 %v2258, %v2389
        %v2473 = vadd.f32 %v2259, %v2392
        %v2474 = vadd.f32 %v2260, %v2395
        %v2475 = vadd.f32 %v2261, %v2398
        %v2476 = vadd.f32 %v2262, %v2401
        %v2477 = vadd.f32 %v2263, %v2404
        %v2478 = vadd.f32 %v2264, %v2407
        %v2479 = vadd.f32 %v2265, %v2410
        %v2480 = vadd.f32 %v2266, %v2413
        %v2481 = vadd.f32 %v2267, %v2416
        %v2482 = vadd.f32 %v2268, %v2419
        %v2483 = vadd.f32 %v2269, %v2422
        %v2484 = vadd.f32 %v2270, %v2425
        %v2485 = vadd.f32 %v2271, %v2428
        %v2486 = vadd.f32 %v2272, %v2431
        %v2487 = vadd.f32 %v2273, %v2434
        %v2488 = vadd.f32 %v2274, %v2437
        %v2489 = vadd.f32 %v2275, %v2440
        %v2490 = vadd.f32 %v2276, %v2443
        %v2491 = vadd.f32 %v2277, %v2446
        %v2492 = vadd.f32 %v2278, %v2449
        %v2493 = vadd.f32 %v2279, %v2452
        %v2494 = vadd.f32 %v2280, %v2455
        %v2495 = vadd.f32 %v2281, %v2458
        %v2496 = vld [vmem:[%s290 + $0x30] sm:$0xff]
        %v2497 = vld [vmem:[%s290 + $0x38] sm:$0xff]
        %v2498 = vld [vmem:[%s290 + $0x40] sm:$0xff]
        %v2499 = vld [vmem:[%s290 + $0x48] sm:$0xff]
        %v2500 = vld [vmem:[%s290 + $0x50] sm:$0xff]
        %v2501 = vld [vmem:[%s290 + $0x58] sm:$0xff]
        %v2502 = vld [vmem:[%s290 + $0x60] sm:$0xff]
        %v2503 = vld [vmem:[%s290 + $0x68] sm:$0xff]
        %v2504 = vld [vmem:[%s290 + $0x70] sm:$0xff]
        %v2505 = vld [vmem:[%s290 + $0x78] sm:$0xff]
        %v2506 = vld [vmem:[%s290 + $0x80] sm:$0xff]
        %v2507 = vld [vmem:[%s290 + $0x88] sm:$0xff]
        %v2508 = vld [vmem:[%s290 + $0x90] sm:$0xff]
        %v2509 = vld [vmem:[%s290 + $0x98] sm:$0xff]
        %v2510 = vld [vmem:[%s290 + $0xa0] sm:$0xff]
        %v2511 = vld [vmem:[%s290 + $0xa8] sm:$0xff]
        %v2512 = vld [vmem:[%s290 + $0xb0] sm:$0xff]
        %v2513 = vld [vmem:[%s290 + $0xb8] sm:$0xff]
        %v2514 = vld [vmem:[%s290 + $0xc0] sm:$0xff]
        %v2515 = vld [vmem:[%s290 + $0xc8] sm:$0xff]
        %v2516 = vld [vmem:[%s290 + $0xd0] sm:$0xff]
        %v2517 = vld [vmem:[%s290 + $0xd8] sm:$0xff]
        %v2518 = vld [vmem:[%s290 + $0xe0] sm:$0xff]
        %v2519 = vld [vmem:[%s290 + $0xe8] sm:$0xff]
        %v2520 = vld [vmem:[%s290 + $0xf0] sm:$0xff]
        %v2521 = vld [vmem:[%s290 + $0xf8] sm:$0xff]
        %v2522 = vld [vmem:[%s290 + $0x100] sm:$0xff]
        %v2523 = vld [vmem:[%s290 + $0x108] sm:$0xff]
        %v2524 = vld [vmem:[%s290 + $0x110] sm:$0xff]
        %v2525 = vld [vmem:[%s290 + $0x118] sm:$0xff]
        %v2526 = vld [vmem:[%s290 + $0x120] sm:$0xff]
        %v2527 = vld [vmem:[%s290 + $0x128] sm:$0xff]
        %v2528 = vld [vmem:[%s290 + $0x130] sm:$0xff]
        %v2529 = vld [vmem:[%s290 + $0x138] sm:$0xff]
        %v2530 = vld [vmem:[%s290 + $0x140] sm:$0xff]
        %v2531 = vld [vmem:[%s290 + $0x148] sm:$0xff]
        %s2532 = scalar_lea.vmem [#allocation6], 512
        %v2533 = vld [vmem:[%s2532] sm:$0xff]
        %v2534 = vld [vmem:[%s2532 + $0x8] sm:$0xff]
        %v2535 = vld [vmem:[%s2532 + $0x10] sm:$0xff]
        %v2536 = vld [vmem:[%s2532 + $0x18] sm:$0xff]
        %v2537 = vld [vmem:[%s2532 + $0x20] sm:$0xff]
        %v2538 = vld [vmem:[%s2532 + $0x28] sm:$0xff]
        %v2539 = vld [vmem:[%s2532 + $0x30] sm:$0xff]
        %v2540 = vld [vmem:[%s2532 + $0x38] sm:$0xff]
        %v2541 = vld [vmem:[%s2532 + $0x40] sm:$0xff]
        %v2542 = vld [vmem:[%s2532 + $0x48] sm:$0xff]
        %v2543 = vld [vmem:[%s2532 + $0x50] sm:$0xff]
        %v2544 = vld [vmem:[%s2532 + $0x58] sm:$0xff]
        %v2545 = vld [vmem:[%s2532 + $0x60] sm:$0xff]
        %v2546 = vld [vmem:[%s2532 + $0x68] sm:$0xff]
        %v2547 = vld [vmem:[%s2532 + $0x70] sm:$0xff]
        %v2548 = vld [vmem:[%s2532 + $0x78] sm:$0xff]
        %2549 = vmatpush.msra.mxu0 %v2548
        %2550 = vmatpush.msra.mxu0 %v2547
        %2551 = vmatpush.msra.mxu0 %v2546
        %2552 = vmatpush.msra.mxu0 %v2545
        %2553 = vmatpush.msra.mxu0 %v2544
        %2554 = vmatpush.msra.mxu0 %v2543
        %2555 = vmatpush.msra.mxu0 %v2542
        %2556 = vmatpush.msra.mxu0 %v2541
        %2557 = vmatpush.msra.mxu0 %v2540
        %2558 = vmatpush.msra.mxu0 %v2539
        %2559 = vmatpush.msra.mxu0 %v2538
        %2560 = vmatpush.msra.mxu0 %v2537
        %2561 = vmatpush.msra.mxu0 %v2536
        %2562 = vmatpush.msra.mxu0 %v2535
        %2563 = vmatpush.msra.mxu0 %v2534
        %2564 = vmatpush.msra.mxu0 %v2533
        %2565 = vmatmul.f32.gmra.mxu0 %v2496
        %v2566 = vpop.f32.mrf.mxu0
        %v2567 = vadd.f32 0.0, %v2566
        %2568 = vmatmul.f32.gmra.mxu0 %v2497
        %v2569 = vpop.f32.mrf.mxu0
        %v2570 = vadd.f32 0.0, %v2569
        %2571 = vmatmul.f32.gmra.mxu0 %v2498
        %v2572 = vpop.f32.mrf.mxu0
        %v2573 = vadd.f32 0.0, %v2572
        %2574 = vmatmul.f32.gmra.mxu0 %v2499
        %v2575 = vpop.f32.mrf.mxu0
        %v2576 = vadd.f32 0.0, %v2575
        %2577 = vmatmul.f32.gmra.mxu0 %v2500
        %v2578 = vpop.f32.mrf.mxu0
        %v2579 = vadd.f32 0.0, %v2578
        %2580 = vmatmul.f32.gmra.mxu0 %v2501
        %v2581 = vpop.f32.mrf.mxu0
        %v2582 = vadd.f32 0.0, %v2581
        %2583 = vmatmul.f32.gmra.mxu0 %v2502
        %v2584 = vpop.f32.mrf.mxu0
        %v2585 = vadd.f32 0.0, %v2584
        %2586 = vmatmul.f32.gmra.mxu0 %v2503
        %v2587 = vpop.f32.mrf.mxu0
        %v2588 = vadd.f32 0.0, %v2587
        %2589 = vmatmul.f32.gmra.mxu0 %v2504
        %v2590 = vpop.f32.mrf.mxu0
        %v2591 = vadd.f32 0.0, %v2590
        %2592 = vmatmul.f32.gmra.mxu0 %v2505
        %v2593 = vpop.f32.mrf.mxu0
        %v2594 = vadd.f32 0.0, %v2593
        %2595 = vmatmul.f32.gmra.mxu0 %v2506
        %v2596 = vpop.f32.mrf.mxu0
        %v2597 = vadd.f32 0.0, %v2596
        %2598 = vmatmul.f32.gmra.mxu0 %v2507
        %v2599 = vpop.f32.mrf.mxu0
        %v2600 = vadd.f32 0.0, %v2599
        %2601 = vmatmul.f32.gmra.mxu0 %v2508
        %v2602 = vpop.f32.mrf.mxu0
        %v2603 = vadd.f32 0.0, %v2602
        %2604 = vmatmul.f32.gmra.mxu0 %v2509
        %v2605 = vpop.f32.mrf.mxu0
        %v2606 = vadd.f32 0.0, %v2605
        %2607 = vmatmul.f32.gmra.mxu0 %v2510
        %v2608 = vpop.f32.mrf.mxu0
        %v2609 = vadd.f32 0.0, %v2608
        %2610 = vmatmul.f32.gmra.mxu0 %v2511
        %v2611 = vpop.f32.mrf.mxu0
        %v2612 = vadd.f32 0.0, %v2611
        %2613 = vmatmul.f32.gmra.mxu0 %v2512
        %v2614 = vpop.f32.mrf.mxu0
        %v2615 = vadd.f32 0.0, %v2614
        %2616 = vmatmul.f32.gmra.mxu0 %v2513
        %v2617 = vpop.f32.mrf.mxu0
        %v2618 = vadd.f32 0.0, %v2617
        %2619 = vmatmul.f32.gmra.mxu0 %v2514
        %v2620 = vpop.f32.mrf.mxu0
        %v2621 = vadd.f32 0.0, %v2620
        %2622 = vmatmul.f32.gmra.mxu0 %v2515
        %v2623 = vpop.f32.mrf.mxu0
        %v2624 = vadd.f32 0.0, %v2623
        %2625 = vmatmul.f32.gmra.mxu0 %v2516
        %v2626 = vpop.f32.mrf.mxu0
        %v2627 = vadd.f32 0.0, %v2626
        %2628 = vmatmul.f32.gmra.mxu0 %v2517
        %v2629 = vpop.f32.mrf.mxu0
        %v2630 = vadd.f32 0.0, %v2629
        %2631 = vmatmul.f32.gmra.mxu0 %v2518
        %v2632 = vpop.f32.mrf.mxu0
        %v2633 = vadd.f32 0.0, %v2632
        %2634 = vmatmul.f32.gmra.mxu0 %v2519
        %v2635 = vpop.f32.mrf.mxu0
        %v2636 = vadd.f32 0.0, %v2635
        %2637 = vmatmul.f32.gmra.mxu0 %v2520
        %v2638 = vpop.f32.mrf.mxu0
        %v2639 = vadd.f32 0.0, %v2638
        %2640 = vmatmul.f32.gmra.mxu0 %v2521
        %v2641 = vpop.f32.mrf.mxu0
        %v2642 = vadd.f32 0.0, %v2641
        %2643 = vmatmul.f32.gmra.mxu0 %v2522
        %v2644 = vpop.f32.mrf.mxu0
        %v2645 = vadd.f32 0.0, %v2644
        %2646 = vmatmul.f32.gmra.mxu0 %v2523
        %v2647 = vpop.f32.mrf.mxu0
        %v2648 = vadd.f32 0.0, %v2647
        %2649 = vmatmul.f32.gmra.mxu0 %v2524
        %v2650 = vpop.f32.mrf.mxu0
        %v2651 = vadd.f32 0.0, %v2650
        %2652 = vmatmul.f32.gmra.mxu0 %v2525
        %v2653 = vpop.f32.mrf.mxu0
        %v2654 = vadd.f32 0.0, %v2653
        %2655 = vmatmul.f32.gmra.mxu0 %v2526
        %v2656 = vpop.f32.mrf.mxu0
        %v2657 = vadd.f32 0.0, %v2656
        %2658 = vmatmul.f32.gmra.mxu0 %v2527
        %v2659 = vpop.f32.mrf.mxu0
        %v2660 = vadd.f32 0.0, %v2659
        %2661 = vmatmul.f32.gmra.mxu0 %v2528
        %v2662 = vpop.f32.mrf.mxu0
        %v2663 = vadd.f32 0.0, %v2662
        %2664 = vmatmul.f32.gmra.mxu0 %v2529
        %v2665 = vpop.f32.mrf.mxu0
        %v2666 = vadd.f32 0.0, %v2665
        %2667 = vmatmul.f32.gmra.mxu0 %v2530
        %v2668 = vpop.f32.mrf.mxu0
        %v2669 = vadd.f32 0.0, %v2668
        %2670 = vmatmul.f32.gmra.mxu0 %v2531
        %v2671 = vpop.f32.mrf.mxu0
        %v2672 = vadd.f32 0.0, %v2671
        %2673 = vdwg.mxu0
        %v2674 = vadd.f32 %v2460, %v2567
        %v2675 = vadd.f32 %v2461, %v2570
        %v2676 = vadd.f32 %v2462, %v2573
        %v2677 = vadd.f32 %v2463, %v2576
        %v2678 = vadd.f32 %v2464, %v2579
        %v2679 = vadd.f32 %v2465, %v2582
        %v2680 = vadd.f32 %v2466, %v2585
        %v2681 = vadd.f32 %v2467, %v2588
        %v2682 = vadd.f32 %v2468, %v2591
        %v2683 = vadd.f32 %v2469, %v2594
        %v2684 = vadd.f32 %v2470, %v2597
        %v2685 = vadd.f32 %v2471, %v2600
        %v2686 = vadd.f32 %v2472, %v2603
        %v2687 = vadd.f32 %v2473, %v2606
        %v2688 = vadd.f32 %v2474, %v2609
        %v2689 = vadd.f32 %v2475, %v2612
        %v2690 = vadd.f32 %v2476, %v2615
        %v2691 = vadd.f32 %v2477, %v2618
        %v2692 = vadd.f32 %v2478, %v2621
        %v2693 = vadd.f32 %v2479, %v2624
        %v2694 = vadd.f32 %v2480, %v2627
        %v2695 = vadd.f32 %v2481, %v2630
        %v2696 = vadd.f32 %v2482, %v2633
        %v2697 = vadd.f32 %v2483, %v2636
        %v2698 = vadd.f32 %v2484, %v2639
        %v2699 = vadd.f32 %v2485, %v2642
        %v2700 = vadd.f32 %v2486, %v2645
        %v2701 = vadd.f32 %v2487, %v2648
        %v2702 = vadd.f32 %v2488, %v2651
        %v2703 = vadd.f32 %v2489, %v2654
        %v2704 = vadd.f32 %v2490, %v2657
        %v2705 = vadd.f32 %v2491, %v2660
        %v2706 = vadd.f32 %v2492, %v2663
        %v2707 = vadd.f32 %v2493, %v2666
        %v2708 = vadd.f32 %v2494, %v2669
        %v2709 = vadd.f32 %v2495, %v2672
        %v2710 = vld [vmem:[%s290 + $0x31] sm:$0xff]
        %v2711 = vld [vmem:[%s290 + $0x39] sm:$0xff]
        %v2712 = vld [vmem:[%s290 + $0x41] sm:$0xff]
        %v2713 = vld [vmem:[%s290 + $0x49] sm:$0xff]
        %v2714 = vld [vmem:[%s290 + $0x51] sm:$0xff]
        %v2715 = vld [vmem:[%s290 + $0x59] sm:$0xff]
        %v2716 = vld [vmem:[%s290 + $0x61] sm:$0xff]
        %v2717 = vld [vmem:[%s290 + $0x69] sm:$0xff]
        %v2718 = vld [vmem:[%s290 + $0x71] sm:$0xff]
        %v2719 = vld [vmem:[%s290 + $0x79] sm:$0xff]
        %v2720 = vld [vmem:[%s290 + $0x81] sm:$0xff]
        %v2721 = vld [vmem:[%s290 + $0x89] sm:$0xff]
        %v2722 = vld [vmem:[%s290 + $0x91] sm:$0xff]
        %v2723 = vld [vmem:[%s290 + $0x99] sm:$0xff]
        %v2724 = vld [vmem:[%s290 + $0xa1] sm:$0xff]
        %v2725 = vld [vmem:[%s290 + $0xa9] sm:$0xff]
        %v2726 = vld [vmem:[%s290 + $0xb1] sm:$0xff]
        %v2727 = vld [vmem:[%s290 + $0xb9] sm:$0xff]
        %v2728 = vld [vmem:[%s290 + $0xc1] sm:$0xff]
        %v2729 = vld [vmem:[%s290 + $0xc9] sm:$0xff]
        %v2730 = vld [vmem:[%s290 + $0xd1] sm:$0xff]
        %v2731 = vld [vmem:[%s290 + $0xd9] sm:$0xff]
        %v2732 = vld [vmem:[%s290 + $0xe1] sm:$0xff]
        %v2733 = vld [vmem:[%s290 + $0xe9] sm:$0xff]
        %v2734 = vld [vmem:[%s290 + $0xf1] sm:$0xff]
        %v2735 = vld [vmem:[%s290 + $0xf9] sm:$0xff]
        %v2736 = vld [vmem:[%s290 + $0x101] sm:$0xff]
        %v2737 = vld [vmem:[%s290 + $0x109] sm:$0xff]
        %v2738 = vld [vmem:[%s290 + $0x111] sm:$0xff]
        %v2739 = vld [vmem:[%s290 + $0x119] sm:$0xff]
        %v2740 = vld [vmem:[%s290 + $0x121] sm:$0xff]
        %v2741 = vld [vmem:[%s290 + $0x129] sm:$0xff]
        %v2742 = vld [vmem:[%s290 + $0x131] sm:$0xff]
        %v2743 = vld [vmem:[%s290 + $0x139] sm:$0xff]
        %v2744 = vld [vmem:[%s290 + $0x141] sm:$0xff]
        %v2745 = vld [vmem:[%s290 + $0x149] sm:$0xff]
        %s2746 = scalar_lea.vmem [#allocation6], 640
        %v2747 = vld [vmem:[%s2746] sm:$0xff]
        %v2748 = vld [vmem:[%s2746 + $0x8] sm:$0xff]
        %v2749 = vld [vmem:[%s2746 + $0x10] sm:$0xff]
        %v2750 = vld [vmem:[%s2746 + $0x18] sm:$0xff]
        %v2751 = vld [vmem:[%s2746 + $0x20] sm:$0xff]
        %v2752 = vld [vmem:[%s2746 + $0x28] sm:$0xff]
        %v2753 = vld [vmem:[%s2746 + $0x30] sm:$0xff]
        %v2754 = vld [vmem:[%s2746 + $0x38] sm:$0xff]
        %v2755 = vld [vmem:[%s2746 + $0x40] sm:$0xff]
        %v2756 = vld [vmem:[%s2746 + $0x48] sm:$0xff]
        %v2757 = vld [vmem:[%s2746 + $0x50] sm:$0xff]
        %v2758 = vld [vmem:[%s2746 + $0x58] sm:$0xff]
        %v2759 = vld [vmem:[%s2746 + $0x60] sm:$0xff]
        %v2760 = vld [vmem:[%s2746 + $0x68] sm:$0xff]
        %v2761 = vld [vmem:[%s2746 + $0x70] sm:$0xff]
        %v2762 = vld [vmem:[%s2746 + $0x78] sm:$0xff]
        %2763 = vmatpush.msra.mxu0 %v2762
        %2764 = vmatpush.msra.mxu0 %v2761
        %2765 = vmatpush.msra.mxu0 %v2760
        %2766 = vmatpush.msra.mxu0 %v2759
        %2767 = vmatpush.msra.mxu0 %v2758
        %2768 = vmatpush.msra.mxu0 %v2757
        %2769 = vmatpush.msra.mxu0 %v2756
        %2770 = vmatpush.msra.mxu0 %v2755
        %2771 = vmatpush.msra.mxu0 %v2754
        %2772 = vmatpush.msra.mxu0 %v2753
        %2773 = vmatpush.msra.mxu0 %v2752
        %2774 = vmatpush.msra.mxu0 %v2751
        %2775 = vmatpush.msra.mxu0 %v2750
        %2776 = vmatpush.msra.mxu0 %v2749
        %2777 = vmatpush.msra.mxu0 %v2748
        %2778 = vmatpush.msra.mxu0 %v2747
        %2779 = vmatmul.f32.gmra.mxu0 %v2710
        %v2780 = vpop.f32.mrf.mxu0
        %v2781 = vadd.f32 0.0, %v2780
        %2782 = vmatmul.f32.gmra.mxu0 %v2711
        %v2783 = vpop.f32.mrf.mxu0
        %v2784 = vadd.f32 0.0, %v2783
        %2785 = vmatmul.f32.gmra.mxu0 %v2712
        %v2786 = vpop.f32.mrf.mxu0
        %v2787 = vadd.f32 0.0, %v2786
        %2788 = vmatmul.f32.gmra.mxu0 %v2713
        %v2789 = vpop.f32.mrf.mxu0
        %v2790 = vadd.f32 0.0, %v2789
        %2791 = vmatmul.f32.gmra.mxu0 %v2714
        %v2792 = vpop.f32.mrf.mxu0
        %v2793 = vadd.f32 0.0, %v2792
        %2794 = vmatmul.f32.gmra.mxu0 %v2715
        %v2795 = vpop.f32.mrf.mxu0
        %v2796 = vadd.f32 0.0, %v2795
        %2797 = vmatmul.f32.gmra.mxu0 %v2716
        %v2798 = vpop.f32.mrf.mxu0
        %v2799 = vadd.f32 0.0, %v2798
        %2800 = vmatmul.f32.gmra.mxu0 %v2717
        %v2801 = vpop.f32.mrf.mxu0
        %v2802 = vadd.f32 0.0, %v2801
        %2803 = vmatmul.f32.gmra.mxu0 %v2718
        %v2804 = vpop.f32.mrf.mxu0
        %v2805 = vadd.f32 0.0, %v2804
        %2806 = vmatmul.f32.gmra.mxu0 %v2719
        %v2807 = vpop.f32.mrf.mxu0
        %v2808 = vadd.f32 0.0, %v2807
        %2809 = vmatmul.f32.gmra.mxu0 %v2720
        %v2810 = vpop.f32.mrf.mxu0
        %v2811 = vadd.f32 0.0, %v2810
        %2812 = vmatmul.f32.gmra.mxu0 %v2721
        %v2813 = vpop.f32.mrf.mxu0
        %v2814 = vadd.f32 0.0, %v2813
        %2815 = vmatmul.f32.gmra.mxu0 %v2722
        %v2816 = vpop.f32.mrf.mxu0
        %v2817 = vadd.f32 0.0, %v2816
        %2818 = vmatmul.f32.gmra.mxu0 %v2723
        %v2819 = vpop.f32.mrf.mxu0
        %v2820 = vadd.f32 0.0, %v2819
        %2821 = vmatmul.f32.gmra.mxu0 %v2724
        %v2822 = vpop.f32.mrf.mxu0
        %v2823 = vadd.f32 0.0, %v2822
        %2824 = vmatmul.f32.gmra.mxu0 %v2725
        %v2825 = vpop.f32.mrf.mxu0
        %v2826 = vadd.f32 0.0, %v2825
        %2827 = vmatmul.f32.gmra.mxu0 %v2726
        %v2828 = vpop.f32.mrf.mxu0
        %v2829 = vadd.f32 0.0, %v2828
        %2830 = vmatmul.f32.gmra.mxu0 %v2727
        %v2831 = vpop.f32.mrf.mxu0
        %v2832 = vadd.f32 0.0, %v2831
        %2833 = vmatmul.f32.gmra.mxu0 %v2728
        %v2834 = vpop.f32.mrf.mxu0
        %v2835 = vadd.f32 0.0, %v2834
        %2836 = vmatmul.f32.gmra.mxu0 %v2729
        %v2837 = vpop.f32.mrf.mxu0
        %v2838 = vadd.f32 0.0, %v2837
        %2839 = vmatmul.f32.gmra.mxu0 %v2730
        %v2840 = vpop.f32.mrf.mxu0
        %v2841 = vadd.f32 0.0, %v2840
        %2842 = vmatmul.f32.gmra.mxu0 %v2731
        %v2843 = vpop.f32.mrf.mxu0
        %v2844 = vadd.f32 0.0, %v2843
        %2845 = vmatmul.f32.gmra.mxu0 %v2732
        %v2846 = vpop.f32.mrf.mxu0
        %v2847 = vadd.f32 0.0, %v2846
        %2848 = vmatmul.f32.gmra.mxu0 %v2733
        %v2849 = vpop.f32.mrf.mxu0
        %v2850 = vadd.f32 0.0, %v2849
        %2851 = vmatmul.f32.gmra.mxu0 %v2734
        %v2852 = vpop.f32.mrf.mxu0
        %v2853 = vadd.f32 0.0, %v2852
        %2854 = vmatmul.f32.gmra.mxu0 %v2735
        %v2855 = vpop.f32.mrf.mxu0
        %v2856 = vadd.f32 0.0, %v2855
        %2857 = vmatmul.f32.gmra.mxu0 %v2736
        %v2858 = vpop.f32.mrf.mxu0
        %v2859 = vadd.f32 0.0, %v2858
        %2860 = vmatmul.f32.gmra.mxu0 %v2737
        %v2861 = vpop.f32.mrf.mxu0
        %v2862 = vadd.f32 0.0, %v2861
        %2863 = vmatmul.f32.gmra.mxu0 %v2738
        %v2864 = vpop.f32.mrf.mxu0
        %v2865 = vadd.f32 0.0, %v2864
        %2866 = vmatmul.f32.gmra.mxu0 %v2739
        %v2867 = vpop.f32.mrf.mxu0
        %v2868 = vadd.f32 0.0, %v2867
        %2869 = vmatmul.f32.gmra.mxu0 %v2740
        %v2870 = vpop.f32.mrf.mxu0
        %v2871 = vadd.f32 0.0, %v2870
        %2872 = vmatmul.f32.gmra.mxu0 %v2741
        %v2873 = vpop.f32.mrf.mxu0
        %v2874 = vadd.f32 0.0, %v2873
        %2875 = vmatmul.f32.gmra.mxu0 %v2742
        %v2876 = vpop.f32.mrf.mxu0
        %v2877 = vadd.f32 0.0, %v2876
        %2878 = vmatmul.f32.gmra.mxu0 %v2743
        %v2879 = vpop.f32.mrf.mxu0
        %v2880 = vadd.f32 0.0, %v2879
        %2881 = vmatmul.f32.gmra.mxu0 %v2744
        %v2882 = vpop.f32.mrf.mxu0
        %v2883 = vadd.f32 0.0, %v2882
        %2884 = vmatmul.f32.gmra.mxu0 %v2745
        %v2885 = vpop.f32.mrf.mxu0
        %v2886 = vadd.f32 0.0, %v2885
        %2887 = vdwg.mxu0
        %v2888 = vadd.f32 %v2674, %v2781
        %v2889 = vadd.f32 %v2675, %v2784
        %v2890 = vadd.f32 %v2676, %v2787
        %v2891 = vadd.f32 %v2677, %v2790
        %v2892 = vadd.f32 %v2678, %v2793
        %v2893 = vadd.f32 %v2679, %v2796
        %v2894 = vadd.f32 %v2680, %v2799
        %v2895 = vadd.f32 %v2681, %v2802
        %v2896 = vadd.f32 %v2682, %v2805
        %v2897 = vadd.f32 %v2683, %v2808
        %v2898 = vadd.f32 %v2684, %v2811
        %v2899 = vadd.f32 %v2685, %v2814
        %v2900 = vadd.f32 %v2686, %v2817
        %v2901 = vadd.f32 %v2687, %v2820
        %v2902 = vadd.f32 %v2688, %v2823
        %v2903 = vadd.f32 %v2689, %v2826
        %v2904 = vadd.f32 %v2690, %v2829
        %v2905 = vadd.f32 %v2691, %v2832
        %v2906 = vadd.f32 %v2692, %v2835
        %v2907 = vadd.f32 %v2693, %v2838
        %v2908 = vadd.f32 %v2694, %v2841
        %v2909 = vadd.f32 %v2695, %v2844
        %v2910 = vadd.f32 %v2696, %v2847
        %v2911 = vadd.f32 %v2697, %v2850
        %v2912 = vadd.f32 %v2698, %v2853
        %v2913 = vadd.f32 %v2699, %v2856
        %v2914 = vadd.f32 %v2700, %v2859
        %v2915 = vadd.f32 %v2701, %v2862
        %v2916 = vadd.f32 %v2702, %v2865
        %v2917 = vadd.f32 %v2703, %v2868
        %v2918 = vadd.f32 %v2704, %v2871
        %v2919 = vadd.f32 %v2705, %v2874
        %v2920 = vadd.f32 %v2706, %v2877
        %v2921 = vadd.f32 %v2707, %v2880
        %v2922 = vadd.f32 %v2708, %v2883
        %v2923 = vadd.f32 %v2709, %v2886
        %v2924 = vld [vmem:[%s290 + $0x41] sm:$0xff]
        %v2925 = vld [vmem:[%s290 + $0x49] sm:$0xff]
        %v2926 = vld [vmem:[%s290 + $0x51] sm:$0xff]
        %v2927 = vld [vmem:[%s290 + $0x59] sm:$0xff]
        %v2928 = vld [vmem:[%s290 + $0x61] sm:$0xff]
        %v2929 = vld [vmem:[%s290 + $0x69] sm:$0xff]
        %v2930 = vld [vmem:[%s290 + $0x71] sm:$0xff]
        %v2931 = vld [vmem:[%s290 + $0x79] sm:$0xff]
        %v2932 = vld [vmem:[%s290 + $0x81] sm:$0xff]
        %v2933 = vld [vmem:[%s290 + $0x89] sm:$0xff]
        %v2934 = vld [vmem:[%s290 + $0x91] sm:$0xff]
        %v2935 = vld [vmem:[%s290 + $0x99] sm:$0xff]
        %v2936 = vld [vmem:[%s290 + $0xa1] sm:$0xff]
        %v2937 = vld [vmem:[%s290 + $0xa9] sm:$0xff]
        %v2938 = vld [vmem:[%s290 + $0xb1] sm:$0xff]
        %v2939 = vld [vmem:[%s290 + $0xb9] sm:$0xff]
        %v2940 = vld [vmem:[%s290 + $0xc1] sm:$0xff]
        %v2941 = vld [vmem:[%s290 + $0xc9] sm:$0xff]
        %v2942 = vld [vmem:[%s290 + $0xd1] sm:$0xff]
        %v2943 = vld [vmem:[%s290 + $0xd9] sm:$0xff]
        %v2944 = vld [vmem:[%s290 + $0xe1] sm:$0xff]
        %v2945 = vld [vmem:[%s290 + $0xe9] sm:$0xff]
        %v2946 = vld [vmem:[%s290 + $0xf1] sm:$0xff]
        %v2947 = vld [vmem:[%s290 + $0xf9] sm:$0xff]
        %v2948 = vld [vmem:[%s290 + $0x101] sm:$0xff]
        %v2949 = vld [vmem:[%s290 + $0x109] sm:$0xff]
        %v2950 = vld [vmem:[%s290 + $0x111] sm:$0xff]
        %v2951 = vld [vmem:[%s290 + $0x119] sm:$0xff]
        %v2952 = vld [vmem:[%s290 + $0x121] sm:$0xff]
        %v2953 = vld [vmem:[%s290 + $0x129] sm:$0xff]
        %v2954 = vld [vmem:[%s290 + $0x131] sm:$0xff]
        %v2955 = vld [vmem:[%s290 + $0x139] sm:$0xff]
        %v2956 = vld [vmem:[%s290 + $0x141] sm:$0xff]
        %v2957 = vld [vmem:[%s290 + $0x149] sm:$0xff]
        %v2958 = vld [vmem:[%s290 + $0x151] sm:$0xff]
        %v2959 = vld [vmem:[%s290 + $0x159] sm:$0xff]
        %s2960 = scalar_lea.vmem [#allocation6], 768
        %v2961 = vld [vmem:[%s2960] sm:$0xff]
        %v2962 = vld [vmem:[%s2960 + $0x8] sm:$0xff]
        %v2963 = vld [vmem:[%s2960 + $0x10] sm:$0xff]
        %v2964 = vld [vmem:[%s2960 + $0x18] sm:$0xff]
        %v2965 = vld [vmem:[%s2960 + $0x20] sm:$0xff]
        %v2966 = vld [vmem:[%s2960 + $0x28] sm:$0xff]
        %v2967 = vld [vmem:[%s2960 + $0x30] sm:$0xff]
        %v2968 = vld [vmem:[%s2960 + $0x38] sm:$0xff]
        %v2969 = vld [vmem:[%s2960 + $0x40] sm:$0xff]
        %v2970 = vld [vmem:[%s2960 + $0x48] sm:$0xff]
        %v2971 = vld [vmem:[%s2960 + $0x50] sm:$0xff]
        %v2972 = vld [vmem:[%s2960 + $0x58] sm:$0xff]
        %v2973 = vld [vmem:[%s2960 + $0x60] sm:$0xff]
        %v2974 = vld [vmem:[%s2960 + $0x68] sm:$0xff]
        %v2975 = vld [vmem:[%s2960 + $0x70] sm:$0xff]
        %v2976 = vld [vmem:[%s2960 + $0x78] sm:$0xff]
        %2977 = vmatpush.msra.mxu0 %v2976
        %2978 = vmatpush.msra.mxu0 %v2975
        %2979 = vmatpush.msra.mxu0 %v2974
        %2980 = vmatpush.msra.mxu0 %v2973
        %2981 = vmatpush.msra.mxu0 %v2972
        %2982 = vmatpush.msra.mxu0 %v2971
        %2983 = vmatpush.msra.mxu0 %v2970
        %2984 = vmatpush.msra.mxu0 %v2969
        %2985 = vmatpush.msra.mxu0 %v2968
        %2986 = vmatpush.msra.mxu0 %v2967
        %2987 = vmatpush.msra.mxu0 %v2966
        %2988 = vmatpush.msra.mxu0 %v2965
        %2989 = vmatpush.msra.mxu0 %v2964
        %2990 = vmatpush.msra.mxu0 %v2963
        %2991 = vmatpush.msra.mxu0 %v2962
        %2992 = vmatpush.msra.mxu0 %v2961
        %2993 = vmatmul.f32.gmra.mxu0 %v2924
        %v2994 = vpop.f32.mrf.mxu0
        %v2995 = vadd.f32 0.0, %v2994
        %2996 = vmatmul.f32.gmra.mxu0 %v2925
        %v2997 = vpop.f32.mrf.mxu0
        %v2998 = vadd.f32 0.0, %v2997
        %2999 = vmatmul.f32.gmra.mxu0 %v2926
        %v3000 = vpop.f32.mrf.mxu0
        %v3001 = vadd.f32 0.0, %v3000
        %3002 = vmatmul.f32.gmra.mxu0 %v2927
        %v3003 = vpop.f32.mrf.mxu0
        %v3004 = vadd.f32 0.0, %v3003
        %3005 = vmatmul.f32.gmra.mxu0 %v2928
        %v3006 = vpop.f32.mrf.mxu0
        %v3007 = vadd.f32 0.0, %v3006
        %3008 = vmatmul.f32.gmra.mxu0 %v2929
        %v3009 = vpop.f32.mrf.mxu0
        %v3010 = vadd.f32 0.0, %v3009
        %3011 = vmatmul.f32.gmra.mxu0 %v2930
        %v3012 = vpop.f32.mrf.mxu0
        %v3013 = vadd.f32 0.0, %v3012
        %3014 = vmatmul.f32.gmra.mxu0 %v2931
        %v3015 = vpop.f32.mrf.mxu0
        %v3016 = vadd.f32 0.0, %v3015
        %3017 = vmatmul.f32.gmra.mxu0 %v2932
        %v3018 = vpop.f32.mrf.mxu0
        %v3019 = vadd.f32 0.0, %v3018
        %3020 = vmatmul.f32.gmra.mxu0 %v2933
        %v3021 = vpop.f32.mrf.mxu0
        %v3022 = vadd.f32 0.0, %v3021
        %3023 = vmatmul.f32.gmra.mxu0 %v2934
        %v3024 = vpop.f32.mrf.mxu0
        %v3025 = vadd.f32 0.0, %v3024
        %3026 = vmatmul.f32.gmra.mxu0 %v2935
        %v3027 = vpop.f32.mrf.mxu0
        %v3028 = vadd.f32 0.0, %v3027
        %3029 = vmatmul.f32.gmra.mxu0 %v2936
        %v3030 = vpop.f32.mrf.mxu0
        %v3031 = vadd.f32 0.0, %v3030
        %3032 = vmatmul.f32.gmra.mxu0 %v2937
        %v3033 = vpop.f32.mrf.mxu0
        %v3034 = vadd.f32 0.0, %v3033
        %3035 = vmatmul.f32.gmra.mxu0 %v2938
        %v3036 = vpop.f32.mrf.mxu0
        %v3037 = vadd.f32 0.0, %v3036
        %3038 = vmatmul.f32.gmra.mxu0 %v2939
        %v3039 = vpop.f32.mrf.mxu0
        %v3040 = vadd.f32 0.0, %v3039
        %3041 = vmatmul.f32.gmra.mxu0 %v2940
        %v3042 = vpop.f32.mrf.mxu0
        %v3043 = vadd.f32 0.0, %v3042
        %3044 = vmatmul.f32.gmra.mxu0 %v2941
        %v3045 = vpop.f32.mrf.mxu0
        %v3046 = vadd.f32 0.0, %v3045
        %3047 = vmatmul.f32.gmra.mxu0 %v2942
        %v3048 = vpop.f32.mrf.mxu0
        %v3049 = vadd.f32 0.0, %v3048
        %3050 = vmatmul.f32.gmra.mxu0 %v2943
        %v3051 = vpop.f32.mrf.mxu0
        %v3052 = vadd.f32 0.0, %v3051
        %3053 = vmatmul.f32.gmra.mxu0 %v2944
        %v3054 = vpop.f32.mrf.mxu0
        %v3055 = vadd.f32 0.0, %v3054
        %3056 = vmatmul.f32.gmra.mxu0 %v2945
        %v3057 = vpop.f32.mrf.mxu0
        %v3058 = vadd.f32 0.0, %v3057
        %3059 = vmatmul.f32.gmra.mxu0 %v2946
        %v3060 = vpop.f32.mrf.mxu0
        %v3061 = vadd.f32 0.0, %v3060
        %3062 = vmatmul.f32.gmra.mxu0 %v2947
        %v3063 = vpop.f32.mrf.mxu0
        %v3064 = vadd.f32 0.0, %v3063
        %3065 = vmatmul.f32.gmra.mxu0 %v2948
        %v3066 = vpop.f32.mrf.mxu0
        %v3067 = vadd.f32 0.0, %v3066
        %3068 = vmatmul.f32.gmra.mxu0 %v2949
        %v3069 = vpop.f32.mrf.mxu0
        %v3070 = vadd.f32 0.0, %v3069
        %3071 = vmatmul.f32.gmra.mxu0 %v2950
        %v3072 = vpop.f32.mrf.mxu0
        %v3073 = vadd.f32 0.0, %v3072
        %3074 = vmatmul.f32.gmra.mxu0 %v2951
        %v3075 = vpop.f32.mrf.mxu0
        %v3076 = vadd.f32 0.0, %v3075
        %3077 = vmatmul.f32.gmra.mxu0 %v2952
        %v3078 = vpop.f32.mrf.mxu0
        %v3079 = vadd.f32 0.0, %v3078
        %3080 = vmatmul.f32.gmra.mxu0 %v2953
        %v3081 = vpop.f32.mrf.mxu0
        %v3082 = vadd.f32 0.0, %v3081
        %3083 = vmatmul.f32.gmra.mxu0 %v2954
        %v3084 = vpop.f32.mrf.mxu0
        %v3085 = vadd.f32 0.0, %v3084
        %3086 = vmatmul.f32.gmra.mxu0 %v2955
        %v3087 = vpop.f32.mrf.mxu0
        %v3088 = vadd.f32 0.0, %v3087
        %3089 = vmatmul.f32.gmra.mxu0 %v2956
        %v3090 = vpop.f32.mrf.mxu0
        %v3091 = vadd.f32 0.0, %v3090
        %3092 = vmatmul.f32.gmra.mxu0 %v2957
        %v3093 = vpop.f32.mrf.mxu0
        %v3094 = vadd.f32 0.0, %v3093
        %3095 = vmatmul.f32.gmra.mxu0 %v2958
        %v3096 = vpop.f32.mrf.mxu0
        %v3097 = vadd.f32 0.0, %v3096
        %3098 = vmatmul.f32.gmra.mxu0 %v2959
        %v3099 = vpop.f32.mrf.mxu0
        %v3100 = vadd.f32 0.0, %v3099
        %3101 = vdwg.mxu0
        %v3102 = vadd.f32 %v2888, %v2995
        %v3103 = vadd.f32 %v2889, %v2998
        %v3104 = vadd.f32 %v2890, %v3001
        %v3105 = vadd.f32 %v2891, %v3004
        %v3106 = vadd.f32 %v2892, %v3007
        %v3107 = vadd.f32 %v2893, %v3010
        %v3108 = vadd.f32 %v2894, %v3013
        %v3109 = vadd.f32 %v2895, %v3016
        %v3110 = vadd.f32 %v2896, %v3019
        %v3111 = vadd.f32 %v2897, %v3022
        %v3112 = vadd.f32 %v2898, %v3025
        %v3113 = vadd.f32 %v2899, %v3028
        %v3114 = vadd.f32 %v2900, %v3031
        %v3115 = vadd.f32 %v2901, %v3034
        %v3116 = vadd.f32 %v2902, %v3037
        %v3117 = vadd.f32 %v2903, %v3040
        %v3118 = vadd.f32 %v2904, %v3043
        %v3119 = vadd.f32 %v2905, %v3046
        %v3120 = vadd.f32 %v2906, %v3049
        %v3121 = vadd.f32 %v2907, %v3052
        %v3122 = vadd.f32 %v2908, %v3055
        %v3123 = vadd.f32 %v2909, %v3058
        %v3124 = vadd.f32 %v2910, %v3061
        %v3125 = vadd.f32 %v2911, %v3064
        %v3126 = vadd.f32 %v2912, %v3067
        %v3127 = vadd.f32 %v2913, %v3070
        %v3128 = vadd.f32 %v2914, %v3073
        %v3129 = vadd.f32 %v2915, %v3076
        %v3130 = vadd.f32 %v2916, %v3079
        %v3131 = vadd.f32 %v2917, %v3082
        %v3132 = vadd.f32 %v2918, %v3085
        %v3133 = vadd.f32 %v2919, %v3088
        %v3134 = vadd.f32 %v2920, %v3091
        %v3135 = vadd.f32 %v2921, %v3094
        %v3136 = vadd.f32 %v2922, %v3097
        %v3137 = vadd.f32 %v2923, %v3100
        %v3138 = vld [vmem:[%s290 + $0x42] sm:$0xff]
        %v3139 = vld [vmem:[%s290 + $0x4a] sm:$0xff]
        %v3140 = vld [vmem:[%s290 + $0x52] sm:$0xff]
        %v3141 = vld [vmem:[%s290 + $0x5a] sm:$0xff]
        %v3142 = vld [vmem:[%s290 + $0x62] sm:$0xff]
        %v3143 = vld [vmem:[%s290 + $0x6a] sm:$0xff]
        %v3144 = vld [vmem:[%s290 + $0x72] sm:$0xff]
        %v3145 = vld [vmem:[%s290 + $0x7a] sm:$0xff]
        %v3146 = vld [vmem:[%s290 + $0x82] sm:$0xff]
        %v3147 = vld [vmem:[%s290 + $0x8a] sm:$0xff]
        %v3148 = vld [vmem:[%s290 + $0x92] sm:$0xff]
        %v3149 = vld [vmem:[%s290 + $0x9a] sm:$0xff]
        %v3150 = vld [vmem:[%s290 + $0xa2] sm:$0xff]
        %v3151 = vld [vmem:[%s290 + $0xaa] sm:$0xff]
        %v3152 = vld [vmem:[%s290 + $0xb2] sm:$0xff]
        %v3153 = vld [vmem:[%s290 + $0xba] sm:$0xff]
        %v3154 = vld [vmem:[%s290 + $0xc2] sm:$0xff]
        %v3155 = vld [vmem:[%s290 + $0xca] sm:$0xff]
        %v3156 = vld [vmem:[%s290 + $0xd2] sm:$0xff]
        %v3157 = vld [vmem:[%s290 + $0xda] sm:$0xff]
        %v3158 = vld [vmem:[%s290 + $0xe2] sm:$0xff]
        %v3159 = vld [vmem:[%s290 + $0xea] sm:$0xff]
        %v3160 = vld [vmem:[%s290 + $0xf2] sm:$0xff]
        %v3161 = vld [vmem:[%s290 + $0xfa] sm:$0xff]
        %v3162 = vld [vmem:[%s290 + $0x102] sm:$0xff]
        %v3163 = vld [vmem:[%s290 + $0x10a] sm:$0xff]
        %v3164 = vld [vmem:[%s290 + $0x112] sm:$0xff]
        %v3165 = vld [vmem:[%s290 + $0x11a] sm:$0xff]
        %v3166 = vld [vmem:[%s290 + $0x122] sm:$0xff]
        %v3167 = vld [vmem:[%s290 + $0x12a] sm:$0xff]
        %v3168 = vld [vmem:[%s290 + $0x132] sm:$0xff]
        %v3169 = vld [vmem:[%s290 + $0x13a] sm:$0xff]
        %v3170 = vld [vmem:[%s290 + $0x142] sm:$0xff]
        %v3171 = vld [vmem:[%s290 + $0x14a] sm:$0xff]
        %v3172 = vld [vmem:[%s290 + $0x152] sm:$0xff]
        %v3173 = vld [vmem:[%s290 + $0x15a] sm:$0xff]
        %s3174 = scalar_lea.vmem [#allocation6], 896
        %v3175 = vld [vmem:[%s3174] sm:$0xff]
        %v3176 = vld [vmem:[%s3174 + $0x8] sm:$0xff]
        %v3177 = vld [vmem:[%s3174 + $0x10] sm:$0xff]
        %v3178 = vld [vmem:[%s3174 + $0x18] sm:$0xff]
        %v3179 = vld [vmem:[%s3174 + $0x20] sm:$0xff]
        %v3180 = vld [vmem:[%s3174 + $0x28] sm:$0xff]
        %v3181 = vld [vmem:[%s3174 + $0x30] sm:$0xff]
        %v3182 = vld [vmem:[%s3174 + $0x38] sm:$0xff]
        %v3183 = vld [vmem:[%s3174 + $0x40] sm:$0xff]
        %v3184 = vld [vmem:[%s3174 + $0x48] sm:$0xff]
        %v3185 = vld [vmem:[%s3174 + $0x50] sm:$0xff]
        %v3186 = vld [vmem:[%s3174 + $0x58] sm:$0xff]
        %v3187 = vld [vmem:[%s3174 + $0x60] sm:$0xff]
        %v3188 = vld [vmem:[%s3174 + $0x68] sm:$0xff]
        %v3189 = vld [vmem:[%s3174 + $0x70] sm:$0xff]
        %v3190 = vld [vmem:[%s3174 + $0x78] sm:$0xff]
        %3191 = vmatpush.msra.mxu0 %v3190
        %3192 = vmatpush.msra.mxu0 %v3189
        %3193 = vmatpush.msra.mxu0 %v3188
        %3194 = vmatpush.msra.mxu0 %v3187
        %3195 = vmatpush.msra.mxu0 %v3186
        %3196 = vmatpush.msra.mxu0 %v3185
        %3197 = vmatpush.msra.mxu0 %v3184
        %3198 = vmatpush.msra.mxu0 %v3183
        %3199 = vmatpush.msra.mxu0 %v3182
        %3200 = vmatpush.msra.mxu0 %v3181
        %3201 = vmatpush.msra.mxu0 %v3180
        %3202 = vmatpush.msra.mxu0 %v3179
        %3203 = vmatpush.msra.mxu0 %v3178
        %3204 = vmatpush.msra.mxu0 %v3177
        %3205 = vmatpush.msra.mxu0 %v3176
        %3206 = vmatpush.msra.mxu0 %v3175
        %3207 = vmatmul.f32.gmra.mxu0 %v3138
        %v3208 = vpop.f32.mrf.mxu0
        %v3209 = vadd.f32 0.0, %v3208
        %3210 = vmatmul.f32.gmra.mxu0 %v3139
        %v3211 = vpop.f32.mrf.mxu0
        %v3212 = vadd.f32 0.0, %v3211
        %3213 = vmatmul.f32.gmra.mxu0 %v3140
        %v3214 = vpop.f32.mrf.mxu0
        %v3215 = vadd.f32 0.0, %v3214
        %3216 = vmatmul.f32.gmra.mxu0 %v3141
        %v3217 = vpop.f32.mrf.mxu0
        %v3218 = vadd.f32 0.0, %v3217
        %3219 = vmatmul.f32.gmra.mxu0 %v3142
        %v3220 = vpop.f32.mrf.mxu0
        %v3221 = vadd.f32 0.0, %v3220
        %3222 = vmatmul.f32.gmra.mxu0 %v3143
        %v3223 = vpop.f32.mrf.mxu0
        %v3224 = vadd.f32 0.0, %v3223
        %3225 = vmatmul.f32.gmra.mxu0 %v3144
        %v3226 = vpop.f32.mrf.mxu0
        %v3227 = vadd.f32 0.0, %v3226
        %3228 = vmatmul.f32.gmra.mxu0 %v3145
        %v3229 = vpop.f32.mrf.mxu0
        %v3230 = vadd.f32 0.0, %v3229
        %3231 = vmatmul.f32.gmra.mxu0 %v3146
        %v3232 = vpop.f32.mrf.mxu0
        %v3233 = vadd.f32 0.0, %v3232
        %3234 = vmatmul.f32.gmra.mxu0 %v3147
        %v3235 = vpop.f32.mrf.mxu0
        %v3236 = vadd.f32 0.0, %v3235
        %3237 = vmatmul.f32.gmra.mxu0 %v3148
        %v3238 = vpop.f32.mrf.mxu0
        %v3239 = vadd.f32 0.0, %v3238
        %3240 = vmatmul.f32.gmra.mxu0 %v3149
        %v3241 = vpop.f32.mrf.mxu0
        %v3242 = vadd.f32 0.0, %v3241
        %3243 = vmatmul.f32.gmra.mxu0 %v3150
        %v3244 = vpop.f32.mrf.mxu0
        %v3245 = vadd.f32 0.0, %v3244
        %3246 = vmatmul.f32.gmra.mxu0 %v3151
        %v3247 = vpop.f32.mrf.mxu0
        %v3248 = vadd.f32 0.0, %v3247
        %3249 = vmatmul.f32.gmra.mxu0 %v3152
        %v3250 = vpop.f32.mrf.mxu0
        %v3251 = vadd.f32 0.0, %v3250
        %3252 = vmatmul.f32.gmra.mxu0 %v3153
        %v3253 = vpop.f32.mrf.mxu0
        %v3254 = vadd.f32 0.0, %v3253
        %3255 = vmatmul.f32.gmra.mxu0 %v3154
        %v3256 = vpop.f32.mrf.mxu0
        %v3257 = vadd.f32 0.0, %v3256
        %3258 = vmatmul.f32.gmra.mxu0 %v3155
        %v3259 = vpop.f32.mrf.mxu0
        %v3260 = vadd.f32 0.0, %v3259
        %3261 = vmatmul.f32.gmra.mxu0 %v3156
        %v3262 = vpop.f32.mrf.mxu0
        %v3263 = vadd.f32 0.0, %v3262
        %3264 = vmatmul.f32.gmra.mxu0 %v3157
        %v3265 = vpop.f32.mrf.mxu0
        %v3266 = vadd.f32 0.0, %v3265
        %3267 = vmatmul.f32.gmra.mxu0 %v3158
        %v3268 = vpop.f32.mrf.mxu0
        %v3269 = vadd.f32 0.0, %v3268
        %3270 = vmatmul.f32.gmra.mxu0 %v3159
        %v3271 = vpop.f32.mrf.mxu0
        %v3272 = vadd.f32 0.0, %v3271
        %3273 = vmatmul.f32.gmra.mxu0 %v3160
        %v3274 = vpop.f32.mrf.mxu0
        %v3275 = vadd.f32 0.0, %v3274
        %3276 = vmatmul.f32.gmra.mxu0 %v3161
        %v3277 = vpop.f32.mrf.mxu0
        %v3278 = vadd.f32 0.0, %v3277
        %3279 = vmatmul.f32.gmra.mxu0 %v3162
        %v3280 = vpop.f32.mrf.mxu0
        %v3281 = vadd.f32 0.0, %v3280
        %3282 = vmatmul.f32.gmra.mxu0 %v3163
        %v3283 = vpop.f32.mrf.mxu0
        %v3284 = vadd.f32 0.0, %v3283
        %3285 = vmatmul.f32.gmra.mxu0 %v3164
        %v3286 = vpop.f32.mrf.mxu0
        %v3287 = vadd.f32 0.0, %v3286
        %3288 = vmatmul.f32.gmra.mxu0 %v3165
        %v3289 = vpop.f32.mrf.mxu0
        %v3290 = vadd.f32 0.0, %v3289
        %3291 = vmatmul.f32.gmra.mxu0 %v3166
        %v3292 = vpop.f32.mrf.mxu0
        %v3293 = vadd.f32 0.0, %v3292
        %3294 = vmatmul.f32.gmra.mxu0 %v3167
        %v3295 = vpop.f32.mrf.mxu0
        %v3296 = vadd.f32 0.0, %v3295
        %3297 = vmatmul.f32.gmra.mxu0 %v3168
        %v3298 = vpop.f32.mrf.mxu0
        %v3299 = vadd.f32 0.0, %v3298
        %3300 = vmatmul.f32.gmra.mxu0 %v3169
        %v3301 = vpop.f32.mrf.mxu0
        %v3302 = vadd.f32 0.0, %v3301
        %3303 = vmatmul.f32.gmra.mxu0 %v3170
        %v3304 = vpop.f32.mrf.mxu0
        %v3305 = vadd.f32 0.0, %v3304
        %3306 = vmatmul.f32.gmra.mxu0 %v3171
        %v3307 = vpop.f32.mrf.mxu0
        %v3308 = vadd.f32 0.0, %v3307
        %3309 = vmatmul.f32.gmra.mxu0 %v3172
        %v3310 = vpop.f32.mrf.mxu0
        %v3311 = vadd.f32 0.0, %v3310
        %3312 = vmatmul.f32.gmra.mxu0 %v3173
        %v3313 = vpop.f32.mrf.mxu0
        %v3314 = vadd.f32 0.0, %v3313
        %3315 = vdwg.mxu0
        %v3316 = vadd.f32 %v3102, %v3209
        %v3317 = vadd.f32 %v3103, %v3212
        %v3318 = vadd.f32 %v3104, %v3215
        %v3319 = vadd.f32 %v3105, %v3218
        %v3320 = vadd.f32 %v3106, %v3221
        %v3321 = vadd.f32 %v3107, %v3224
        %v3322 = vadd.f32 %v3108, %v3227
        %v3323 = vadd.f32 %v3109, %v3230
        %v3324 = vadd.f32 %v3110, %v3233
        %v3325 = vadd.f32 %v3111, %v3236
        %v3326 = vadd.f32 %v3112, %v3239
        %v3327 = vadd.f32 %v3113, %v3242
        %v3328 = vadd.f32 %v3114, %v3245
        %v3329 = vadd.f32 %v3115, %v3248
        %v3330 = vadd.f32 %v3116, %v3251
        %v3331 = vadd.f32 %v3117, %v3254
        %v3332 = vadd.f32 %v3118, %v3257
        %v3333 = vadd.f32 %v3119, %v3260
        %v3334 = vadd.f32 %v3120, %v3263
        %v3335 = vadd.f32 %v3121, %v3266
        %v3336 = vadd.f32 %v3122, %v3269
        %v3337 = vadd.f32 %v3123, %v3272
        %v3338 = vadd.f32 %v3124, %v3275
        %v3339 = vadd.f32 %v3125, %v3278
        %v3340 = vadd.f32 %v3126, %v3281
        %v3341 = vadd.f32 %v3127, %v3284
        %v3342 = vadd.f32 %v3128, %v3287
        %v3343 = vadd.f32 %v3129, %v3290
        %v3344 = vadd.f32 %v3130, %v3293
        %v3345 = vadd.f32 %v3131, %v3296
        %v3346 = vadd.f32 %v3132, %v3299
        %v3347 = vadd.f32 %v3133, %v3302
        %v3348 = vadd.f32 %v3134, %v3305
        %v3349 = vadd.f32 %v3135, %v3308
        %v3350 = vadd.f32 %v3136, %v3311
        %v3351 = vadd.f32 %v3137, %v3314
        %v3352 = vld [vmem:[%s290 + $0x43] sm:$0xff]
        %v3353 = vld [vmem:[%s290 + $0x4b] sm:$0xff]
        %v3354 = vld [vmem:[%s290 + $0x53] sm:$0xff]
        %v3355 = vld [vmem:[%s290 + $0x5b] sm:$0xff]
        %v3356 = vld [vmem:[%s290 + $0x63] sm:$0xff]
        %v3357 = vld [vmem:[%s290 + $0x6b] sm:$0xff]
        %v3358 = vld [vmem:[%s290 + $0x73] sm:$0xff]
        %v3359 = vld [vmem:[%s290 + $0x7b] sm:$0xff]
        %v3360 = vld [vmem:[%s290 + $0x83] sm:$0xff]
        %v3361 = vld [vmem:[%s290 + $0x8b] sm:$0xff]
        %v3362 = vld [vmem:[%s290 + $0x93] sm:$0xff]
        %v3363 = vld [vmem:[%s290 + $0x9b] sm:$0xff]
        %v3364 = vld [vmem:[%s290 + $0xa3] sm:$0xff]
        %v3365 = vld [vmem:[%s290 + $0xab] sm:$0xff]
        %v3366 = vld [vmem:[%s290 + $0xb3] sm:$0xff]
        %v3367 = vld [vmem:[%s290 + $0xbb] sm:$0xff]
        %v3368 = vld [vmem:[%s290 + $0xc3] sm:$0xff]
        %v3369 = vld [vmem:[%s290 + $0xcb] sm:$0xff]
        %v3370 = vld [vmem:[%s290 + $0xd3] sm:$0xff]
        %v3371 = vld [vmem:[%s290 + $0xdb] sm:$0xff]
        %v3372 = vld [vmem:[%s290 + $0xe3] sm:$0xff]
        %v3373 = vld [vmem:[%s290 + $0xeb] sm:$0xff]
        %v3374 = vld [vmem:[%s290 + $0xf3] sm:$0xff]
        %v3375 = vld [vmem:[%s290 + $0xfb] sm:$0xff]
        %v3376 = vld [vmem:[%s290 + $0x103] sm:$0xff]
        %v3377 = vld [vmem:[%s290 + $0x10b] sm:$0xff]
        %v3378 = vld [vmem:[%s290 + $0x113] sm:$0xff]
        %v3379 = vld [vmem:[%s290 + $0x11b] sm:$0xff]
        %v3380 = vld [vmem:[%s290 + $0x123] sm:$0xff]
        %v3381 = vld [vmem:[%s290 + $0x12b] sm:$0xff]
        %v3382 = vld [vmem:[%s290 + $0x133] sm:$0xff]
        %v3383 = vld [vmem:[%s290 + $0x13b] sm:$0xff]
        %v3384 = vld [vmem:[%s290 + $0x143] sm:$0xff]
        %v3385 = vld [vmem:[%s290 + $0x14b] sm:$0xff]
        %v3386 = vld [vmem:[%s290 + $0x153] sm:$0xff]
        %v3387 = vld [vmem:[%s290 + $0x15b] sm:$0xff]
        %s3388 = scalar_lea.vmem [#allocation6], 1024
        %v3389 = vld [vmem:[%s3388] sm:$0xff]
        %v3390 = vld [vmem:[%s3388 + $0x8] sm:$0xff]
        %v3391 = vld [vmem:[%s3388 + $0x10] sm:$0xff]
        %v3392 = vld [vmem:[%s3388 + $0x18] sm:$0xff]
        %v3393 = vld [vmem:[%s3388 + $0x20] sm:$0xff]
        %v3394 = vld [vmem:[%s3388 + $0x28] sm:$0xff]
        %v3395 = vld [vmem:[%s3388 + $0x30] sm:$0xff]
        %v3396 = vld [vmem:[%s3388 + $0x38] sm:$0xff]
        %v3397 = vld [vmem:[%s3388 + $0x40] sm:$0xff]
        %v3398 = vld [vmem:[%s3388 + $0x48] sm:$0xff]
        %v3399 = vld [vmem:[%s3388 + $0x50] sm:$0xff]
        %v3400 = vld [vmem:[%s3388 + $0x58] sm:$0xff]
        %v3401 = vld [vmem:[%s3388 + $0x60] sm:$0xff]
        %v3402 = vld [vmem:[%s3388 + $0x68] sm:$0xff]
        %v3403 = vld [vmem:[%s3388 + $0x70] sm:$0xff]
        %v3404 = vld [vmem:[%s3388 + $0x78] sm:$0xff]
        %3405 = vmatpush.msra.mxu0 %v3404
        %3406 = vmatpush.msra.mxu0 %v3403
        %3407 = vmatpush.msra.mxu0 %v3402
        %3408 = vmatpush.msra.mxu0 %v3401
        %3409 = vmatpush.msra.mxu0 %v3400
        %3410 = vmatpush.msra.mxu0 %v3399
        %3411 = vmatpush.msra.mxu0 %v3398
        %3412 = vmatpush.msra.mxu0 %v3397
        %3413 = vmatpush.msra.mxu0 %v3396
        %3414 = vmatpush.msra.mxu0 %v3395
        %3415 = vmatpush.msra.mxu0 %v3394
        %3416 = vmatpush.msra.mxu0 %v3393
        %3417 = vmatpush.msra.mxu0 %v3392
        %3418 = vmatpush.msra.mxu0 %v3391
        %3419 = vmatpush.msra.mxu0 %v3390
        %3420 = vmatpush.msra.mxu0 %v3389
        %3421 = vmatmul.f32.gmra.mxu0 %v3352
        %v3422 = vpop.f32.mrf.mxu0
        %v3423 = vadd.f32 0.0, %v3422
        %3424 = vmatmul.f32.gmra.mxu0 %v3353
        %v3425 = vpop.f32.mrf.mxu0
        %v3426 = vadd.f32 0.0, %v3425
        %3427 = vmatmul.f32.gmra.mxu0 %v3354
        %v3428 = vpop.f32.mrf.mxu0
        %v3429 = vadd.f32 0.0, %v3428
        %3430 = vmatmul.f32.gmra.mxu0 %v3355
        %v3431 = vpop.f32.mrf.mxu0
        %v3432 = vadd.f32 0.0, %v3431
        %3433 = vmatmul.f32.gmra.mxu0 %v3356
        %v3434 = vpop.f32.mrf.mxu0
        %v3435 = vadd.f32 0.0, %v3434
        %3436 = vmatmul.f32.gmra.mxu0 %v3357
        %v3437 = vpop.f32.mrf.mxu0
        %v3438 = vadd.f32 0.0, %v3437
        %3439 = vmatmul.f32.gmra.mxu0 %v3358
        %v3440 = vpop.f32.mrf.mxu0
        %v3441 = vadd.f32 0.0, %v3440
        %3442 = vmatmul.f32.gmra.mxu0 %v3359
        %v3443 = vpop.f32.mrf.mxu0
        %v3444 = vadd.f32 0.0, %v3443
        %3445 = vmatmul.f32.gmra.mxu0 %v3360
        %v3446 = vpop.f32.mrf.mxu0
        %v3447 = vadd.f32 0.0, %v3446
        %3448 = vmatmul.f32.gmra.mxu0 %v3361
        %v3449 = vpop.f32.mrf.mxu0
        %v3450 = vadd.f32 0.0, %v3449
        %3451 = vmatmul.f32.gmra.mxu0 %v3362
        %v3452 = vpop.f32.mrf.mxu0
        %v3453 = vadd.f32 0.0, %v3452
        %3454 = vmatmul.f32.gmra.mxu0 %v3363
        %v3455 = vpop.f32.mrf.mxu0
        %v3456 = vadd.f32 0.0, %v3455
        %3457 = vmatmul.f32.gmra.mxu0 %v3364
        %v3458 = vpop.f32.mrf.mxu0
        %v3459 = vadd.f32 0.0, %v3458
        %3460 = vmatmul.f32.gmra.mxu0 %v3365
        %v3461 = vpop.f32.mrf.mxu0
        %v3462 = vadd.f32 0.0, %v3461
        %3463 = vmatmul.f32.gmra.mxu0 %v3366
        %v3464 = vpop.f32.mrf.mxu0
        %v3465 = vadd.f32 0.0, %v3464
        %3466 = vmatmul.f32.gmra.mxu0 %v3367
        %v3467 = vpop.f32.mrf.mxu0
        %v3468 = vadd.f32 0.0, %v3467
        %3469 = vmatmul.f32.gmra.mxu0 %v3368
        %v3470 = vpop.f32.mrf.mxu0
        %v3471 = vadd.f32 0.0, %v3470
        %3472 = vmatmul.f32.gmra.mxu0 %v3369
        %v3473 = vpop.f32.mrf.mxu0
        %v3474 = vadd.f32 0.0, %v3473
        %3475 = vmatmul.f32.gmra.mxu0 %v3370
        %v3476 = vpop.f32.mrf.mxu0
        %v3477 = vadd.f32 0.0, %v3476
        %3478 = vmatmul.f32.gmra.mxu0 %v3371
        %v3479 = vpop.f32.mrf.mxu0
        %v3480 = vadd.f32 0.0, %v3479
        %3481 = vmatmul.f32.gmra.mxu0 %v3372
        %v3482 = vpop.f32.mrf.mxu0
        %v3483 = vadd.f32 0.0, %v3482
        %3484 = vmatmul.f32.gmra.mxu0 %v3373
        %v3485 = vpop.f32.mrf.mxu0
        %v3486 = vadd.f32 0.0, %v3485
        %3487 = vmatmul.f32.gmra.mxu0 %v3374
        %v3488 = vpop.f32.mrf.mxu0
        %v3489 = vadd.f32 0.0, %v3488
        %3490 = vmatmul.f32.gmra.mxu0 %v3375
        %v3491 = vpop.f32.mrf.mxu0
        %v3492 = vadd.f32 0.0, %v3491
        %3493 = vmatmul.f32.gmra.mxu0 %v3376
        %v3494 = vpop.f32.mrf.mxu0
        %v3495 = vadd.f32 0.0, %v3494
        %3496 = vmatmul.f32.gmra.mxu0 %v3377
        %v3497 = vpop.f32.mrf.mxu0
        %v3498 = vadd.f32 0.0, %v3497
        %3499 = vmatmul.f32.gmra.mxu0 %v3378
        %v3500 = vpop.f32.mrf.mxu0
        %v3501 = vadd.f32 0.0, %v3500
        %3502 = vmatmul.f32.gmra.mxu0 %v3379
        %v3503 = vpop.f32.mrf.mxu0
        %v3504 = vadd.f32 0.0, %v3503
        %3505 = vmatmul.f32.gmra.mxu0 %v3380
        %v3506 = vpop.f32.mrf.mxu0
        %v3507 = vadd.f32 0.0, %v3506
        %3508 = vmatmul.f32.gmra.mxu0 %v3381
        %v3509 = vpop.f32.mrf.mxu0
        %v3510 = vadd.f32 0.0, %v3509
        %3511 = vmatmul.f32.gmra.mxu0 %v3382
        %v3512 = vpop.f32.mrf.mxu0
        %v3513 = vadd.f32 0.0, %v3512
        %3514 = vmatmul.f32.gmra.mxu0 %v3383
        %v3515 = vpop.f32.mrf.mxu0
        %v3516 = vadd.f32 0.0, %v3515
        %3517 = vmatmul.f32.gmra.mxu0 %v3384
        %v3518 = vpop.f32.mrf.mxu0
        %v3519 = vadd.f32 0.0, %v3518
        %3520 = vmatmul.f32.gmra.mxu0 %v3385
        %v3521 = vpop.f32.mrf.mxu0
        %v3522 = vadd.f32 0.0, %v3521
        %3523 = vmatmul.f32.gmra.mxu0 %v3386
        %v3524 = vpop.f32.mrf.mxu0
        %v3525 = vadd.f32 0.0, %v3524
        %3526 = vmatmul.f32.gmra.mxu0 %v3387
        %v3527 = vpop.f32.mrf.mxu0
        %v3528 = vadd.f32 0.0, %v3527
        %3529 = vdwg.mxu0
        %v3530 = vadd.f32 %v3316, %v3423
        %v3531 = vadd.f32 %v3317, %v3426
        %v3532 = vadd.f32 %v3318, %v3429
        %v3533 = vadd.f32 %v3319, %v3432
        %v3534 = vadd.f32 %v3320, %v3435
        %v3535 = vadd.f32 %v3321, %v3438
        %v3536 = vadd.f32 %v3322, %v3441
        %v3537 = vadd.f32 %v3323, %v3444
        %v3538 = vadd.f32 %v3324, %v3447
        %v3539 = vadd.f32 %v3325, %v3450
        %v3540 = vadd.f32 %v3326, %v3453
        %v3541 = vadd.f32 %v3327, %v3456
        %v3542 = vadd.f32 %v3328, %v3459
        %v3543 = vadd.f32 %v3329, %v3462
        %v3544 = vadd.f32 %v3330, %v3465
        %v3545 = vadd.f32 %v3331, %v3468
        %v3546 = vadd.f32 %v3332, %v3471
        %v3547 = vadd.f32 %v3333, %v3474
        %v3548 = vadd.f32 %v3334, %v3477
        %v3549 = vadd.f32 %v3335, %v3480
        %v3550 = vadd.f32 %v3336, %v3483
        %v3551 = vadd.f32 %v3337, %v3486
        %v3552 = vadd.f32 %v3338, %v3489
        %v3553 = vadd.f32 %v3339, %v3492
        %v3554 = vadd.f32 %v3340, %v3495
        %v3555 = vadd.f32 %v3341, %v3498
        %v3556 = vadd.f32 %v3342, %v3501
        %v3557 = vadd.f32 %v3343, %v3504
        %v3558 = vadd.f32 %v3344, %v3507
        %v3559 = vadd.f32 %v3345, %v3510
        %v3560 = vadd.f32 %v3346, %v3513
        %v3561 = vadd.f32 %v3347, %v3516
        %v3562 = vadd.f32 %v3348, %v3519
        %v3563 = vadd.f32 %v3349, %v3522
        %v3564 = vadd.f32 %v3350, %v3525
        %v3565 = vadd.f32 %v3351, %v3528
        %v3566 = vld [vmem:[%s2] sm:$0x1]
        %v3568 = vperm.slane %v3566, 0
        %v3570 = vmul.f32 %v3530, %v3568
        %v3571 = vmul.f32 %v3531, %v3568
        %v3572 = vmul.f32 %v3532, %v3568
        %v3573 = vmul.f32 %v3533, %v3568
        %v3574 = vmul.f32 %v3534, %v3568
        %v3575 = vmul.f32 %v3535, %v3568
        %v3576 = vmul.f32 %v3536, %v3568
        %v3577 = vmul.f32 %v3537, %v3568
        %v3578 = vmul.f32 %v3538, %v3568
        %v3579 = vmul.f32 %v3539, %v3568
        %v3580 = vmul.f32 %v3540, %v3568
        %v3581 = vmul.f32 %v3541, %v3568
        %v3582 = vmul.f32 %v3542, %v3568
        %v3583 = vmul.f32 %v3543, %v3568
        %v3584 = vmul.f32 %v3544, %v3568
        %v3585 = vmul.f32 %v3545, %v3568
        %v3586 = vmul.f32 %v3546, %v3568
        %v3587 = vmul.f32 %v3547, %v3568
        %v3588 = vmul.f32 %v3548, %v3568
        %v3589 = vmul.f32 %v3549, %v3568
        %v3590 = vmul.f32 %v3550, %v3568
        %v3591 = vmul.f32 %v3551, %v3568
        %v3592 = vmul.f32 %v3552, %v3568
        %v3593 = vmul.f32 %v3553, %v3568
        %v3594 = vmul.f32 %v3554, %v3568
        %v3595 = vmul.f32 %v3555, %v3568
        %v3596 = vmul.f32 %v3556, %v3568
        %v3597 = vmul.f32 %v3557, %v3568
        %v3598 = vmul.f32 %v3558, %v3568
        %v3599 = vmul.f32 %v3559, %v3568
        %v3600 = vmul.f32 %v3560, %v3568
        %v3601 = vmul.f32 %v3561, %v3568
        %v3602 = vmul.f32 %v3562, %v3568
        %v3603 = vmul.f32 %v3563, %v3568
        %v3604 = vmul.f32 %v3564, %v3568
        %v3605 = vmul.f32 %v3565, %v3568
        %v3606 = vld [vmem:[%s3] sm:$0x1]
        %v3608 = vperm.slane %v3606, 0
        %v3610 = vadd.f32 %v3570, %v3608
        %v3611 = vadd.f32 %v3571, %v3608
        %v3612 = vadd.f32 %v3572, %v3608
        %v3613 = vadd.f32 %v3573, %v3608
        %v3614 = vadd.f32 %v3574, %v3608
        %v3615 = vadd.f32 %v3575, %v3608
        %v3616 = vadd.f32 %v3576, %v3608
        %v3617 = vadd.f32 %v3577, %v3608
        %v3618 = vadd.f32 %v3578, %v3608
        %v3619 = vadd.f32 %v3579, %v3608
        %v3620 = vadd.f32 %v3580, %v3608
        %v3621 = vadd.f32 %v3581, %v3608
        %v3622 = vadd.f32 %v3582, %v3608
        %v3623 = vadd.f32 %v3583, %v3608
        %v3624 = vadd.f32 %v3584, %v3608
        %v3625 = vadd.f32 %v3585, %v3608
        %v3626 = vadd.f32 %v3586, %v3608
        %v3627 = vadd.f32 %v3587, %v3608
        %v3628 = vadd.f32 %v3588, %v3608
        %v3629 = vadd.f32 %v3589, %v3608
        %v3630 = vadd.f32 %v3590, %v3608
        %v3631 = vadd.f32 %v3591, %v3608
        %v3632 = vadd.f32 %v3592, %v3608
        %v3633 = vadd.f32 %v3593, %v3608
        %v3634 = vadd.f32 %v3594, %v3608
        %v3635 = vadd.f32 %v3595, %v3608
        %v3636 = vadd.f32 %v3596, %v3608
        %v3637 = vadd.f32 %v3597, %v3608
        %v3638 = vadd.f32 %v3598, %v3608
        %v3639 = vadd.f32 %v3599, %v3608
        %v3640 = vadd.f32 %v3600, %v3608
        %v3641 = vadd.f32 %v3601, %v3608
        %v3642 = vadd.f32 %v3602, %v3608
        %v3643 = vadd.f32 %v3603, %v3608
        %v3644 = vadd.f32 %v3604, %v3608
        %v3645 = vadd.f32 %v3605, %v3608
        %v3646 = vmax.f32 %v3610, 0.0
        %v3647 = vmax.f32 %v3611, 0.0
        %v3648 = vmax.f32 %v3612, 0.0
        %v3649 = vmax.f32 %v3613, 0.0
        %v3650 = vmax.f32 %v3614, 0.0
        %v3651 = vmax.f32 %v3615, 0.0
        %v3652 = vmax.f32 %v3616, 0.0
        %v3653 = vmax.f32 %v3617, 0.0
        %v3654 = vmax.f32 %v3618, 0.0
        %v3655 = vmax.f32 %v3619, 0.0
        %v3656 = vmax.f32 %v3620, 0.0
        %v3657 = vmax.f32 %v3621, 0.0
        %v3658 = vmax.f32 %v3622, 0.0
        %v3659 = vmax.f32 %v3623, 0.0
        %v3660 = vmax.f32 %v3624, 0.0
        %v3661 = vmax.f32 %v3625, 0.0
        %v3662 = vmax.f32 %v3626, 0.0
        %v3663 = vmax.f32 %v3627, 0.0
        %v3664 = vmax.f32 %v3628, 0.0
        %v3665 = vmax.f32 %v3629, 0.0
        %v3666 = vmax.f32 %v3630, 0.0
        %v3667 = vmax.f32 %v3631, 0.0
        %v3668 = vmax.f32 %v3632, 0.0
        %v3669 = vmax.f32 %v3633, 0.0
        %v3670 = vmax.f32 %v3634, 0.0
        %v3671 = vmax.f32 %v3635, 0.0
        %v3672 = vmax.f32 %v3636, 0.0
        %v3673 = vmax.f32 %v3637, 0.0
        %v3674 = vmax.f32 %v3638, 0.0
        %v3675 = vmax.f32 %v3639, 0.0
        %v3676 = vmax.f32 %v3640, 0.0
        %v3677 = vmax.f32 %v3641, 0.0
        %v3678 = vmax.f32 %v3642, 0.0
        %v3679 = vmax.f32 %v3643, 0.0
        %v3680 = vmax.f32 %v3644, 0.0
        %v3681 = vmax.f32 %v3645, 0.0
        %v3682 = vsel %vm1665, 1, 0
        %v3683 = vsel %vm1666, 1, 0
        %v3684 = vsel %vm1667, 1, 0
        %v3685 = vsel %vm1668, 1, 0
        %v3686 = vsel %vm1669, 1, 0
        %v3687 = vsel %vm1670, 1, 0
        %v3688 = vsel %vm1671, 1, 0
        %v3689 = vsel %vm1672, 1, 0
        %v3690 = vsel %vm1673, 1, 0
        %v3691 = vsel %vm1674, 1, 0
        %v3692 = vsel %vm1675, 1, 0
        %v3693 = vsel %vm1676, 1, 0
        %v3694 = vsel %vm1677, 1, 0
        %v3695 = vsel %vm1678, 1, 0
        %v3696 = vsel %vm1679, 1, 0
        %v3697 = vsel %vm1680, 1, 0
        %v3698 = vsel %vm1681, 1, 0
        %v3699 = vsel %vm1682, 1, 0
        %v3700 = vsel %vm1683, 1, 0
        %v3701 = vsel %vm1684, 1, 0
        %v3702 = vsel %vm1685, 1, 0
        %v3703 = vsel %vm1686, 1, 0
        %v3704 = vsel %vm1687, 1, 0
        %v3705 = vsel %vm1688, 1, 0
        %v3706 = vsel %vm1689, 1, 0
        %v3707 = vsel %vm1690, 1, 0
        %v3708 = vsel %vm1691, 1, 0
        %v3709 = vsel %vm1692, 1, 0
        %v3710 = vsel %vm1693, 1, 0
        %v3711 = vsel %vm1694, 1, 0
        %v3712 = vsel %vm1695, 1, 0
        %v3713 = vsel %vm1696, 1, 0
        %v3714 = vsel %vm1697, 1, 0
        %v3715 = vsel %vm1698, 1, 0
        %v3716 = vsel %vm1699, 1, 0
        %v3717 = vsel %vm1700, 1, 0
        %vm3718 = vcmp.eq.s32.totalorder %v3682, 1
        %vm3719 = vcmp.eq.s32.totalorder %v3683, 1
        %vm3720 = vcmp.eq.s32.totalorder %v3684, 1
        %vm3721 = vcmp.eq.s32.totalorder %v3685, 1
        %vm3722 = vcmp.eq.s32.totalorder %v3686, 1
        %vm3723 = vcmp.eq.s32.totalorder %v3687, 1
        %vm3724 = vcmp.eq.s32.totalorder %v3688, 1
        %vm3725 = vcmp.eq.s32.totalorder %v3689, 1
        %vm3726 = vcmp.eq.s32.totalorder %v3690, 1
        %vm3727 = vcmp.eq.s32.totalorder %v3691, 1
        %vm3728 = vcmp.eq.s32.totalorder %v3692, 1
        %vm3729 = vcmp.eq.s32.totalorder %v3693, 1
        %vm3730 = vcmp.eq.s32.totalorder %v3694, 1
        %vm3731 = vcmp.eq.s32.totalorder %v3695, 1
        %vm3732 = vcmp.eq.s32.totalorder %v3696, 1
        %vm3733 = vcmp.eq.s32.totalorder %v3697, 1
        %vm3734 = vcmp.eq.s32.totalorder %v3698, 1
        %vm3735 = vcmp.eq.s32.totalorder %v3699, 1
        %vm3736 = vcmp.eq.s32.totalorder %v3700, 1
        %vm3737 = vcmp.eq.s32.totalorder %v3701, 1
        %vm3738 = vcmp.eq.s32.totalorder %v3702, 1
        %vm3739 = vcmp.eq.s32.totalorder %v3703, 1
        %vm3740 = vcmp.eq.s32.totalorder %v3704, 1
        %vm3741 = vcmp.eq.s32.totalorder %v3705, 1
        %vm3742 = vcmp.eq.s32.totalorder %v3706, 1
        %vm3743 = vcmp.eq.s32.totalorder %v3707, 1
        %vm3744 = vcmp.eq.s32.totalorder %v3708, 1
        %vm3745 = vcmp.eq.s32.totalorder %v3709, 1
        %vm3746 = vcmp.eq.s32.totalorder %v3710, 1
        %vm3747 = vcmp.eq.s32.totalorder %v3711, 1
        %vm3748 = vcmp.eq.s32.totalorder %v3712, 1
        %vm3749 = vcmp.eq.s32.totalorder %v3713, 1
        %vm3750 = vcmp.eq.s32.totalorder %v3714, 1
        %vm3751 = vcmp.eq.s32.totalorder %v3715, 1
        %vm3752 = vcmp.eq.s32.totalorder %v3716, 1
        %vm3753 = vcmp.eq.s32.totalorder %v3717, 1
        %v3754 = vsel %vm3718, %v3646, 0.0
        %v3755 = vsel %vm3719, %v3647, 0.0
        %v3756 = vsel %vm3720, %v3648, 0.0
        %v3757 = vsel %vm3721, %v3649, 0.0
        %v3758 = vsel %vm3722, %v3650, 0.0
        %v3759 = vsel %vm3723, %v3651, 0.0
        %v3760 = vsel %vm3724, %v3652, 0.0
        %v3761 = vsel %vm3725, %v3653, 0.0
        %v3762 = vsel %vm3726, %v3654, 0.0
        %v3763 = vsel %vm3727, %v3655, 0.0
        %v3764 = vsel %vm3728, %v3656, 0.0
        %v3765 = vsel %vm3729, %v3657, 0.0
        %v3766 = vsel %vm3730, %v3658, 0.0
        %v3767 = vsel %vm3731, %v3659, 0.0
        %v3768 = vsel %vm3732, %v3660, 0.0
        %v3769 = vsel %vm3733, %v3661, 0.0
        %v3770 = vsel %vm3734, %v3662, 0.0
        %v3771 = vsel %vm3735, %v3663, 0.0
        %v3772 = vsel %vm3736, %v3664, 0.0
        %v3773 = vsel %vm3737, %v3665, 0.0
        %v3774 = vsel %vm3738, %v3666, 0.0
        %v3775 = vsel %vm3739, %v3667, 0.0
        %v3776 = vsel %vm3740, %v3668, 0.0
        %v3777 = vsel %vm3741, %v3669, 0.0
        %v3778 = vsel %vm3742, %v3670, 0.0
        %v3779 = vsel %vm3743, %v3671, 0.0
        %v3780 = vsel %vm3744, %v3672, 0.0
        %v3781 = vsel %vm3745, %v3673, 0.0
        %v3782 = vsel %vm3746, %v3674, 0.0
        %v3783 = vsel %vm3747, %v3675, 0.0
        %v3784 = vsel %vm3748, %v3676, 0.0
        %v3785 = vsel %vm3749, %v3677, 0.0
        %v3786 = vsel %vm3750, %v3678, 0.0
        %v3787 = vsel %vm3751, %v3679, 0.0
        %v3788 = vsel %vm3752, %v3680, 0.0
        %v3789 = vsel %vm3753, %v3681, 0.0
        %3790 = vst [vmem:[#allocation2 + $0x30] sm:$0xff] %v3754
        %3791 = vst [vmem:[#allocation2 + $0x38] sm:$0xff] %v3755
        %3792 = vst [vmem:[#allocation2 + $0x40] sm:$0xff] %v3756
        %3793 = vst [vmem:[#allocation2 + $0x48] sm:$0xff] %v3757
        %3794 = vst [vmem:[#allocation2 + $0x50] sm:$0xff] %v3758
        %3795 = vst [vmem:[#allocation2 + $0x58] sm:$0xff] %v3759
        %3796 = vst [vmem:[#allocation2 + $0x60] sm:$0xff] %v3760
        %3797 = vst [vmem:[#allocation2 + $0x68] sm:$0xff] %v3761
        %3798 = vst [vmem:[#allocation2 + $0x70] sm:$0xff] %v3762
        %3799 = vst [vmem:[#allocation2 + $0x78] sm:$0xff] %v3763
        %3800 = vst [vmem:[#allocation2 + $0x80] sm:$0xff] %v3764
        %3801 = vst [vmem:[#allocation2 + $0x88] sm:$0xff] %v3765
        %3802 = vst [vmem:[#allocation2 + $0x90] sm:$0xff] %v3766
        %3803 = vst [vmem:[#allocation2 + $0x98] sm:$0xff] %v3767
        %3804 = vst [vmem:[#allocation2 + $0xa0] sm:$0xff] %v3768
        %3805 = vst [vmem:[#allocation2 + $0xa8] sm:$0xff] %v3769
        %3806 = vst [vmem:[#allocation2 + $0xb0] sm:$0xff] %v3770
        %3807 = vst [vmem:[#allocation2 + $0xb8] sm:$0xff] %v3771
        %3808 = vst [vmem:[#allocation2 + $0xc0] sm:$0xff] %v3772
        %3809 = vst [vmem:[#allocation2 + $0xc8] sm:$0xff] %v3773
        %3810 = vst [vmem:[#allocation2 + $0xd0] sm:$0xff] %v3774
        %3811 = vst [vmem:[#allocation2 + $0xd8] sm:$0xff] %v3775
        %3812 = vst [vmem:[#allocation2 + $0xe0] sm:$0xff] %v3776
        %3813 = vst [vmem:[#allocation2 + $0xe8] sm:$0xff] %v3777
        %3814 = vst [vmem:[#allocation2 + $0xf0] sm:$0xff] %v3778
        %3815 = vst [vmem:[#allocation2 + $0xf8] sm:$0xff] %v3779
        %3816 = vst [vmem:[#allocation2 + $0x100] sm:$0xff] %v3780
        %3817 = vst [vmem:[#allocation2 + $0x108] sm:$0xff] %v3781
        %3818 = vst [vmem:[#allocation2 + $0x110] sm:$0xff] %v3782
        %3819 = vst [vmem:[#allocation2 + $0x118] sm:$0xff] %v3783
        %3820 = vst [vmem:[#allocation2 + $0x120] sm:$0xff] %v3784
        %3821 = vst [vmem:[#allocation2 + $0x128] sm:$0xff] %v3785
        %3822 = vst [vmem:[#allocation2 + $0x130] sm:$0xff] %v3786
        %3823 = vst [vmem:[#allocation2 + $0x138] sm:$0xff] %v3787
        %3824 = vst [vmem:[#allocation2 + $0x140] sm:$0xff] %v3788
        %3825 = vst [vmem:[#allocation2 + $0x148] sm:$0xff] %v3789
        %v3826 = vld [vmem:[#allocation2 + $0x1d] sm:$0xff]
        %v3827 = vld [vmem:[#allocation2 + $0x25] sm:$0xff]
        %v3828 = vld [vmem:[#allocation2 + $0x2d] sm:$0xff]
        %v3829 = vld [vmem:[#allocation2 + $0x35] sm:$0xff]
        %v3830 = vld [vmem:[#allocation2 + $0x3d] sm:$0xff]
        %v3831 = vld [vmem:[#allocation2 + $0x45] sm:$0xff]
        %v3832 = vld [vmem:[#allocation2 + $0x4d] sm:$0xff]
        %v3833 = vld [vmem:[#allocation2 + $0x55] sm:$0xff]
        %v3834 = vld [vmem:[#allocation2 + $0x5d] sm:$0xff]
        %v3835 = vld [vmem:[#allocation2 + $0x65] sm:$0xff]
        %v3836 = vld [vmem:[#allocation2 + $0x6d] sm:$0xff]
        %v3837 = vld [vmem:[#allocation2 + $0x75] sm:$0xff]
        %v3838 = vld [vmem:[#allocation2 + $0x7d] sm:$0xff]
        %v3839 = vld [vmem:[#allocation2 + $0x85] sm:$0xff]
        %v3840 = vld [vmem:[#allocation2 + $0x8d] sm:$0xff]
        %v3841 = vld [vmem:[#allocation2 + $0x95] sm:$0xff]
        %v3842 = vld [vmem:[#allocation2 + $0x9d] sm:$0xff]
        %v3843 = vld [vmem:[#allocation2 + $0xa5] sm:$0xff]
        %v3844 = vld [vmem:[#allocation2 + $0xad] sm:$0xff]
        %v3845 = vld [vmem:[#allocation2 + $0xb5] sm:$0xff]
        %v3846 = vld [vmem:[#allocation2 + $0xbd] sm:$0xff]
        %v3847 = vld [vmem:[#allocation2 + $0xc5] sm:$0xff]
        %v3848 = vld [vmem:[#allocation2 + $0xcd] sm:$0xff]
        %v3849 = vld [vmem:[#allocation2 + $0xd5] sm:$0xff]
        %v3850 = vld [vmem:[#allocation2 + $0xdd] sm:$0xff]
        %v3851 = vld [vmem:[#allocation2 + $0xe5] sm:$0xff]
        %v3852 = vld [vmem:[#allocation2 + $0xed] sm:$0xff]
        %v3853 = vld [vmem:[#allocation2 + $0xf5] sm:$0xff]
        %v3854 = vld [vmem:[#allocation2 + $0xfd] sm:$0xff]
        %v3855 = vld [vmem:[#allocation2 + $0x105] sm:$0xff]
        %v3856 = vld [vmem:[#allocation2 + $0x10d] sm:$0xff]
        %v3857 = vld [vmem:[#allocation2 + $0x115] sm:$0xff]
        %v3858 = vld [vmem:[#allocation2 + $0x11d] sm:$0xff]
        %v3859 = vld [vmem:[#allocation2 + $0x125] sm:$0xff]
        %v3860 = vld [vmem:[#allocation2 + $0x12d] sm:$0xff]
        %v3861 = vld [vmem:[#allocation2 + $0x135] sm:$0xff]
        %v3862 = vld [vmem:[#allocation8] sm:$0xff]
        %v3863 = vld [vmem:[#allocation8 + $0x8] sm:$0xff]
        %v3864 = vld [vmem:[#allocation8 + $0x10] sm:$0xff]
        %v3865 = vld [vmem:[#allocation8 + $0x18] sm:$0xff]
        %v3866 = vld [vmem:[#allocation8 + $0x20] sm:$0xff]
        %v3867 = vld [vmem:[#allocation8 + $0x28] sm:$0xff]
        %v3868 = vld [vmem:[#allocation8 + $0x30] sm:$0xff]
        %v3869 = vld [vmem:[#allocation8 + $0x38] sm:$0xff]
        %v3870 = vld [vmem:[#allocation8 + $0x40] sm:$0xff]
        %v3871 = vld [vmem:[#allocation8 + $0x48] sm:$0xff]
        %v3872 = vld [vmem:[#allocation8 + $0x50] sm:$0xff]
        %v3873 = vld [vmem:[#allocation8 + $0x58] sm:$0xff]
        %v3874 = vld [vmem:[#allocation8 + $0x60] sm:$0xff]
        %v3875 = vld [vmem:[#allocation8 + $0x68] sm:$0xff]
        %v3876 = vld [vmem:[#allocation8 + $0x70] sm:$0xff]
        %v3877 = vld [vmem:[#allocation8 + $0x78] sm:$0xff]
        %v3878 = vld [vmem:[#allocation2 + $0x1e] sm:$0xff]
        %v3879 = vld [vmem:[#allocation2 + $0x26] sm:$0xff]
        %v3880 = vld [vmem:[#allocation2 + $0x2e] sm:$0xff]
        %v3881 = vld [vmem:[#allocation2 + $0x36] sm:$0xff]
        %v3882 = vld [vmem:[#allocation2 + $0x3e] sm:$0xff]
        %v3883 = vld [vmem:[#allocation2 + $0x46] sm:$0xff]
        %v3884 = vld [vmem:[#allocation2 + $0x4e] sm:$0xff]
        %v3885 = vld [vmem:[#allocation2 + $0x56] sm:$0xff]
        %v3886 = vld [vmem:[#allocation2 + $0x5e] sm:$0xff]
        %v3887 = vld [vmem:[#allocation2 + $0x66] sm:$0xff]
        %v3888 = vld [vmem:[#allocation2 + $0x6e] sm:$0xff]
        %v3889 = vld [vmem:[#allocation2 + $0x76] sm:$0xff]
        %v3890 = vld [vmem:[#allocation2 + $0x7e] sm:$0xff]
        %v3891 = vld [vmem:[#allocation2 + $0x86] sm:$0xff]
        %v3892 = vld [vmem:[#allocation2 + $0x8e] sm:$0xff]
        %v3893 = vld [vmem:[#allocation2 + $0x96] sm:$0xff]
        %v3894 = vld [vmem:[#allocation2 + $0x9e] sm:$0xff]
        %v3895 = vld [vmem:[#allocation2 + $0xa6] sm:$0xff]
        %v3896 = vld [vmem:[#allocation2 + $0xae] sm:$0xff]
        %v3897 = vld [vmem:[#allocation2 + $0xb6] sm:$0xff]
        %v3898 = vld [vmem:[#allocation2 + $0xbe] sm:$0xff]
        %v3899 = vld [vmem:[#allocation2 + $0xc6] sm:$0xff]
        %v3900 = vld [vmem:[#allocation2 + $0xce] sm:$0xff]
        %v3901 = vld [vmem:[#allocation2 + $0xd6] sm:$0xff]
        %v3902 = vld [vmem:[#allocation2 + $0xde] sm:$0xff]
        %v3903 = vld [vmem:[#allocation2 + $0xe6] sm:$0xff]
        %v3904 = vld [vmem:[#allocation2 + $0xee] sm:$0xff]
        %v3905 = vld [vmem:[#allocation2 + $0xf6] sm:$0xff]
        %v3906 = vld [vmem:[#allocation2 + $0xfe] sm:$0xff]
        %v3907 = vld [vmem:[#allocation2 + $0x106] sm:$0xff]
        %v3908 = vld [vmem:[#allocation2 + $0x10e] sm:$0xff]
        %v3909 = vld [vmem:[#allocation2 + $0x116] sm:$0xff]
        %v3910 = vld [vmem:[#allocation2 + $0x11e] sm:$0xff]
        %v3911 = vld [vmem:[#allocation2 + $0x126] sm:$0xff]
        %v3912 = vld [vmem:[#allocation2 + $0x12e] sm:$0xff]
        %v3913 = vld [vmem:[#allocation2 + $0x136] sm:$0xff]
        %s3914 = scalar_lea.vmem [#allocation8], 128
        %v3915 = vld [vmem:[%s3914] sm:$0xff]
        %v3916 = vld [vmem:[%s3914 + $0x8] sm:$0xff]
        %v3917 = vld [vmem:[%s3914 + $0x10] sm:$0xff]
        %v3918 = vld [vmem:[%s3914 + $0x18] sm:$0xff]
        %v3919 = vld [vmem:[%s3914 + $0x20] sm:$0xff]
        %v3920 = vld [vmem:[%s3914 + $0x28] sm:$0xff]
        %v3921 = vld [vmem:[%s3914 + $0x30] sm:$0xff]
        %v3922 = vld [vmem:[%s3914 + $0x38] sm:$0xff]
        %v3923 = vld [vmem:[%s3914 + $0x40] sm:$0xff]
        %v3924 = vld [vmem:[%s3914 + $0x48] sm:$0xff]
        %v3925 = vld [vmem:[%s3914 + $0x50] sm:$0xff]
        %v3926 = vld [vmem:[%s3914 + $0x58] sm:$0xff]
        %v3927 = vld [vmem:[%s3914 + $0x60] sm:$0xff]
        %v3928 = vld [vmem:[%s3914 + $0x68] sm:$0xff]
        %v3929 = vld [vmem:[%s3914 + $0x70] sm:$0xff]
        %v3930 = vld [vmem:[%s3914 + $0x78] sm:$0xff]
        %3931 = vmatpush.msra.mxu0 %v3930
        %3932 = vmatpush.msra.mxu0 %v3929
        %3933 = vmatpush.msra.mxu0 %v3928
        %3934 = vmatpush.msra.mxu0 %v3927
        %3935 = vmatpush.msra.mxu0 %v3926
        %3936 = vmatpush.msra.mxu0 %v3925
        %3937 = vmatpush.msra.mxu0 %v3924
        %3938 = vmatpush.msra.mxu0 %v3923
        %3939 = vmatpush.msra.mxu0 %v3922
        %3940 = vmatpush.msra.mxu0 %v3921
        %3941 = vmatpush.msra.mxu0 %v3920
        %3942 = vmatpush.msra.mxu0 %v3919
        %3943 = vmatpush.msra.mxu0 %v3918
        %3944 = vmatpush.msra.mxu0 %v3917
        %3945 = vmatpush.msra.mxu0 %v3916
        %3946 = vmatpush.msra.mxu0 %v3915
        %3947 = vmatmul.f32.gmra.mxu0 %v3878
        %v3948 = vpop.f32.mrf.mxu0
        %v3949 = vadd.f32 0.0, %v3948
        %3950 = vmatmul.f32.gmra.mxu0 %v3879
        %v3951 = vpop.f32.mrf.mxu0
        %v3952 = vadd.f32 0.0, %v3951
        %3953 = vmatmul.f32.gmra.mxu0 %v3880
        %v3954 = vpop.f32.mrf.mxu0
        %v3955 = vadd.f32 0.0, %v3954
        %3956 = vmatmul.f32.gmra.mxu0 %v3881
        %v3957 = vpop.f32.mrf.mxu0
        %v3958 = vadd.f32 0.0, %v3957
        %3959 = vmatmul.f32.gmra.mxu0 %v3882
        %v3960 = vpop.f32.mrf.mxu0
        %v3961 = vadd.f32 0.0, %v3960
        %3962 = vmatmul.f32.gmra.mxu0 %v3883
        %v3963 = vpop.f32.mrf.mxu0
        %v3964 = vadd.f32 0.0, %v3963
        %3965 = vmatmul.f32.gmra.mxu0 %v3884
        %v3966 = vpop.f32.mrf.mxu0
        %v3967 = vadd.f32 0.0, %v3966
        %3968 = vmatmul.f32.gmra.mxu0 %v3885
        %v3969 = vpop.f32.mrf.mxu0
        %v3970 = vadd.f32 0.0, %v3969
        %3971 = vmatmul.f32.gmra.mxu0 %v3886
        %v3972 = vpop.f32.mrf.mxu0
        %v3973 = vadd.f32 0.0, %v3972
        %3974 = vmatmul.f32.gmra.mxu0 %v3887
        %v3975 = vpop.f32.mrf.mxu0
        %v3976 = vadd.f32 0.0, %v3975
        %3977 = vmatmul.f32.gmra.mxu0 %v3888
        %v3978 = vpop.f32.mrf.mxu0
        %v3979 = vadd.f32 0.0, %v3978
        %3980 = vmatmul.f32.gmra.mxu0 %v3889
        %v3981 = vpop.f32.mrf.mxu0
        %v3982 = vadd.f32 0.0, %v3981
        %3983 = vmatmul.f32.gmra.mxu0 %v3890
        %v3984 = vpop.f32.mrf.mxu0
        %v3985 = vadd.f32 0.0, %v3984
        %3986 = vmatmul.f32.gmra.mxu0 %v3891
        %v3987 = vpop.f32.mrf.mxu0
        %v3988 = vadd.f32 0.0, %v3987
        %3989 = vmatmul.f32.gmra.mxu0 %v3892
        %v3990 = vpop.f32.mrf.mxu0
        %v3991 = vadd.f32 0.0, %v3990
        %3992 = vmatmul.f32.gmra.mxu0 %v3893
        %v3993 = vpop.f32.mrf.mxu0
        %v3994 = vadd.f32 0.0, %v3993
        %3995 = vmatmul.f32.gmra.mxu0 %v3894
        %v3996 = vpop.f32.mrf.mxu0
        %v3997 = vadd.f32 0.0, %v3996
        %3998 = vmatmul.f32.gmra.mxu0 %v3895
        %v3999 = vpop.f32.mrf.mxu0
        %v4000 = vadd.f32 0.0, %v3999
        %4001 = vmatmul.f32.gmra.mxu0 %v3896
        %v4002 = vpop.f32.mrf.mxu0
        %v4003 = vadd.f32 0.0, %v4002
        %4004 = vmatmul.f32.gmra.mxu0 %v3897
        %v4005 = vpop.f32.mrf.mxu0
        %v4006 = vadd.f32 0.0, %v4005
        %4007 = vmatmul.f32.gmra.mxu0 %v3898
        %v4008 = vpop.f32.mrf.mxu0
        %v4009 = vadd.f32 0.0, %v4008
        %4010 = vmatmul.f32.gmra.mxu0 %v3899
        %v4011 = vpop.f32.mrf.mxu0
        %v4012 = vadd.f32 0.0, %v4011
        %4013 = vmatmul.f32.gmra.mxu0 %v3900
        %v4014 = vpop.f32.mrf.mxu0
        %v4015 = vadd.f32 0.0, %v4014
        %4016 = vmatmul.f32.gmra.mxu0 %v3901
        %v4017 = vpop.f32.mrf.mxu0
        %v4018 = vadd.f32 0.0, %v4017
        %4019 = vmatmul.f32.gmra.mxu0 %v3902
        %v4020 = vpop.f32.mrf.mxu0
        %v4021 = vadd.f32 0.0, %v4020
        %4022 = vmatmul.f32.gmra.mxu0 %v3903
        %v4023 = vpop.f32.mrf.mxu0
        %v4024 = vadd.f32 0.0, %v4023
        %4025 = vmatmul.f32.gmra.mxu0 %v3904
        %v4026 = vpop.f32.mrf.mxu0
        %v4027 = vadd.f32 0.0, %v4026
        %4028 = vmatmul.f32.gmra.mxu0 %v3905
        %v4029 = vpop.f32.mrf.mxu0
        %v4030 = vadd.f32 0.0, %v4029
        %4031 = vmatmul.f32.gmra.mxu0 %v3906
        %v4032 = vpop.f32.mrf.mxu0
        %v4033 = vadd.f32 0.0, %v4032
        %4034 = vmatmul.f32.gmra.mxu0 %v3907
        %v4035 = vpop.f32.mrf.mxu0
        %v4036 = vadd.f32 0.0, %v4035
        %4037 = vmatmul.f32.gmra.mxu0 %v3908
        %v4038 = vpop.f32.mrf.mxu0
        %v4039 = vadd.f32 0.0, %v4038
        %4040 = vmatmul.f32.gmra.mxu0 %v3909
        %v4041 = vpop.f32.mrf.mxu0
        %v4042 = vadd.f32 0.0, %v4041
        %4043 = vmatmul.f32.gmra.mxu0 %v3910
        %v4044 = vpop.f32.mrf.mxu0
        %v4045 = vadd.f32 0.0, %v4044
        %4046 = vmatmul.f32.gmra.mxu0 %v3911
        %v4047 = vpop.f32.mrf.mxu0
        %v4048 = vadd.f32 0.0, %v4047
        %4049 = vmatmul.f32.gmra.mxu0 %v3912
        %v4050 = vpop.f32.mrf.mxu0
        %v4051 = vadd.f32 0.0, %v4050
        %4052 = vmatmul.f32.gmra.mxu0 %v3913
        %v4053 = vpop.f32.mrf.mxu0
        %v4054 = vadd.f32 0.0, %v4053
        %4055 = vdwg.mxu0
        %4056 = vmatpush.msra.mxu0 %v3877
        %4057 = vmatpush.msra.mxu0 %v3876
        %4058 = vmatpush.msra.mxu0 %v3875
        %4059 = vmatpush.msra.mxu0 %v3874
        %4060 = vmatpush.msra.mxu0 %v3873
        %4061 = vmatpush.msra.mxu0 %v3872
        %4062 = vmatpush.msra.mxu0 %v3871
        %4063 = vmatpush.msra.mxu0 %v3870
        %4064 = vmatpush.msra.mxu0 %v3869
        %4065 = vmatpush.msra.mxu0 %v3868
        %4066 = vmatpush.msra.mxu0 %v3867
        %4067 = vmatpush.msra.mxu0 %v3866
        %4068 = vmatpush.msra.mxu0 %v3865
        %4069 = vmatpush.msra.mxu0 %v3864
        %4070 = vmatpush.msra.mxu0 %v3863
        %4071 = vmatpush.msra.mxu0 %v3862
        %4072 = vmatmul.f32.gmra.mxu0 %v3826
        %v4073 = vpop.f32.mrf.mxu0
        %v4074 = vadd.f32 %v3949, %v4073
        %4075 = vmatmul.f32.gmra.mxu0 %v3827
        %v4076 = vpop.f32.mrf.mxu0
        %v4077 = vadd.f32 %v3952, %v4076
        %4078 = vmatmul.f32.gmra.mxu0 %v3828
        %v4079 = vpop.f32.mrf.mxu0
        %v4080 = vadd.f32 %v3955, %v4079
        %4081 = vmatmul.f32.gmra.mxu0 %v3829
        %v4082 = vpop.f32.mrf.mxu0
        %v4083 = vadd.f32 %v3958, %v4082
        %4084 = vmatmul.f32.gmra.mxu0 %v3830
        %v4085 = vpop.f32.mrf.mxu0
        %v4086 = vadd.f32 %v3961, %v4085
        %4087 = vmatmul.f32.gmra.mxu0 %v3831
        %v4088 = vpop.f32.mrf.mxu0
        %v4089 = vadd.f32 %v3964, %v4088
        %4090 = vmatmul.f32.gmra.mxu0 %v3832
        %v4091 = vpop.f32.mrf.mxu0
        %v4092 = vadd.f32 %v3967, %v4091
        %4093 = vmatmul.f32.gmra.mxu0 %v3833
        %v4094 = vpop.f32.mrf.mxu0
        %v4095 = vadd.f32 %v3970, %v4094
        %4096 = vmatmul.f32.gmra.mxu0 %v3834
        %v4097 = vpop.f32.mrf.mxu0
        %v4098 = vadd.f32 %v3973, %v4097
        %4099 = vmatmul.f32.gmra.mxu0 %v3835
        %v4100 = vpop.f32.mrf.mxu0
        %v4101 = vadd.f32 %v3976, %v4100
        %4102 = vmatmul.f32.gmra.mxu0 %v3836
        %v4103 = vpop.f32.mrf.mxu0
        %v4104 = vadd.f32 %v3979, %v4103
        %4105 = vmatmul.f32.gmra.mxu0 %v3837
        %v4106 = vpop.f32.mrf.mxu0
        %v4107 = vadd.f32 %v3982, %v4106
        %4108 = vmatmul.f32.gmra.mxu0 %v3838
        %v4109 = vpop.f32.mrf.mxu0
        %v4110 = vadd.f32 %v3985, %v4109
        %4111 = vmatmul.f32.gmra.mxu0 %v3839
        %v4112 = vpop.f32.mrf.mxu0
        %v4113 = vadd.f32 %v3988, %v4112
        %4114 = vmatmul.f32.gmra.mxu0 %v3840
        %v4115 = vpop.f32.mrf.mxu0
        %v4116 = vadd.f32 %v3991, %v4115
        %4117 = vmatmul.f32.gmra.mxu0 %v3841
        %v4118 = vpop.f32.mrf.mxu0
        %v4119 = vadd.f32 %v3994, %v4118
        %4120 = vmatmul.f32.gmra.mxu0 %v3842
        %v4121 = vpop.f32.mrf.mxu0
        %v4122 = vadd.f32 %v3997, %v4121
        %4123 = vmatmul.f32.gmra.mxu0 %v3843
        %v4124 = vpop.f32.mrf.mxu0
        %v4125 = vadd.f32 %v4000, %v4124
        %4126 = vmatmul.f32.gmra.mxu0 %v3844
        %v4127 = vpop.f32.mrf.mxu0
        %v4128 = vadd.f32 %v4003, %v4127
        %4129 = vmatmul.f32.gmra.mxu0 %v3845
        %v4130 = vpop.f32.mrf.mxu0
        %v4131 = vadd.f32 %v4006, %v4130
        %4132 = vmatmul.f32.gmra.mxu0 %v3846
        %v4133 = vpop.f32.mrf.mxu0
        %v4134 = vadd.f32 %v4009, %v4133
        %4135 = vmatmul.f32.gmra.mxu0 %v3847
        %v4136 = vpop.f32.mrf.mxu0
        %v4137 = vadd.f32 %v4012, %v4136
        %4138 = vmatmul.f32.gmra.mxu0 %v3848
        %v4139 = vpop.f32.mrf.mxu0
        %v4140 = vadd.f32 %v4015, %v4139
        %4141 = vmatmul.f32.gmra.mxu0 %v3849
        %v4142 = vpop.f32.mrf.mxu0
        %v4143 = vadd.f32 %v4018, %v4142
        %4144 = vmatmul.f32.gmra.mxu0 %v3850
        %v4145 = vpop.f32.mrf.mxu0
        %v4146 = vadd.f32 %v4021, %v4145
        %4147 = vmatmul.f32.gmra.mxu0 %v3851
        %v4148 = vpop.f32.mrf.mxu0
        %v4149 = vadd.f32 %v4024, %v4148
        %4150 = vmatmul.f32.gmra.mxu0 %v3852
        %v4151 = vpop.f32.mrf.mxu0
        %v4152 = vadd.f32 %v4027, %v4151
        %4153 = vmatmul.f32.gmra.mxu0 %v3853
        %v4154 = vpop.f32.mrf.mxu0
        %v4155 = vadd.f32 %v4030, %v4154
        %4156 = vmatmul.f32.gmra.mxu0 %v3854
        %v4157 = vpop.f32.mrf.mxu0
        %v4158 = vadd.f32 %v4033, %v4157
        %4159 = vmatmul.f32.gmra.mxu0 %v3855
        %v4160 = vpop.f32.mrf.mxu0
        %v4161 = vadd.f32 %v4036, %v4160
        %4162 = vmatmul.f32.gmra.mxu0 %v3856
        %v4163 = vpop.f32.mrf.mxu0
        %v4164 = vadd.f32 %v4039, %v4163
        %4165 = vmatmul.f32.gmra.mxu0 %v3857
        %v4166 = vpop.f32.mrf.mxu0
        %v4167 = vadd.f32 %v4042, %v4166
        %4168 = vmatmul.f32.gmra.mxu0 %v3858
        %v4169 = vpop.f32.mrf.mxu0
        %v4170 = vadd.f32 %v4045, %v4169
        %4171 = vmatmul.f32.gmra.mxu0 %v3859
        %v4172 = vpop.f32.mrf.mxu0
        %v4173 = vadd.f32 %v4048, %v4172
        %4174 = vmatmul.f32.gmra.mxu0 %v3860
        %v4175 = vpop.f32.mrf.mxu0
        %v4176 = vadd.f32 %v4051, %v4175
        %4177 = vmatmul.f32.gmra.mxu0 %v3861
        %v4178 = vpop.f32.mrf.mxu0
        %v4179 = vadd.f32 %v4054, %v4178
        %4180 = vdwg.mxu0
        %v4181 = vld [vmem:[#allocation2 + $0x1f] sm:$0xff]
        %v4182 = vld [vmem:[#allocation2 + $0x27] sm:$0xff]
        %v4183 = vld [vmem:[#allocation2 + $0x2f] sm:$0xff]
        %v4184 = vld [vmem:[#allocation2 + $0x37] sm:$0xff]
        %v4185 = vld [vmem:[#allocation2 + $0x3f] sm:$0xff]
        %v4186 = vld [vmem:[#allocation2 + $0x47] sm:$0xff]
        %v4187 = vld [vmem:[#allocation2 + $0x4f] sm:$0xff]
        %v4188 = vld [vmem:[#allocation2 + $0x57] sm:$0xff]
        %v4189 = vld [vmem:[#allocation2 + $0x5f] sm:$0xff]
        %v4190 = vld [vmem:[#allocation2 + $0x67] sm:$0xff]
        %v4191 = vld [vmem:[#allocation2 + $0x6f] sm:$0xff]
        %v4192 = vld [vmem:[#allocation2 + $0x77] sm:$0xff]
        %v4193 = vld [vmem:[#allocation2 + $0x7f] sm:$0xff]
        %v4194 = vld [vmem:[#allocation2 + $0x87] sm:$0xff]
        %v4195 = vld [vmem:[#allocation2 + $0x8f] sm:$0xff]
        %v4196 = vld [vmem:[#allocation2 + $0x97] sm:$0xff]
        %v4197 = vld [vmem:[#allocation2 + $0x9f] sm:$0xff]
        %v4198 = vld [vmem:[#allocation2 + $0xa7] sm:$0xff]
        %v4199 = vld [vmem:[#allocation2 + $0xaf] sm:$0xff]
        %v4200 = vld [vmem:[#allocation2 + $0xb7] sm:$0xff]
        %v4201 = vld [vmem:[#allocation2 + $0xbf] sm:$0xff]
        %v4202 = vld [vmem:[#allocation2 + $0xc7] sm:$0xff]
        %v4203 = vld [vmem:[#allocation2 + $0xcf] sm:$0xff]
        %v4204 = vld [vmem:[#allocation2 + $0xd7] sm:$0xff]
        %v4205 = vld [vmem:[#allocation2 + $0xdf] sm:$0xff]
        %v4206 = vld [vmem:[#allocation2 + $0xe7] sm:$0xff]
        %v4207 = vld [vmem:[#allocation2 + $0xef] sm:$0xff]
        %v4208 = vld [vmem:[#allocation2 + $0xf7] sm:$0xff]
        %v4209 = vld [vmem:[#allocation2 + $0xff] sm:$0xff]
        %v4210 = vld [vmem:[#allocation2 + $0x107] sm:$0xff]
        %v4211 = vld [vmem:[#allocation2 + $0x10f] sm:$0xff]
        %v4212 = vld [vmem:[#allocation2 + $0x117] sm:$0xff]
        %v4213 = vld [vmem:[#allocation2 + $0x11f] sm:$0xff]
        %v4214 = vld [vmem:[#allocation2 + $0x127] sm:$0xff]
        %v4215 = vld [vmem:[#allocation2 + $0x12f] sm:$0xff]
        %v4216 = vld [vmem:[#allocation2 + $0x137] sm:$0xff]
        %s4217 = scalar_lea.vmem [#allocation8], 256
        %v4218 = vld [vmem:[%s4217] sm:$0xff]
        %v4219 = vld [vmem:[%s4217 + $0x8] sm:$0xff]
        %v4220 = vld [vmem:[%s4217 + $0x10] sm:$0xff]
        %v4221 = vld [vmem:[%s4217 + $0x18] sm:$0xff]
        %v4222 = vld [vmem:[%s4217 + $0x20] sm:$0xff]
        %v4223 = vld [vmem:[%s4217 + $0x28] sm:$0xff]
        %v4224 = vld [vmem:[%s4217 + $0x30] sm:$0xff]
        %v4225 = vld [vmem:[%s4217 + $0x38] sm:$0xff]
        %v4226 = vld [vmem:[%s4217 + $0x40] sm:$0xff]
        %v4227 = vld [vmem:[%s4217 + $0x48] sm:$0xff]
        %v4228 = vld [vmem:[%s4217 + $0x50] sm:$0xff]
        %v4229 = vld [vmem:[%s4217 + $0x58] sm:$0xff]
        %v4230 = vld [vmem:[%s4217 + $0x60] sm:$0xff]
        %v4231 = vld [vmem:[%s4217 + $0x68] sm:$0xff]
        %v4232 = vld [vmem:[%s4217 + $0x70] sm:$0xff]
        %v4233 = vld [vmem:[%s4217 + $0x78] sm:$0xff]
        %4234 = vmatpush.msra.mxu0 %v4233
        %4235 = vmatpush.msra.mxu0 %v4232
        %4236 = vmatpush.msra.mxu0 %v4231
        %4237 = vmatpush.msra.mxu0 %v4230
        %4238 = vmatpush.msra.mxu0 %v4229
        %4239 = vmatpush.msra.mxu0 %v4228
        %4240 = vmatpush.msra.mxu0 %v4227
        %4241 = vmatpush.msra.mxu0 %v4226
        %4242 = vmatpush.msra.mxu0 %v4225
        %4243 = vmatpush.msra.mxu0 %v4224
        %4244 = vmatpush.msra.mxu0 %v4223
        %4245 = vmatpush.msra.mxu0 %v4222
        %4246 = vmatpush.msra.mxu0 %v4221
        %4247 = vmatpush.msra.mxu0 %v4220
        %4248 = vmatpush.msra.mxu0 %v4219
        %4249 = vmatpush.msra.mxu0 %v4218
        %4250 = vmatmul.f32.gmra.mxu0 %v4181
        %v4251 = vpop.f32.mrf.mxu0
        %v4252 = vadd.f32 0.0, %v4251
        %4253 = vmatmul.f32.gmra.mxu0 %v4182
        %v4254 = vpop.f32.mrf.mxu0
        %v4255 = vadd.f32 0.0, %v4254
        %4256 = vmatmul.f32.gmra.mxu0 %v4183
        %v4257 = vpop.f32.mrf.mxu0
        %v4258 = vadd.f32 0.0, %v4257
        %4259 = vmatmul.f32.gmra.mxu0 %v4184
        %v4260 = vpop.f32.mrf.mxu0
        %v4261 = vadd.f32 0.0, %v4260
        %4262 = vmatmul.f32.gmra.mxu0 %v4185
        %v4263 = vpop.f32.mrf.mxu0
        %v4264 = vadd.f32 0.0, %v4263
        %4265 = vmatmul.f32.gmra.mxu0 %v4186
        %v4266 = vpop.f32.mrf.mxu0
        %v4267 = vadd.f32 0.0, %v4266
        %4268 = vmatmul.f32.gmra.mxu0 %v4187
        %v4269 = vpop.f32.mrf.mxu0
        %v4270 = vadd.f32 0.0, %v4269
        %4271 = vmatmul.f32.gmra.mxu0 %v4188
        %v4272 = vpop.f32.mrf.mxu0
        %v4273 = vadd.f32 0.0, %v4272
        %4274 = vmatmul.f32.gmra.mxu0 %v4189
        %v4275 = vpop.f32.mrf.mxu0
        %v4276 = vadd.f32 0.0, %v4275
        %4277 = vmatmul.f32.gmra.mxu0 %v4190
        %v4278 = vpop.f32.mrf.mxu0
        %v4279 = vadd.f32 0.0, %v4278
        %4280 = vmatmul.f32.gmra.mxu0 %v4191
        %v4281 = vpop.f32.mrf.mxu0
        %v4282 = vadd.f32 0.0, %v4281
        %4283 = vmatmul.f32.gmra.mxu0 %v4192
        %v4284 = vpop.f32.mrf.mxu0
        %v4285 = vadd.f32 0.0, %v4284
        %4286 = vmatmul.f32.gmra.mxu0 %v4193
        %v4287 = vpop.f32.mrf.mxu0
        %v4288 = vadd.f32 0.0, %v4287
        %4289 = vmatmul.f32.gmra.mxu0 %v4194
        %v4290 = vpop.f32.mrf.mxu0
        %v4291 = vadd.f32 0.0, %v4290
        %4292 = vmatmul.f32.gmra.mxu0 %v4195
        %v4293 = vpop.f32.mrf.mxu0
        %v4294 = vadd.f32 0.0, %v4293
        %4295 = vmatmul.f32.gmra.mxu0 %v4196
        %v4296 = vpop.f32.mrf.mxu0
        %v4297 = vadd.f32 0.0, %v4296
        %4298 = vmatmul.f32.gmra.mxu0 %v4197
        %v4299 = vpop.f32.mrf.mxu0
        %v4300 = vadd.f32 0.0, %v4299
        %4301 = vmatmul.f32.gmra.mxu0 %v4198
        %v4302 = vpop.f32.mrf.mxu0
        %v4303 = vadd.f32 0.0, %v4302
        %4304 = vmatmul.f32.gmra.mxu0 %v4199
        %v4305 = vpop.f32.mrf.mxu0
        %v4306 = vadd.f32 0.0, %v4305
        %4307 = vmatmul.f32.gmra.mxu0 %v4200
        %v4308 = vpop.f32.mrf.mxu0
        %v4309 = vadd.f32 0.0, %v4308
        %4310 = vmatmul.f32.gmra.mxu0 %v4201
        %v4311 = vpop.f32.mrf.mxu0
        %v4312 = vadd.f32 0.0, %v4311
        %4313 = vmatmul.f32.gmra.mxu0 %v4202
        %v4314 = vpop.f32.mrf.mxu0
        %v4315 = vadd.f32 0.0, %v4314
        %4316 = vmatmul.f32.gmra.mxu0 %v4203
        %v4317 = vpop.f32.mrf.mxu0
        %v4318 = vadd.f32 0.0, %v4317
        %4319 = vmatmul.f32.gmra.mxu0 %v4204
        %v4320 = vpop.f32.mrf.mxu0
        %v4321 = vadd.f32 0.0, %v4320
        %4322 = vmatmul.f32.gmra.mxu0 %v4205
        %v4323 = vpop.f32.mrf.mxu0
        %v4324 = vadd.f32 0.0, %v4323
        %4325 = vmatmul.f32.gmra.mxu0 %v4206
        %v4326 = vpop.f32.mrf.mxu0
        %v4327 = vadd.f32 0.0, %v4326
        %4328 = vmatmul.f32.gmra.mxu0 %v4207
        %v4329 = vpop.f32.mrf.mxu0
        %v4330 = vadd.f32 0.0, %v4329
        %4331 = vmatmul.f32.gmra.mxu0 %v4208
        %v4332 = vpop.f32.mrf.mxu0
        %v4333 = vadd.f32 0.0, %v4332
        %4334 = vmatmul.f32.gmra.mxu0 %v4209
        %v4335 = vpop.f32.mrf.mxu0
        %v4336 = vadd.f32 0.0, %v4335
        %4337 = vmatmul.f32.gmra.mxu0 %v4210
        %v4338 = vpop.f32.mrf.mxu0
        %v4339 = vadd.f32 0.0, %v4338
        %4340 = vmatmul.f32.gmra.mxu0 %v4211
        %v4341 = vpop.f32.mrf.mxu0
        %v4342 = vadd.f32 0.0, %v4341
        %4343 = vmatmul.f32.gmra.mxu0 %v4212
        %v4344 = vpop.f32.mrf.mxu0
        %v4345 = vadd.f32 0.0, %v4344
        %4346 = vmatmul.f32.gmra.mxu0 %v4213
        %v4347 = vpop.f32.mrf.mxu0
        %v4348 = vadd.f32 0.0, %v4347
        %4349 = vmatmul.f32.gmra.mxu0 %v4214
        %v4350 = vpop.f32.mrf.mxu0
        %v4351 = vadd.f32 0.0, %v4350
        %4352 = vmatmul.f32.gmra.mxu0 %v4215
        %v4353 = vpop.f32.mrf.mxu0
        %v4354 = vadd.f32 0.0, %v4353
        %4355 = vmatmul.f32.gmra.mxu0 %v4216
        %v4356 = vpop.f32.mrf.mxu0
        %v4357 = vadd.f32 0.0, %v4356
        %4358 = vdwg.mxu0
        %v4359 = vadd.f32 %v4074, %v4252
        %v4360 = vadd.f32 %v4077, %v4255
        %v4361 = vadd.f32 %v4080, %v4258
        %v4362 = vadd.f32 %v4083, %v4261
        %v4363 = vadd.f32 %v4086, %v4264
        %v4364 = vadd.f32 %v4089, %v4267
        %v4365 = vadd.f32 %v4092, %v4270
        %v4366 = vadd.f32 %v4095, %v4273
        %v4367 = vadd.f32 %v4098, %v4276
        %v4368 = vadd.f32 %v4101, %v4279
        %v4369 = vadd.f32 %v4104, %v4282
        %v4370 = vadd.f32 %v4107, %v4285
        %v4371 = vadd.f32 %v4110, %v4288
        %v4372 = vadd.f32 %v4113, %v4291
        %v4373 = vadd.f32 %v4116, %v4294
        %v4374 = vadd.f32 %v4119, %v4297
        %v4375 = vadd.f32 %v4122, %v4300
        %v4376 = vadd.f32 %v4125, %v4303
        %v4377 = vadd.f32 %v4128, %v4306
        %v4378 = vadd.f32 %v4131, %v4309
        %v4379 = vadd.f32 %v4134, %v4312
        %v4380 = vadd.f32 %v4137, %v4315
        %v4381 = vadd.f32 %v4140, %v4318
        %v4382 = vadd.f32 %v4143, %v4321
        %v4383 = vadd.f32 %v4146, %v4324
        %v4384 = vadd.f32 %v4149, %v4327
        %v4385 = vadd.f32 %v4152, %v4330
        %v4386 = vadd.f32 %v4155, %v4333
        %v4387 = vadd.f32 %v4158, %v4336
        %v4388 = vadd.f32 %v4161, %v4339
        %v4389 = vadd.f32 %v4164, %v4342
        %v4390 = vadd.f32 %v4167, %v4345
        %v4391 = vadd.f32 %v4170, %v4348
        %v4392 = vadd.f32 %v4173, %v4351
        %v4393 = vadd.f32 %v4176, %v4354
        %v4394 = vadd.f32 %v4179, %v4357
        %v4395 = vld [vmem:[#allocation2 + $0x2f] sm:$0xff]
        %v4396 = vld [vmem:[#allocation2 + $0x37] sm:$0xff]
        %v4397 = vld [vmem:[#allocation2 + $0x3f] sm:$0xff]
        %v4398 = vld [vmem:[#allocation2 + $0x47] sm:$0xff]
        %v4399 = vld [vmem:[#allocation2 + $0x4f] sm:$0xff]
        %v4400 = vld [vmem:[#allocation2 + $0x57] sm:$0xff]
        %v4401 = vld [vmem:[#allocation2 + $0x5f] sm:$0xff]
        %v4402 = vld [vmem:[#allocation2 + $0x67] sm:$0xff]
        %v4403 = vld [vmem:[#allocation2 + $0x6f] sm:$0xff]
        %v4404 = vld [vmem:[#allocation2 + $0x77] sm:$0xff]
        %v4405 = vld [vmem:[#allocation2 + $0x7f] sm:$0xff]
        %v4406 = vld [vmem:[#allocation2 + $0x87] sm:$0xff]
        %v4407 = vld [vmem:[#allocation2 + $0x8f] sm:$0xff]
        %v4408 = vld [vmem:[#allocation2 + $0x97] sm:$0xff]
        %v4409 = vld [vmem:[#allocation2 + $0x9f] sm:$0xff]
        %v4410 = vld [vmem:[#allocation2 + $0xa7] sm:$0xff]
        %v4411 = vld [vmem:[#allocation2 + $0xaf] sm:$0xff]
        %v4412 = vld [vmem:[#allocation2 + $0xb7] sm:$0xff]
        %v4413 = vld [vmem:[#allocation2 + $0xbf] sm:$0xff]
        %v4414 = vld [vmem:[#allocation2 + $0xc7] sm:$0xff]
        %v4415 = vld [vmem:[#allocation2 + $0xcf] sm:$0xff]
        %v4416 = vld [vmem:[#allocation2 + $0xd7] sm:$0xff]
        %v4417 = vld [vmem:[#allocation2 + $0xdf] sm:$0xff]
        %v4418 = vld [vmem:[#allocation2 + $0xe7] sm:$0xff]
        %v4419 = vld [vmem:[#allocation2 + $0xef] sm:$0xff]
        %v4420 = vld [vmem:[#allocation2 + $0xf7] sm:$0xff]
        %v4421 = vld [vmem:[#allocation2 + $0xff] sm:$0xff]
        %v4422 = vld [vmem:[#allocation2 + $0x107] sm:$0xff]
        %v4423 = vld [vmem:[#allocation2 + $0x10f] sm:$0xff]
        %v4424 = vld [vmem:[#allocation2 + $0x117] sm:$0xff]
        %v4425 = vld [vmem:[#allocation2 + $0x11f] sm:$0xff]
        %v4426 = vld [vmem:[#allocation2 + $0x127] sm:$0xff]
        %v4427 = vld [vmem:[#allocation2 + $0x12f] sm:$0xff]
        %v4428 = vld [vmem:[#allocation2 + $0x137] sm:$0xff]
        %v4429 = vld [vmem:[#allocation2 + $0x13f] sm:$0xff]
        %v4430 = vld [vmem:[#allocation2 + $0x147] sm:$0xff]
        %s4431 = scalar_lea.vmem [#allocation8], 384
        %v4432 = vld [vmem:[%s4431] sm:$0xff]
        %v4433 = vld [vmem:[%s4431 + $0x8] sm:$0xff]
        %v4434 = vld [vmem:[%s4431 + $0x10] sm:$0xff]
        %v4435 = vld [vmem:[%s4431 + $0x18] sm:$0xff]
        %v4436 = vld [vmem:[%s4431 + $0x20] sm:$0xff]
        %v4437 = vld [vmem:[%s4431 + $0x28] sm:$0xff]
        %v4438 = vld [vmem:[%s4431 + $0x30] sm:$0xff]
        %v4439 = vld [vmem:[%s4431 + $0x38] sm:$0xff]
        %v4440 = vld [vmem:[%s4431 + $0x40] sm:$0xff]
        %v4441 = vld [vmem:[%s4431 + $0x48] sm:$0xff]
        %v4442 = vld [vmem:[%s4431 + $0x50] sm:$0xff]
        %v4443 = vld [vmem:[%s4431 + $0x58] sm:$0xff]
        %v4444 = vld [vmem:[%s4431 + $0x60] sm:$0xff]
        %v4445 = vld [vmem:[%s4431 + $0x68] sm:$0xff]
        %v4446 = vld [vmem:[%s4431 + $0x70] sm:$0xff]
        %v4447 = vld [vmem:[%s4431 + $0x78] sm:$0xff]
        %4448 = vmatpush.msra.mxu0 %v4447
        %4449 = vmatpush.msra.mxu0 %v4446
        %4450 = vmatpush.msra.mxu0 %v4445
        %4451 = vmatpush.msra.mxu0 %v4444
        %4452 = vmatpush.msra.mxu0 %v4443
        %4453 = vmatpush.msra.mxu0 %v4442
        %4454 = vmatpush.msra.mxu0 %v4441
        %4455 = vmatpush.msra.mxu0 %v4440
        %4456 = vmatpush.msra.mxu0 %v4439
        %4457 = vmatpush.msra.mxu0 %v4438
        %4458 = vmatpush.msra.mxu0 %v4437
        %4459 = vmatpush.msra.mxu0 %v4436
        %4460 = vmatpush.msra.mxu0 %v4435
        %4461 = vmatpush.msra.mxu0 %v4434
        %4462 = vmatpush.msra.mxu0 %v4433
        %4463 = vmatpush.msra.mxu0 %v4432
        %4464 = vmatmul.f32.gmra.mxu0 %v4395
        %v4465 = vpop.f32.mrf.mxu0
        %v4466 = vadd.f32 0.0, %v4465
        %4467 = vmatmul.f32.gmra.mxu0 %v4396
        %v4468 = vpop.f32.mrf.mxu0
        %v4469 = vadd.f32 0.0, %v4468
        %4470 = vmatmul.f32.gmra.mxu0 %v4397
        %v4471 = vpop.f32.mrf.mxu0
        %v4472 = vadd.f32 0.0, %v4471
        %4473 = vmatmul.f32.gmra.mxu0 %v4398
        %v4474 = vpop.f32.mrf.mxu0
        %v4475 = vadd.f32 0.0, %v4474
        %4476 = vmatmul.f32.gmra.mxu0 %v4399
        %v4477 = vpop.f32.mrf.mxu0
        %v4478 = vadd.f32 0.0, %v4477
        %4479 = vmatmul.f32.gmra.mxu0 %v4400
        %v4480 = vpop.f32.mrf.mxu0
        %v4481 = vadd.f32 0.0, %v4480
        %4482 = vmatmul.f32.gmra.mxu0 %v4401
        %v4483 = vpop.f32.mrf.mxu0
        %v4484 = vadd.f32 0.0, %v4483
        %4485 = vmatmul.f32.gmra.mxu0 %v4402
        %v4486 = vpop.f32.mrf.mxu0
        %v4487 = vadd.f32 0.0, %v4486
        %4488 = vmatmul.f32.gmra.mxu0 %v4403
        %v4489 = vpop.f32.mrf.mxu0
        %v4490 = vadd.f32 0.0, %v4489
        %4491 = vmatmul.f32.gmra.mxu0 %v4404
        %v4492 = vpop.f32.mrf.mxu0
        %v4493 = vadd.f32 0.0, %v4492
        %4494 = vmatmul.f32.gmra.mxu0 %v4405
        %v4495 = vpop.f32.mrf.mxu0
        %v4496 = vadd.f32 0.0, %v4495
        %4497 = vmatmul.f32.gmra.mxu0 %v4406
        %v4498 = vpop.f32.mrf.mxu0
        %v4499 = vadd.f32 0.0, %v4498
        %4500 = vmatmul.f32.gmra.mxu0 %v4407
        %v4501 = vpop.f32.mrf.mxu0
        %v4502 = vadd.f32 0.0, %v4501
        %4503 = vmatmul.f32.gmra.mxu0 %v4408
        %v4504 = vpop.f32.mrf.mxu0
        %v4505 = vadd.f32 0.0, %v4504
        %4506 = vmatmul.f32.gmra.mxu0 %v4409
        %v4507 = vpop.f32.mrf.mxu0
        %v4508 = vadd.f32 0.0, %v4507
        %4509 = vmatmul.f32.gmra.mxu0 %v4410
        %v4510 = vpop.f32.mrf.mxu0
        %v4511 = vadd.f32 0.0, %v4510
        %4512 = vmatmul.f32.gmra.mxu0 %v4411
        %v4513 = vpop.f32.mrf.mxu0
        %v4514 = vadd.f32 0.0, %v4513
        %4515 = vmatmul.f32.gmra.mxu0 %v4412
        %v4516 = vpop.f32.mrf.mxu0
        %v4517 = vadd.f32 0.0, %v4516
        %4518 = vmatmul.f32.gmra.mxu0 %v4413
        %v4519 = vpop.f32.mrf.mxu0
        %v4520 = vadd.f32 0.0, %v4519
        %4521 = vmatmul.f32.gmra.mxu0 %v4414
        %v4522 = vpop.f32.mrf.mxu0
        %v4523 = vadd.f32 0.0, %v4522
        %4524 = vmatmul.f32.gmra.mxu0 %v4415
        %v4525 = vpop.f32.mrf.mxu0
        %v4526 = vadd.f32 0.0, %v4525
        %4527 = vmatmul.f32.gmra.mxu0 %v4416
        %v4528 = vpop.f32.mrf.mxu0
        %v4529 = vadd.f32 0.0, %v4528
        %4530 = vmatmul.f32.gmra.mxu0 %v4417
        %v4531 = vpop.f32.mrf.mxu0
        %v4532 = vadd.f32 0.0, %v4531
        %4533 = vmatmul.f32.gmra.mxu0 %v4418
        %v4534 = vpop.f32.mrf.mxu0
        %v4535 = vadd.f32 0.0, %v4534
        %4536 = vmatmul.f32.gmra.mxu0 %v4419
        %v4537 = vpop.f32.mrf.mxu0
        %v4538 = vadd.f32 0.0, %v4537
        %4539 = vmatmul.f32.gmra.mxu0 %v4420
        %v4540 = vpop.f32.mrf.mxu0
        %v4541 = vadd.f32 0.0, %v4540
        %4542 = vmatmul.f32.gmra.mxu0 %v4421
        %v4543 = vpop.f32.mrf.mxu0
        %v4544 = vadd.f32 0.0, %v4543
        %4545 = vmatmul.f32.gmra.mxu0 %v4422
        %v4546 = vpop.f32.mrf.mxu0
        %v4547 = vadd.f32 0.0, %v4546
        %4548 = vmatmul.f32.gmra.mxu0 %v4423
        %v4549 = vpop.f32.mrf.mxu0
        %v4550 = vadd.f32 0.0, %v4549
        %4551 = vmatmul.f32.gmra.mxu0 %v4424
        %v4552 = vpop.f32.mrf.mxu0
        %v4553 = vadd.f32 0.0, %v4552
        %4554 = vmatmul.f32.gmra.mxu0 %v4425
        %v4555 = vpop.f32.mrf.mxu0
        %v4556 = vadd.f32 0.0, %v4555
        %4557 = vmatmul.f32.gmra.mxu0 %v4426
        %v4558 = vpop.f32.mrf.mxu0
        %v4559 = vadd.f32 0.0, %v4558
        %4560 = vmatmul.f32.gmra.mxu0 %v4427
        %v4561 = vpop.f32.mrf.mxu0
        %v4562 = vadd.f32 0.0, %v4561
        %4563 = vmatmul.f32.gmra.mxu0 %v4428
        %v4564 = vpop.f32.mrf.mxu0
        %v4565 = vadd.f32 0.0, %v4564
        %4566 = vmatmul.f32.gmra.mxu0 %v4429
        %v4567 = vpop.f32.mrf.mxu0
        %v4568 = vadd.f32 0.0, %v4567
        %4569 = vmatmul.f32.gmra.mxu0 %v4430
        %v4570 = vpop.f32.mrf.mxu0
        %v4571 = vadd.f32 0.0, %v4570
        %4572 = vdwg.mxu0
        %v4573 = vadd.f32 %v4359, %v4466
        %v4574 = vadd.f32 %v4360, %v4469
        %v4575 = vadd.f32 %v4361, %v4472
        %v4576 = vadd.f32 %v4362, %v4475
        %v4577 = vadd.f32 %v4363, %v4478
        %v4578 = vadd.f32 %v4364, %v4481
        %v4579 = vadd.f32 %v4365, %v4484
        %v4580 = vadd.f32 %v4366, %v4487
        %v4581 = vadd.f32 %v4367, %v4490
        %v4582 = vadd.f32 %v4368, %v4493
        %v4583 = vadd.f32 %v4369, %v4496
        %v4584 = vadd.f32 %v4370, %v4499
        %v4585 = vadd.f32 %v4371, %v4502
        %v4586 = vadd.f32 %v4372, %v4505
        %v4587 = vadd.f32 %v4373, %v4508
        %v4588 = vadd.f32 %v4374, %v4511
        %v4589 = vadd.f32 %v4375, %v4514
        %v4590 = vadd.f32 %v4376, %v4517
        %v4591 = vadd.f32 %v4377, %v4520
        %v4592 = vadd.f32 %v4378, %v4523
        %v4593 = vadd.f32 %v4379, %v4526
        %v4594 = vadd.f32 %v4380, %v4529
        %v4595 = vadd.f32 %v4381, %v4532
        %v4596 = vadd.f32 %v4382, %v4535
        %v4597 = vadd.f32 %v4383, %v4538
        %v4598 = vadd.f32 %v4384, %v4541
        %v4599 = vadd.f32 %v4385, %v4544
        %v4600 = vadd.f32 %v4386, %v4547
        %v4601 = vadd.f32 %v4387, %v4550
        %v4602 = vadd.f32 %v4388, %v4553
        %v4603 = vadd.f32 %v4389, %v4556
        %v4604 = vadd.f32 %v4390, %v4559
        %v4605 = vadd.f32 %v4391, %v4562
        %v4606 = vadd.f32 %v4392, %v4565
        %v4607 = vadd.f32 %v4393, %v4568
        %v4608 = vadd.f32 %v4394, %v4571
        %v4609 = vld [vmem:[#allocation2 + $0x30] sm:$0xff]
        %v4610 = vld [vmem:[#allocation2 + $0x38] sm:$0xff]
        %v4611 = vld [vmem:[#allocation2 + $0x40] sm:$0xff]
        %v4612 = vld [vmem:[#allocation2 + $0x48] sm:$0xff]
        %v4613 = vld [vmem:[#allocation2 + $0x50] sm:$0xff]
        %v4614 = vld [vmem:[#allocation2 + $0x58] sm:$0xff]
        %v4615 = vld [vmem:[#allocation2 + $0x60] sm:$0xff]
        %v4616 = vld [vmem:[#allocation2 + $0x68] sm:$0xff]
        %v4617 = vld [vmem:[#allocation2 + $0x70] sm:$0xff]
        %v4618 = vld [vmem:[#allocation2 + $0x78] sm:$0xff]
        %v4619 = vld [vmem:[#allocation2 + $0x80] sm:$0xff]
        %v4620 = vld [vmem:[#allocation2 + $0x88] sm:$0xff]
        %v4621 = vld [vmem:[#allocation2 + $0x90] sm:$0xff]
        %v4622 = vld [vmem:[#allocation2 + $0x98] sm:$0xff]
        %v4623 = vld [vmem:[#allocation2 + $0xa0] sm:$0xff]
        %v4624 = vld [vmem:[#allocation2 + $0xa8] sm:$0xff]
        %v4625 = vld [vmem:[#allocation2 + $0xb0] sm:$0xff]
        %v4626 = vld [vmem:[#allocation2 + $0xb8] sm:$0xff]
        %v4627 = vld [vmem:[#allocation2 + $0xc0] sm:$0xff]
        %v4628 = vld [vmem:[#allocation2 + $0xc8] sm:$0xff]
        %v4629 = vld [vmem:[#allocation2 + $0xd0] sm:$0xff]
        %v4630 = vld [vmem:[#allocation2 + $0xd8] sm:$0xff]
        %v4631 = vld [vmem:[#allocation2 + $0xe0] sm:$0xff]
        %v4632 = vld [vmem:[#allocation2 + $0xe8] sm:$0xff]
        %v4633 = vld [vmem:[#allocation2 + $0xf0] sm:$0xff]
        %v4634 = vld [vmem:[#allocation2 + $0xf8] sm:$0xff]
        %v4635 = vld [vmem:[#allocation2 + $0x100] sm:$0xff]
        %v4636 = vld [vmem:[#allocation2 + $0x108] sm:$0xff]
        %v4637 = vld [vmem:[#allocation2 + $0x110] sm:$0xff]
        %v4638 = vld [vmem:[#allocation2 + $0x118] sm:$0xff]
        %v4639 = vld [vmem:[#allocation2 + $0x120] sm:$0xff]
        %v4640 = vld [vmem:[#allocation2 + $0x128] sm:$0xff]
        %v4641 = vld [vmem:[#allocation2 + $0x130] sm:$0xff]
        %v4642 = vld [vmem:[#allocation2 + $0x138] sm:$0xff]
        %v4643 = vld [vmem:[#allocation2 + $0x140] sm:$0xff]
        %v4644 = vld [vmem:[#allocation2 + $0x148] sm:$0xff]
        %s4645 = scalar_lea.vmem [#allocation8], 512
        %v4646 = vld [vmem:[%s4645] sm:$0xff]
        %v4647 = vld [vmem:[%s4645 + $0x8] sm:$0xff]
        %v4648 = vld [vmem:[%s4645 + $0x10] sm:$0xff]
        %v4649 = vld [vmem:[%s4645 + $0x18] sm:$0xff]
        %v4650 = vld [vmem:[%s4645 + $0x20] sm:$0xff]
        %v4651 = vld [vmem:[%s4645 + $0x28] sm:$0xff]
        %v4652 = vld [vmem:[%s4645 + $0x30] sm:$0xff]
        %v4653 = vld [vmem:[%s4645 + $0x38] sm:$0xff]
        %v4654 = vld [vmem:[%s4645 + $0x40] sm:$0xff]
        %v4655 = vld [vmem:[%s4645 + $0x48] sm:$0xff]
        %v4656 = vld [vmem:[%s4645 + $0x50] sm:$0xff]
        %v4657 = vld [vmem:[%s4645 + $0x58] sm:$0xff]
        %v4658 = vld [vmem:[%s4645 + $0x60] sm:$0xff]
        %v4659 = vld [vmem:[%s4645 + $0x68] sm:$0xff]
        %v4660 = vld [vmem:[%s4645 + $0x70] sm:$0xff]
        %v4661 = vld [vmem:[%s4645 + $0x78] sm:$0xff]
        %4662 = vmatpush.msra.mxu0 %v4661
        %4663 = vmatpush.msra.mxu0 %v4660
        %4664 = vmatpush.msra.mxu0 %v4659
        %4665 = vmatpush.msra.mxu0 %v4658
        %4666 = vmatpush.msra.mxu0 %v4657
        %4667 = vmatpush.msra.mxu0 %v4656
        %4668 = vmatpush.msra.mxu0 %v4655
        %4669 = vmatpush.msra.mxu0 %v4654
        %4670 = vmatpush.msra.mxu0 %v4653
        %4671 = vmatpush.msra.mxu0 %v4652
        %4672 = vmatpush.msra.mxu0 %v4651
        %4673 = vmatpush.msra.mxu0 %v4650
        %4674 = vmatpush.msra.mxu0 %v4649
        %4675 = vmatpush.msra.mxu0 %v4648
        %4676 = vmatpush.msra.mxu0 %v4647
        %4677 = vmatpush.msra.mxu0 %v4646
        %4678 = vmatmul.f32.gmra.mxu0 %v4609
        %v4679 = vpop.f32.mrf.mxu0
        %v4680 = vadd.f32 0.0, %v4679
        %4681 = vmatmul.f32.gmra.mxu0 %v4610
        %v4682 = vpop.f32.mrf.mxu0
        %v4683 = vadd.f32 0.0, %v4682
        %4684 = vmatmul.f32.gmra.mxu0 %v4611
        %v4685 = vpop.f32.mrf.mxu0
        %v4686 = vadd.f32 0.0, %v4685
        %4687 = vmatmul.f32.gmra.mxu0 %v4612
        %v4688 = vpop.f32.mrf.mxu0
        %v4689 = vadd.f32 0.0, %v4688
        %4690 = vmatmul.f32.gmra.mxu0 %v4613
        %v4691 = vpop.f32.mrf.mxu0
        %v4692 = vadd.f32 0.0, %v4691
        %4693 = vmatmul.f32.gmra.mxu0 %v4614
        %v4694 = vpop.f32.mrf.mxu0
        %v4695 = vadd.f32 0.0, %v4694
        %4696 = vmatmul.f32.gmra.mxu0 %v4615
        %v4697 = vpop.f32.mrf.mxu0
        %v4698 = vadd.f32 0.0, %v4697
        %4699 = vmatmul.f32.gmra.mxu0 %v4616
        %v4700 = vpop.f32.mrf.mxu0
        %v4701 = vadd.f32 0.0, %v4700
        %4702 = vmatmul.f32.gmra.mxu0 %v4617
        %v4703 = vpop.f32.mrf.mxu0
        %v4704 = vadd.f32 0.0, %v4703
        %4705 = vmatmul.f32.gmra.mxu0 %v4618
        %v4706 = vpop.f32.mrf.mxu0
        %v4707 = vadd.f32 0.0, %v4706
        %4708 = vmatmul.f32.gmra.mxu0 %v4619
        %v4709 = vpop.f32.mrf.mxu0
        %v4710 = vadd.f32 0.0, %v4709
        %4711 = vmatmul.f32.gmra.mxu0 %v4620
        %v4712 = vpop.f32.mrf.mxu0
        %v4713 = vadd.f32 0.0, %v4712
        %4714 = vmatmul.f32.gmra.mxu0 %v4621
        %v4715 = vpop.f32.mrf.mxu0
        %v4716 = vadd.f32 0.0, %v4715
        %4717 = vmatmul.f32.gmra.mxu0 %v4622
        %v4718 = vpop.f32.mrf.mxu0
        %v4719 = vadd.f32 0.0, %v4718
        %4720 = vmatmul.f32.gmra.mxu0 %v4623
        %v4721 = vpop.f32.mrf.mxu0
        %v4722 = vadd.f32 0.0, %v4721
        %4723 = vmatmul.f32.gmra.mxu0 %v4624
        %v4724 = vpop.f32.mrf.mxu0
        %v4725 = vadd.f32 0.0, %v4724
        %4726 = vmatmul.f32.gmra.mxu0 %v4625
        %v4727 = vpop.f32.mrf.mxu0
        %v4728 = vadd.f32 0.0, %v4727
        %4729 = vmatmul.f32.gmra.mxu0 %v4626
        %v4730 = vpop.f32.mrf.mxu0
        %v4731 = vadd.f32 0.0, %v4730
        %4732 = vmatmul.f32.gmra.mxu0 %v4627
        %v4733 = vpop.f32.mrf.mxu0
        %v4734 = vadd.f32 0.0, %v4733
        %4735 = vmatmul.f32.gmra.mxu0 %v4628
        %v4736 = vpop.f32.mrf.mxu0
        %v4737 = vadd.f32 0.0, %v4736
        %4738 = vmatmul.f32.gmra.mxu0 %v4629
        %v4739 = vpop.f32.mrf.mxu0
        %v4740 = vadd.f32 0.0, %v4739
        %4741 = vmatmul.f32.gmra.mxu0 %v4630
        %v4742 = vpop.f32.mrf.mxu0
        %v4743 = vadd.f32 0.0, %v4742
        %4744 = vmatmul.f32.gmra.mxu0 %v4631
        %v4745 = vpop.f32.mrf.mxu0
        %v4746 = vadd.f32 0.0, %v4745
        %4747 = vmatmul.f32.gmra.mxu0 %v4632
        %v4748 = vpop.f32.mrf.mxu0
        %v4749 = vadd.f32 0.0, %v4748
        %4750 = vmatmul.f32.gmra.mxu0 %v4633
        %v4751 = vpop.f32.mrf.mxu0
        %v4752 = vadd.f32 0.0, %v4751
        %4753 = vmatmul.f32.gmra.mxu0 %v4634
        %v4754 = vpop.f32.mrf.mxu0
        %v4755 = vadd.f32 0.0, %v4754
        %4756 = vmatmul.f32.gmra.mxu0 %v4635
        %v4757 = vpop.f32.mrf.mxu0
        %v4758 = vadd.f32 0.0, %v4757
        %4759 = vmatmul.f32.gmra.mxu0 %v4636
        %v4760 = vpop.f32.mrf.mxu0
        %v4761 = vadd.f32 0.0, %v4760
        %4762 = vmatmul.f32.gmra.mxu0 %v4637
        %v4763 = vpop.f32.mrf.mxu0
        %v4764 = vadd.f32 0.0, %v4763
        %4765 = vmatmul.f32.gmra.mxu0 %v4638
        %v4766 = vpop.f32.mrf.mxu0
        %v4767 = vadd.f32 0.0, %v4766
        %4768 = vmatmul.f32.gmra.mxu0 %v4639
        %v4769 = vpop.f32.mrf.mxu0
        %v4770 = vadd.f32 0.0, %v4769
        %4771 = vmatmul.f32.gmra.mxu0 %v4640
        %v4772 = vpop.f32.mrf.mxu0
        %v4773 = vadd.f32 0.0, %v4772
        %4774 = vmatmul.f32.gmra.mxu0 %v4641
        %v4775 = vpop.f32.mrf.mxu0
        %v4776 = vadd.f32 0.0, %v4775
        %4777 = vmatmul.f32.gmra.mxu0 %v4642
        %v4778 = vpop.f32.mrf.mxu0
        %v4779 = vadd.f32 0.0, %v4778
        %4780 = vmatmul.f32.gmra.mxu0 %v4643
        %v4781 = vpop.f32.mrf.mxu0
        %v4782 = vadd.f32 0.0, %v4781
        %4783 = vmatmul.f32.gmra.mxu0 %v4644
        %v4784 = vpop.f32.mrf.mxu0
        %v4785 = vadd.f32 0.0, %v4784
        %4786 = vdwg.mxu0
        %v4787 = vadd.f32 %v4573, %v4680
        %v4788 = vadd.f32 %v4574, %v4683
        %v4789 = vadd.f32 %v4575, %v4686
        %v4790 = vadd.f32 %v4576, %v4689
        %v4791 = vadd.f32 %v4577, %v4692
        %v4792 = vadd.f32 %v4578, %v4695
        %v4793 = vadd.f32 %v4579, %v4698
        %v4794 = vadd.f32 %v4580, %v4701
        %v4795 = vadd.f32 %v4581, %v4704
        %v4796 = vadd.f32 %v4582, %v4707
        %v4797 = vadd.f32 %v4583, %v4710
        %v4798 = vadd.f32 %v4584, %v4713
        %v4799 = vadd.f32 %v4585, %v4716
        %v4800 = vadd.f32 %v4586, %v4719
        %v4801 = vadd.f32 %v4587, %v4722
        %v4802 = vadd.f32 %v4588, %v4725
        %v4803 = vadd.f32 %v4589, %v4728
        %v4804 = vadd.f32 %v4590, %v4731
        %v4805 = vadd.f32 %v4591, %v4734
        %v4806 = vadd.f32 %v4592, %v4737
        %v4807 = vadd.f32 %v4593, %v4740
        %v4808 = vadd.f32 %v4594, %v4743
        %v4809 = vadd.f32 %v4595, %v4746
        %v4810 = vadd.f32 %v4596, %v4749
        %v4811 = vadd.f32 %v4597, %v4752
        %v4812 = vadd.f32 %v4598, %v4755
        %v4813 = vadd.f32 %v4599, %v4758
        %v4814 = vadd.f32 %v4600, %v4761
        %v4815 = vadd.f32 %v4601, %v4764
        %v4816 = vadd.f32 %v4602, %v4767
        %v4817 = vadd.f32 %v4603, %v4770
        %v4818 = vadd.f32 %v4604, %v4773
        %v4819 = vadd.f32 %v4605, %v4776
        %v4820 = vadd.f32 %v4606, %v4779
        %v4821 = vadd.f32 %v4607, %v4782
        %v4822 = vadd.f32 %v4608, %v4785
        %v4823 = vld [vmem:[#allocation2 + $0x31] sm:$0xff]
        %v4824 = vld [vmem:[#allocation2 + $0x39] sm:$0xff]
        %v4825 = vld [vmem:[#allocation2 + $0x41] sm:$0xff]
        %v4826 = vld [vmem:[#allocation2 + $0x49] sm:$0xff]
        %v4827 = vld [vmem:[#allocation2 + $0x51] sm:$0xff]
        %v4828 = vld [vmem:[#allocation2 + $0x59] sm:$0xff]
        %v4829 = vld [vmem:[#allocation2 + $0x61] sm:$0xff]
        %v4830 = vld [vmem:[#allocation2 + $0x69] sm:$0xff]
        %v4831 = vld [vmem:[#allocation2 + $0x71] sm:$0xff]
        %v4832 = vld [vmem:[#allocation2 + $0x79] sm:$0xff]
        %v4833 = vld [vmem:[#allocation2 + $0x81] sm:$0xff]
        %v4834 = vld [vmem:[#allocation2 + $0x89] sm:$0xff]
        %v4835 = vld [vmem:[#allocation2 + $0x91] sm:$0xff]
        %v4836 = vld [vmem:[#allocation2 + $0x99] sm:$0xff]
        %v4837 = vld [vmem:[#allocation2 + $0xa1] sm:$0xff]
        %v4838 = vld [vmem:[#allocation2 + $0xa9] sm:$0xff]
        %v4839 = vld [vmem:[#allocation2 + $0xb1] sm:$0xff]
        %v4840 = vld [vmem:[#allocation2 + $0xb9] sm:$0xff]
        %v4841 = vld [vmem:[#allocation2 + $0xc1] sm:$0xff]
        %v4842 = vld [vmem:[#allocation2 + $0xc9] sm:$0xff]
        %v4843 = vld [vmem:[#allocation2 + $0xd1] sm:$0xff]
        %v4844 = vld [vmem:[#allocation2 + $0xd9] sm:$0xff]
        %v4845 = vld [vmem:[#allocation2 + $0xe1] sm:$0xff]
        %v4846 = vld [vmem:[#allocation2 + $0xe9] sm:$0xff]
        %v4847 = vld [vmem:[#allocation2 + $0xf1] sm:$0xff]
        %v4848 = vld [vmem:[#allocation2 + $0xf9] sm:$0xff]
        %v4849 = vld [vmem:[#allocation2 + $0x101] sm:$0xff]
        %v4850 = vld [vmem:[#allocation2 + $0x109] sm:$0xff]
        %v4851 = vld [vmem:[#allocation2 + $0x111] sm:$0xff]
        %v4852 = vld [vmem:[#allocation2 + $0x119] sm:$0xff]
        %v4853 = vld [vmem:[#allocation2 + $0x121] sm:$0xff]
        %v4854 = vld [vmem:[#allocation2 + $0x129] sm:$0xff]
        %v4855 = vld [vmem:[#allocation2 + $0x131] sm:$0xff]
        %v4856 = vld [vmem:[#allocation2 + $0x139] sm:$0xff]
        %v4857 = vld [vmem:[#allocation2 + $0x141] sm:$0xff]
        %v4858 = vld [vmem:[#allocation2 + $0x149] sm:$0xff]
        %s4859 = scalar_lea.vmem [#allocation8], 640
        %v4860 = vld [vmem:[%s4859] sm:$0xff]
        %v4861 = vld [vmem:[%s4859 + $0x8] sm:$0xff]
        %v4862 = vld [vmem:[%s4859 + $0x10] sm:$0xff]
        %v4863 = vld [vmem:[%s4859 + $0x18] sm:$0xff]
        %v4864 = vld [vmem:[%s4859 + $0x20] sm:$0xff]
        %v4865 = vld [vmem:[%s4859 + $0x28] sm:$0xff]
        %v4866 = vld [vmem:[%s4859 + $0x30] sm:$0xff]
        %v4867 = vld [vmem:[%s4859 + $0x38] sm:$0xff]
        %v4868 = vld [vmem:[%s4859 + $0x40] sm:$0xff]
        %v4869 = vld [vmem:[%s4859 + $0x48] sm:$0xff]
        %v4870 = vld [vmem:[%s4859 + $0x50] sm:$0xff]
        %v4871 = vld [vmem:[%s4859 + $0x58] sm:$0xff]
        %v4872 = vld [vmem:[%s4859 + $0x60] sm:$0xff]
        %v4873 = vld [vmem:[%s4859 + $0x68] sm:$0xff]
        %v4874 = vld [vmem:[%s4859 + $0x70] sm:$0xff]
        %v4875 = vld [vmem:[%s4859 + $0x78] sm:$0xff]
        %4876 = vmatpush.msra.mxu0 %v4875
        %4877 = vmatpush.msra.mxu0 %v4874
        %4878 = vmatpush.msra.mxu0 %v4873
        %4879 = vmatpush.msra.mxu0 %v4872
        %4880 = vmatpush.msra.mxu0 %v4871
        %4881 = vmatpush.msra.mxu0 %v4870
        %4882 = vmatpush.msra.mxu0 %v4869
        %4883 = vmatpush.msra.mxu0 %v4868
        %4884 = vmatpush.msra.mxu0 %v4867
        %4885 = vmatpush.msra.mxu0 %v4866
        %4886 = vmatpush.msra.mxu0 %v4865
        %4887 = vmatpush.msra.mxu0 %v4864
        %4888 = vmatpush.msra.mxu0 %v4863
        %4889 = vmatpush.msra.mxu0 %v4862
        %4890 = vmatpush.msra.mxu0 %v4861
        %4891 = vmatpush.msra.mxu0 %v4860
        %4892 = vmatmul.f32.gmra.mxu0 %v4823
        %v4893 = vpop.f32.mrf.mxu0
        %v4894 = vadd.f32 0.0, %v4893
        %4895 = vmatmul.f32.gmra.mxu0 %v4824
        %v4896 = vpop.f32.mrf.mxu0
        %v4897 = vadd.f32 0.0, %v4896
        %4898 = vmatmul.f32.gmra.mxu0 %v4825
        %v4899 = vpop.f32.mrf.mxu0
        %v4900 = vadd.f32 0.0, %v4899
        %4901 = vmatmul.f32.gmra.mxu0 %v4826
        %v4902 = vpop.f32.mrf.mxu0
        %v4903 = vadd.f32 0.0, %v4902
        %4904 = vmatmul.f32.gmra.mxu0 %v4827
        %v4905 = vpop.f32.mrf.mxu0
        %v4906 = vadd.f32 0.0, %v4905
        %4907 = vmatmul.f32.gmra.mxu0 %v4828
        %v4908 = vpop.f32.mrf.mxu0
        %v4909 = vadd.f32 0.0, %v4908
        %4910 = vmatmul.f32.gmra.mxu0 %v4829
        %v4911 = vpop.f32.mrf.mxu0
        %v4912 = vadd.f32 0.0, %v4911
        %4913 = vmatmul.f32.gmra.mxu0 %v4830
        %v4914 = vpop.f32.mrf.mxu0
        %v4915 = vadd.f32 0.0, %v4914
        %4916 = vmatmul.f32.gmra.mxu0 %v4831
        %v4917 = vpop.f32.mrf.mxu0
        %v4918 = vadd.f32 0.0, %v4917
        %4919 = vmatmul.f32.gmra.mxu0 %v4832
        %v4920 = vpop.f32.mrf.mxu0
        %v4921 = vadd.f32 0.0, %v4920
        %4922 = vmatmul.f32.gmra.mxu0 %v4833
        %v4923 = vpop.f32.mrf.mxu0
        %v4924 = vadd.f32 0.0, %v4923
        %4925 = vmatmul.f32.gmra.mxu0 %v4834
        %v4926 = vpop.f32.mrf.mxu0
        %v4927 = vadd.f32 0.0, %v4926
        %4928 = vmatmul.f32.gmra.mxu0 %v4835
        %v4929 = vpop.f32.mrf.mxu0
        %v4930 = vadd.f32 0.0, %v4929
        %4931 = vmatmul.f32.gmra.mxu0 %v4836
        %v4932 = vpop.f32.mrf.mxu0
        %v4933 = vadd.f32 0.0, %v4932
        %4934 = vmatmul.f32.gmra.mxu0 %v4837
        %v4935 = vpop.f32.mrf.mxu0
        %v4936 = vadd.f32 0.0, %v4935
        %4937 = vmatmul.f32.gmra.mxu0 %v4838
        %v4938 = vpop.f32.mrf.mxu0
        %v4939 = vadd.f32 0.0, %v4938
        %4940 = vmatmul.f32.gmra.mxu0 %v4839
        %v4941 = vpop.f32.mrf.mxu0
        %v4942 = vadd.f32 0.0, %v4941
        %4943 = vmatmul.f32.gmra.mxu0 %v4840
        %v4944 = vpop.f32.mrf.mxu0
        %v4945 = vadd.f32 0.0, %v4944
        %4946 = vmatmul.f32.gmra.mxu0 %v4841
        %v4947 = vpop.f32.mrf.mxu0
        %v4948 = vadd.f32 0.0, %v4947
        %4949 = vmatmul.f32.gmra.mxu0 %v4842
        %v4950 = vpop.f32.mrf.mxu0
        %v4951 = vadd.f32 0.0, %v4950
        %4952 = vmatmul.f32.gmra.mxu0 %v4843
        %v4953 = vpop.f32.mrf.mxu0
        %v4954 = vadd.f32 0.0, %v4953
        %4955 = vmatmul.f32.gmra.mxu0 %v4844
        %v4956 = vpop.f32.mrf.mxu0
        %v4957 = vadd.f32 0.0, %v4956
        %4958 = vmatmul.f32.gmra.mxu0 %v4845
        %v4959 = vpop.f32.mrf.mxu0
        %v4960 = vadd.f32 0.0, %v4959
        %4961 = vmatmul.f32.gmra.mxu0 %v4846
        %v4962 = vpop.f32.mrf.mxu0
        %v4963 = vadd.f32 0.0, %v4962
        %4964 = vmatmul.f32.gmra.mxu0 %v4847
        %v4965 = vpop.f32.mrf.mxu0
        %v4966 = vadd.f32 0.0, %v4965
        %4967 = vmatmul.f32.gmra.mxu0 %v4848
        %v4968 = vpop.f32.mrf.mxu0
        %v4969 = vadd.f32 0.0, %v4968
        %4970 = vmatmul.f32.gmra.mxu0 %v4849
        %v4971 = vpop.f32.mrf.mxu0
        %v4972 = vadd.f32 0.0, %v4971
        %4973 = vmatmul.f32.gmra.mxu0 %v4850
        %v4974 = vpop.f32.mrf.mxu0
        %v4975 = vadd.f32 0.0, %v4974
        %4976 = vmatmul.f32.gmra.mxu0 %v4851
        %v4977 = vpop.f32.mrf.mxu0
        %v4978 = vadd.f32 0.0, %v4977
        %4979 = vmatmul.f32.gmra.mxu0 %v4852
        %v4980 = vpop.f32.mrf.mxu0
        %v4981 = vadd.f32 0.0, %v4980
        %4982 = vmatmul.f32.gmra.mxu0 %v4853
        %v4983 = vpop.f32.mrf.mxu0
        %v4984 = vadd.f32 0.0, %v4983
        %4985 = vmatmul.f32.gmra.mxu0 %v4854
        %v4986 = vpop.f32.mrf.mxu0
        %v4987 = vadd.f32 0.0, %v4986
        %4988 = vmatmul.f32.gmra.mxu0 %v4855
        %v4989 = vpop.f32.mrf.mxu0
        %v4990 = vadd.f32 0.0, %v4989
        %4991 = vmatmul.f32.gmra.mxu0 %v4856
        %v4992 = vpop.f32.mrf.mxu0
        %v4993 = vadd.f32 0.0, %v4992
        %4994 = vmatmul.f32.gmra.mxu0 %v4857
        %v4995 = vpop.f32.mrf.mxu0
        %v4996 = vadd.f32 0.0, %v4995
        %4997 = vmatmul.f32.gmra.mxu0 %v4858
        %v4998 = vpop.f32.mrf.mxu0
        %v4999 = vadd.f32 0.0, %v4998
        %5000 = vdwg.mxu0
        %v5001 = vadd.f32 %v4787, %v4894
        %v5002 = vadd.f32 %v4788, %v4897
        %v5003 = vadd.f32 %v4789, %v4900
        %v5004 = vadd.f32 %v4790, %v4903
        %v5005 = vadd.f32 %v4791, %v4906
        %v5006 = vadd.f32 %v4792, %v4909
        %v5007 = vadd.f32 %v4793, %v4912
        %v5008 = vadd.f32 %v4794, %v4915
        %v5009 = vadd.f32 %v4795, %v4918
        %v5010 = vadd.f32 %v4796, %v4921
        %v5011 = vadd.f32 %v4797, %v4924
        %v5012 = vadd.f32 %v4798, %v4927
        %v5013 = vadd.f32 %v4799, %v4930
        %v5014 = vadd.f32 %v4800, %v4933
        %v5015 = vadd.f32 %v4801, %v4936
        %v5016 = vadd.f32 %v4802, %v4939
        %v5017 = vadd.f32 %v4803, %v4942
        %v5018 = vadd.f32 %v4804, %v4945
        %v5019 = vadd.f32 %v4805, %v4948
        %v5020 = vadd.f32 %v4806, %v4951
        %v5021 = vadd.f32 %v4807, %v4954
        %v5022 = vadd.f32 %v4808, %v4957
        %v5023 = vadd.f32 %v4809, %v4960
        %v5024 = vadd.f32 %v4810, %v4963
        %v5025 = vadd.f32 %v4811, %v4966
        %v5026 = vadd.f32 %v4812, %v4969
        %v5027 = vadd.f32 %v4813, %v4972
        %v5028 = vadd.f32 %v4814, %v4975
        %v5029 = vadd.f32 %v4815, %v4978
        %v5030 = vadd.f32 %v4816, %v4981
        %v5031 = vadd.f32 %v4817, %v4984
        %v5032 = vadd.f32 %v4818, %v4987
        %v5033 = vadd.f32 %v4819, %v4990
        %v5034 = vadd.f32 %v4820, %v4993
        %v5035 = vadd.f32 %v4821, %v4996
        %v5036 = vadd.f32 %v4822, %v4999
        %v5037 = vld [vmem:[#allocation2 + $0x41] sm:$0xff]
        %v5038 = vld [vmem:[#allocation2 + $0x49] sm:$0xff]
        %v5039 = vld [vmem:[#allocation2 + $0x51] sm:$0xff]
        %v5040 = vld [vmem:[#allocation2 + $0x59] sm:$0xff]
        %v5041 = vld [vmem:[#allocation2 + $0x61] sm:$0xff]
        %v5042 = vld [vmem:[#allocation2 + $0x69] sm:$0xff]
        %v5043 = vld [vmem:[#allocation2 + $0x71] sm:$0xff]
        %v5044 = vld [vmem:[#allocation2 + $0x79] sm:$0xff]
        %v5045 = vld [vmem:[#allocation2 + $0x81] sm:$0xff]
        %v5046 = vld [vmem:[#allocation2 + $0x89] sm:$0xff]
        %v5047 = vld [vmem:[#allocation2 + $0x91] sm:$0xff]
        %v5048 = vld [vmem:[#allocation2 + $0x99] sm:$0xff]
        %v5049 = vld [vmem:[#allocation2 + $0xa1] sm:$0xff]
        %v5050 = vld [vmem:[#allocation2 + $0xa9] sm:$0xff]
        %v5051 = vld [vmem:[#allocation2 + $0xb1] sm:$0xff]
        %v5052 = vld [vmem:[#allocation2 + $0xb9] sm:$0xff]
        %v5053 = vld [vmem:[#allocation2 + $0xc1] sm:$0xff]
        %v5054 = vld [vmem:[#allocation2 + $0xc9] sm:$0xff]
        %v5055 = vld [vmem:[#allocation2 + $0xd1] sm:$0xff]
        %v5056 = vld [vmem:[#allocation2 + $0xd9] sm:$0xff]
        %v5057 = vld [vmem:[#allocation2 + $0xe1] sm:$0xff]
        %v5058 = vld [vmem:[#allocation2 + $0xe9] sm:$0xff]
        %v5059 = vld [vmem:[#allocation2 + $0xf1] sm:$0xff]
        %v5060 = vld [vmem:[#allocation2 + $0xf9] sm:$0xff]
        %v5061 = vld [vmem:[#allocation2 + $0x101] sm:$0xff]
        %v5062 = vld [vmem:[#allocation2 + $0x109] sm:$0xff]
        %v5063 = vld [vmem:[#allocation2 + $0x111] sm:$0xff]
        %v5064 = vld [vmem:[#allocation2 + $0x119] sm:$0xff]
        %v5065 = vld [vmem:[#allocation2 + $0x121] sm:$0xff]
        %v5066 = vld [vmem:[#allocation2 + $0x129] sm:$0xff]
        %v5067 = vld [vmem:[#allocation2 + $0x131] sm:$0xff]
        %v5068 = vld [vmem:[#allocation2 + $0x139] sm:$0xff]
        %v5069 = vld [vmem:[#allocation2 + $0x141] sm:$0xff]
        %v5070 = vld [vmem:[#allocation2 + $0x149] sm:$0xff]
        %v5071 = vld [vmem:[#allocation2 + $0x151] sm:$0xff]
        %v5072 = vld [vmem:[#allocation2 + $0x159] sm:$0xff]
        %s5073 = scalar_lea.vmem [#allocation8], 768
        %v5074 = vld [vmem:[%s5073] sm:$0xff]
        %v5075 = vld [vmem:[%s5073 + $0x8] sm:$0xff]
        %v5076 = vld [vmem:[%s5073 + $0x10] sm:$0xff]
        %v5077 = vld [vmem:[%s5073 + $0x18] sm:$0xff]
        %v5078 = vld [vmem:[%s5073 + $0x20] sm:$0xff]
        %v5079 = vld [vmem:[%s5073 + $0x28] sm:$0xff]
        %v5080 = vld [vmem:[%s5073 + $0x30] sm:$0xff]
        %v5081 = vld [vmem:[%s5073 + $0x38] sm:$0xff]
        %v5082 = vld [vmem:[%s5073 + $0x40] sm:$0xff]
        %v5083 = vld [vmem:[%s5073 + $0x48] sm:$0xff]
        %v5084 = vld [vmem:[%s5073 + $0x50] sm:$0xff]
        %v5085 = vld [vmem:[%s5073 + $0x58] sm:$0xff]
        %v5086 = vld [vmem:[%s5073 + $0x60] sm:$0xff]
        %v5087 = vld [vmem:[%s5073 + $0x68] sm:$0xff]
        %v5088 = vld [vmem:[%s5073 + $0x70] sm:$0xff]
        %v5089 = vld [vmem:[%s5073 + $0x78] sm:$0xff]
        %5090 = vmatpush.msra.mxu0 %v5089
        %5091 = vmatpush.msra.mxu0 %v5088
        %5092 = vmatpush.msra.mxu0 %v5087
        %5093 = vmatpush.msra.mxu0 %v5086
        %5094 = vmatpush.msra.mxu0 %v5085
        %5095 = vmatpush.msra.mxu0 %v5084
        %5096 = vmatpush.msra.mxu0 %v5083
        %5097 = vmatpush.msra.mxu0 %v5082
        %5098 = vmatpush.msra.mxu0 %v5081
        %5099 = vmatpush.msra.mxu0 %v5080
        %5100 = vmatpush.msra.mxu0 %v5079
        %5101 = vmatpush.msra.mxu0 %v5078
        %5102 = vmatpush.msra.mxu0 %v5077
        %5103 = vmatpush.msra.mxu0 %v5076
        %5104 = vmatpush.msra.mxu0 %v5075
        %5105 = vmatpush.msra.mxu0 %v5074
        %5106 = vmatmul.f32.gmra.mxu0 %v5037
        %v5107 = vpop.f32.mrf.mxu0
        %v5108 = vadd.f32 0.0, %v5107
        %5109 = vmatmul.f32.gmra.mxu0 %v5038
        %v5110 = vpop.f32.mrf.mxu0
        %v5111 = vadd.f32 0.0, %v5110
        %5112 = vmatmul.f32.gmra.mxu0 %v5039
        %v5113 = vpop.f32.mrf.mxu0
        %v5114 = vadd.f32 0.0, %v5113
        %5115 = vmatmul.f32.gmra.mxu0 %v5040
        %v5116 = vpop.f32.mrf.mxu0
        %v5117 = vadd.f32 0.0, %v5116
        %5118 = vmatmul.f32.gmra.mxu0 %v5041
        %v5119 = vpop.f32.mrf.mxu0
        %v5120 = vadd.f32 0.0, %v5119
        %5121 = vmatmul.f32.gmra.mxu0 %v5042
        %v5122 = vpop.f32.mrf.mxu0
        %v5123 = vadd.f32 0.0, %v5122
        %5124 = vmatmul.f32.gmra.mxu0 %v5043
        %v5125 = vpop.f32.mrf.mxu0
        %v5126 = vadd.f32 0.0, %v5125
        %5127 = vmatmul.f32.gmra.mxu0 %v5044
        %v5128 = vpop.f32.mrf.mxu0
        %v5129 = vadd.f32 0.0, %v5128
        %5130 = vmatmul.f32.gmra.mxu0 %v5045
        %v5131 = vpop.f32.mrf.mxu0
        %v5132 = vadd.f32 0.0, %v5131
        %5133 = vmatmul.f32.gmra.mxu0 %v5046
        %v5134 = vpop.f32.mrf.mxu0
        %v5135 = vadd.f32 0.0, %v5134
        %5136 = vmatmul.f32.gmra.mxu0 %v5047
        %v5137 = vpop.f32.mrf.mxu0
        %v5138 = vadd.f32 0.0, %v5137
        %5139 = vmatmul.f32.gmra.mxu0 %v5048
        %v5140 = vpop.f32.mrf.mxu0
        %v5141 = vadd.f32 0.0, %v5140
        %5142 = vmatmul.f32.gmra.mxu0 %v5049
        %v5143 = vpop.f32.mrf.mxu0
        %v5144 = vadd.f32 0.0, %v5143
        %5145 = vmatmul.f32.gmra.mxu0 %v5050
        %v5146 = vpop.f32.mrf.mxu0
        %v5147 = vadd.f32 0.0, %v5146
        %5148 = vmatmul.f32.gmra.mxu0 %v5051
        %v5149 = vpop.f32.mrf.mxu0
        %v5150 = vadd.f32 0.0, %v5149
        %5151 = vmatmul.f32.gmra.mxu0 %v5052
        %v5152 = vpop.f32.mrf.mxu0
        %v5153 = vadd.f32 0.0, %v5152
        %5154 = vmatmul.f32.gmra.mxu0 %v5053
        %v5155 = vpop.f32.mrf.mxu0
        %v5156 = vadd.f32 0.0, %v5155
        %5157 = vmatmul.f32.gmra.mxu0 %v5054
        %v5158 = vpop.f32.mrf.mxu0
        %v5159 = vadd.f32 0.0, %v5158
        %5160 = vmatmul.f32.gmra.mxu0 %v5055
        %v5161 = vpop.f32.mrf.mxu0
        %v5162 = vadd.f32 0.0, %v5161
        %5163 = vmatmul.f32.gmra.mxu0 %v5056
        %v5164 = vpop.f32.mrf.mxu0
        %v5165 = vadd.f32 0.0, %v5164
        %5166 = vmatmul.f32.gmra.mxu0 %v5057
        %v5167 = vpop.f32.mrf.mxu0
        %v5168 = vadd.f32 0.0, %v5167
        %5169 = vmatmul.f32.gmra.mxu0 %v5058
        %v5170 = vpop.f32.mrf.mxu0
        %v5171 = vadd.f32 0.0, %v5170
        %5172 = vmatmul.f32.gmra.mxu0 %v5059
        %v5173 = vpop.f32.mrf.mxu0
        %v5174 = vadd.f32 0.0, %v5173
        %5175 = vmatmul.f32.gmra.mxu0 %v5060
        %v5176 = vpop.f32.mrf.mxu0
        %v5177 = vadd.f32 0.0, %v5176
        %5178 = vmatmul.f32.gmra.mxu0 %v5061
        %v5179 = vpop.f32.mrf.mxu0
        %v5180 = vadd.f32 0.0, %v5179
        %5181 = vmatmul.f32.gmra.mxu0 %v5062
        %v5182 = vpop.f32.mrf.mxu0
        %v5183 = vadd.f32 0.0, %v5182
        %5184 = vmatmul.f32.gmra.mxu0 %v5063
        %v5185 = vpop.f32.mrf.mxu0
        %v5186 = vadd.f32 0.0, %v5185
        %5187 = vmatmul.f32.gmra.mxu0 %v5064
        %v5188 = vpop.f32.mrf.mxu0
        %v5189 = vadd.f32 0.0, %v5188
        %5190 = vmatmul.f32.gmra.mxu0 %v5065
        %v5191 = vpop.f32.mrf.mxu0
        %v5192 = vadd.f32 0.0, %v5191
        %5193 = vmatmul.f32.gmra.mxu0 %v5066
        %v5194 = vpop.f32.mrf.mxu0
        %v5195 = vadd.f32 0.0, %v5194
        %5196 = vmatmul.f32.gmra.mxu0 %v5067
        %v5197 = vpop.f32.mrf.mxu0
        %v5198 = vadd.f32 0.0, %v5197
        %5199 = vmatmul.f32.gmra.mxu0 %v5068
        %v5200 = vpop.f32.mrf.mxu0
        %v5201 = vadd.f32 0.0, %v5200
        %5202 = vmatmul.f32.gmra.mxu0 %v5069
        %v5203 = vpop.f32.mrf.mxu0
        %v5204 = vadd.f32 0.0, %v5203
        %5205 = vmatmul.f32.gmra.mxu0 %v5070
        %v5206 = vpop.f32.mrf.mxu0
        %v5207 = vadd.f32 0.0, %v5206
        %5208 = vmatmul.f32.gmra.mxu0 %v5071
        %v5209 = vpop.f32.mrf.mxu0
        %v5210 = vadd.f32 0.0, %v5209
        %5211 = vmatmul.f32.gmra.mxu0 %v5072
        %v5212 = vpop.f32.mrf.mxu0
        %v5213 = vadd.f32 0.0, %v5212
        %5214 = vdwg.mxu0
        %v5215 = vadd.f32 %v5001, %v5108
        %v5216 = vadd.f32 %v5002, %v5111
        %v5217 = vadd.f32 %v5003, %v5114
        %v5218 = vadd.f32 %v5004, %v5117
        %v5219 = vadd.f32 %v5005, %v5120
        %v5220 = vadd.f32 %v5006, %v5123
        %v5221 = vadd.f32 %v5007, %v5126
        %v5222 = vadd.f32 %v5008, %v5129
        %v5223 = vadd.f32 %v5009, %v5132
        %v5224 = vadd.f32 %v5010, %v5135
        %v5225 = vadd.f32 %v5011, %v5138
        %v5226 = vadd.f32 %v5012, %v5141
        %v5227 = vadd.f32 %v5013, %v5144
        %v5228 = vadd.f32 %v5014, %v5147
        %v5229 = vadd.f32 %v5015, %v5150
        %v5230 = vadd.f32 %v5016, %v5153
        %v5231 = vadd.f32 %v5017, %v5156
        %v5232 = vadd.f32 %v5018, %v5159
        %v5233 = vadd.f32 %v5019, %v5162
        %v5234 = vadd.f32 %v5020, %v5165
        %v5235 = vadd.f32 %v5021, %v5168
        %v5236 = vadd.f32 %v5022, %v5171
        %v5237 = vadd.f32 %v5023, %v5174
        %v5238 = vadd.f32 %v5024, %v5177
        %v5239 = vadd.f32 %v5025, %v5180
        %v5240 = vadd.f32 %v5026, %v5183
        %v5241 = vadd.f32 %v5027, %v5186
        %v5242 = vadd.f32 %v5028, %v5189
        %v5243 = vadd.f32 %v5029, %v5192
        %v5244 = vadd.f32 %v5030, %v5195
        %v5245 = vadd.f32 %v5031, %v5198
        %v5246 = vadd.f32 %v5032, %v5201
        %v5247 = vadd.f32 %v5033, %v5204
        %v5248 = vadd.f32 %v5034, %v5207
        %v5249 = vadd.f32 %v5035, %v5210
        %v5250 = vadd.f32 %v5036, %v5213
        %v5251 = vld [vmem:[#allocation2 + $0x42] sm:$0xff]
        %v5252 = vld [vmem:[#allocation2 + $0x4a] sm:$0xff]
        %v5253 = vld [vmem:[#allocation2 + $0x52] sm:$0xff]
        %v5254 = vld [vmem:[#allocation2 + $0x5a] sm:$0xff]
        %v5255 = vld [vmem:[#allocation2 + $0x62] sm:$0xff]
        %v5256 = vld [vmem:[#allocation2 + $0x6a] sm:$0xff]
        %v5257 = vld [vmem:[#allocation2 + $0x72] sm:$0xff]
        %v5258 = vld [vmem:[#allocation2 + $0x7a] sm:$0xff]
        %v5259 = vld [vmem:[#allocation2 + $0x82] sm:$0xff]
        %v5260 = vld [vmem:[#allocation2 + $0x8a] sm:$0xff]
        %v5261 = vld [vmem:[#allocation2 + $0x92] sm:$0xff]
        %v5262 = vld [vmem:[#allocation2 + $0x9a] sm:$0xff]
        %v5263 = vld [vmem:[#allocation2 + $0xa2] sm:$0xff]
        %v5264 = vld [vmem:[#allocation2 + $0xaa] sm:$0xff]
        %v5265 = vld [vmem:[#allocation2 + $0xb2] sm:$0xff]
        %v5266 = vld [vmem:[#allocation2 + $0xba] sm:$0xff]
        %v5267 = vld [vmem:[#allocation2 + $0xc2] sm:$0xff]
        %v5268 = vld [vmem:[#allocation2 + $0xca] sm:$0xff]
        %v5269 = vld [vmem:[#allocation2 + $0xd2] sm:$0xff]
        %v5270 = vld [vmem:[#allocation2 + $0xda] sm:$0xff]
        %v5271 = vld [vmem:[#allocation2 + $0xe2] sm:$0xff]
        %v5272 = vld [vmem:[#allocation2 + $0xea] sm:$0xff]
        %v5273 = vld [vmem:[#allocation2 + $0xf2] sm:$0xff]
        %v5274 = vld [vmem:[#allocation2 + $0xfa] sm:$0xff]
        %v5275 = vld [vmem:[#allocation2 + $0x102] sm:$0xff]
        %v5276 = vld [vmem:[#allocation2 + $0x10a] sm:$0xff]
        %v5277 = vld [vmem:[#allocation2 + $0x112] sm:$0xff]
        %v5278 = vld [vmem:[#allocation2 + $0x11a] sm:$0xff]
        %v5279 = vld [vmem:[#allocation2 + $0x122] sm:$0xff]
        %v5280 = vld [vmem:[#allocation2 + $0x12a] sm:$0xff]
        %v5281 = vld [vmem:[#allocation2 + $0x132] sm:$0xff]
        %v5282 = vld [vmem:[#allocation2 + $0x13a] sm:$0xff]
        %v5283 = vld [vmem:[#allocation2 + $0x142] sm:$0xff]
        %v5284 = vld [vmem:[#allocation2 + $0x14a] sm:$0xff]
        %v5285 = vld [vmem:[#allocation2 + $0x152] sm:$0xff]
        %v5286 = vld [vmem:[#allocation2 + $0x15a] sm:$0xff]
        %s5287 = scalar_lea.vmem [#allocation8], 896
        %v5288 = vld [vmem:[%s5287] sm:$0xff]
        %v5289 = vld [vmem:[%s5287 + $0x8] sm:$0xff]
        %v5290 = vld [vmem:[%s5287 + $0x10] sm:$0xff]
        %v5291 = vld [vmem:[%s5287 + $0x18] sm:$0xff]
        %v5292 = vld [vmem:[%s5287 + $0x20] sm:$0xff]
        %v5293 = vld [vmem:[%s5287 + $0x28] sm:$0xff]
        %v5294 = vld [vmem:[%s5287 + $0x30] sm:$0xff]
        %v5295 = vld [vmem:[%s5287 + $0x38] sm:$0xff]
        %v5296 = vld [vmem:[%s5287 + $0x40] sm:$0xff]
        %v5297 = vld [vmem:[%s5287 + $0x48] sm:$0xff]
        %v5298 = vld [vmem:[%s5287 + $0x50] sm:$0xff]
        %v5299 = vld [vmem:[%s5287 + $0x58] sm:$0xff]
        %v5300 = vld [vmem:[%s5287 + $0x60] sm:$0xff]
        %v5301 = vld [vmem:[%s5287 + $0x68] sm:$0xff]
        %v5302 = vld [vmem:[%s5287 + $0x70] sm:$0xff]
        %v5303 = vld [vmem:[%s5287 + $0x78] sm:$0xff]
        %5304 = vmatpush.msra.mxu0 %v5303
        %5305 = vmatpush.msra.mxu0 %v5302
        %5306 = vmatpush.msra.mxu0 %v5301
        %5307 = vmatpush.msra.mxu0 %v5300
        %5308 = vmatpush.msra.mxu0 %v5299
        %5309 = vmatpush.msra.mxu0 %v5298
        %5310 = vmatpush.msra.mxu0 %v5297
        %5311 = vmatpush.msra.mxu0 %v5296
        %5312 = vmatpush.msra.mxu0 %v5295
        %5313 = vmatpush.msra.mxu0 %v5294
        %5314 = vmatpush.msra.mxu0 %v5293
        %5315 = vmatpush.msra.mxu0 %v5292
        %5316 = vmatpush.msra.mxu0 %v5291
        %5317 = vmatpush.msra.mxu0 %v5290
        %5318 = vmatpush.msra.mxu0 %v5289
        %5319 = vmatpush.msra.mxu0 %v5288
        %5320 = vmatmul.f32.gmra.mxu0 %v5251
        %v5321 = vpop.f32.mrf.mxu0
        %v5322 = vadd.f32 0.0, %v5321
        %5323 = vmatmul.f32.gmra.mxu0 %v5252
        %v5324 = vpop.f32.mrf.mxu0
        %v5325 = vadd.f32 0.0, %v5324
        %5326 = vmatmul.f32.gmra.mxu0 %v5253
        %v5327 = vpop.f32.mrf.mxu0
        %v5328 = vadd.f32 0.0, %v5327
        %5329 = vmatmul.f32.gmra.mxu0 %v5254
        %v5330 = vpop.f32.mrf.mxu0
        %v5331 = vadd.f32 0.0, %v5330
        %5332 = vmatmul.f32.gmra.mxu0 %v5255
        %v5333 = vpop.f32.mrf.mxu0
        %v5334 = vadd.f32 0.0, %v5333
        %5335 = vmatmul.f32.gmra.mxu0 %v5256
        %v5336 = vpop.f32.mrf.mxu0
        %v5337 = vadd.f32 0.0, %v5336
        %5338 = vmatmul.f32.gmra.mxu0 %v5257
        %v5339 = vpop.f32.mrf.mxu0
        %v5340 = vadd.f32 0.0, %v5339
        %5341 = vmatmul.f32.gmra.mxu0 %v5258
        %v5342 = vpop.f32.mrf.mxu0
        %v5343 = vadd.f32 0.0, %v5342
        %5344 = vmatmul.f32.gmra.mxu0 %v5259
        %v5345 = vpop.f32.mrf.mxu0
        %v5346 = vadd.f32 0.0, %v5345
        %5347 = vmatmul.f32.gmra.mxu0 %v5260
        %v5348 = vpop.f32.mrf.mxu0
        %v5349 = vadd.f32 0.0, %v5348
        %5350 = vmatmul.f32.gmra.mxu0 %v5261
        %v5351 = vpop.f32.mrf.mxu0
        %v5352 = vadd.f32 0.0, %v5351
        %5353 = vmatmul.f32.gmra.mxu0 %v5262
        %v5354 = vpop.f32.mrf.mxu0
        %v5355 = vadd.f32 0.0, %v5354
        %5356 = vmatmul.f32.gmra.mxu0 %v5263
        %v5357 = vpop.f32.mrf.mxu0
        %v5358 = vadd.f32 0.0, %v5357
        %5359 = vmatmul.f32.gmra.mxu0 %v5264
        %v5360 = vpop.f32.mrf.mxu0
        %v5361 = vadd.f32 0.0, %v5360
        %5362 = vmatmul.f32.gmra.mxu0 %v5265
        %v5363 = vpop.f32.mrf.mxu0
        %v5364 = vadd.f32 0.0, %v5363
        %5365 = vmatmul.f32.gmra.mxu0 %v5266
        %v5366 = vpop.f32.mrf.mxu0
        %v5367 = vadd.f32 0.0, %v5366
        %5368 = vmatmul.f32.gmra.mxu0 %v5267
        %v5369 = vpop.f32.mrf.mxu0
        %v5370 = vadd.f32 0.0, %v5369
        %5371 = vmatmul.f32.gmra.mxu0 %v5268
        %v5372 = vpop.f32.mrf.mxu0
        %v5373 = vadd.f32 0.0, %v5372
        %5374 = vmatmul.f32.gmra.mxu0 %v5269
        %v5375 = vpop.f32.mrf.mxu0
        %v5376 = vadd.f32 0.0, %v5375
        %5377 = vmatmul.f32.gmra.mxu0 %v5270
        %v5378 = vpop.f32.mrf.mxu0
        %v5379 = vadd.f32 0.0, %v5378
        %5380 = vmatmul.f32.gmra.mxu0 %v5271
        %v5381 = vpop.f32.mrf.mxu0
        %v5382 = vadd.f32 0.0, %v5381
        %5383 = vmatmul.f32.gmra.mxu0 %v5272
        %v5384 = vpop.f32.mrf.mxu0
        %v5385 = vadd.f32 0.0, %v5384
        %5386 = vmatmul.f32.gmra.mxu0 %v5273
        %v5387 = vpop.f32.mrf.mxu0
        %v5388 = vadd.f32 0.0, %v5387
        %5389 = vmatmul.f32.gmra.mxu0 %v5274
        %v5390 = vpop.f32.mrf.mxu0
        %v5391 = vadd.f32 0.0, %v5390
        %5392 = vmatmul.f32.gmra.mxu0 %v5275
        %v5393 = vpop.f32.mrf.mxu0
        %v5394 = vadd.f32 0.0, %v5393
        %5395 = vmatmul.f32.gmra.mxu0 %v5276
        %v5396 = vpop.f32.mrf.mxu0
        %v5397 = vadd.f32 0.0, %v5396
        %5398 = vmatmul.f32.gmra.mxu0 %v5277
        %v5399 = vpop.f32.mrf.mxu0
        %v5400 = vadd.f32 0.0, %v5399
        %5401 = vmatmul.f32.gmra.mxu0 %v5278
        %v5402 = vpop.f32.mrf.mxu0
        %v5403 = vadd.f32 0.0, %v5402
        %5404 = vmatmul.f32.gmra.mxu0 %v5279
        %v5405 = vpop.f32.mrf.mxu0
        %v5406 = vadd.f32 0.0, %v5405
        %5407 = vmatmul.f32.gmra.mxu0 %v5280
        %v5408 = vpop.f32.mrf.mxu0
        %v5409 = vadd.f32 0.0, %v5408
        %5410 = vmatmul.f32.gmra.mxu0 %v5281
        %v5411 = vpop.f32.mrf.mxu0
        %v5412 = vadd.f32 0.0, %v5411
        %5413 = vmatmul.f32.gmra.mxu0 %v5282
        %v5414 = vpop.f32.mrf.mxu0
        %v5415 = vadd.f32 0.0, %v5414
        %5416 = vmatmul.f32.gmra.mxu0 %v5283
        %v5417 = vpop.f32.mrf.mxu0
        %v5418 = vadd.f32 0.0, %v5417
        %5419 = vmatmul.f32.gmra.mxu0 %v5284
        %v5420 = vpop.f32.mrf.mxu0
        %v5421 = vadd.f32 0.0, %v5420
        %5422 = vmatmul.f32.gmra.mxu0 %v5285
        %v5423 = vpop.f32.mrf.mxu0
        %v5424 = vadd.f32 0.0, %v5423
        %5425 = vmatmul.f32.gmra.mxu0 %v5286
        %v5426 = vpop.f32.mrf.mxu0
        %v5427 = vadd.f32 0.0, %v5426
        %5428 = vdwg.mxu0
        %v5429 = vadd.f32 %v5215, %v5322
        %v5430 = vadd.f32 %v5216, %v5325
        %v5431 = vadd.f32 %v5217, %v5328
        %v5432 = vadd.f32 %v5218, %v5331
        %v5433 = vadd.f32 %v5219, %v5334
        %v5434 = vadd.f32 %v5220, %v5337
        %v5435 = vadd.f32 %v5221, %v5340
        %v5436 = vadd.f32 %v5222, %v5343
        %v5437 = vadd.f32 %v5223, %v5346
        %v5438 = vadd.f32 %v5224, %v5349
        %v5439 = vadd.f32 %v5225, %v5352
        %v5440 = vadd.f32 %v5226, %v5355
        %v5441 = vadd.f32 %v5227, %v5358
        %v5442 = vadd.f32 %v5228, %v5361
        %v5443 = vadd.f32 %v5229, %v5364
        %v5444 = vadd.f32 %v5230, %v5367
        %v5445 = vadd.f32 %v5231, %v5370
        %v5446 = vadd.f32 %v5232, %v5373
        %v5447 = vadd.f32 %v5233, %v5376
        %v5448 = vadd.f32 %v5234, %v5379
        %v5449 = vadd.f32 %v5235, %v5382
        %v5450 = vadd.f32 %v5236, %v5385
        %v5451 = vadd.f32 %v5237, %v5388
        %v5452 = vadd.f32 %v5238, %v5391
        %v5453 = vadd.f32 %v5239, %v5394
        %v5454 = vadd.f32 %v5240, %v5397
        %v5455 = vadd.f32 %v5241, %v5400
        %v5456 = vadd.f32 %v5242, %v5403
        %v5457 = vadd.f32 %v5243, %v5406
        %v5458 = vadd.f32 %v5244, %v5409
        %v5459 = vadd.f32 %v5245, %v5412
        %v5460 = vadd.f32 %v5246, %v5415
        %v5461 = vadd.f32 %v5247, %v5418
        %v5462 = vadd.f32 %v5248, %v5421
        %v5463 = vadd.f32 %v5249, %v5424
        %v5464 = vadd.f32 %v5250, %v5427
        %v5465 = vld [vmem:[#allocation2 + $0x43] sm:$0xff]
        %v5466 = vld [vmem:[#allocation2 + $0x4b] sm:$0xff]
        %v5467 = vld [vmem:[#allocation2 + $0x53] sm:$0xff]
        %v5468 = vld [vmem:[#allocation2 + $0x5b] sm:$0xff]
        %v5469 = vld [vmem:[#allocation2 + $0x63] sm:$0xff]
        %v5470 = vld [vmem:[#allocation2 + $0x6b] sm:$0xff]
        %v5471 = vld [vmem:[#allocation2 + $0x73] sm:$0xff]
        %v5472 = vld [vmem:[#allocation2 + $0x7b] sm:$0xff]
        %v5473 = vld [vmem:[#allocation2 + $0x83] sm:$0xff]
        %v5474 = vld [vmem:[#allocation2 + $0x8b] sm:$0xff]
        %v5475 = vld [vmem:[#allocation2 + $0x93] sm:$0xff]
        %v5476 = vld [vmem:[#allocation2 + $0x9b] sm:$0xff]
        %v5477 = vld [vmem:[#allocation2 + $0xa3] sm:$0xff]
        %v5478 = vld [vmem:[#allocation2 + $0xab] sm:$0xff]
        %v5479 = vld [vmem:[#allocation2 + $0xb3] sm:$0xff]
        %v5480 = vld [vmem:[#allocation2 + $0xbb] sm:$0xff]
        %v5481 = vld [vmem:[#allocation2 + $0xc3] sm:$0xff]
        %v5482 = vld [vmem:[#allocation2 + $0xcb] sm:$0xff]
        %v5483 = vld [vmem:[#allocation2 + $0xd3] sm:$0xff]
        %v5484 = vld [vmem:[#allocation2 + $0xdb] sm:$0xff]
        %v5485 = vld [vmem:[#allocation2 + $0xe3] sm:$0xff]
        %v5486 = vld [vmem:[#allocation2 + $0xeb] sm:$0xff]
        %v5487 = vld [vmem:[#allocation2 + $0xf3] sm:$0xff]
        %v5488 = vld [vmem:[#allocation2 + $0xfb] sm:$0xff]
        %v5489 = vld [vmem:[#allocation2 + $0x103] sm:$0xff]
        %v5490 = vld [vmem:[#allocation2 + $0x10b] sm:$0xff]
        %v5491 = vld [vmem:[#allocation2 + $0x113] sm:$0xff]
        %v5492 = vld [vmem:[#allocation2 + $0x11b] sm:$0xff]
        %v5493 = vld [vmem:[#allocation2 + $0x123] sm:$0xff]
        %v5494 = vld [vmem:[#allocation2 + $0x12b] sm:$0xff]
        %v5495 = vld [vmem:[#allocation2 + $0x133] sm:$0xff]
        %v5496 = vld [vmem:[#allocation2 + $0x13b] sm:$0xff]
        %v5497 = vld [vmem:[#allocation2 + $0x143] sm:$0xff]
        %v5498 = vld [vmem:[#allocation2 + $0x14b] sm:$0xff]
        %v5499 = vld [vmem:[#allocation2 + $0x153] sm:$0xff]
        %v5500 = vld [vmem:[#allocation2 + $0x15b] sm:$0xff]
        %s5501 = scalar_lea.vmem [#allocation8], 1024
        %v5502 = vld [vmem:[%s5501] sm:$0xff]
        %v5503 = vld [vmem:[%s5501 + $0x8] sm:$0xff]
        %v5504 = vld [vmem:[%s5501 + $0x10] sm:$0xff]
        %v5505 = vld [vmem:[%s5501 + $0x18] sm:$0xff]
        %v5506 = vld [vmem:[%s5501 + $0x20] sm:$0xff]
        %v5507 = vld [vmem:[%s5501 + $0x28] sm:$0xff]
        %v5508 = vld [vmem:[%s5501 + $0x30] sm:$0xff]
        %v5509 = vld [vmem:[%s5501 + $0x38] sm:$0xff]
        %v5510 = vld [vmem:[%s5501 + $0x40] sm:$0xff]
        %v5511 = vld [vmem:[%s5501 + $0x48] sm:$0xff]
        %v5512 = vld [vmem:[%s5501 + $0x50] sm:$0xff]
        %v5513 = vld [vmem:[%s5501 + $0x58] sm:$0xff]
        %v5514 = vld [vmem:[%s5501 + $0x60] sm:$0xff]
        %v5515 = vld [vmem:[%s5501 + $0x68] sm:$0xff]
        %v5516 = vld [vmem:[%s5501 + $0x70] sm:$0xff]
        %v5517 = vld [vmem:[%s5501 + $0x78] sm:$0xff]
        %5518 = vmatpush.msra.mxu0 %v5517
        %5519 = vmatpush.msra.mxu0 %v5516
        %5520 = vmatpush.msra.mxu0 %v5515
        %5521 = vmatpush.msra.mxu0 %v5514
        %5522 = vmatpush.msra.mxu0 %v5513
        %5523 = vmatpush.msra.mxu0 %v5512
        %5524 = vmatpush.msra.mxu0 %v5511
        %5525 = vmatpush.msra.mxu0 %v5510
        %5526 = vmatpush.msra.mxu0 %v5509
        %5527 = vmatpush.msra.mxu0 %v5508
        %5528 = vmatpush.msra.mxu0 %v5507
        %5529 = vmatpush.msra.mxu0 %v5506
        %5530 = vmatpush.msra.mxu0 %v5505
        %5531 = vmatpush.msra.mxu0 %v5504
        %5532 = vmatpush.msra.mxu0 %v5503
        %5533 = vmatpush.msra.mxu0 %v5502
        %5534 = vmatmul.f32.gmra.mxu0 %v5465
        %v5535 = vpop.f32.mrf.mxu0
        %v5536 = vadd.f32 0.0, %v5535
        %5537 = vmatmul.f32.gmra.mxu0 %v5466
        %v5538 = vpop.f32.mrf.mxu0
        %v5539 = vadd.f32 0.0, %v5538
        %5540 = vmatmul.f32.gmra.mxu0 %v5467
        %v5541 = vpop.f32.mrf.mxu0
        %v5542 = vadd.f32 0.0, %v5541
        %5543 = vmatmul.f32.gmra.mxu0 %v5468
        %v5544 = vpop.f32.mrf.mxu0
        %v5545 = vadd.f32 0.0, %v5544
        %5546 = vmatmul.f32.gmra.mxu0 %v5469
        %v5547 = vpop.f32.mrf.mxu0
        %v5548 = vadd.f32 0.0, %v5547
        %5549 = vmatmul.f32.gmra.mxu0 %v5470
        %v5550 = vpop.f32.mrf.mxu0
        %v5551 = vadd.f32 0.0, %v5550
        %5552 = vmatmul.f32.gmra.mxu0 %v5471
        %v5553 = vpop.f32.mrf.mxu0
        %v5554 = vadd.f32 0.0, %v5553
        %5555 = vmatmul.f32.gmra.mxu0 %v5472
        %v5556 = vpop.f32.mrf.mxu0
        %v5557 = vadd.f32 0.0, %v5556
        %5558 = vmatmul.f32.gmra.mxu0 %v5473
        %v5559 = vpop.f32.mrf.mxu0
        %v5560 = vadd.f32 0.0, %v5559
        %5561 = vmatmul.f32.gmra.mxu0 %v5474
        %v5562 = vpop.f32.mrf.mxu0
        %v5563 = vadd.f32 0.0, %v5562
        %5564 = vmatmul.f32.gmra.mxu0 %v5475
        %v5565 = vpop.f32.mrf.mxu0
        %v5566 = vadd.f32 0.0, %v5565
        %5567 = vmatmul.f32.gmra.mxu0 %v5476
        %v5568 = vpop.f32.mrf.mxu0
        %v5569 = vadd.f32 0.0, %v5568
        %5570 = vmatmul.f32.gmra.mxu0 %v5477
        %v5571 = vpop.f32.mrf.mxu0
        %v5572 = vadd.f32 0.0, %v5571
        %5573 = vmatmul.f32.gmra.mxu0 %v5478
        %v5574 = vpop.f32.mrf.mxu0
        %v5575 = vadd.f32 0.0, %v5574
        %5576 = vmatmul.f32.gmra.mxu0 %v5479
        %v5577 = vpop.f32.mrf.mxu0
        %v5578 = vadd.f32 0.0, %v5577
        %5579 = vmatmul.f32.gmra.mxu0 %v5480
        %v5580 = vpop.f32.mrf.mxu0
        %v5581 = vadd.f32 0.0, %v5580
        %5582 = vmatmul.f32.gmra.mxu0 %v5481
        %v5583 = vpop.f32.mrf.mxu0
        %v5584 = vadd.f32 0.0, %v5583
        %5585 = vmatmul.f32.gmra.mxu0 %v5482
        %v5586 = vpop.f32.mrf.mxu0
        %v5587 = vadd.f32 0.0, %v5586
        %5588 = vmatmul.f32.gmra.mxu0 %v5483
        %v5589 = vpop.f32.mrf.mxu0
        %v5590 = vadd.f32 0.0, %v5589
        %5591 = vmatmul.f32.gmra.mxu0 %v5484
        %v5592 = vpop.f32.mrf.mxu0
        %v5593 = vadd.f32 0.0, %v5592
        %5594 = vmatmul.f32.gmra.mxu0 %v5485
        %v5595 = vpop.f32.mrf.mxu0
        %v5596 = vadd.f32 0.0, %v5595
        %5597 = vmatmul.f32.gmra.mxu0 %v5486
        %v5598 = vpop.f32.mrf.mxu0
        %v5599 = vadd.f32 0.0, %v5598
        %5600 = vmatmul.f32.gmra.mxu0 %v5487
        %v5601 = vpop.f32.mrf.mxu0
        %v5602 = vadd.f32 0.0, %v5601
        %5603 = vmatmul.f32.gmra.mxu0 %v5488
        %v5604 = vpop.f32.mrf.mxu0
        %v5605 = vadd.f32 0.0, %v5604
        %5606 = vmatmul.f32.gmra.mxu0 %v5489
        %v5607 = vpop.f32.mrf.mxu0
        %v5608 = vadd.f32 0.0, %v5607
        %5609 = vmatmul.f32.gmra.mxu0 %v5490
        %v5610 = vpop.f32.mrf.mxu0
        %v5611 = vadd.f32 0.0, %v5610
        %5612 = vmatmul.f32.gmra.mxu0 %v5491
        %v5613 = vpop.f32.mrf.mxu0
        %v5614 = vadd.f32 0.0, %v5613
        %5615 = vmatmul.f32.gmra.mxu0 %v5492
        %v5616 = vpop.f32.mrf.mxu0
        %v5617 = vadd.f32 0.0, %v5616
        %5618 = vmatmul.f32.gmra.mxu0 %v5493
        %v5619 = vpop.f32.mrf.mxu0
        %v5620 = vadd.f32 0.0, %v5619
        %5621 = vmatmul.f32.gmra.mxu0 %v5494
        %v5622 = vpop.f32.mrf.mxu0
        %v5623 = vadd.f32 0.0, %v5622
        %5624 = vmatmul.f32.gmra.mxu0 %v5495
        %v5625 = vpop.f32.mrf.mxu0
        %v5626 = vadd.f32 0.0, %v5625
        %5627 = vmatmul.f32.gmra.mxu0 %v5496
        %v5628 = vpop.f32.mrf.mxu0
        %v5629 = vadd.f32 0.0, %v5628
        %5630 = vmatmul.f32.gmra.mxu0 %v5497
        %v5631 = vpop.f32.mrf.mxu0
        %v5632 = vadd.f32 0.0, %v5631
        %5633 = vmatmul.f32.gmra.mxu0 %v5498
        %v5634 = vpop.f32.mrf.mxu0
        %v5635 = vadd.f32 0.0, %v5634
        %5636 = vmatmul.f32.gmra.mxu0 %v5499
        %v5637 = vpop.f32.mrf.mxu0
        %v5638 = vadd.f32 0.0, %v5637
        %5639 = vmatmul.f32.gmra.mxu0 %v5500
        %v5640 = vpop.f32.mrf.mxu0
        %v5641 = vadd.f32 0.0, %v5640
        %5642 = vdwg.mxu0
        %v5643 = vadd.f32 %v5429, %v5536
        %v5644 = vadd.f32 %v5430, %v5539
        %v5645 = vadd.f32 %v5431, %v5542
        %v5646 = vadd.f32 %v5432, %v5545
        %v5647 = vadd.f32 %v5433, %v5548
        %v5648 = vadd.f32 %v5434, %v5551
        %v5649 = vadd.f32 %v5435, %v5554
        %v5650 = vadd.f32 %v5436, %v5557
        %v5651 = vadd.f32 %v5437, %v5560
        %v5652 = vadd.f32 %v5438, %v5563
        %v5653 = vadd.f32 %v5439, %v5566
        %v5654 = vadd.f32 %v5440, %v5569
        %v5655 = vadd.f32 %v5441, %v5572
        %v5656 = vadd.f32 %v5442, %v5575
        %v5657 = vadd.f32 %v5443, %v5578
        %v5658 = vadd.f32 %v5444, %v5581
        %v5659 = vadd.f32 %v5445, %v5584
        %v5660 = vadd.f32 %v5446, %v5587
        %v5661 = vadd.f32 %v5447, %v5590
        %v5662 = vadd.f32 %v5448, %v5593
        %v5663 = vadd.f32 %v5449, %v5596
        %v5664 = vadd.f32 %v5450, %v5599
        %v5665 = vadd.f32 %v5451, %v5602
        %v5666 = vadd.f32 %v5452, %v5605
        %v5667 = vadd.f32 %v5453, %v5608
        %v5668 = vadd.f32 %v5454, %v5611
        %v5669 = vadd.f32 %v5455, %v5614
        %v5670 = vadd.f32 %v5456, %v5617
        %v5671 = vadd.f32 %v5457, %v5620
        %v5672 = vadd.f32 %v5458, %v5623
        %v5673 = vadd.f32 %v5459, %v5626
        %v5674 = vadd.f32 %v5460, %v5629
        %v5675 = vadd.f32 %v5461, %v5632
        %v5676 = vadd.f32 %v5462, %v5635
        %v5677 = vadd.f32 %v5463, %v5638
        %v5678 = vadd.f32 %v5464, %v5641
        %v5679 = vld [vmem:[%s5] sm:$0x1]
        %v5681 = vperm.slane %v5679, 0
        %v5683 = vmul.f32 %v5643, %v5681
        %v5684 = vmul.f32 %v5644, %v5681
        %v5685 = vmul.f32 %v5645, %v5681
        %v5686 = vmul.f32 %v5646, %v5681
        %v5687 = vmul.f32 %v5647, %v5681
        %v5688 = vmul.f32 %v5648, %v5681
        %v5689 = vmul.f32 %v5649, %v5681
        %v5690 = vmul.f32 %v5650, %v5681
        %v5691 = vmul.f32 %v5651, %v5681
        %v5692 = vmul.f32 %v5652, %v5681
        %v5693 = vmul.f32 %v5653, %v5681
        %v5694 = vmul.f32 %v5654, %v5681
        %v5695 = vmul.f32 %v5655, %v5681
        %v5696 = vmul.f32 %v5656, %v5681
        %v5697 = vmul.f32 %v5657, %v5681
        %v5698 = vmul.f32 %v5658, %v5681
        %v5699 = vmul.f32 %v5659, %v5681
        %v5700 = vmul.f32 %v5660, %v5681
        %v5701 = vmul.f32 %v5661, %v5681
        %v5702 = vmul.f32 %v5662, %v5681
        %v5703 = vmul.f32 %v5663, %v5681
        %v5704 = vmul.f32 %v5664, %v5681
        %v5705 = vmul.f32 %v5665, %v5681
        %v5706 = vmul.f32 %v5666, %v5681
        %v5707 = vmul.f32 %v5667, %v5681
        %v5708 = vmul.f32 %v5668, %v5681
        %v5709 = vmul.f32 %v5669, %v5681
        %v5710 = vmul.f32 %v5670, %v5681
        %v5711 = vmul.f32 %v5671, %v5681
        %v5712 = vmul.f32 %v5672, %v5681
        %v5713 = vmul.f32 %v5673, %v5681
        %v5714 = vmul.f32 %v5674, %v5681
        %v5715 = vmul.f32 %v5675, %v5681
        %v5716 = vmul.f32 %v5676, %v5681
        %v5717 = vmul.f32 %v5677, %v5681
        %v5718 = vmul.f32 %v5678, %v5681
        %v5719 = vld [vmem:[%s6] sm:$0x1]
        %v5721 = vperm.slane %v5719, 0
        %v5723 = vadd.f32 %v5683, %v5721
        %v5724 = vadd.f32 %v5684, %v5721
        %v5725 = vadd.f32 %v5685, %v5721
        %v5726 = vadd.f32 %v5686, %v5721
        %v5727 = vadd.f32 %v5687, %v5721
        %v5728 = vadd.f32 %v5688, %v5721
        %v5729 = vadd.f32 %v5689, %v5721
        %v5730 = vadd.f32 %v5690, %v5721
        %v5731 = vadd.f32 %v5691, %v5721
        %v5732 = vadd.f32 %v5692, %v5721
        %v5733 = vadd.f32 %v5693, %v5721
        %v5734 = vadd.f32 %v5694, %v5721
        %v5735 = vadd.f32 %v5695, %v5721
        %v5736 = vadd.f32 %v5696, %v5721
        %v5737 = vadd.f32 %v5697, %v5721
        %v5738 = vadd.f32 %v5698, %v5721
        %v5739 = vadd.f32 %v5699, %v5721
        %v5740 = vadd.f32 %v5700, %v5721
        %v5741 = vadd.f32 %v5701, %v5721
        %v5742 = vadd.f32 %v5702, %v5721
        %v5743 = vadd.f32 %v5703, %v5721
        %v5744 = vadd.f32 %v5704, %v5721
        %v5745 = vadd.f32 %v5705, %v5721
        %v5746 = vadd.f32 %v5706, %v5721
        %v5747 = vadd.f32 %v5707, %v5721
        %v5748 = vadd.f32 %v5708, %v5721
        %v5749 = vadd.f32 %v5709, %v5721
        %v5750 = vadd.f32 %v5710, %v5721
        %v5751 = vadd.f32 %v5711, %v5721
        %v5752 = vadd.f32 %v5712, %v5721
        %v5753 = vadd.f32 %v5713, %v5721
        %v5754 = vadd.f32 %v5714, %v5721
        %v5755 = vadd.f32 %v5715, %v5721
        %v5756 = vadd.f32 %v5716, %v5721
        %v5757 = vadd.f32 %v5717, %v5721
        %v5758 = vadd.f32 %v5718, %v5721
        %v5759 = vld [vmem:[%s290 + $0x30] sm:$0xff]
        %v5760 = vld [vmem:[%s290 + $0x38] sm:$0xff]
        %v5761 = vld [vmem:[%s290 + $0x40] sm:$0xff]
        %v5762 = vld [vmem:[%s290 + $0x48] sm:$0xff]
        %v5763 = vld [vmem:[%s290 + $0x50] sm:$0xff]
        %v5764 = vld [vmem:[%s290 + $0x58] sm:$0xff]
        %v5765 = vld [vmem:[%s290 + $0x60] sm:$0xff]
        %v5766 = vld [vmem:[%s290 + $0x68] sm:$0xff]
        %v5767 = vld [vmem:[%s290 + $0x70] sm:$0xff]
        %v5768 = vld [vmem:[%s290 + $0x78] sm:$0xff]
        %v5769 = vld [vmem:[%s290 + $0x80] sm:$0xff]
        %v5770 = vld [vmem:[%s290 + $0x88] sm:$0xff]
        %v5771 = vld [vmem:[%s290 + $0x90] sm:$0xff]
        %v5772 = vld [vmem:[%s290 + $0x98] sm:$0xff]
        %v5773 = vld [vmem:[%s290 + $0xa0] sm:$0xff]
        %v5774 = vld [vmem:[%s290 + $0xa8] sm:$0xff]
        %v5775 = vld [vmem:[%s290 + $0xb0] sm:$0xff]
        %v5776 = vld [vmem:[%s290 + $0xb8] sm:$0xff]
        %v5777 = vld [vmem:[%s290 + $0xc0] sm:$0xff]
        %v5778 = vld [vmem:[%s290 + $0xc8] sm:$0xff]
        %v5779 = vld [vmem:[%s290 + $0xd0] sm:$0xff]
        %v5780 = vld [vmem:[%s290 + $0xd8] sm:$0xff]
        %v5781 = vld [vmem:[%s290 + $0xe0] sm:$0xff]
        %v5782 = vld [vmem:[%s290 + $0xe8] sm:$0xff]
        %v5783 = vld [vmem:[%s290 + $0xf0] sm:$0xff]
        %v5784 = vld [vmem:[%s290 + $0xf8] sm:$0xff]
        %v5785 = vld [vmem:[%s290 + $0x100] sm:$0xff]
        %v5786 = vld [vmem:[%s290 + $0x108] sm:$0xff]
        %v5787 = vld [vmem:[%s290 + $0x110] sm:$0xff]
        %v5788 = vld [vmem:[%s290 + $0x118] sm:$0xff]
        %v5789 = vld [vmem:[%s290 + $0x120] sm:$0xff]
        %v5790 = vld [vmem:[%s290 + $0x128] sm:$0xff]
        %v5791 = vld [vmem:[%s290 + $0x130] sm:$0xff]
        %v5792 = vld [vmem:[%s290 + $0x138] sm:$0xff]
        %v5793 = vld [vmem:[%s290 + $0x140] sm:$0xff]
        %v5794 = vld [vmem:[%s290 + $0x148] sm:$0xff]
        %v5795 = vadd.f32 %v5723, %v5759
        %v5796 = vadd.f32 %v5724, %v5760
        %v5797 = vadd.f32 %v5725, %v5761
        %v5798 = vadd.f32 %v5726, %v5762
        %v5799 = vadd.f32 %v5727, %v5763
        %v5800 = vadd.f32 %v5728, %v5764
        %v5801 = vadd.f32 %v5729, %v5765
        %v5802 = vadd.f32 %v5730, %v5766
        %v5803 = vadd.f32 %v5731, %v5767
        %v5804 = vadd.f32 %v5732, %v5768
        %v5805 = vadd.f32 %v5733, %v5769
        %v5806 = vadd.f32 %v5734, %v5770
        %v5807 = vadd.f32 %v5735, %v5771
        %v5808 = vadd.f32 %v5736, %v5772
        %v5809 = vadd.f32 %v5737, %v5773
        %v5810 = vadd.f32 %v5738, %v5774
        %v5811 = vadd.f32 %v5739, %v5775
        %v5812 = vadd.f32 %v5740, %v5776
        %v5813 = vadd.f32 %v5741, %v5777
        %v5814 = vadd.f32 %v5742, %v5778
        %v5815 = vadd.f32 %v5743, %v5779
        %v5816 = vadd.f32 %v5744, %v5780
        %v5817 = vadd.f32 %v5745, %v5781
        %v5818 = vadd.f32 %v5746, %v5782
        %v5819 = vadd.f32 %v5747, %v5783
        %v5820 = vadd.f32 %v5748, %v5784
        %v5821 = vadd.f32 %v5749, %v5785
        %v5822 = vadd.f32 %v5750, %v5786
        %v5823 = vadd.f32 %v5751, %v5787
        %v5824 = vadd.f32 %v5752, %v5788
        %v5825 = vadd.f32 %v5753, %v5789
        %v5826 = vadd.f32 %v5754, %v5790
        %v5827 = vadd.f32 %v5755, %v5791
        %v5828 = vadd.f32 %v5756, %v5792
        %v5829 = vadd.f32 %v5757, %v5793
        %v5830 = vadd.f32 %v5758, %v5794
        %v5831 = vmax.f32 %v5795, 0.0
        %v5832 = vmax.f32 %v5796, 0.0
        %v5833 = vmax.f32 %v5797, 0.0
        %v5834 = vmax.f32 %v5798, 0.0
        %v5835 = vmax.f32 %v5799, 0.0
        %v5836 = vmax.f32 %v5800, 0.0
        %v5837 = vmax.f32 %v5801, 0.0
        %v5838 = vmax.f32 %v5802, 0.0
        %v5839 = vmax.f32 %v5803, 0.0
        %v5840 = vmax.f32 %v5804, 0.0
        %v5841 = vmax.f32 %v5805, 0.0
        %v5842 = vmax.f32 %v5806, 0.0
        %v5843 = vmax.f32 %v5807, 0.0
        %v5844 = vmax.f32 %v5808, 0.0
        %v5845 = vmax.f32 %v5809, 0.0
        %v5846 = vmax.f32 %v5810, 0.0
        %v5847 = vmax.f32 %v5811, 0.0
        %v5848 = vmax.f32 %v5812, 0.0
        %v5849 = vmax.f32 %v5813, 0.0
        %v5850 = vmax.f32 %v5814, 0.0
        %v5851 = vmax.f32 %v5815, 0.0
        %v5852 = vmax.f32 %v5816, 0.0
        %v5853 = vmax.f32 %v5817, 0.0
        %v5854 = vmax.f32 %v5818, 0.0
        %v5855 = vmax.f32 %v5819, 0.0
        %v5856 = vmax.f32 %v5820, 0.0
        %v5857 = vmax.f32 %v5821, 0.0
        %v5858 = vmax.f32 %v5822, 0.0
        %v5859 = vmax.f32 %v5823, 0.0
        %v5860 = vmax.f32 %v5824, 0.0
        %v5861 = vmax.f32 %v5825, 0.0
        %v5862 = vmax.f32 %v5826, 0.0
        %v5863 = vmax.f32 %v5827, 0.0
        %v5864 = vmax.f32 %v5828, 0.0
        %v5865 = vmax.f32 %v5829, 0.0
        %v5866 = vmax.f32 %v5830, 0.0
        %5867 = vst [vmem:[%s331] sm:$0xff] %v5831
        %5868 = vst [vmem:[%s331 + $0x8] sm:$0xff] %v5832
        %5869 = vst [vmem:[%s331 + $0x10] sm:$0xff] %v5833
        %5870 = vst [vmem:[%s331 + $0x18] sm:$0xff] %v5834
        %5871 = vst [vmem:[%s331 + $0x20] sm:$0xff] %v5835
        %5872 = vst [vmem:[%s331 + $0x28] sm:$0xff] %v5836
        %5873 = vst [vmem:[%s331 + $0x30] sm:$0xff] %v5837
        %5874 = vst [vmem:[%s331 + $0x38] sm:$0xff] %v5838
        %5875 = vst [vmem:[%s331 + $0x40] sm:$0xff] %v5839
        %5876 = vst [vmem:[%s331 + $0x48] sm:$0xff] %v5840
        %5877 = vst [vmem:[%s331 + $0x50] sm:$0xff] %v5841
        %5878 = vst [vmem:[%s331 + $0x58] sm:$0xff] %v5842
        %5879 = vst [vmem:[%s331 + $0x60] sm:$0xff] %v5843
        %5880 = vst [vmem:[%s331 + $0x68] sm:$0xff] %v5844
        %5881 = vst [vmem:[%s331 + $0x70] sm:$0xff] %v5845
        %5882 = vst [vmem:[%s331 + $0x78] sm:$0xff] %v5846
        %5883 = vst [vmem:[%s331 + $0x80] sm:$0xff] %v5847
        %5884 = vst [vmem:[%s331 + $0x88] sm:$0xff] %v5848
        %5885 = vst [vmem:[%s331 + $0x90] sm:$0xff] %v5849
        %5886 = vst [vmem:[%s331 + $0x98] sm:$0xff] %v5850
        %5887 = vst [vmem:[%s331 + $0xa0] sm:$0xff] %v5851
        %5888 = vst [vmem:[%s331 + $0xa8] sm:$0xff] %v5852
        %5889 = vst [vmem:[%s331 + $0xb0] sm:$0xff] %v5853
        %5890 = vst [vmem:[%s331 + $0xb8] sm:$0xff] %v5854
        %5891 = vst [vmem:[%s331 + $0xc0] sm:$0xff] %v5855
        %5892 = vst [vmem:[%s331 + $0xc8] sm:$0xff] %v5856
        %5893 = vst [vmem:[%s331 + $0xd0] sm:$0xff] %v5857
        %5894 = vst [vmem:[%s331 + $0xd8] sm:$0xff] %v5858
        %5895 = vst [vmem:[%s331 + $0xe0] sm:$0xff] %v5859
        %5896 = vst [vmem:[%s331 + $0xe8] sm:$0xff] %v5860
        %5897 = vst [vmem:[%s331 + $0xf0] sm:$0xff] %v5861
        %5898 = vst [vmem:[%s331 + $0xf8] sm:$0xff] %v5862
        %5899 = vst [vmem:[%s331 + $0x100] sm:$0xff] %v5863
        %5900 = vst [vmem:[%s331 + $0x108] sm:$0xff] %v5864
        %5901 = vst [vmem:[%s331 + $0x110] sm:$0xff] %v5865
        %5902 = vst [vmem:[%s331 + $0x118] sm:$0xff] %v5866
        %s5903 = sand.u32 %s185, 1
        %s5904 = scalar_lea.sflag [#allocation5], %s5903
        %s5905 = sand.u32 %s185, 1
        %s5906 = smul.addr %s5905, 288
        %s5907 = scalar_lea.vmem [#allocation9], %s5906
        // Predicated region
        $region61: #{tpu_custom_call.1} parent=47 // pred_check
          %p5908 = pneg %p195
        $region62: #{tpu_custom_call.1} parent=47 // pred_check_branch
          %5910 = sbr.rel (%p5908) target = $region64
        $region63: #{tpu_custom_call.1} parent=47 // pred_region
          %5912 = vsyncadd %s5904, 0
          %s5913 = smul.addr %s25, 36
          %s5914 = smul.addr %s5913, 8
          %s5915 = scalar_lea.hbm %s7, %s5914
          %s5916 = sshll.u32 %s5907, 4
          %s5917 = int_to_ptr.vmem [resolvable:$true] %s5916
          %s5918 = sshll.u32 %s5915, 4
          %s5919 = int_to_ptr.hbm [resolvable:$true] %s5918
          %5924 = dma.vmem_to_hbm [thread:$0]  %s5917, 4608, %s5919, %s5904, 128, 128, 8
        $region64: #{tpu_custom_call.1} parent=47 // pred_fallthru
          _
      $region48: #{tpu_custom_call.1} parent=5 // pred_fallthru
        _
      %p5925 = scmp.le.s32.totalorder 2, %s20
      // Predicated region
      $region65: #{tpu_custom_call.1} parent=5 // pred_check
        %p5926 = pneg %p5925
      $region66: #{tpu_custom_call.1} parent=5 // pred_check_branch
        %5928 = sbr.rel (%p5926) target = $region68
      $region67: #{tpu_custom_call.1} parent=5 // pred_region
        %s5929 = ssub.s32 %s20, 2
        // Predicated region
        $region69: #{tpu_custom_call.1} parent=67 // pred_check
          %p5930 = pneg %p201
        $region70: #{tpu_custom_call.1} parent=67 // pred_check_branch
          %5932 = sbr.rel (%p5930) target = $region72
        $region71: #{tpu_custom_call.1} parent=67 // pred_region
          %s5933 = sand.u32 %s186, 1
          %s5934 = scalar_lea.sflag [#allocation5], %s5933
          %s5935 = sand.u32 %s186, 1
          %s5936 = smul.addr %s5935, 288
          %s5937 = scalar_lea.vmem [#allocation9], %s5936
          %5939 = dma.done %s5934, 4608
        $region72: #{tpu_custom_call.1} parent=67 // pred_fallthru
          _
      $region68: #{tpu_custom_call.1} parent=5 // pred_fallthru
        _
    $region6: #{tpu_custom_call.1} parent=1 // loop_footer
      %s24 = sadd.s32 1, %s20
    $region7: #{tpu_custom_call.1} parent=1 // loop_footer_branch
      %19 = sbr.rel target = $region3
    $region8: #{tpu_custom_call.1} parent=1 // loop_exit
      _
    %5940 = vsyncpa [#allocation4], 1
    %s5941 = scalar_lea.sflag [#allocation4], 1
    %5942 = vsyncpa %s5941, 1
    %5943 = vsyncpa [#allocation7], 1
    %5944 = vsyncpa [#allocation5], 1
    %s5945 = scalar_lea.sflag [#allocation5], 1
    %5946 = vsyncpa %s5945, 1

</llo_original>
